<compile_context>
chip_gen: v7x
topology: tpu7x:2x2x1
jax: 0.10.0
libtpu: 0.0.40
codegen_flags: <defaults>
</compile_context>

<pallas_src>
import functools

import jax
import jax.numpy as jnp
import numpy as np
from jax.experimental import pallas as pl
from jax.experimental.pallas import tpu as pltpu


def _round_up(x, m):
    return ((x + m - 1) // m) * m


def _repvgg_kernel(x_hbm, w_ref, b_ref, o_ref, xbuf, sem, *,
                   K, TH, WP, RH, cin_p, cout_p, n_t):
    """One (batch, H-strip) tile per grid step.

    x_hbm : (N, HP, WP, cin_p)    bf16 zero-padded NHWC input, left in HBM (pl.ANY)
    w_ref : (K*K, cin_p, cout_p)  bf16 fully re-parameterized KxK weight (VMEM)
    b_ref : (1, cout_p)           f32 combined bias (VMEM)
    o_ref : (1, TH, WP, cout_p)   output strip (columns >= Wo discarded in wrapper)
    xbuf  : (2, RH, WP, cin_p)    double-buffered halo strip (VMEM scratch)
    sem   : (2,)                  DMA completion semaphores, one per slot
    """
    n = pl.program_id(0)
    t = pl.program_id(1)
    slot = t % 2
    M = TH * WP

    # ---- manual halo DMA: rows [t*TH, t*TH+RH) of image n -------------------------
    # Prime the pipeline at the first strip of each image; every other strip's copy was
    # already issued as a prefetch by the previous strip (t stays on one core because
    # the strip axis is "arbitrary").
    @pl.when(t == 0)
    def _():
        pltpu.make_async_copy(x_hbm.at[n, pl.ds(0, RH), :, :],
                              xbuf.at[0], sem.at[0]).start()

    if n_t > 1:
        @pl.when(t + 1 < n_t)
        def _():
            pltpu.make_async_copy(x_hbm.at[n, pl.ds((t + 1) * TH, RH), :, :],
                                  xbuf.at[1 - slot], sem.at[1 - slot]).start()

    pltpu.make_async_copy(x_hbm.at[n, pl.ds(t * TH, RH), :, :],
                          xbuf.at[slot], sem.at[slot]).wait()

    # ---- K row-shifted views of the strip, flattened to (M, cin_p) for the MXU -----
    # WP is a multiple of 16 so the (TH, WP) -> M merge is layout-preserving for bf16.
    xs = xbuf[slot]                                        # (RH, WP, cin_p)
    flats = [xs[kh:kh + TH].reshape(M, cin_p) for kh in range(K)]

    # ---- Horner-style kw scan: one fp32 accumulator, K-1 XLU rolls ------------------
    # acc[p] ends up = sum_kw part_kw[p + kw]; wrapped / cross-row garbage lands only
    # in output columns >= Wo (discarded in the wrapper).
    acc = jnp.zeros((M, cout_p), jnp.float32)
    for kw in range(K - 1, -1, -1):
        if kw != K - 1:
            acc = pltpu.roll(acc, shift=M - 1, axis=0)     # acc[p] <- acc[p+1]
        for kh in range(K):
            acc = acc + jnp.dot(flats[kh], w_ref[kh * K + kw],
                                preferred_element_type=jnp.float32)

    acc = acc + b_ref[...]
    o_ref[0] = acc.reshape(TH, WP, cout_p).astype(o_ref.dtype)


def _fold_bn(gamma, beta, mean, var, eps=1e-5):
    scale = gamma / jnp.sqrt(var + eps)
    bias = beta - mean * scale
    return scale, bias


def repvgg_block_forward(x_nchw, params, *, kernel_size, stride, padding,
                         eps=1e-5, out_dtype=None):
    """Pallas forward of RepVGGBlock. x_nchw: (N, Cin, H, W) float32 (torch NCHW)."""
    assert stride == 1, "TODO(synk): stride > 1 output indexing not implemented"
    N, Cin, H, W = x_nchw.shape
    K, pad = kernel_size, padding
    Cout = params["w_dense"].shape[0]
    assert K % 2 == 1, "center-tap re-parameterization assumes odd kernel size"
    assert pad >= K // 2, "padding_11 = padding - kernel_size//2 must be >= 0"
    has_identity = (Cin == Cout) and (stride == 1)
    if has_identity:
        assert pad == K // 2, "identity branch requires output spatial == input spatial"
    out_dtype = x_nchw.dtype if out_dtype is None else out_dtype

    # ---- fold BN into conv weights, then re-parameterize 1x1 + identity into KxK ----
    s_d, b_d = _fold_bn(*params["bn_dense"], eps=eps)
    s_1, b_1 = _fold_bn(*params["bn_1x1"], eps=eps)
    # torch conv weight (Cout, Cin, K, K) -> (K, K, Cin, Cout), BN-scaled
    w3 = jnp.transpose(params["w_dense"] * s_d[:, None, None, None], (2, 3, 1, 0))
    w1 = jnp.transpose(params["w_1x1"] * s_1[:, None, None, None], (2, 3, 1, 0))[0, 0]
    c = K // 2
    w3 = w3.at[c, c].add(w1)                                 # fold 1x1 into center tap
    bias = b_d + b_1
    if has_identity:
        s_id, b_id = _fold_bn(*params["bn_identity"], eps=eps)
        w3 = w3.at[c, c].add(jnp.diag(s_id))                 # identity as diagonal add
        bias = bias + b_id

    # ---- lane-dense channel padding (multiples of 128) + bf16 cast ------------------
    # TODO(synk): small-Cin layers (e.g. a 3-channel stem) would be better served by an
    # im2col layout (contraction = K*K*Cin padded to 128) than by padding Cin to 128.
    Cin_p = _round_up(Cin, 128)
    Cout_p = _round_up(Cout, 128)
    w3p = jnp.zeros((K, K, Cin_p, Cout_p), jnp.float32).at[:, :, :Cin, :Cout].set(w3)
    w_flat = w3p.reshape(K * K, Cin_p, Cout_p).astype(jnp.bfloat16)
    bias_p = jnp.zeros((1, Cout_p), jnp.float32).at[0, :Cout].set(bias)

    # ---- spatial geometry: strips sized so the flattened matmul M dim is ~2048 ------
    Ho = H + 2 * pad - K + 1
    Wo = W + 2 * pad - K + 1
    WP = _round_up(W + 2 * pad, 16)          # bf16 sublane-tile aligned padded width
    # roll-wraparound safety: garbage produced by the kw rolls must land in cols >= Wo
    assert WP >= W + 2 * pad and WP - (K - 1) >= Wo
    target_m = 2048                          # amortize ~0.35us/step grid overhead
    TH = max(1, min(Ho, max(1, target_m // WP)))
    n_t = pl.cdiv(Ho, TH)
    Ho_p = n_t * TH
    HP = Ho_p + K - 1
    RH = TH + K - 1                          # halo strip height
    M = TH * WP

    # ---- NCHW -> NHWC, pad spatial + channels, cast bf16 ----------------------------
    # TODO(synk): this host/XLA pass is an extra HBM round trip; an NHWC-bf16-native
    # network (plus in-kernel edge masking) would eliminate it.
    x = jnp.transpose(x_nchw, (0, 2, 3, 1))
    x = jnp.pad(x, ((0, 0),
                    (pad, HP - pad - H),
                    (pad, WP - pad - W),
                    (0, Cin_p - Cin)))
    x = x.astype(jnp.bfloat16)

    kernel = functools.partial(_repvgg_kernel, K=K, TH=TH, WP=WP, RH=RH,
                               cin_p=Cin_p, cout_p=Cout_p, n_t=n_t)

    # ---- VMEM budget: halo buffers + weights + output blocks + in-kernel temporaries
    xbuf_bytes = 2 * RH * WP * Cin_p * 2
    w_bytes = 2 * K * K * Cin_p * Cout_p * 2      # conservatively assume double-buffer
    o_bytes = 2 * TH * WP * Cout_p * 4
    flats_bytes = K * M * Cin_p * 2
    acc_bytes = 2 * M * Cout_p * 4
    est = xbuf_bytes + w_bytes + o_bytes + flats_bytes + acc_bytes + (4 << 20)
    try:
        # Generation-aware cap with ~20% headroom: ~51 MiB on v7x, ~102 MiB on v5e/v6e.
        cap = int(pltpu.get_tpu_info().vmem_capacity_bytes * 0.8)
    except Exception:
        cap = 48 << 20                            # conservative: safe on v7x
    vmem_limit = int(min(cap, max(est, 32 << 20)))

    out_shape = jax.ShapeDtypeStruct((N, Ho_p, WP, Cout_p), out_dtype)
    scratch = [pltpu.VMEM((2, RH, WP, Cin_p), jnp.bfloat16),
               pltpu.SemaphoreType.DMA((2,))]
    out_spec = pl.BlockSpec((1, TH, WP, Cout_p), lambda n, t: (n, t, 0, 0))
    cparams = pltpu.CompilerParams(
        # Strip axis must stay "arbitrary": the cross-step halo-DMA handoff assumes a
        # given image's strips run sequentially on one core; batch is the sharded axis.
        dimension_semantics=("parallel", "arbitrary"),
        vmem_limit_bytes=vmem_limit)

    def build(weight_mode):
        w_kwargs = {} if weight_mode is None else {"pipeline_mode": weight_mode}
        in_specs = [
            pl.BlockSpec(memory_space=pl.ANY),                     # raw HBM input
            pl.BlockSpec((K * K, Cin_p, Cout_p), lambda n, t: (0, 0, 0), **w_kwargs),
            pl.BlockSpec((1, Cout_p), lambda n, t: (0, 0)),
        ]
        return pl.pallas_call(
            kernel,
            out_shape=out_shape,
            grid=(N, n_t),
            in_specs=in_specs,
            out_specs=out_spec,
            scratch_shapes=scratch,
            compiler_params=cparams)

    try:
        # Weight block index never changes -> single-buffer it (VMEM saving, no perf cost).
        out = build(pl.Buffered(1))(x, w_flat, bias_p)
    except Exception:
        # Fallback for JAX builds that reject buffer_count=1 on a top-level BlockSpec.
        out = build(None)(x, w_flat, bias_p)

    out = out[:, :Ho, :Wo, :Cout]                # drop padded rows / cols / channels
    # TODO(synk): an NHWC/bf16 output would save this transpose HBM round trip if the
    # consumer accepted it; NCHW fp32 is kept to match the PyTorch module interface.
    return jnp.transpose(out, (0, 3, 1, 2))


def _reference(x_nchw, params, *, kernel_size, stride, padding, eps=1e-5):
    """Pure-JAX fp32 reference mirroring the PyTorch forward (eval-mode BN)."""
    K, pad = kernel_size, padding
    Cin = x_nchw.shape[1]
    Cout = params["w_dense"].shape[0]
    s_d, b_d = _fold_bn(*params["bn_dense"], eps=eps)
    s_1, b_1 = _fold_bn(*params["bn_1x1"], eps=eps)
    w3 = params["w_dense"] * s_d[:, None, None, None]
    w1 = params["w_1x1"] * s_1[:, None, None, None]
    dn = jax.lax.conv_general_dilated(
        x_nchw, w3, (stride, stride), [(pad, pad), (pad, pad)],
        dimension_numbers=("NCHW", "OIHW", "NCHW"))
    p11 = pad - K // 2
    one = jax.lax.conv_general_dilated(
        x_nchw, w1, (stride, stride), [(p11, p11), (p11, p11)],
        dimension_numbers=("NCHW", "OIHW", "NCHW"))
    out = dn + b_d[None, :, None, None] + one + b_1[None, :, None, None]
    if Cin == Cout and stride == 1:
        s_id, b_id = _fold_bn(*params["bn_identity"], eps=eps)
        out = out + x_nchw * s_id[None, :, None, None] + b_id[None, :, None, None]
    return out


if __name__ == "__main__":
    # Small config consistent with the module: in=out=4, k=3, stride=1, pad=1
    N, Cin, Cout, H, W = 2, 4, 4, 16, 16
    K, stride, pad = 3, 1, 1
    gamma_init = 0.01

    key = jax.random.PRNGKey(0)
    kx, kd, k1 = jax.random.split(key, 3)
    x = jax.random.normal(kx, (N, Cin, H, W), dtype=jnp.float32)

    # kaiming_normal_(mode='fan_out', nonlinearity='relu'): std = sqrt(2 / fan_out)
    fan_out_d = Cout * K * K
    fan_out_1 = Cout * 1 * 1
    w_dense = jax.random.normal(kd, (Cout, Cin, K, K), jnp.float32) * np.sqrt(2.0 / fan_out_d)
    w_1x1 = jax.random.normal(k1, (Cout, Cin, 1, 1), jnp.float32) * np.sqrt(2.0 / fan_out_1)

    def bn_params(c):
        return (jnp.full((c,), gamma_init, jnp.float32),   # gamma (weight)
                jnp.full((c,), gamma_init, jnp.float32),   # beta  (bias)
                jnp.zeros((c,), jnp.float32),               # running_mean
                jnp.ones((c,), jnp.float32))                # running_var

    params = {
        "w_dense": w_dense,
        "w_1x1": w_1x1,
        "bn_dense": bn_params(Cout),
        "bn_1x1": bn_params(Cout),
        "bn_identity": bn_params(Cin),
    }

    out = repvgg_block_forward(x, params, kernel_size=K, stride=stride, padding=pad)
    out = jax.block_until_ready(out)

    ref = jax.block_until_ready(
        _reference(x, params, kernel_size=K, stride=stride, padding=pad))

    # bf16 inputs/weights with fp32 accumulation -> relaxed tolerance vs fp32 reference.
    np.testing.assert_allclose(np.asarray(out), np.asarray(ref), rtol=2e-2, atol=2e-3)
    print("KERNEL_OK")
</pallas_src>

<mosaic_0001>
module attributes {stable_mosaic.version = 11 : i64} {
  func.func @_repvgg_kernel(%arg0: i32, %arg1: i32, %arg2: memref<2x18x32x128xbf16, #tpu.memory_space<any>>, %arg3: memref<9x128x128xbf16, #tpu.memory_space<vmem>>, %arg4: memref<1x128xf32, #tpu.memory_space<vmem>>, %arg5: memref<1x16x32x128xf32, #tpu.memory_space<vmem>>, %arg6: memref<2x18x32x128xbf16, #tpu.memory_space<vmem>>, %arg7: memref<2x!tpu.dma_semaphore, #tpu.memory_space<semaphore_mem>>) attributes {dimension_semantics = [#tpu.dimension_semantics<parallel>, #tpu.dimension_semantics<arbitrary>], iteration_bounds = array<i64: 2, 1>, scalar_prefetch = 0 : i64, scratch_operands = 2 : i64, tpu.core_type = #tpu.core_type<tc>, window_params = [{}, {pipeline_mode = #tpu.pipeline_mode<synchronous>, transform_indices = @transform_1, window_bounds = array<i64: 9, 128, 128>}, {pipeline_mode = #tpu.pipeline_mode<synchronous>, transform_indices = @transform_2, window_bounds = array<i64: 1, 128>}, {transform_indices = @transform_3, window_bounds = array<i64: 1, 16, 32, 128>}]} {
    %c2_i32 = arith.constant 2 : i32
    %c0_i32 = arith.constant 0 : i32
    %0 = arith.cmpi eq, %c2_i32, %c0_i32 : i32
    %c1_i32 = arith.constant 1 : i32
    %1 = arith.select %0, %c1_i32, %c2_i32 : i32
    %2 = arith.remsi %arg1, %1 : i32
    %c0_i32_0 = arith.constant 0 : i32
    %3 = arith.cmpi ne, %2, %c0_i32_0 : i32
    %c0_i32_1 = arith.constant 0 : i32
    %4 = arith.cmpi slt, %2, %c0_i32_1 : i32
    %c0_i32_2 = arith.constant 0 : i32
    %5 = arith.cmpi slt, %1, %c0_i32_2 : i32
    %6 = arith.xori %4, %5 : i1
    %7 = arith.andi %6, %3 : i1
    %8 = arith.addi %2, %1 : i32
    %9 = arith.select %7, %8, %2 : i32
    %c0_i32_3 = arith.constant 0 : i32
    %10 = arith.cmpi eq, %arg1, %c0_i32_3 : i32
    %11 = arith.extui %10 : i1 to i32
    %c0_i32_4 = arith.constant 0 : i32
    %12 = arith.cmpi ne, %11, %c0_i32_4 : i32
    scf.if %12 {
      %c0_i32_47 = arith.constant 0 : i32
      %c0_i32_48 = arith.constant 0 : i32
      %c0_i32_49 = arith.constant 0 : i32
      %c0_i32_50 = arith.constant 0 : i32
      %c0_i32_51 = arith.constant 0 : i32
      %75 = tpu.memref_slice %arg2[%arg0, %c0_i32_49, %c0_i32_50, %c0_i32_51] : memref<2x18x32x128xbf16, #tpu.memory_space<any>> -> memref<1x18x32x128xbf16, #tpu.memory_space<any>>
      %76 = tpu.memref_squeeze %75 : memref<1x18x32x128xbf16, #tpu.memory_space<any>> -> memref<18x32x128xbf16, #tpu.memory_space<any>>
      %c0_i32_52 = arith.constant 0 : i32
      %c0_i32_53 = arith.constant 0 : i32
      %c0_i32_54 = arith.constant 0 : i32
      %77 = tpu.memref_slice %arg6[%c0_i32_47, %c0_i32_52, %c0_i32_53, %c0_i32_54] : memref<2x18x32x128xbf16, #tpu.memory_space<vmem>> -> memref<1x18x32x128xbf16, #tpu.memory_space<vmem>>
      %78 = tpu.memref_squeeze %77 : memref<1x18x32x128xbf16, #tpu.memory_space<vmem>> -> memref<18x32x128xbf16, #tpu.memory_space<vmem>>
      %79 = tpu.memref_slice %arg7[%c0_i32_48] : memref<2x!tpu.dma_semaphore, #tpu.memory_space<semaphore_mem>> -> memref<1x!tpu.dma_semaphore, #tpu.memory_space<semaphore_mem>>
      %80 = tpu.memref_squeeze %79 : memref<1x!tpu.dma_semaphore, #tpu.memory_space<semaphore_mem>> -> memref<!tpu.dma_semaphore, #tpu.memory_space<semaphore_mem>>
      tpu.enqueue_dma source(%76 : memref<18x32x128xbf16, #tpu.memory_space<any>>) target(%78 : memref<18x32x128xbf16, #tpu.memory_space<vmem>>) target_semaphore(%80 : memref<!tpu.dma_semaphore, #tpu.memory_space<semaphore_mem>>)
    } else {
    }
    %c16_i32 = arith.constant 16 : i32
    %13 = arith.muli %arg1, %c16_i32 : i32
    %c0_i32_5 = arith.constant 0 : i32
    %c0_i32_6 = arith.constant 0 : i32
    %14 = tpu.memref_slice %arg2[%arg0, %13, %c0_i32_5, %c0_i32_6] : memref<2x18x32x128xbf16, #tpu.memory_space<any>> -> memref<1x18x32x128xbf16, #tpu.memory_space<any>>
    %15 = tpu.memref_squeeze %14 : memref<1x18x32x128xbf16, #tpu.memory_space<any>> -> memref<18x32x128xbf16, #tpu.memory_space<any>>
    %c0_i32_7 = arith.constant 0 : i32
    %c0_i32_8 = arith.constant 0 : i32
    %c0_i32_9 = arith.constant 0 : i32
    %16 = tpu.memref_slice %arg6[%9, %c0_i32_7, %c0_i32_8, %c0_i32_9] : memref<2x18x32x128xbf16, #tpu.memory_space<vmem>> -> memref<1x18x32x128xbf16, #tpu.memory_space<vmem>>
    %17 = tpu.memref_squeeze %16 : memref<1x18x32x128xbf16, #tpu.memory_space<vmem>> -> memref<18x32x128xbf16, #tpu.memory_space<vmem>>
    %18 = tpu.memref_slice %arg7[%9] : memref<2x!tpu.dma_semaphore, #tpu.memory_space<semaphore_mem>> -> memref<1x!tpu.dma_semaphore, #tpu.memory_space<semaphore_mem>>
    %19 = tpu.memref_squeeze %18 : memref<1x!tpu.dma_semaphore, #tpu.memory_space<semaphore_mem>> -> memref<!tpu.dma_semaphore, #tpu.memory_space<semaphore_mem>>
    tpu.wait_dma2 semaphore(%19 : memref<!tpu.dma_semaphore, #tpu.memory_space<semaphore_mem>>) src(%15 : memref<18x32x128xbf16, #tpu.memory_space<any>>) dst(%17 : memref<18x32x128xbf16, #tpu.memory_space<vmem>>)
    %20 = arith.index_cast %9 : i32 to index
    %c0 = arith.constant 0 : index
    %c0_10 = arith.constant 0 : index
    %c0_11 = arith.constant 0 : index
    %21 = vector.load %arg6[%20, %c0, %c0_10, %c0_11] : memref<2x18x32x128xbf16, #tpu.memory_space<vmem>>, vector<1x18x32x128xbf16>
    %22 = vector.shape_cast %21 : vector<1x18x32x128xbf16> to vector<18x32x128xbf16>
    %23 = vector.extract_strided_slice %22 {offsets = [0, 0, 0], sizes = [16, 32, 128], strides = [1, 1, 1]} : vector<18x32x128xbf16> to vector<16x32x128xbf16>
    %24 = vector.shape_cast %23 : vector<16x32x128xbf16> to vector<512x128xbf16>
    %25 = vector.extract_strided_slice %22 {offsets = [1, 0, 0], sizes = [16, 32, 128], strides = [1, 1, 1]} : vector<18x32x128xbf16> to vector<16x32x128xbf16>
    %26 = vector.shape_cast %25 : vector<16x32x128xbf16> to vector<512x128xbf16>
    %27 = vector.extract_strided_slice %22 {offsets = [2, 0, 0], sizes = [16, 32, 128], strides = [1, 1, 1]} : vector<18x32x128xbf16> to vector<16x32x128xbf16>
    %28 = vector.shape_cast %27 : vector<16x32x128xbf16> to vector<512x128xbf16>
    %cst = arith.constant 0.000000e+00 : f32
    %29 = vector.broadcast %cst : f32 to vector<512x128xf32>
    %c2 = arith.constant 2 : index
    %c0_12 = arith.constant 0 : index
    %c0_13 = arith.constant 0 : index
    %30 = vector.load %arg3[%c2, %c0_12, %c0_13] : memref<9x128x128xbf16, #tpu.memory_space<vmem>>, vector<1x128x128xbf16>
    %31 = vector.shape_cast %30 : vector<1x128x128xbf16> to vector<128x128xbf16>
    %cst_14 = arith.constant dense<0.000000e+00> : vector<512x128xf32>
    %32 = tpu.matmul %24, %31, %cst_14 {dimension_numbers = #tpu.dot_dimension_numbers<[1], [0], [0], [1], [0, 0, 1, 1], [], []>} : vector<512x128xbf16>, vector<128x128xbf16>, vector<512x128xf32> -> vector<512x128xf32>
    %33 = arith.addf %29, %32 : vector<512x128xf32>
    %c5 = arith.constant 5 : index
    %c0_15 = arith.constant 0 : index
    %c0_16 = arith.constant 0 : index
    %34 = vector.load %arg3[%c5, %c0_15, %c0_16] : memref<9x128x128xbf16, #tpu.memory_space<vmem>>, vector<1x128x128xbf16>
    %35 = vector.shape_cast %34 : vector<1x128x128xbf16> to vector<128x128xbf16>
    %cst_17 = arith.constant dense<0.000000e+00> : vector<512x128xf32>
    %36 = tpu.matmul %26, %35, %cst_17 {dimension_numbers = #tpu.dot_dimension_numbers<[1], [0], [0], [1], [0, 0, 1, 1], [], []>} : vector<512x128xbf16>, vector<128x128xbf16>, vector<512x128xf32> -> vector<512x128xf32>
    %37 = arith.addf %33, %36 : vector<512x128xf32>
    %c8 = arith.constant 8 : index
    %c0_18 = arith.constant 0 : index
    %c0_19 = arith.constant 0 : index
    %38 = vector.load %arg3[%c8, %c0_18, %c0_19] : memref<9x128x128xbf16, #tpu.memory_space<vmem>>, vector<1x128x128xbf16>
    %39 = vector.shape_cast %38 : vector<1x128x128xbf16> to vector<128x128xbf16>
    %cst_20 = arith.constant dense<0.000000e+00> : vector<512x128xf32>
    %40 = tpu.matmul %28, %39, %cst_20 {dimension_numbers = #tpu.dot_dimension_numbers<[1], [0], [0], [1], [0, 0, 1, 1], [], []>} : vector<512x128xbf16>, vector<128x128xbf16>, vector<512x128xf32> -> vector<512x128xf32>
    %41 = arith.addf %37, %40 : vector<512x128xf32>
    %c511_i32 = arith.constant 511 : i32
    %42 = tpu.dynamic_rotate %41 by %c511_i32 dim 0 : vector<512x128xf32>, i32 -> vector<512x128xf32>
    %c1 = arith.constant 1 : index
    %c0_21 = arith.constant 0 : index
    %c0_22 = arith.constant 0 : index
    %43 = vector.load %arg3[%c1, %c0_21, %c0_22] : memref<9x128x128xbf16, #tpu.memory_space<vmem>>, vector<1x128x128xbf16>
    %44 = vector.shape_cast %43 : vector<1x128x128xbf16> to vector<128x128xbf16>
    %cst_23 = arith.constant dense<0.000000e+00> : vector<512x128xf32>
    %45 = tpu.matmul %24, %44, %cst_23 {dimension_numbers = #tpu.dot_dimension_numbers<[1], [0], [0], [1], [0, 0, 1, 1], [], []>} : vector<512x128xbf16>, vector<128x128xbf16>, vector<512x128xf32> -> vector<512x128xf32>
    %46 = arith.addf %42, %45 : vector<512x128xf32>
    %c4 = arith.constant 4 : index
    %c0_24 = arith.constant 0 : index
    %c0_25 = arith.constant 0 : index
    %47 = vector.load %arg3[%c4, %c0_24, %c0_25] : memref<9x128x128xbf16, #tpu.memory_space<vmem>>, vector<1x128x128xbf16>
    %48 = vector.shape_cast %47 : vector<1x128x128xbf16> to vector<128x128xbf16>
    %cst_26 = arith.constant dense<0.000000e+00> : vector<512x128xf32>
    %49 = tpu.matmul %26, %48, %cst_26 {dimension_numbers = #tpu.dot_dimension_numbers<[1], [0], [0], [1], [0, 0, 1, 1], [], []>} : vector<512x128xbf16>, vector<128x128xbf16>, vector<512x128xf32> -> vector<512x128xf32>
    %50 = arith.addf %46, %49 : vector<512x128xf32>
    %c7 = arith.constant 7 : index
    %c0_27 = arith.constant 0 : index
    %c0_28 = arith.constant 0 : index
    %51 = vector.load %arg3[%c7, %c0_27, %c0_28] : memref<9x128x128xbf16, #tpu.memory_space<vmem>>, vector<1x128x128xbf16>
    %52 = vector.shape_cast %51 : vector<1x128x128xbf16> to vector<128x128xbf16>
    %cst_29 = arith.constant dense<0.000000e+00> : vector<512x128xf32>
    %53 = tpu.matmul %28, %52, %cst_29 {dimension_numbers = #tpu.dot_dimension_numbers<[1], [0], [0], [1], [0, 0, 1, 1], [], []>} : vector<512x128xbf16>, vector<128x128xbf16>, vector<512x128xf32> -> vector<512x128xf32>
    %54 = arith.addf %50, %53 : vector<512x128xf32>
    %c511_i32_30 = arith.constant 511 : i32
    %55 = tpu.dynamic_rotate %54 by %c511_i32_30 dim 0 : vector<512x128xf32>, i32 -> vector<512x128xf32>
    %c0_31 = arith.constant 0 : index
    %c0_32 = arith.constant 0 : index
    %c0_33 = arith.constant 0 : index
    %56 = vector.load %arg3[%c0_31, %c0_32, %c0_33] : memref<9x128x128xbf16, #tpu.memory_space<vmem>>, vector<1x128x128xbf16>
    %57 = vector.shape_cast %56 : vector<1x128x128xbf16> to vector<128x128xbf16>
    %cst_34 = arith.constant dense<0.000000e+00> : vector<512x128xf32>
    %58 = tpu.matmul %24, %57, %cst_34 {dimension_numbers = #tpu.dot_dimension_numbers<[1], [0], [0], [1], [0, 0, 1, 1], [], []>} : vector<512x128xbf16>, vector<128x128xbf16>, vector<512x128xf32> -> vector<512x128xf32>
    %59 = arith.addf %55, %58 : vector<512x128xf32>
    %c3 = arith.constant 3 : index
    %c0_35 = arith.constant 0 : index
    %c0_36 = arith.constant 0 : index
    %60 = vector.load %arg3[%c3, %c0_35, %c0_36] : memref<9x128x128xbf16, #tpu.memory_space<vmem>>, vector<1x128x128xbf16>
    %61 = vector.shape_cast %60 : vector<1x128x128xbf16> to vector<128x128xbf16>
    %cst_37 = arith.constant dense<0.000000e+00> : vector<512x128xf32>
    %62 = tpu.matmul %26, %61, %cst_37 {dimension_numbers = #tpu.dot_dimension_numbers<[1], [0], [0], [1], [0, 0, 1, 1], [], []>} : vector<512x128xbf16>, vector<128x128xbf16>, vector<512x128xf32> -> vector<512x128xf32>
    %63 = arith.addf %59, %62 : vector<512x128xf32>
    %c6 = arith.constant 6 : index
    %c0_38 = arith.constant 0 : index
    %c0_39 = arith.constant 0 : index
    %64 = vector.load %arg3[%c6, %c0_38, %c0_39] : memref<9x128x128xbf16, #tpu.memory_space<vmem>>, vector<1x128x128xbf16>
    %65 = vector.shape_cast %64 : vector<1x128x128xbf16> to vector<128x128xbf16>
    %cst_40 = arith.constant dense<0.000000e+00> : vector<512x128xf32>
    %66 = tpu.matmul %28, %65, %cst_40 {dimension_numbers = #tpu.dot_dimension_numbers<[1], [0], [0], [1], [0, 0, 1, 1], [], []>} : vector<512x128xbf16>, vector<128x128xbf16>, vector<512x128xf32> -> vector<512x128xf32>
    %67 = arith.addf %63, %66 : vector<512x128xf32>
    %c0_41 = arith.constant 0 : index
    %c0_42 = arith.constant 0 : index
    %68 = vector.load %arg4[%c0_41, %c0_42] : memref<1x128xf32, #tpu.memory_space<vmem>>, vector<1x128xf32>
    %69 = vector.broadcast %68 : vector<1x128xf32> to vector<512x128xf32>
    %70 = arith.addf %67, %69 : vector<512x128xf32>
    %71 = vector.shape_cast %70 : vector<512x128xf32> to vector<16x32x128xf32>
    %c0_43 = arith.constant 0 : index
    %c0_44 = arith.constant 0 : index
    %c0_45 = arith.constant 0 : index
    %c0_46 = arith.constant 0 : index
    %72 = vector.load %arg5[%c0_43, %c0_44, %c0_45, %c0_46] : memref<1x16x32x128xf32, #tpu.memory_space<vmem>>, vector<1x16x32x128xf32>
    %73 = vector.shape_cast %72 : vector<1x16x32x128xf32> to vector<16x32x128xf32>
    %74 = vector.shape_cast %71 : vector<16x32x128xf32> to vector<1x16x32x128xf32>
    tpu.vector_store %arg5[%c0_43, %c0_44, %c0_45, %c0_46], %74 {strides = array<i32>} : memref<1x16x32x128xf32, #tpu.memory_space<vmem>>, vector<1x16x32x128xf32>,
    return
  }
  func.func @transform_1(%arg0: i32, %arg1: i32) -> (i32, i32, i32) {
    %c0_i32 = arith.constant 0 : i32
    %c0_i32_0 = arith.constant 0 : i32
    %c0_i32_1 = arith.constant 0 : i32
    %c0_i32_2 = arith.constant 0 : i32
    return %c0_i32, %c0_i32_0, %c0_i32_1 : i32, i32, i32
  }
  func.func @transform_2(%arg0: i32, %arg1: i32) -> (i32, i32) {
    %c0_i32 = arith.constant 0 : i32
    %c0_i32_0 = arith.constant 0 : i32
    %c0_i32_1 = arith.constant 0 : i32
    return %c0_i32, %c0_i32_0 : i32, i32
  }
  func.func @transform_3(%arg0: i32, %arg1: i32) -> (i32, i32, i32, i32) {
    %c0_i32 = arith.constant 0 : i32
    %c0_i32_0 = arith.constant 0 : i32
    %c0_i32_1 = arith.constant 0 : i32
    return %arg0, %arg1, %c0_i32, %c0_i32_0 : i32, i32, i32, i32
  }
}

module attributes {stable_mosaic.version = 11 : i64} {
  func.func @_repvgg_kernel(%arg0: i32, %arg1: i32, %arg2: memref<2x18x32x128xbf16, #tpu.memory_space<any>>, %arg3: memref<9x128x128xbf16, #tpu.memory_space<vmem>>, %arg4: memref<1x128xf32, #tpu.memory_space<vmem>>, %arg5: memref<1x16x32x128xf32, #tpu.memory_space<vmem>>, %arg6: memref<2x18x32x128xbf16, #tpu.memory_space<vmem>>, %arg7: memref<2x!tpu.dma_semaphore, #tpu.memory_space<semaphore_mem>>) attributes {dimension_semantics = [#tpu.dimension_semantics<parallel>, #tpu.dimension_semantics<arbitrary>], iteration_bounds = array<i64: 2, 1>, scalar_prefetch = 0 : i64, scratch_operands = 2 : i64, tpu.core_type = #tpu.core_type<tc>, window_params = [{}, {pipeline_mode = #tpu.pipeline_mode<synchronous>, transform_indices = @transform_1, window_bounds = array<i64: 9, 128, 128>}, {pipeline_mode = #tpu.pipeline_mode<synchronous>, transform_indices = @transform_2, window_bounds = array<i64: 1, 128>}, {transform_indices = @transform_3, window_bounds = array<i64: 1, 16, 32, 128>}]} {
    %c2_i32 = arith.constant 2 : i32
    %c0_i32 = arith.constant 0 : i32
    %0 = arith.cmpi eq, %c2_i32, %c0_i32 : i32
    %c1_i32 = arith.constant 1 : i32
    %1 = arith.select %0, %c1_i32, %c2_i32 : i32
    %2 = arith.remsi %arg1, %1 : i32
    %c0_i32_0 = arith.constant 0 : i32
    %3 = arith.cmpi ne, %2, %c0_i32_0 : i32
    %c0_i32_1 = arith.constant 0 : i32
    %4 = arith.cmpi slt, %2, %c0_i32_1 : i32
    %c0_i32_2 = arith.constant 0 : i32
    %5 = arith.cmpi slt, %1, %c0_i32_2 : i32
    %6 = arith.xori %4, %5 : i1
    %7 = arith.andi %6, %3 : i1
    %8 = arith.addi %2, %1 : i32
    %9 = arith.select %7, %8, %2 : i32
    %c0_i32_3 = arith.constant 0 : i32
    %10 = arith.cmpi eq, %arg1, %c0_i32_3 : i32
    %11 = arith.extui %10 : i1 to i32
    %c0_i32_4 = arith.constant 0 : i32
    %12 = arith.cmpi ne, %11, %c0_i32_4 : i32
    scf.if %12 {
      %c0_i32_47 = arith.constant 0 : i32
      %c0_i32_48 = arith.constant 0 : i32
      %c0_i32_49 = arith.constant 0 : i32
      %c0_i32_50 = arith.constant 0 : i32
      %c0_i32_51 = arith.constant 0 : i32
      %75 = tpu.memref_slice %arg2[%arg0, %c0_i32_49, %c0_i32_50, %c0_i32_51] : memref<2x18x32x128xbf16, #tpu.memory_space<any>> -> memref<1x18x32x128xbf16, #tpu.memory_space<any>>
      %76 = tpu.memref_squeeze %75 : memref<1x18x32x128xbf16, #tpu.memory_space<any>> -> memref<18x32x128xbf16, #tpu.memory_space<any>>
      %c0_i32_52 = arith.constant 0 : i32
      %c0_i32_53 = arith.constant 0 : i32
      %c0_i32_54 = arith.constant 0 : i32
      %77 = tpu.memref_slice %arg6[%c0_i32_47, %c0_i32_52, %c0_i32_53, %c0_i32_54] : memref<2x18x32x128xbf16, #tpu.memory_space<vmem>> -> memref<1x18x32x128xbf16, #tpu.memory_space<vmem>>
      %78 = tpu.memref_squeeze %77 : memref<1x18x32x128xbf16, #tpu.memory_space<vmem>> -> memref<18x32x128xbf16, #tpu.memory_space<vmem>>
      %79 = tpu.memref_slice %arg7[%c0_i32_48] : memref<2x!tpu.dma_semaphore, #tpu.memory_space<semaphore_mem>> -> memref<1x!tpu.dma_semaphore, #tpu.memory_space<semaphore_mem>>
      %80 = tpu.memref_squeeze %79 : memref<1x!tpu.dma_semaphore, #tpu.memory_space<semaphore_mem>> -> memref<!tpu.dma_semaphore, #tpu.memory_space<semaphore_mem>>
      tpu.enqueue_dma source(%76 : memref<18x32x128xbf16, #tpu.memory_space<any>>) target(%78 : memref<18x32x128xbf16, #tpu.memory_space<vmem>>) target_semaphore(%80 : memref<!tpu.dma_semaphore, #tpu.memory_space<semaphore_mem>>)
    } else {
    }
    %c16_i32 = arith.constant 16 : i32
    %13 = arith.muli %arg1, %c16_i32 : i32
    %c0_i32_5 = arith.constant 0 : i32
    %c0_i32_6 = arith.constant 0 : i32
    %14 = tpu.memref_slice %arg2[%arg0, %13, %c0_i32_5, %c0_i32_6] : memref<2x18x32x128xbf16, #tpu.memory_space<any>> -> memref<1x18x32x128xbf16, #tpu.memory_space<any>>
    %15 = tpu.memref_squeeze %14 : memref<1x18x32x128xbf16, #tpu.memory_space<any>> -> memref<18x32x128xbf16, #tpu.memory_space<any>>
    %c0_i32_7 = arith.constant 0 : i32
    %c0_i32_8 = arith.constant 0 : i32
    %c0_i32_9 = arith.constant 0 : i32
    %16 = tpu.memref_slice %arg6[%9, %c0_i32_7, %c0_i32_8, %c0_i32_9] : memref<2x18x32x128xbf16, #tpu.memory_space<vmem>> -> memref<1x18x32x128xbf16, #tpu.memory_space<vmem>>
    %17 = tpu.memref_squeeze %16 : memref<1x18x32x128xbf16, #tpu.memory_space<vmem>> -> memref<18x32x128xbf16, #tpu.memory_space<vmem>>
    %18 = tpu.memref_slice %arg7[%9] : memref<2x!tpu.dma_semaphore, #tpu.memory_space<semaphore_mem>> -> memref<1x!tpu.dma_semaphore, #tpu.memory_space<semaphore_mem>>
    %19 = tpu.memref_squeeze %18 : memref<1x!tpu.dma_semaphore, #tpu.memory_space<semaphore_mem>> -> memref<!tpu.dma_semaphore, #tpu.memory_space<semaphore_mem>>
    tpu.wait_dma2 semaphore(%19 : memref<!tpu.dma_semaphore, #tpu.memory_space<semaphore_mem>>) src(%15 : memref<18x32x128xbf16, #tpu.memory_space<any>>) dst(%17 : memref<18x32x128xbf16, #tpu.memory_space<vmem>>)
    %20 = arith.index_cast %9 : i32 to index
    %c0 = arith.constant 0 : index
    %c0_10 = arith.constant 0 : index
    %c0_11 = arith.constant 0 : index
    %21 = vector.load %arg6[%20, %c0, %c0_10, %c0_11] : memref<2x18x32x128xbf16, #tpu.memory_space<vmem>>, vector<1x18x32x128xbf16>
    %22 = vector.shape_cast %21 : vector<1x18x32x128xbf16> to vector<18x32x128xbf16>
    %23 = vector.extract_strided_slice %22 {offsets = [0, 0, 0], sizes = [16, 32, 128], strides = [1, 1, 1]} : vector<18x32x128xbf16> to vector<16x32x128xbf16>
    %24 = vector.shape_cast %23 : vector<16x32x128xbf16> to vector<512x128xbf16>
    %25 = vector.extract_strided_slice %22 {offsets = [1, 0, 0], sizes = [16, 32, 128], strides = [1, 1, 1]} : vector<18x32x128xbf16> to vector<16x32x128xbf16>
    %26 = vector.shape_cast %25 : vector<16x32x128xbf16> to vector<512x128xbf16>
    %27 = vector.extract_strided_slice %22 {offsets = [2, 0, 0], sizes = [16, 32, 128], strides = [1, 1, 1]} : vector<18x32x128xbf16> to vector<16x32x128xbf16>
    %28 = vector.shape_cast %27 : vector<16x32x128xbf16> to vector<512x128xbf16>
    %cst = arith.constant 0.000000e+00 : f32
    %29 = vector.broadcast %cst : f32 to vector<512x128xf32>
    %c2 = arith.constant 2 : index
    %c0_12 = arith.constant 0 : index
    %c0_13 = arith.constant 0 : index
    %30 = vector.load %arg3[%c2, %c0_12, %c0_13] : memref<9x128x128xbf16, #tpu.memory_space<vmem>>, vector<1x128x128xbf16>
    %31 = vector.shape_cast %30 : vector<1x128x128xbf16> to vector<128x128xbf16>
    %cst_14 = arith.constant dense<0.000000e+00> : vector<512x128xf32>
    %32 = tpu.matmul %24, %31, %cst_14 {dimension_numbers = #tpu.dot_dimension_numbers<[1], [0], [0], [1], [0, 0, 1, 1], [], []>} : vector<512x128xbf16>, vector<128x128xbf16>, vector<512x128xf32> -> vector<512x128xf32>
    %33 = arith.addf %29, %32 : vector<512x128xf32>
    %c5 = arith.constant 5 : index
    %c0_15 = arith.constant 0 : index
    %c0_16 = arith.constant 0 : index
    %34 = vector.load %arg3[%c5, %c0_15, %c0_16] : memref<9x128x128xbf16, #tpu.memory_space<vmem>>, vector<1x128x128xbf16>
    %35 = vector.shape_cast %34 : vector<1x128x128xbf16> to vector<128x128xbf16>
    %cst_17 = arith.constant dense<0.000000e+00> : vector<512x128xf32>
    %36 = tpu.matmul %26, %35, %cst_17 {dimension_numbers = #tpu.dot_dimension_numbers<[1], [0], [0], [1], [0, 0, 1, 1], [], []>} : vector<512x128xbf16>, vector<128x128xbf16>, vector<512x128xf32> -> vector<512x128xf32>
    %37 = arith.addf %33, %36 : vector<512x128xf32>
    %c8 = arith.constant 8 : index
    %c0_18 = arith.constant 0 : index
    %c0_19 = arith.constant 0 : index
    %38 = vector.load %arg3[%c8, %c0_18, %c0_19] : memref<9x128x128xbf16, #tpu.memory_space<vmem>>, vector<1x128x128xbf16>
    %39 = vector.shape_cast %38 : vector<1x128x128xbf16> to vector<128x128xbf16>
    %cst_20 = arith.constant dense<0.000000e+00> : vector<512x128xf32>
    %40 = tpu.matmul %28, %39, %cst_20 {dimension_numbers = #tpu.dot_dimension_numbers<[1], [0], [0], [1], [0, 0, 1, 1], [], []>} : vector<512x128xbf16>, vector<128x128xbf16>, vector<512x128xf32> -> vector<512x128xf32>
    %41 = arith.addf %37, %40 : vector<512x128xf32>
    %c511_i32 = arith.constant 511 : i32
    %42 = tpu.dynamic_rotate %41 by %c511_i32 dim 0 : vector<512x128xf32>, i32 -> vector<512x128xf32>
    %c1 = arith.constant 1 : index
    %c0_21 = arith.constant 0 : index
    %c0_22 = arith.constant 0 : index
    %43 = vector.load %arg3[%c1, %c0_21, %c0_22] : memref<9x128x128xbf16, #tpu.memory_space<vmem>>, vector<1x128x128xbf16>
    %44 = vector.shape_cast %43 : vector<1x128x128xbf16> to vector<128x128xbf16>
    %cst_23 = arith.constant dense<0.000000e+00> : vector<512x128xf32>
    %45 = tpu.matmul %24, %44, %cst_23 {dimension_numbers = #tpu.dot_dimension_numbers<[1], [0], [0], [1], [0, 0, 1, 1], [], []>} : vector<512x128xbf16>, vector<128x128xbf16>, vector<512x128xf32> -> vector<512x128xf32>
    %46 = arith.addf %42, %45 : vector<512x128xf32>
    %c4 = arith.constant 4 : index
    %c0_24 = arith.constant 0 : index
    %c0_25 = arith.constant 0 : index
    %47 = vector.load %arg3[%c4, %c0_24, %c0_25] : memref<9x128x128xbf16, #tpu.memory_space<vmem>>, vector<1x128x128xbf16>
    %48 = vector.shape_cast %47 : vector<1x128x128xbf16> to vector<128x128xbf16>
    %cst_26 = arith.constant dense<0.000000e+00> : vector<512x128xf32>
    %49 = tpu.matmul %26, %48, %cst_26 {dimension_numbers = #tpu.dot_dimension_numbers<[1], [0], [0], [1], [0, 0, 1, 1], [], []>} : vector<512x128xbf16>, vector<128x128xbf16>, vector<512x128xf32> -> vector<512x128xf32>
    %50 = arith.addf %46, %49 : vector<512x128xf32>
    %c7 = arith.constant 7 : index
    %c0_27 = arith.constant 0 : index
    %c0_28 = arith.constant 0 : index
    %51 = vector.load %arg3[%c7, %c0_27, %c0_28] : memref<9x128x128xbf16, #tpu.memory_space<vmem>>, vector<1x128x128xbf16>
    %52 = vector.shape_cast %51 : vector<1x128x128xbf16> to vector<128x128xbf16>
    %cst_29 = arith.constant dense<0.000000e+00> : vector<512x128xf32>
    %53 = tpu.matmul %28, %52, %cst_29 {dimension_numbers = #tpu.dot_dimension_numbers<[1], [0], [0], [1], [0, 0, 1, 1], [], []>} : vector<512x128xbf16>, vector<128x128xbf16>, vector<512x128xf32> -> vector<512x128xf32>
    %54 = arith.addf %50, %53 : vector<512x128xf32>
    %c511_i32_30 = arith.constant 511 : i32
    %55 = tpu.dynamic_rotate %54 by %c511_i32_30 dim 0 : vector<512x128xf32>, i32 -> vector<512x128xf32>
    %c0_31 = arith.constant 0 : index
    %c0_32 = arith.constant 0 : index
    %c0_33 = arith.constant 0 : index
    %56 = vector.load %arg3[%c0_31, %c0_32, %c0_33] : memref<9x128x128xbf16, #tpu.memory_space<vmem>>, vector<1x128x128xbf16>
    %57 = vector.shape_cast %56 : vector<1x128x128xbf16> to vector<128x128xbf16>
    %cst_34 = arith.constant dense<0.000000e+00> : vector<512x128xf32>
    %58 = tpu.matmul %24, %57, %cst_34 {dimension_numbers = #tpu.dot_dimension_numbers<[1], [0], [0], [1], [0, 0, 1, 1], [], []>} : vector<512x128xbf16>, vector<128x128xbf16>, vector<512x128xf32> -> vector<512x128xf32>
    %59 = arith.addf %55, %58 : vector<512x128xf32>
    %c3 = arith.constant 3 : index
    %c0_35 = arith.constant 0 : index
    %c0_36 = arith.constant 0 : index
    %60 = vector.load %arg3[%c3, %c0_35, %c0_36] : memref<9x128x128xbf16, #tpu.memory_space<vmem>>, vector<1x128x128xbf16>
    %61 = vector.shape_cast %60 : vector<1x128x128xbf16> to vector<128x128xbf16>
    %cst_37 = arith.constant dense<0.000000e+00> : vector<512x128xf32>
    %62 = tpu.matmul %26, %61, %cst_37 {dimension_numbers = #tpu.dot_dimension_numbers<[1], [0], [0], [1], [0, 0, 1, 1], [], []>} : vector<512x128xbf16>, vector<128x128xbf16>, vector<512x128xf32> -> vector<512x128xf32>
    %63 = arith.addf %59, %62 : vector<512x128xf32>
    %c6 = arith.constant 6 : index
    %c0_38 = arith.constant 0 : index
    %c0_39 = arith.constant 0 : index
    %64 = vector.load %arg3[%c6, %c0_38, %c0_39] : memref<9x128x128xbf16, #tpu.memory_space<vmem>>, vector<1x128x128xbf16>
    %65 = vector.shape_cast %64 : vector<1x128x128xbf16> to vector<128x128xbf16>
    %cst_40 = arith.constant dense<0.000000e+00> : vector<512x128xf32>
    %66 = tpu.matmul %28, %65, %cst_40 {dimension_numbers = #tpu.dot_dimension_numbers<[1], [0], [0], [1], [0, 0, 1, 1], [], []>} : vector<512x128xbf16>, vector<128x128xbf16>, vector<512x128xf32> -> vector<512x128xf32>
    %67 = arith.addf %63, %66 : vector<512x128xf32>
    %c0_41 = arith.constant 0 : index
    %c0_42 = arith.constant 0 : index
    %68 = vector.load %arg4[%c0_41, %c0_42] : memref<1x128xf32, #tpu.memory_space<vmem>>, vector<1x128xf32>
    %69 = vector.broadcast %68 : vector<1x128xf32> to vector<512x128xf32>
    %70 = arith.addf %67, %69 : vector<512x128xf32>
    %71 = vector.shape_cast %70 : vector<512x128xf32> to vector<16x32x128xf32>
    %c0_43 = arith.constant 0 : index
    %c0_44 = arith.constant 0 : index
    %c0_45 = arith.constant 0 : index
    %c0_46 = arith.constant 0 : index
    %72 = vector.load %arg5[%c0_43, %c0_44, %c0_45, %c0_46] : memref<1x16x32x128xf32, #tpu.memory_space<vmem>>, vector<1x16x32x128xf32>
    %73 = vector.shape_cast %72 : vector<1x16x32x128xf32> to vector<16x32x128xf32>
    %74 = vector.shape_cast %71 : vector<16x32x128xf32> to vector<1x16x32x128xf32>
    tpu.vector_store %arg5[%c0_43, %c0_44, %c0_45, %c0_46], %74 {strides = array<i32>} : memref<1x16x32x128xf32, #tpu.memory_space<vmem>>, vector<1x16x32x128xf32>,
    return
  }
  func.func @transform_1(%arg0: i32, %arg1: i32) -> (i32, i32, i32) {
    %c0_i32 = arith.constant 0 : i32
    %c0_i32_0 = arith.constant 0 : i32
    %c0_i32_1 = arith.constant 0 : i32
    %c0_i32_2 = arith.constant 0 : i32
    return %c0_i32, %c0_i32_0, %c0_i32_1 : i32, i32, i32
  }
  func.func @transform_2(%arg0: i32, %arg1: i32) -> (i32, i32) {
    %c0_i32 = arith.constant 0 : i32
    %c0_i32_0 = arith.constant 0 : i32
    %c0_i32_1 = arith.constant 0 : i32
    return %c0_i32, %c0_i32_0 : i32, i32
  }
  func.func @transform_3(%arg0: i32, %arg1: i32) -> (i32, i32, i32, i32) {
    %c0_i32 = arith.constant 0 : i32
    %c0_i32_0 = arith.constant 0 : i32
    %c0_i32_1 = arith.constant 0 : i32
    return %arg0, %arg1, %c0_i32, %c0_i32_0 : i32, i32, i32, i32
  }
}

</mosaic_0001>

<llo_original>
// kernel: tpu_custom_call.1
$region0: #{tpu_custom_call.1}
  #allocation0 [shape = 'u32[]', space=smem, size = 0x4, offset = 0x4, fixed_abs, tag = 'smem constant byte address 0x4 - core index']
  #allocation1 [shape = 'u32[144,128]{1,0:T(1,128)}', space=vmem, size = 0x12000, scoped, tag = 'internal scratch']
  #allocation2 [shape = 'bf16[2,18,32,128]{3,2,1,0:T(16,128)(2,1)}', space=vmem, size = 0x48000, scoped, tag = 'scratch operand']
  #allocation3 [shape = 's32[2]{0}', space=sflag, size = 0x8, scoped, tag = 'scratch operand']
  #allocation8 [shape = 's32[]', space=sflag, size = 0x4, offset = 0, fixed_abs, tag = 'sflag constant byte address 0x0 - dummy sync flag']
  #allocation9 [shape = 's32[]', space=sflag, size = 0x4, offset = 0, fixed_abs, tag = 'sflag constant byte address 0x0 - dummy sync flag']
  #allocation10 [shape = 'u32[]', space=smem, size = 0x4, offset = 0x44, fixed_abs, tag = 'smem constant byte address 0x44 - assertion arg 0']
  #allocation11 [shape = 'u32[]', space=smem, size = 0x4, offset = 0x48, fixed_abs, tag = 'smem constant byte address 0x48 - assertion arg 1']
  %s0 = inlined_call_operand.hbm [shape: bf16[2,18,32,128], index: 0, kind: input, shape index: {}]
  %s1 = inlined_call_operand.hbm [shape: bf16[9,128,128], index: 1, kind: input, shape index: {}]
  %s2 = inlined_call_operand.vmem [shape: f32[1,128], index: 2, kind: input, shape index: {}]
  %s3 = inlined_call_operand.hbm [shape: f32[2,16,32,128], index: 3, kind: output, shape index: {}]
  %s4 = sld [smem:[#allocation0]]
  $region53: #{tpu_custom_call.1} parent=0
    _
  %s6 = ssub.s32 1, %s4
  %s7 = scalar_select 0, %s6, %s4
  $region1: #{tpu_custom_call.1} parent=0
    #allocation4 [shape = 'u8[294912]{0}', space=vmem, size = 0x48000, scoped, tag = 'input window, operand 1, single buffered']
    #allocation5 [shape = 's32[2]{0}', space=sflag, size = 0x8, scoped, tag = 'scoped memory for tpu_custom_call.1']
    #allocation6 [shape = 's32[2]{0}', space=sflag, size = 0x8, scoped, tag = 'scoped memory for tpu_custom_call.1']
    #allocation7 [shape = 'u8[524288]{0}', space=vmem, size = 0x80000, scoped, tag = 'output window, operand 0']
    %8 = vsyncpa [#allocation5], 0
    %9 = vsyncpa [#allocation6], 0
    %s10 = scalar_lea.sflag [#allocation6], 1
    %11 = vsyncpa %s10, 0
    loop: start=0, step=1, limit=4
    $region2: #{tpu_custom_call.1} parent=1 // loop_pre_header
      _
    $region3: #{tpu_custom_call.1} parent=1 // loop_header
      %s13 = sphi 0, %s17
      %p14 = scmp.ge.s32.totalorder %s13, 4
      %s20 = sphi 0, %s32
      %s21 = sphi 0, %s28
      %s22 = sphi 0, %s20
      %s23 = sphi 0, %s21
      %s24 = sphi 0, %s22
      %s25 = sphi 0, %s23
      %s33 = sphi 0, %s33
      %s35 = sphi 0, %s33
      %s36 = sphi 0, %s35
      %s50 = sphi 0, %s36
      %s54 = sphi 0, %s54
      %s56 = sphi 0, %s54
      %s57 = sphi 0, %s56
      %s71 = sphi 0, %s57
      %s79 = sphi 0, %s81
      %s82 = sphi 0, %s79
      %s83 = sphi 0, %s82
      %s99 = sphi 0, %s83
    $region4: #{tpu_custom_call.1} parent=1 // loop_header_branch
      %16 = sbr.rel (%p14) target = $region8
    $region5: #{tpu_custom_call.1} parent=1 // loop_body
      %s18 = ssub.s32 %s13, 1
      %s19 = ssub.s32 %s13, 2
      %s26 = sadd.s32 1, %s21
      %p27 = scmp.ge.s32.totalorder %s26, 1
      %s28 = scalar_select %p27, 0, %s26
      %s29 = sadd.s32 1, %s20
      %s30 = scalar_select %p27, %s29, %s20
      %p31 = scmp.ge.s32.totalorder %s30, 2
      %s32 = scalar_select %p31, 0, %s30
      %s34 = sadd.s32 %s33, 1
      %p37 = scmp.eq.s32.totalorder %s13, 1
      %p38 = scmp.ne.s32.totalorder %s33, %s35
      %p39 = scmp.eq.s32.totalorder %s13, 0
      %p40 = por %p38, %p39
      %p41 = scmp.ne.s32.totalorder %s33, %s35
      %p42 = scmp.eq.s32.totalorder %s18, 1
      %p43 = por %p41, %p42
      %p44 = scmp.ne.s32.totalorder %s35, %s36
      %p45 = scmp.eq.s32.totalorder %s18, 0
      %p46 = por %p44, %p45
      %p47 = scmp.ne.s32.totalorder %s35, %s36
      %p48 = scmp.eq.s32.totalorder %s19, 1
      %p49 = por %p47, %p48
      %p51 = scmp.ne.s32.totalorder %s36, %s50
      %p52 = scmp.eq.s32.totalorder %s19, 0
      %p53 = por %p51, %p52
      %s55 = sadd.s32 %s54, 1
      %p58 = scmp.eq.s32.totalorder %s13, 1
      %p59 = scmp.ne.s32.totalorder %s54, %s56
      %p60 = scmp.eq.s32.totalorder %s13, 0
      %p61 = por %p59, %p60
      %p62 = scmp.ne.s32.totalorder %s54, %s56
      %p63 = scmp.eq.s32.totalorder %s18, 1
      %p64 = por %p62, %p63
      %p65 = scmp.ne.s32.totalorder %s56, %s57
      %p66 = scmp.eq.s32.totalorder %s18, 0
      %p67 = por %p65, %p66
      %p68 = scmp.ne.s32.totalorder %s56, %s57
      %p69 = scmp.eq.s32.totalorder %s19, 1
      %p70 = por %p68, %p69
      %p72 = scmp.ne.s32.totalorder %s57, %s71
      %p73 = scmp.eq.s32.totalorder %s19, 0
      %p74 = por %p72, %p73
      %s75 = ssub.s32 %s20, %s32
      %s76 = ssub.s32 %s21, %s28
      %s77 = sor.u32 %s75, %s76
      %p78 = scmp.eq.s32.totalorder %s77, 0
      %s80 = sadd.s32 %s79, 1
      %s81 = scalar_select %p78, %s79, %s80
      %p84 = pneg %p78
      %p85 = scmp.eq.s32.totalorder %s13, 1
      %p86 = por %p84, %p85
      %p87 = scmp.ne.s32.totalorder %s79, %s82
      %p88 = scmp.eq.s32.totalorder %s13, 0
      %p89 = por %p87, %p88
      %p90 = scmp.ne.s32.totalorder %s79, %s82
      %p91 = scmp.eq.s32.totalorder %s18, 1
      %p92 = por %p90, %p91
      %p93 = scmp.ne.s32.totalorder %s82, %s83
      %p94 = scmp.eq.s32.totalorder %s18, 0
      %p95 = por %p93, %p94
      %p96 = scmp.ne.s32.totalorder %s82, %s83
      %p97 = scmp.eq.s32.totalorder %s19, 1
      %p98 = por %p96, %p97
      %p100 = scmp.ne.s32.totalorder %s83, %s99
      %p101 = scmp.eq.s32.totalorder %s19, 0
      %p102 = por %p100, %p101
      %p103 = scmp.le.s32.totalorder 1, %s13
      %p104 = scmp.lt.s32.totalorder %s13, 3
      %p105 = pnand %p103, %p104
      %p106 = pneg %p105
      // Predicated region
      $region9: #{tpu_custom_call.1} parent=5 // pred_check
        _
      $region10: #{tpu_custom_call.1} parent=5 // pred_check_branch
        %108 = sbr.rel (%p105) target = $region12
      $region11: #{tpu_custom_call.1} parent=5 // pred_region
        %s109 = ssub.s32 %s13, 1
        // Predicated region
        $region13: #{tpu_custom_call.1} parent=11 // pred_check
          %p110 = pneg %p46
        $region14: #{tpu_custom_call.1} parent=11 // pred_check_branch
          %112 = sbr.rel (%p110) target = $region16
        $region15: #{tpu_custom_call.1} parent=11 // pred_region
          %s114 = ssub.s32 9216, 9216
          %115 = vsyncadd [#allocation5], %s114
          %s116 = sshll.u32 [#allocation4], 4
          %s117 = int_to_ptr.vmem [resolvable:$true] %s116
          %122 = dma.hbm_to_vmem [thread:$0]  %s1, 9216, %s117, [#allocation5], 64, 64, 4
        $region16: #{tpu_custom_call.1} parent=11 // pred_fallthru
          _
        // Predicated region
        $region17: #{tpu_custom_call.1} parent=11 // pred_check
          %p123 = pneg %p67
        $region18: #{tpu_custom_call.1} parent=11 // pred_check_branch
          %125 = sbr.rel (%p123) target = $region20
        $region19: #{tpu_custom_call.1} parent=11 // pred_region
          _
        $region20: #{tpu_custom_call.1} parent=11 // pred_fallthru
          _
      $region12: #{tpu_custom_call.1} parent=5 // pred_fallthru
        _
      %p126 = scmp.lt.s32.totalorder %s13, 2
      // Predicated region
      $region21: #{tpu_custom_call.1} parent=5 // pred_check
        %p127 = pneg %p126
      $region22: #{tpu_custom_call.1} parent=5 // pred_check_branch
        %129 = sbr.rel (%p127) target = $region24
      $region23: #{tpu_custom_call.1} parent=5 // pred_region
        _
      $region24: #{tpu_custom_call.1} parent=5 // pred_fallthru
        _
      %p130 = scmp.le.s32.totalorder 1, %s13
      %p131 = scmp.lt.s32.totalorder %s13, 3
      %p132 = pnand %p130, %p131
      %p133 = pneg %p132
      // Predicated region
      $region25: #{tpu_custom_call.1} parent=5 // pred_check
        _
      $region26: #{tpu_custom_call.1} parent=5 // pred_check_branch
        %135 = sbr.rel (%p132) target = $region28
      $region27: #{tpu_custom_call.1} parent=5 // pred_region
        %s136 = ssub.s32 %s13, 1
        // Predicated region
        $region29: #{tpu_custom_call.1} parent=27 // pred_check
          %p137 = pneg %p46
        $region30: #{tpu_custom_call.1} parent=27 // pred_check_branch
          %139 = sbr.rel (%p137) target = $region32
        $region31: #{tpu_custom_call.1} parent=27 // pred_region
          %140 = dma.done [#allocation5], 9216
        $region32: #{tpu_custom_call.1} parent=27 // pred_fallthru
          _
        %p141 = pneg %p46
        %p142 = pneg %p43
        %p143 = pneg %p67
        %p144 = pneg %p64
        %p145 = pneg %p95
        %p146 = pneg %p92
        %s147 = sand.u32 %s82, 1
        %s148 = scalar_lea.sflag [#allocation6], %s147
        %s149 = sand.u32 %s82, 1
        %s150 = smul.addr %s149, 512
        %s151 = scalar_lea.vmem [#allocation7], %s150
        %s152 = smul.u32 16, %s23
        %p154 = scmp.lt.s32.totalorder %s23, 0
        %s155 = ssub.s32 0, %s23
        %s156 = scalar_select %p154, %s155, %s23
        %s157 = sand.u32 %s156, 1
        %s158 = ssub.s32 0, %s157
        %s159 = scalar_select %p154, %s158, %s157
        %p160 = scmp.ne.s32.totalorder %s159, 0
        %p161 = scmp.lt.s32.totalorder %s159, 0
        %p162 = pnand %p161, %p160
        %p163 = pneg %p162
        %s164 = sadd.s32 %s159, 2
        %s165 = scalar_select %p163, %s164, %s159
        %p166 = scmp.eq.s32.totalorder %s23, 0
        // Predicated region
        $region33: #{tpu_custom_call.1} parent=27 // pred_check
          %p167 = pneg %p166
        $region34: #{tpu_custom_call.1} parent=27 // pred_check_branch
          %169 = sbr.rel (%p167) target = $region36
        $region35: #{tpu_custom_call.1} parent=27 // pred_region
          %s170 = smul.u32 %s22, 72
          %s171 = smul.addr %s170, 64
          %s172 = scalar_lea.hbm %s0, %s171
          // Predicated region
          $region37: #{tpu_custom_call.1} parent=35 // pred_check
            _
          $region38: #{tpu_custom_call.1} parent=35 // pred_check_branch
            %174 = sbr.rel target = $region40
          $region39: #{tpu_custom_call.1} parent=35 // pred_region
            %175 = sst [smem:[#allocation10]] [#allocation9]
            %176 = sst [smem:[#allocation11]] [#allocation8]
          $region40: #{tpu_custom_call.1} parent=35 // pred_fallthru
            _
          %178 = shalt.err (0)
          %s180 = sshll.u32 [#allocation2], 4
          %s181 = int_to_ptr.vmem [resolvable:$true] %s180
          %183 = dma.hbm_to_vmem [thread:$0]  %s172, 4608, %s181, [#allocation3]
        $region36: #{tpu_custom_call.1} parent=27 // pred_fallthru
          _
        %s184 = smul.u32 %s165, 36
        %s185 = smul.addr %s184, 8
        %s186 = scalar_lea.vmem [#allocation2], %s185
        %s187 = scalar_lea.sflag [#allocation3], %s165
        %s188 = smul.u32 4, 18
        %s189 = smul.u32 %s188, 4
        %s190 = smul.u32 %s189, 1
        %s191 = sshll.u32 %s190, 4
        %192 = dma.done %s187, %s191
        %v193 = vld [vmem:[%s186] sm:$0xff]
        %v194 = vld [vmem:[%s186 + $0x8] sm:$0xff]
        %v195 = vld [vmem:[%s186 + $0x10] sm:$0xff]
        %v196 = vld [vmem:[%s186 + $0x18] sm:$0xff]
        %v197 = vld [vmem:[%s186 + $0x20] sm:$0xff]
        %v198 = vld [vmem:[%s186 + $0x28] sm:$0xff]
        %v199 = vld [vmem:[%s186 + $0x30] sm:$0xff]
        %v200 = vld [vmem:[%s186 + $0x38] sm:$0xff]
        %v201 = vld [vmem:[%s186 + $0x40] sm:$0xff]
        %v202 = vld [vmem:[%s186 + $0x48] sm:$0xff]
        %v203 = vld [vmem:[%s186 + $0x50] sm:$0xff]
        %v204 = vld [vmem:[%s186 + $0x58] sm:$0xff]
        %v205 = vld [vmem:[%s186 + $0x60] sm:$0xff]
        %v206 = vld [vmem:[%s186 + $0x68] sm:$0xff]
        %v207 = vld [vmem:[%s186 + $0x70] sm:$0xff]
        %v208 = vld [vmem:[%s186 + $0x78] sm:$0xff]
        %v209 = vld [vmem:[%s186 + $0x80] sm:$0xff]
        %v210 = vld [vmem:[%s186 + $0x88] sm:$0xff]
        %v211 = vld [vmem:[%s186 + $0x90] sm:$0xff]
        %v212 = vld [vmem:[%s186 + $0x98] sm:$0xff]
        %v213 = vld [vmem:[%s186 + $0xa0] sm:$0xff]
        %v214 = vld [vmem:[%s186 + $0xa8] sm:$0xff]
        %v215 = vld [vmem:[%s186 + $0xb0] sm:$0xff]
        %v216 = vld [vmem:[%s186 + $0xb8] sm:$0xff]
        %v217 = vld [vmem:[%s186 + $0xc0] sm:$0xff]
        %v218 = vld [vmem:[%s186 + $0xc8] sm:$0xff]
        %v219 = vld [vmem:[%s186 + $0xd0] sm:$0xff]
        %v220 = vld [vmem:[%s186 + $0xd8] sm:$0xff]
        %v221 = vld [vmem:[%s186 + $0xe0] sm:$0xff]
        %v222 = vld [vmem:[%s186 + $0xe8] sm:$0xff]
        %v223 = vld [vmem:[%s186 + $0xf0] sm:$0xff]
        %v224 = vld [vmem:[%s186 + $0xf8] sm:$0xff]
        %v225 = vld [vmem:[%s186 + $0x100] sm:$0xff]
        %v226 = vld [vmem:[%s186 + $0x108] sm:$0xff]
        %v227 = vld [vmem:[%s186 + $0x110] sm:$0xff]
        %v228 = vld [vmem:[%s186 + $0x118] sm:$0xff]
        %s229 = scalar_lea.vmem [#allocation4], 128
        %v230 = vld [vmem:[%s229] sm:$0xf]
        %v231 = vld [vmem:[%s229 + $0x4] sm:$0xf]
        %v232 = vld [vmem:[%s229 + $0x8] sm:$0xf]
        %v233 = vld [vmem:[%s229 + $0xc] sm:$0xf]
        %v234 = vld [vmem:[%s229 + $0x10] sm:$0xf]
        %v235 = vld [vmem:[%s229 + $0x14] sm:$0xf]
        %v236 = vld [vmem:[%s229 + $0x18] sm:$0xf]
        %v237 = vld [vmem:[%s229 + $0x1c] sm:$0xf]
        %v238 = vld [vmem:[%s229 + $0x20] sm:$0xf]
        %v239 = vld [vmem:[%s229 + $0x24] sm:$0xf]
        %v240 = vld [vmem:[%s229 + $0x28] sm:$0xf]
        %v241 = vld [vmem:[%s229 + $0x2c] sm:$0xf]
        %v242 = vld [vmem:[%s229 + $0x30] sm:$0xf]
        %v243 = vld [vmem:[%s229 + $0x34] sm:$0xf]
        %v244 = vld [vmem:[%s229 + $0x38] sm:$0xf]
        %v245 = vld [vmem:[%s229 + $0x3c] sm:$0xf]
        %s246 = scalar_lea.vmem [#allocation4], 320
        %v247 = vld [vmem:[%s246] sm:$0xf]
        %v248 = vld [vmem:[%s246 + $0x4] sm:$0xf]
        %v249 = vld [vmem:[%s246 + $0x8] sm:$0xf]
        %v250 = vld [vmem:[%s246 + $0xc] sm:$0xf]
        %v251 = vld [vmem:[%s246 + $0x10] sm:$0xf]
        %v252 = vld [vmem:[%s246 + $0x14] sm:$0xf]
        %v253 = vld [vmem:[%s246 + $0x18] sm:$0xf]
        %v254 = vld [vmem:[%s246 + $0x1c] sm:$0xf]
        %v255 = vld [vmem:[%s246 + $0x20] sm:$0xf]
        %v256 = vld [vmem:[%s246 + $0x24] sm:$0xf]
        %v257 = vld [vmem:[%s246 + $0x28] sm:$0xf]
        %v258 = vld [vmem:[%s246 + $0x2c] sm:$0xf]
        %v259 = vld [vmem:[%s246 + $0x30] sm:$0xf]
        %v260 = vld [vmem:[%s246 + $0x34] sm:$0xf]
        %v261 = vld [vmem:[%s246 + $0x38] sm:$0xf]
        %v262 = vld [vmem:[%s246 + $0x3c] sm:$0xf]
        %v279 = vunpack.c.l.b16 %v247
        %v280 = vunpack.c.l.b16 %v248
        %v281 = vunpack.c.l.b16 %v249
        %v282 = vunpack.c.l.b16 %v250
        %v283 = vunpack.c.l.b16 %v251
        %v284 = vunpack.c.l.b16 %v252
        %v285 = vunpack.c.l.b16 %v253
        %v286 = vunpack.c.l.b16 %v254
        %v287 = vunpack.c.l.b16 %v255
        %v288 = vunpack.c.l.b16 %v256
        %v289 = vunpack.c.l.b16 %v257
        %v290 = vunpack.c.l.b16 %v258
        %v291 = vunpack.c.l.b16 %v259
        %v292 = vunpack.c.l.b16 %v260
        %v293 = vunpack.c.l.b16 %v261
        %v294 = vunpack.c.l.b16 %v262
        %v295 = vpack.c.b16 %v280, %v279
        %v296 = vpack.c.b16 %v282, %v281
        %v297 = vpack.c.b16 %v284, %v283
        %v298 = vpack.c.b16 %v286, %v285
        %v299 = vpack.c.b16 %v288, %v287
        %v300 = vpack.c.b16 %v290, %v289
        %v301 = vpack.c.b16 %v292, %v291
        %v302 = vpack.c.b16 %v294, %v293
        %311 = vmatprep.subr.bf16.mxu0 0
        %312 = vmatpush1.bf16.msra.mxu0 %v295
        %313 = vmatprep.subr.bf16.mxu0 0
        %314 = vmatpush1.bf16.msra.mxu0 %v296
        %315 = vmatprep.subr.bf16.mxu0 0
        %316 = vmatpush1.bf16.msra.mxu0 %v297
        %317 = vmatprep.subr.bf16.mxu0 0
        %318 = vmatpush1.bf16.msra.mxu0 %v298
        %319 = vmatprep.subr.bf16.mxu0 0
        %320 = vmatpush1.bf16.msra.mxu0 %v299
        %321 = vmatprep.subr.bf16.mxu0 0
        %322 = vmatpush1.bf16.msra.mxu0 %v300
        %323 = vmatprep.subr.bf16.mxu0 0
        %324 = vmatpush1.bf16.msra.mxu0 %v301
        %325 = vmatprep.subr.bf16.mxu0 0
        %326 = vmatpush1.bf16.msra.mxu0 %v302
        %327 = vmatprep.subr.bf16.mxu0 0
        %328 = vmatpush1.bf16.msra.mxu0 0
        %329 = vmatprep.subr.bf16.mxu0 0
        %330 = vmatpush1.bf16.msra.mxu0 0
        %331 = vmatprep.subr.bf16.mxu0 0
        %332 = vmatpush1.bf16.msra.mxu0 0
        %333 = vmatprep.subr.bf16.mxu0 0
        %334 = vmatpush1.bf16.msra.mxu0 0
        %335 = vmatprep.subr.bf16.mxu0 0
        %336 = vmatpush1.bf16.msra.mxu0 0
        %337 = vmatprep.subr.bf16.mxu0 0
        %338 = vmatpush1.bf16.msra.mxu0 0
        %339 = vmatprep.subr.bf16.mxu0 0
        %340 = vmatpush1.bf16.msra.mxu0 0
        %341 = vmatprep.subr.bf16.mxu0 0
        %342 = vmatpush1.bf16.msra.mxu0 0
        %343 = vmatprep.mubr.bf16.mxu0 0
        %344 = vmatmul.mubr.bf16.gmra.mrb[0].mxu0 %v195
        %v345 = vpop.f32.mrb[0].mxu0
        %v346 = vadd.f32 0.0, %v345
        %v347 = vpop.f32.mrb[0].mxu0
        %v348 = vpop.f32.mrb[0].mxu0
        %v349 = vadd.f32 0.0, %v348
        %v350 = vpop.f32.mrb[0].mxu0
        %351 = vmatprep.mubr.bf16.mxu0 0
        %352 = vmatmul.mubr.bf16.gmra.mrb[0].mxu0 %v196
        %v353 = vpop.f32.mrb[0].mxu0
        %v354 = vadd.f32 0.0, %v353
        %v355 = vpop.f32.mrb[0].mxu0
        %v356 = vpop.f32.mrb[0].mxu0
        %v357 = vadd.f32 0.0, %v356
        %v358 = vpop.f32.mrb[0].mxu0
        %359 = vmatprep.mubr.bf16.mxu0 0
        %360 = vmatmul.mubr.bf16.gmra.mrb[0].mxu0 %v197
        %v361 = vpop.f32.mrb[0].mxu0
        %v362 = vadd.f32 0.0, %v361
        %v363 = vpop.f32.mrb[0].mxu0
        %v364 = vpop.f32.mrb[0].mxu0
        %v365 = vadd.f32 0.0, %v364
        %v366 = vpop.f32.mrb[0].mxu0
        %367 = vmatprep.mubr.bf16.mxu0 0
        %368 = vmatmul.mubr.bf16.gmra.mrb[0].mxu0 %v198
        %v369 = vpop.f32.mrb[0].mxu0
        %v370 = vadd.f32 0.0, %v369
        %v371 = vpop.f32.mrb[0].mxu0
        %v372 = vpop.f32.mrb[0].mxu0
        %v373 = vadd.f32 0.0, %v372
        %v374 = vpop.f32.mrb[0].mxu0
        %375 = vmatprep.mubr.bf16.mxu0 0
        %376 = vmatmul.mubr.bf16.gmra.mrb[0].mxu0 %v199
        %v377 = vpop.f32.mrb[0].mxu0
        %v378 = vadd.f32 0.0, %v377
        %v379 = vpop.f32.mrb[0].mxu0
        %v380 = vpop.f32.mrb[0].mxu0
        %v381 = vadd.f32 0.0, %v380
        %v382 = vpop.f32.mrb[0].mxu0
        %383 = vmatprep.mubr.bf16.mxu0 0
        %384 = vmatmul.mubr.bf16.gmra.mrb[0].mxu0 %v200
        %v385 = vpop.f32.mrb[0].mxu0
        %v386 = vadd.f32 0.0, %v385
        %v387 = vpop.f32.mrb[0].mxu0
        %v388 = vpop.f32.mrb[0].mxu0
        %v389 = vadd.f32 0.0, %v388
        %v390 = vpop.f32.mrb[0].mxu0
        %391 = vmatprep.mubr.bf16.mxu0 0
        %392 = vmatmul.mubr.bf16.gmra.mrb[0].mxu0 %v201
        %v393 = vpop.f32.mrb[0].mxu0
        %v394 = vadd.f32 0.0, %v393
        %v395 = vpop.f32.mrb[0].mxu0
        %v396 = vpop.f32.mrb[0].mxu0
        %v397 = vadd.f32 0.0, %v396
        %v398 = vpop.f32.mrb[0].mxu0
        %399 = vmatprep.mubr.bf16.mxu0 0
        %400 = vmatmul.mubr.bf16.gmra.mrb[0].mxu0 %v202
        %v401 = vpop.f32.mrb[0].mxu0
        %v402 = vadd.f32 0.0, %v401
        %v403 = vpop.f32.mrb[0].mxu0
        %v404 = vpop.f32.mrb[0].mxu0
        %v405 = vadd.f32 0.0, %v404
        %v406 = vpop.f32.mrb[0].mxu0
        %407 = vmatprep.mubr.bf16.mxu0 0
        %408 = vmatmul.mubr.bf16.gmra.mrb[0].mxu0 %v203
        %v409 = vpop.f32.mrb[0].mxu0
        %v410 = vadd.f32 0.0, %v409
        %v411 = vpop.f32.mrb[0].mxu0
        %v412 = vpop.f32.mrb[0].mxu0
        %v413 = vadd.f32 0.0, %v412
        %v414 = vpop.f32.mrb[0].mxu0
        %415 = vmatprep.mubr.bf16.mxu0 0
        %416 = vmatmul.mubr.bf16.gmra.mrb[0].mxu0 %v204
        %v417 = vpop.f32.mrb[0].mxu0
        %v418 = vadd.f32 0.0, %v417
        %v419 = vpop.f32.mrb[0].mxu0
        %v420 = vpop.f32.mrb[0].mxu0
        %v421 = vadd.f32 0.0, %v420
        %v422 = vpop.f32.mrb[0].mxu0
        %423 = vmatprep.mubr.bf16.mxu0 0
        %424 = vmatmul.mubr.bf16.gmra.mrb[0].mxu0 %v205
        %v425 = vpop.f32.mrb[0].mxu0
        %v426 = vadd.f32 0.0, %v425
        %v427 = vpop.f32.mrb[0].mxu0
        %v428 = vpop.f32.mrb[0].mxu0
        %v429 = vadd.f32 0.0, %v428
        %v430 = vpop.f32.mrb[0].mxu0
        %431 = vmatprep.mubr.bf16.mxu0 0
        %432 = vmatmul.mubr.bf16.gmra.mrb[0].mxu0 %v206
        %v433 = vpop.f32.mrb[0].mxu0
        %v434 = vadd.f32 0.0, %v433
        %v435 = vpop.f32.mrb[0].mxu0
        %v436 = vpop.f32.mrb[0].mxu0
        %v437 = vadd.f32 0.0, %v436
        %v438 = vpop.f32.mrb[0].mxu0
        %439 = vmatprep.mubr.bf16.mxu0 0
        %440 = vmatmul.mubr.bf16.gmra.mrb[0].mxu0 %v207
        %v441 = vpop.f32.mrb[0].mxu0
        %v442 = vadd.f32 0.0, %v441
        %v443 = vpop.f32.mrb[0].mxu0
        %v444 = vpop.f32.mrb[0].mxu0
        %v445 = vadd.f32 0.0, %v444
        %v446 = vpop.f32.mrb[0].mxu0
        %447 = vmatprep.mubr.bf16.mxu0 0
        %448 = vmatmul.mubr.bf16.gmra.mrb[0].mxu0 %v208
        %v449 = vpop.f32.mrb[0].mxu0
        %v450 = vadd.f32 0.0, %v449
        %v451 = vpop.f32.mrb[0].mxu0
        %v452 = vpop.f32.mrb[0].mxu0
        %v453 = vadd.f32 0.0, %v452
        %v454 = vpop.f32.mrb[0].mxu0
        %455 = vmatprep.mubr.bf16.mxu0 0
        %456 = vmatmul.mubr.bf16.gmra.mrb[0].mxu0 %v209
        %v457 = vpop.f32.mrb[0].mxu0
        %v458 = vadd.f32 0.0, %v457
        %v459 = vpop.f32.mrb[0].mxu0
        %v460 = vpop.f32.mrb[0].mxu0
        %v461 = vadd.f32 0.0, %v460
        %v462 = vpop.f32.mrb[0].mxu0
        %463 = vmatprep.mubr.bf16.mxu0 0
        %464 = vmatmul.mubr.bf16.gmra.mrb[0].mxu0 %v210
        %v465 = vpop.f32.mrb[0].mxu0
        %v466 = vadd.f32 0.0, %v465
        %v467 = vpop.f32.mrb[0].mxu0
        %v468 = vpop.f32.mrb[0].mxu0
        %v469 = vadd.f32 0.0, %v468
        %v470 = vpop.f32.mrb[0].mxu0
        %471 = vmatprep.mubr.bf16.mxu0 0
        %472 = vmatmul.mubr.bf16.gmra.mrb[0].mxu0 %v211
        %v473 = vpop.f32.mrb[0].mxu0
        %v474 = vadd.f32 0.0, %v473
        %v475 = vpop.f32.mrb[0].mxu0
        %v476 = vpop.f32.mrb[0].mxu0
        %v477 = vadd.f32 0.0, %v476
        %v478 = vpop.f32.mrb[0].mxu0
        %479 = vmatprep.mubr.bf16.mxu0 0
        %480 = vmatmul.mubr.bf16.gmra.mrb[0].mxu0 %v212
        %v481 = vpop.f32.mrb[0].mxu0
        %v482 = vadd.f32 0.0, %v481
        %v483 = vpop.f32.mrb[0].mxu0
        %v484 = vpop.f32.mrb[0].mxu0
        %v485 = vadd.f32 0.0, %v484
        %v486 = vpop.f32.mrb[0].mxu0
        %487 = vmatprep.mubr.bf16.mxu0 0
        %488 = vmatmul.mubr.bf16.gmra.mrb[0].mxu0 %v213
        %v489 = vpop.f32.mrb[0].mxu0
        %v490 = vadd.f32 0.0, %v489
        %v491 = vpop.f32.mrb[0].mxu0
        %v492 = vpop.f32.mrb[0].mxu0
        %v493 = vadd.f32 0.0, %v492
        %v494 = vpop.f32.mrb[0].mxu0
        %495 = vmatprep.mubr.bf16.mxu0 0
        %496 = vmatmul.mubr.bf16.gmra.mrb[0].mxu0 %v214
        %v497 = vpop.f32.mrb[0].mxu0
        %v498 = vadd.f32 0.0, %v497
        %v499 = vpop.f32.mrb[0].mxu0
        %v500 = vpop.f32.mrb[0].mxu0
        %v501 = vadd.f32 0.0, %v500
        %v502 = vpop.f32.mrb[0].mxu0
        %503 = vmatprep.mubr.bf16.mxu0 0
        %504 = vmatmul.mubr.bf16.gmra.mrb[0].mxu0 %v215
        %v505 = vpop.f32.mrb[0].mxu0
        %v506 = vadd.f32 0.0, %v505
        %v507 = vpop.f32.mrb[0].mxu0
        %v508 = vpop.f32.mrb[0].mxu0
        %v509 = vadd.f32 0.0, %v508
        %v510 = vpop.f32.mrb[0].mxu0
        %511 = vmatprep.mubr.bf16.mxu0 0
        %512 = vmatmul.mubr.bf16.gmra.mrb[0].mxu0 %v216
        %v513 = vpop.f32.mrb[0].mxu0
        %v514 = vadd.f32 0.0, %v513
        %v515 = vpop.f32.mrb[0].mxu0
        %v516 = vpop.f32.mrb[0].mxu0
        %v517 = vadd.f32 0.0, %v516
        %v518 = vpop.f32.mrb[0].mxu0
        %519 = vmatprep.mubr.bf16.mxu0 0
        %520 = vmatmul.mubr.bf16.gmra.mrb[0].mxu0 %v217
        %v521 = vpop.f32.mrb[0].mxu0
        %v522 = vadd.f32 0.0, %v521
        %v523 = vpop.f32.mrb[0].mxu0
        %v524 = vpop.f32.mrb[0].mxu0
        %v525 = vadd.f32 0.0, %v524
        %v526 = vpop.f32.mrb[0].mxu0
        %527 = vmatprep.mubr.bf16.mxu0 0
        %528 = vmatmul.mubr.bf16.gmra.mrb[0].mxu0 %v218
        %v529 = vpop.f32.mrb[0].mxu0
        %v530 = vadd.f32 0.0, %v529
        %v531 = vpop.f32.mrb[0].mxu0
        %v532 = vpop.f32.mrb[0].mxu0
        %v533 = vadd.f32 0.0, %v532
        %v534 = vpop.f32.mrb[0].mxu0
        %535 = vmatprep.mubr.bf16.mxu0 0
        %536 = vmatmul.mubr.bf16.gmra.mrb[0].mxu0 %v219
        %v537 = vpop.f32.mrb[0].mxu0
        %v538 = vadd.f32 0.0, %v537
        %v539 = vpop.f32.mrb[0].mxu0
        %v540 = vpop.f32.mrb[0].mxu0
        %v541 = vadd.f32 0.0, %v540
        %v542 = vpop.f32.mrb[0].mxu0
        %543 = vmatprep.mubr.bf16.mxu0 0
        %544 = vmatmul.mubr.bf16.gmra.mrb[0].mxu0 %v220
        %v545 = vpop.f32.mrb[0].mxu0
        %v546 = vadd.f32 0.0, %v545
        %v547 = vpop.f32.mrb[0].mxu0
        %v548 = vpop.f32.mrb[0].mxu0
        %v549 = vadd.f32 0.0, %v548
        %v550 = vpop.f32.mrb[0].mxu0
        %551 = vmatprep.mubr.bf16.mxu0 0
        %552 = vmatmul.mubr.bf16.gmra.mrb[0].mxu0 %v221
        %v553 = vpop.f32.mrb[0].mxu0
        %v554 = vadd.f32 0.0, %v553
        %v555 = vpop.f32.mrb[0].mxu0
        %v556 = vpop.f32.mrb[0].mxu0
        %v557 = vadd.f32 0.0, %v556
        %v558 = vpop.f32.mrb[0].mxu0
        %559 = vmatprep.mubr.bf16.mxu0 0
        %560 = vmatmul.mubr.bf16.gmra.mrb[0].mxu0 %v222
        %v561 = vpop.f32.mrb[0].mxu0
        %v562 = vadd.f32 0.0, %v561
        %v563 = vpop.f32.mrb[0].mxu0
        %v564 = vpop.f32.mrb[0].mxu0
        %v565 = vadd.f32 0.0, %v564
        %v566 = vpop.f32.mrb[0].mxu0
        %567 = vmatprep.mubr.bf16.mxu0 0
        %568 = vmatmul.mubr.bf16.gmra.mrb[0].mxu0 %v223
        %v569 = vpop.f32.mrb[0].mxu0
        %v570 = vadd.f32 0.0, %v569
        %v571 = vpop.f32.mrb[0].mxu0
        %v572 = vpop.f32.mrb[0].mxu0
        %v573 = vadd.f32 0.0, %v572
        %v574 = vpop.f32.mrb[0].mxu0
        %575 = vmatprep.mubr.bf16.mxu0 0
        %576 = vmatmul.mubr.bf16.gmra.mrb[0].mxu0 %v224
        %v577 = vpop.f32.mrb[0].mxu0
        %v578 = vadd.f32 0.0, %v577
        %v579 = vpop.f32.mrb[0].mxu0
        %v580 = vpop.f32.mrb[0].mxu0
        %v581 = vadd.f32 0.0, %v580
        %v582 = vpop.f32.mrb[0].mxu0
        %583 = vmatprep.mubr.bf16.mxu0 0
        %584 = vmatmul.mubr.bf16.gmra.mrb[0].mxu0 %v225
        %v585 = vpop.f32.mrb[0].mxu0
        %v586 = vadd.f32 0.0, %v585
        %v587 = vpop.f32.mrb[0].mxu0
        %v588 = vpop.f32.mrb[0].mxu0
        %v589 = vadd.f32 0.0, %v588
        %v590 = vpop.f32.mrb[0].mxu0
        %591 = vmatprep.mubr.bf16.mxu0 0
        %592 = vmatmul.mubr.bf16.gmra.mrb[0].mxu0 %v226
        %v593 = vpop.f32.mrb[0].mxu0
        %v594 = vadd.f32 0.0, %v593
        %v595 = vpop.f32.mrb[0].mxu0
        %v596 = vpop.f32.mrb[0].mxu0
        %v597 = vadd.f32 0.0, %v596
        %v598 = vpop.f32.mrb[0].mxu0
        %599 = vdwg.mxu0
        %v616 = vunpack.c.l.b16 %v230
        %v617 = vunpack.c.l.b16 %v231
        %v618 = vunpack.c.l.b16 %v232
        %v619 = vunpack.c.l.b16 %v233
        %v620 = vunpack.c.l.b16 %v234
        %v621 = vunpack.c.l.b16 %v235
        %v622 = vunpack.c.l.b16 %v236
        %v623 = vunpack.c.l.b16 %v237
        %v624 = vunpack.c.l.b16 %v238
        %v625 = vunpack.c.l.b16 %v239
        %v626 = vunpack.c.l.b16 %v240
        %v627 = vunpack.c.l.b16 %v241
        %v628 = vunpack.c.l.b16 %v242
        %v629 = vunpack.c.l.b16 %v243
        %v630 = vunpack.c.l.b16 %v244
        %v631 = vunpack.c.l.b16 %v245
        %v632 = vpack.c.b16 %v617, %v616
        %v633 = vpack.c.b16 %v619, %v618
        %v634 = vpack.c.b16 %v621, %v620
        %v635 = vpack.c.b16 %v623, %v622
        %v636 = vpack.c.b16 %v625, %v624
        %v637 = vpack.c.b16 %v627, %v626
        %v638 = vpack.c.b16 %v629, %v628
        %v639 = vpack.c.b16 %v631, %v630
        %648 = vmatprep.subr.bf16.mxu0 0
        %649 = vmatpush1.bf16.msra.mxu0 %v632
        %650 = vmatprep.subr.bf16.mxu0 0
        %651 = vmatpush1.bf16.msra.mxu0 %v633
        %652 = vmatprep.subr.bf16.mxu0 0
        %653 = vmatpush1.bf16.msra.mxu0 %v634
        %654 = vmatprep.subr.bf16.mxu0 0
        %655 = vmatpush1.bf16.msra.mxu0 %v635
        %656 = vmatprep.subr.bf16.mxu0 0
        %657 = vmatpush1.bf16.msra.mxu0 %v636
        %658 = vmatprep.subr.bf16.mxu0 0
        %659 = vmatpush1.bf16.msra.mxu0 %v637
        %660 = vmatprep.subr.bf16.mxu0 0
        %661 = vmatpush1.bf16.msra.mxu0 %v638
        %662 = vmatprep.subr.bf16.mxu0 0
        %663 = vmatpush1.bf16.msra.mxu0 %v639
        %664 = vmatprep.subr.bf16.mxu0 0
        %665 = vmatpush1.bf16.msra.mxu0 0
        %666 = vmatprep.subr.bf16.mxu0 0
        %667 = vmatpush1.bf16.msra.mxu0 0
        %668 = vmatprep.subr.bf16.mxu0 0
        %669 = vmatpush1.bf16.msra.mxu0 0
        %670 = vmatprep.subr.bf16.mxu0 0
        %671 = vmatpush1.bf16.msra.mxu0 0
        %672 = vmatprep.subr.bf16.mxu0 0
        %673 = vmatpush1.bf16.msra.mxu0 0
        %674 = vmatprep.subr.bf16.mxu0 0
        %675 = vmatpush1.bf16.msra.mxu0 0
        %676 = vmatprep.subr.bf16.mxu0 0
        %677 = vmatpush1.bf16.msra.mxu0 0
        %678 = vmatprep.subr.bf16.mxu0 0
        %679 = vmatpush1.bf16.msra.mxu0 0
        %680 = vmatprep.mubr.bf16.mxu0 0
        %681 = vmatmul.mubr.bf16.gmra.mrb[0].mxu0 %v193
        %v682 = vpop.f32.mrb[0].mxu0
        %v683 = vadd.f32 %v346, %v682
        %v684 = vpop.f32.mrb[0].mxu0
        %v685 = vpop.f32.mrb[0].mxu0
        %v686 = vadd.f32 %v349, %v685
        %v687 = vpop.f32.mrb[0].mxu0
        %688 = vmatprep.mubr.bf16.mxu0 0
        %689 = vmatmul.mubr.bf16.gmra.mrb[0].mxu0 %v194
        %v690 = vpop.f32.mrb[0].mxu0
        %v691 = vadd.f32 %v354, %v690
        %v692 = vpop.f32.mrb[0].mxu0
        %v693 = vpop.f32.mrb[0].mxu0
        %v694 = vadd.f32 %v357, %v693
        %v695 = vpop.f32.mrb[0].mxu0
        %696 = vmatprep.mubr.bf16.mxu0 0
        %697 = vmatmul.mubr.bf16.gmra.mrb[0].mxu0 %v195
        %v698 = vpop.f32.mrb[0].mxu0
        %v699 = vadd.f32 %v362, %v698
        %v700 = vpop.f32.mrb[0].mxu0
        %v701 = vpop.f32.mrb[0].mxu0
        %v702 = vadd.f32 %v365, %v701
        %v703 = vpop.f32.mrb[0].mxu0
        %704 = vmatprep.mubr.bf16.mxu0 0
        %705 = vmatmul.mubr.bf16.gmra.mrb[0].mxu0 %v196
        %v706 = vpop.f32.mrb[0].mxu0
        %v707 = vadd.f32 %v370, %v706
        %v708 = vpop.f32.mrb[0].mxu0
        %v709 = vpop.f32.mrb[0].mxu0
        %v710 = vadd.f32 %v373, %v709
        %v711 = vpop.f32.mrb[0].mxu0
        %712 = vmatprep.mubr.bf16.mxu0 0
        %713 = vmatmul.mubr.bf16.gmra.mrb[0].mxu0 %v197
        %v714 = vpop.f32.mrb[0].mxu0
        %v715 = vadd.f32 %v378, %v714
        %v716 = vpop.f32.mrb[0].mxu0
        %v717 = vpop.f32.mrb[0].mxu0
        %v718 = vadd.f32 %v381, %v717
        %v719 = vpop.f32.mrb[0].mxu0
        %720 = vmatprep.mubr.bf16.mxu0 0
        %721 = vmatmul.mubr.bf16.gmra.mrb[0].mxu0 %v198
        %v722 = vpop.f32.mrb[0].mxu0
        %v723 = vadd.f32 %v386, %v722
        %v724 = vpop.f32.mrb[0].mxu0
        %v725 = vpop.f32.mrb[0].mxu0
        %v726 = vadd.f32 %v389, %v725
        %v727 = vpop.f32.mrb[0].mxu0
        %728 = vmatprep.mubr.bf16.mxu0 0
        %729 = vmatmul.mubr.bf16.gmra.mrb[0].mxu0 %v199
        %v730 = vpop.f32.mrb[0].mxu0
        %v731 = vadd.f32 %v394, %v730
        %v732 = vpop.f32.mrb[0].mxu0
        %v733 = vpop.f32.mrb[0].mxu0
        %v734 = vadd.f32 %v397, %v733
        %v735 = vpop.f32.mrb[0].mxu0
        %736 = vmatprep.mubr.bf16.mxu0 0
        %737 = vmatmul.mubr.bf16.gmra.mrb[0].mxu0 %v200
        %v738 = vpop.f32.mrb[0].mxu0
        %v739 = vadd.f32 %v402, %v738
        %v740 = vpop.f32.mrb[0].mxu0
        %v741 = vpop.f32.mrb[0].mxu0
        %v742 = vadd.f32 %v405, %v741
        %v743 = vpop.f32.mrb[0].mxu0
        %744 = vmatprep.mubr.bf16.mxu0 0
        %745 = vmatmul.mubr.bf16.gmra.mrb[0].mxu0 %v201
        %v746 = vpop.f32.mrb[0].mxu0
        %v747 = vadd.f32 %v410, %v746
        %v748 = vpop.f32.mrb[0].mxu0
        %v749 = vpop.f32.mrb[0].mxu0
        %v750 = vadd.f32 %v413, %v749
        %v751 = vpop.f32.mrb[0].mxu0
        %752 = vmatprep.mubr.bf16.mxu0 0
        %753 = vmatmul.mubr.bf16.gmra.mrb[0].mxu0 %v202
        %v754 = vpop.f32.mrb[0].mxu0
        %v755 = vadd.f32 %v418, %v754
        %v756 = vpop.f32.mrb[0].mxu0
        %v757 = vpop.f32.mrb[0].mxu0
        %v758 = vadd.f32 %v421, %v757
        %v759 = vpop.f32.mrb[0].mxu0
        %760 = vmatprep.mubr.bf16.mxu0 0
        %761 = vmatmul.mubr.bf16.gmra.mrb[0].mxu0 %v203
        %v762 = vpop.f32.mrb[0].mxu0
        %v763 = vadd.f32 %v426, %v762
        %v764 = vpop.f32.mrb[0].mxu0
        %v765 = vpop.f32.mrb[0].mxu0
        %v766 = vadd.f32 %v429, %v765
        %v767 = vpop.f32.mrb[0].mxu0
        %768 = vmatprep.mubr.bf16.mxu0 0
        %769 = vmatmul.mubr.bf16.gmra.mrb[0].mxu0 %v204
        %v770 = vpop.f32.mrb[0].mxu0
        %v771 = vadd.f32 %v434, %v770
        %v772 = vpop.f32.mrb[0].mxu0
        %v773 = vpop.f32.mrb[0].mxu0
        %v774 = vadd.f32 %v437, %v773
        %v775 = vpop.f32.mrb[0].mxu0
        %776 = vmatprep.mubr.bf16.mxu0 0
        %777 = vmatmul.mubr.bf16.gmra.mrb[0].mxu0 %v205
        %v778 = vpop.f32.mrb[0].mxu0
        %v779 = vadd.f32 %v442, %v778
        %v780 = vpop.f32.mrb[0].mxu0
        %v781 = vpop.f32.mrb[0].mxu0
        %v782 = vadd.f32 %v445, %v781
        %v783 = vpop.f32.mrb[0].mxu0
        %784 = vmatprep.mubr.bf16.mxu0 0
        %785 = vmatmul.mubr.bf16.gmra.mrb[0].mxu0 %v206
        %v786 = vpop.f32.mrb[0].mxu0
        %v787 = vadd.f32 %v450, %v786
        %v788 = vpop.f32.mrb[0].mxu0
        %v789 = vpop.f32.mrb[0].mxu0
        %v790 = vadd.f32 %v453, %v789
        %v791 = vpop.f32.mrb[0].mxu0
        %792 = vmatprep.mubr.bf16.mxu0 0
        %793 = vmatmul.mubr.bf16.gmra.mrb[0].mxu0 %v207
        %v794 = vpop.f32.mrb[0].mxu0
        %v795 = vadd.f32 %v458, %v794
        %v796 = vpop.f32.mrb[0].mxu0
        %v797 = vpop.f32.mrb[0].mxu0
        %v798 = vadd.f32 %v461, %v797
        %v799 = vpop.f32.mrb[0].mxu0
        %800 = vmatprep.mubr.bf16.mxu0 0
        %801 = vmatmul.mubr.bf16.gmra.mrb[0].mxu0 %v208
        %v802 = vpop.f32.mrb[0].mxu0
        %v803 = vadd.f32 %v466, %v802
        %v804 = vpop.f32.mrb[0].mxu0
        %v805 = vpop.f32.mrb[0].mxu0
        %v806 = vadd.f32 %v469, %v805
        %v807 = vpop.f32.mrb[0].mxu0
        %808 = vmatprep.mubr.bf16.mxu0 0
        %809 = vmatmul.mubr.bf16.gmra.mrb[0].mxu0 %v209
        %v810 = vpop.f32.mrb[0].mxu0
        %v811 = vadd.f32 %v474, %v810
        %v812 = vpop.f32.mrb[0].mxu0
        %v813 = vpop.f32.mrb[0].mxu0
        %v814 = vadd.f32 %v477, %v813
        %v815 = vpop.f32.mrb[0].mxu0
        %816 = vmatprep.mubr.bf16.mxu0 0
        %817 = vmatmul.mubr.bf16.gmra.mrb[0].mxu0 %v210
        %v818 = vpop.f32.mrb[0].mxu0
        %v819 = vadd.f32 %v482, %v818
        %v820 = vpop.f32.mrb[0].mxu0
        %v821 = vpop.f32.mrb[0].mxu0
        %v822 = vadd.f32 %v485, %v821
        %v823 = vpop.f32.mrb[0].mxu0
        %824 = vmatprep.mubr.bf16.mxu0 0
        %825 = vmatmul.mubr.bf16.gmra.mrb[0].mxu0 %v211
        %v826 = vpop.f32.mrb[0].mxu0
        %v827 = vadd.f32 %v490, %v826
        %v828 = vpop.f32.mrb[0].mxu0
        %v829 = vpop.f32.mrb[0].mxu0
        %v830 = vadd.f32 %v493, %v829
        %v831 = vpop.f32.mrb[0].mxu0
        %832 = vmatprep.mubr.bf16.mxu0 0
        %833 = vmatmul.mubr.bf16.gmra.mrb[0].mxu0 %v212
        %v834 = vpop.f32.mrb[0].mxu0
        %v835 = vadd.f32 %v498, %v834
        %v836 = vpop.f32.mrb[0].mxu0
        %v837 = vpop.f32.mrb[0].mxu0
        %v838 = vadd.f32 %v501, %v837
        %v839 = vpop.f32.mrb[0].mxu0
        %840 = vmatprep.mubr.bf16.mxu0 0
        %841 = vmatmul.mubr.bf16.gmra.mrb[0].mxu0 %v213
        %v842 = vpop.f32.mrb[0].mxu0
        %v843 = vadd.f32 %v506, %v842
        %v844 = vpop.f32.mrb[0].mxu0
        %v845 = vpop.f32.mrb[0].mxu0
        %v846 = vadd.f32 %v509, %v845
        %v847 = vpop.f32.mrb[0].mxu0
        %848 = vmatprep.mubr.bf16.mxu0 0
        %849 = vmatmul.mubr.bf16.gmra.mrb[0].mxu0 %v214
        %v850 = vpop.f32.mrb[0].mxu0
        %v851 = vadd.f32 %v514, %v850
        %v852 = vpop.f32.mrb[0].mxu0
        %v853 = vpop.f32.mrb[0].mxu0
        %v854 = vadd.f32 %v517, %v853
        %v855 = vpop.f32.mrb[0].mxu0
        %856 = vmatprep.mubr.bf16.mxu0 0
        %857 = vmatmul.mubr.bf16.gmra.mrb[0].mxu0 %v215
        %v858 = vpop.f32.mrb[0].mxu0
        %v859 = vadd.f32 %v522, %v858
        %v860 = vpop.f32.mrb[0].mxu0
        %v861 = vpop.f32.mrb[0].mxu0
        %v862 = vadd.f32 %v525, %v861
        %v863 = vpop.f32.mrb[0].mxu0
        %864 = vmatprep.mubr.bf16.mxu0 0
        %865 = vmatmul.mubr.bf16.gmra.mrb[0].mxu0 %v216
        %v866 = vpop.f32.mrb[0].mxu0
        %v867 = vadd.f32 %v530, %v866
        %v868 = vpop.f32.mrb[0].mxu0
        %v869 = vpop.f32.mrb[0].mxu0
        %v870 = vadd.f32 %v533, %v869
        %v871 = vpop.f32.mrb[0].mxu0
        %872 = vmatprep.mubr.bf16.mxu0 0
        %873 = vmatmul.mubr.bf16.gmra.mrb[0].mxu0 %v217
        %v874 = vpop.f32.mrb[0].mxu0
        %v875 = vadd.f32 %v538, %v874
        %v876 = vpop.f32.mrb[0].mxu0
        %v877 = vpop.f32.mrb[0].mxu0
        %v878 = vadd.f32 %v541, %v877
        %v879 = vpop.f32.mrb[0].mxu0
        %880 = vmatprep.mubr.bf16.mxu0 0
        %881 = vmatmul.mubr.bf16.gmra.mrb[0].mxu0 %v218
        %v882 = vpop.f32.mrb[0].mxu0
        %v883 = vadd.f32 %v546, %v882
        %v884 = vpop.f32.mrb[0].mxu0
        %v885 = vpop.f32.mrb[0].mxu0
        %v886 = vadd.f32 %v549, %v885
        %v887 = vpop.f32.mrb[0].mxu0
        %888 = vmatprep.mubr.bf16.mxu0 0
        %889 = vmatmul.mubr.bf16.gmra.mrb[0].mxu0 %v219
        %v890 = vpop.f32.mrb[0].mxu0
        %v891 = vadd.f32 %v554, %v890
        %v892 = vpop.f32.mrb[0].mxu0
        %v893 = vpop.f32.mrb[0].mxu0
        %v894 = vadd.f32 %v557, %v893
        %v895 = vpop.f32.mrb[0].mxu0
        %896 = vmatprep.mubr.bf16.mxu0 0
        %897 = vmatmul.mubr.bf16.gmra.mrb[0].mxu0 %v220
        %v898 = vpop.f32.mrb[0].mxu0
        %v899 = vadd.f32 %v562, %v898
        %v900 = vpop.f32.mrb[0].mxu0
        %v901 = vpop.f32.mrb[0].mxu0
        %v902 = vadd.f32 %v565, %v901
        %v903 = vpop.f32.mrb[0].mxu0
        %904 = vmatprep.mubr.bf16.mxu0 0
        %905 = vmatmul.mubr.bf16.gmra.mrb[0].mxu0 %v221
        %v906 = vpop.f32.mrb[0].mxu0
        %v907 = vadd.f32 %v570, %v906
        %v908 = vpop.f32.mrb[0].mxu0
        %v909 = vpop.f32.mrb[0].mxu0
        %v910 = vadd.f32 %v573, %v909
        %v911 = vpop.f32.mrb[0].mxu0
        %912 = vmatprep.mubr.bf16.mxu0 0
        %913 = vmatmul.mubr.bf16.gmra.mrb[0].mxu0 %v222
        %v914 = vpop.f32.mrb[0].mxu0
        %v915 = vadd.f32 %v578, %v914
        %v916 = vpop.f32.mrb[0].mxu0
        %v917 = vpop.f32.mrb[0].mxu0
        %v918 = vadd.f32 %v581, %v917
        %v919 = vpop.f32.mrb[0].mxu0
        %920 = vmatprep.mubr.bf16.mxu0 0
        %921 = vmatmul.mubr.bf16.gmra.mrb[0].mxu0 %v223
        %v922 = vpop.f32.mrb[0].mxu0
        %v923 = vadd.f32 %v586, %v922
        %v924 = vpop.f32.mrb[0].mxu0
        %v925 = vpop.f32.mrb[0].mxu0
        %v926 = vadd.f32 %v589, %v925
        %v927 = vpop.f32.mrb[0].mxu0
        %928 = vmatprep.mubr.bf16.mxu0 0
        %929 = vmatmul.mubr.bf16.gmra.mrb[0].mxu0 %v224
        %v930 = vpop.f32.mrb[0].mxu0
        %v931 = vadd.f32 %v594, %v930
        %v932 = vpop.f32.mrb[0].mxu0
        %v933 = vpop.f32.mrb[0].mxu0
        %v934 = vadd.f32 %v597, %v933
        %v935 = vpop.f32.mrb[0].mxu0
        %936 = vdwg.mxu0
        %s937 = scalar_lea.vmem [#allocation4], 512
        %v938 = vld [vmem:[%s937] sm:$0xf]
        %v939 = vld [vmem:[%s937 + $0x4] sm:$0xf]
        %v940 = vld [vmem:[%s937 + $0x8] sm:$0xf]
        %v941 = vld [vmem:[%s937 + $0xc] sm:$0xf]
        %v942 = vld [vmem:[%s937 + $0x10] sm:$0xf]
        %v943 = vld [vmem:[%s937 + $0x14] sm:$0xf]
        %v944 = vld [vmem:[%s937 + $0x18] sm:$0xf]
        %v945 = vld [vmem:[%s937 + $0x1c] sm:$0xf]
        %v946 = vld [vmem:[%s937 + $0x20] sm:$0xf]
        %v947 = vld [vmem:[%s937 + $0x24] sm:$0xf]
        %v948 = vld [vmem:[%s937 + $0x28] sm:$0xf]
        %v949 = vld [vmem:[%s937 + $0x2c] sm:$0xf]
        %v950 = vld [vmem:[%s937 + $0x30] sm:$0xf]
        %v951 = vld [vmem:[%s937 + $0x34] sm:$0xf]
        %v952 = vld [vmem:[%s937 + $0x38] sm:$0xf]
        %v953 = vld [vmem:[%s937 + $0x3c] sm:$0xf]
        %v970 = vunpack.c.l.b16 %v938
        %v971 = vunpack.c.l.b16 %v939
        %v972 = vunpack.c.l.b16 %v940
        %v973 = vunpack.c.l.b16 %v941
        %v974 = vunpack.c.l.b16 %v942
        %v975 = vunpack.c.l.b16 %v943
        %v976 = vunpack.c.l.b16 %v944
        %v977 = vunpack.c.l.b16 %v945
        %v978 = vunpack.c.l.b16 %v946
        %v979 = vunpack.c.l.b16 %v947
        %v980 = vunpack.c.l.b16 %v948
        %v981 = vunpack.c.l.b16 %v949
        %v982 = vunpack.c.l.b16 %v950
        %v983 = vunpack.c.l.b16 %v951
        %v984 = vunpack.c.l.b16 %v952
        %v985 = vunpack.c.l.b16 %v953
        %v986 = vpack.c.b16 %v971, %v970
        %v987 = vpack.c.b16 %v973, %v972
        %v988 = vpack.c.b16 %v975, %v974
        %v989 = vpack.c.b16 %v977, %v976
        %v990 = vpack.c.b16 %v979, %v978
        %v991 = vpack.c.b16 %v981, %v980
        %v992 = vpack.c.b16 %v983, %v982
        %v993 = vpack.c.b16 %v985, %v984
        %1002 = vmatprep.subr.bf16.mxu0 0
        %1003 = vmatpush1.bf16.msra.mxu0 %v986
        %1004 = vmatprep.subr.bf16.mxu0 0
        %1005 = vmatpush1.bf16.msra.mxu0 %v987
        %1006 = vmatprep.subr.bf16.mxu0 0
        %1007 = vmatpush1.bf16.msra.mxu0 %v988
        %1008 = vmatprep.subr.bf16.mxu0 0
        %1009 = vmatpush1.bf16.msra.mxu0 %v989
        %1010 = vmatprep.subr.bf16.mxu0 0
        %1011 = vmatpush1.bf16.msra.mxu0 %v990
        %1012 = vmatprep.subr.bf16.mxu0 0
        %1013 = vmatpush1.bf16.msra.mxu0 %v991
        %1014 = vmatprep.subr.bf16.mxu0 0
        %1015 = vmatpush1.bf16.msra.mxu0 %v992
        %1016 = vmatprep.subr.bf16.mxu0 0
        %1017 = vmatpush1.bf16.msra.mxu0 %v993
        %1018 = vmatprep.subr.bf16.mxu0 0
        %1019 = vmatpush1.bf16.msra.mxu0 0
        %1020 = vmatprep.subr.bf16.mxu0 0
        %1021 = vmatpush1.bf16.msra.mxu0 0
        %1022 = vmatprep.subr.bf16.mxu0 0
        %1023 = vmatpush1.bf16.msra.mxu0 0
        %1024 = vmatprep.subr.bf16.mxu0 0
        %1025 = vmatpush1.bf16.msra.mxu0 0
        %1026 = vmatprep.subr.bf16.mxu0 0
        %1027 = vmatpush1.bf16.msra.mxu0 0
        %1028 = vmatprep.subr.bf16.mxu0 0
        %1029 = vmatpush1.bf16.msra.mxu0 0
        %1030 = vmatprep.subr.bf16.mxu0 0
        %1031 = vmatpush1.bf16.msra.mxu0 0
        %1032 = vmatprep.subr.bf16.mxu0 0
        %1033 = vmatpush1.bf16.msra.mxu0 0
        %1034 = vmatprep.mubr.bf16.mxu0 0
        %1035 = vmatmul.mubr.bf16.gmra.mrb[0].mxu0 %v197
        %v1036 = vpop.f32.mrb[0].mxu0
        %v1037 = vadd.f32 0.0, %v1036
        %v1038 = vpop.f32.mrb[0].mxu0
        %v1039 = vpop.f32.mrb[0].mxu0
        %v1040 = vadd.f32 0.0, %v1039
        %v1041 = vpop.f32.mrb[0].mxu0
        %1042 = vmatprep.mubr.bf16.mxu0 0
        %1043 = vmatmul.mubr.bf16.gmra.mrb[0].mxu0 %v198
        %v1044 = vpop.f32.mrb[0].mxu0
        %v1045 = vadd.f32 0.0, %v1044
        %v1046 = vpop.f32.mrb[0].mxu0
        %v1047 = vpop.f32.mrb[0].mxu0
        %v1048 = vadd.f32 0.0, %v1047
        %v1049 = vpop.f32.mrb[0].mxu0
        %1050 = vmatprep.mubr.bf16.mxu0 0
        %1051 = vmatmul.mubr.bf16.gmra.mrb[0].mxu0 %v199
        %v1052 = vpop.f32.mrb[0].mxu0
        %v1053 = vadd.f32 0.0, %v1052
        %v1054 = vpop.f32.mrb[0].mxu0
        %v1055 = vpop.f32.mrb[0].mxu0
        %v1056 = vadd.f32 0.0, %v1055
        %v1057 = vpop.f32.mrb[0].mxu0
        %1058 = vmatprep.mubr.bf16.mxu0 0
        %1059 = vmatmul.mubr.bf16.gmra.mrb[0].mxu0 %v200
        %v1060 = vpop.f32.mrb[0].mxu0
        %v1061 = vadd.f32 0.0, %v1060
        %v1062 = vpop.f32.mrb[0].mxu0
        %v1063 = vpop.f32.mrb[0].mxu0
        %v1064 = vadd.f32 0.0, %v1063
        %v1065 = vpop.f32.mrb[0].mxu0
        %1066 = vmatprep.mubr.bf16.mxu0 0
        %1067 = vmatmul.mubr.bf16.gmra.mrb[0].mxu0 %v201
        %v1068 = vpop.f32.mrb[0].mxu0
        %v1069 = vadd.f32 0.0, %v1068
        %v1070 = vpop.f32.mrb[0].mxu0
        %v1071 = vpop.f32.mrb[0].mxu0
        %v1072 = vadd.f32 0.0, %v1071
        %v1073 = vpop.f32.mrb[0].mxu0
        %1074 = vmatprep.mubr.bf16.mxu0 0
        %1075 = vmatmul.mubr.bf16.gmra.mrb[0].mxu0 %v202
        %v1076 = vpop.f32.mrb[0].mxu0
        %v1077 = vadd.f32 0.0, %v1076
        %v1078 = vpop.f32.mrb[0].mxu0
        %v1079 = vpop.f32.mrb[0].mxu0
        %v1080 = vadd.f32 0.0, %v1079
        %v1081 = vpop.f32.mrb[0].mxu0
        %1082 = vmatprep.mubr.bf16.mxu0 0
        %1083 = vmatmul.mubr.bf16.gmra.mrb[0].mxu0 %v203
        %v1084 = vpop.f32.mrb[0].mxu0
        %v1085 = vadd.f32 0.0, %v1084
        %v1086 = vpop.f32.mrb[0].mxu0
        %v1087 = vpop.f32.mrb[0].mxu0
        %v1088 = vadd.f32 0.0, %v1087
        %v1089 = vpop.f32.mrb[0].mxu0
        %1090 = vmatprep.mubr.bf16.mxu0 0
        %1091 = vmatmul.mubr.bf16.gmra.mrb[0].mxu0 %v204
        %v1092 = vpop.f32.mrb[0].mxu0
        %v1093 = vadd.f32 0.0, %v1092
        %v1094 = vpop.f32.mrb[0].mxu0
        %v1095 = vpop.f32.mrb[0].mxu0
        %v1096 = vadd.f32 0.0, %v1095
        %v1097 = vpop.f32.mrb[0].mxu0
        %1098 = vmatprep.mubr.bf16.mxu0 0
        %1099 = vmatmul.mubr.bf16.gmra.mrb[0].mxu0 %v205
        %v1100 = vpop.f32.mrb[0].mxu0
        %v1101 = vadd.f32 0.0, %v1100
        %v1102 = vpop.f32.mrb[0].mxu0
        %v1103 = vpop.f32.mrb[0].mxu0
        %v1104 = vadd.f32 0.0, %v1103
        %v1105 = vpop.f32.mrb[0].mxu0
        %1106 = vmatprep.mubr.bf16.mxu0 0
        %1107 = vmatmul.mubr.bf16.gmra.mrb[0].mxu0 %v206
        %v1108 = vpop.f32.mrb[0].mxu0
        %v1109 = vadd.f32 0.0, %v1108
        %v1110 = vpop.f32.mrb[0].mxu0
        %v1111 = vpop.f32.mrb[0].mxu0
        %v1112 = vadd.f32 0.0, %v1111
        %v1113 = vpop.f32.mrb[0].mxu0
        %1114 = vmatprep.mubr.bf16.mxu0 0
        %1115 = vmatmul.mubr.bf16.gmra.mrb[0].mxu0 %v207
        %v1116 = vpop.f32.mrb[0].mxu0
        %v1117 = vadd.f32 0.0, %v1116
        %v1118 = vpop.f32.mrb[0].mxu0
        %v1119 = vpop.f32.mrb[0].mxu0
        %v1120 = vadd.f32 0.0, %v1119
        %v1121 = vpop.f32.mrb[0].mxu0
        %1122 = vmatprep.mubr.bf16.mxu0 0
        %1123 = vmatmul.mubr.bf16.gmra.mrb[0].mxu0 %v208
        %v1124 = vpop.f32.mrb[0].mxu0
        %v1125 = vadd.f32 0.0, %v1124
        %v1126 = vpop.f32.mrb[0].mxu0
        %v1127 = vpop.f32.mrb[0].mxu0
        %v1128 = vadd.f32 0.0, %v1127
        %v1129 = vpop.f32.mrb[0].mxu0
        %1130 = vmatprep.mubr.bf16.mxu0 0
        %1131 = vmatmul.mubr.bf16.gmra.mrb[0].mxu0 %v209
        %v1132 = vpop.f32.mrb[0].mxu0
        %v1133 = vadd.f32 0.0, %v1132
        %v1134 = vpop.f32.mrb[0].mxu0
        %v1135 = vpop.f32.mrb[0].mxu0
        %v1136 = vadd.f32 0.0, %v1135
        %v1137 = vpop.f32.mrb[0].mxu0
        %1138 = vmatprep.mubr.bf16.mxu0 0
        %1139 = vmatmul.mubr.bf16.gmra.mrb[0].mxu0 %v210
        %v1140 = vpop.f32.mrb[0].mxu0
        %v1141 = vadd.f32 0.0, %v1140
        %v1142 = vpop.f32.mrb[0].mxu0
        %v1143 = vpop.f32.mrb[0].mxu0
        %v1144 = vadd.f32 0.0, %v1143
        %v1145 = vpop.f32.mrb[0].mxu0
        %1146 = vmatprep.mubr.bf16.mxu0 0
        %1147 = vmatmul.mubr.bf16.gmra.mrb[0].mxu0 %v211
        %v1148 = vpop.f32.mrb[0].mxu0
        %v1149 = vadd.f32 0.0, %v1148
        %v1150 = vpop.f32.mrb[0].mxu0
        %v1151 = vpop.f32.mrb[0].mxu0
        %v1152 = vadd.f32 0.0, %v1151
        %v1153 = vpop.f32.mrb[0].mxu0
        %1154 = vmatprep.mubr.bf16.mxu0 0
        %1155 = vmatmul.mubr.bf16.gmra.mrb[0].mxu0 %v212
        %v1156 = vpop.f32.mrb[0].mxu0
        %v1157 = vadd.f32 0.0, %v1156
        %v1158 = vpop.f32.mrb[0].mxu0
        %v1159 = vpop.f32.mrb[0].mxu0
        %v1160 = vadd.f32 0.0, %v1159
        %v1161 = vpop.f32.mrb[0].mxu0
        %1162 = vmatprep.mubr.bf16.mxu0 0
        %1163 = vmatmul.mubr.bf16.gmra.mrb[0].mxu0 %v213
        %v1164 = vpop.f32.mrb[0].mxu0
        %v1165 = vadd.f32 0.0, %v1164
        %v1166 = vpop.f32.mrb[0].mxu0
        %v1167 = vpop.f32.mrb[0].mxu0
        %v1168 = vadd.f32 0.0, %v1167
        %v1169 = vpop.f32.mrb[0].mxu0
        %1170 = vmatprep.mubr.bf16.mxu0 0
        %1171 = vmatmul.mubr.bf16.gmra.mrb[0].mxu0 %v214
        %v1172 = vpop.f32.mrb[0].mxu0
        %v1173 = vadd.f32 0.0, %v1172
        %v1174 = vpop.f32.mrb[0].mxu0
        %v1175 = vpop.f32.mrb[0].mxu0
        %v1176 = vadd.f32 0.0, %v1175
        %v1177 = vpop.f32.mrb[0].mxu0
        %1178 = vmatprep.mubr.bf16.mxu0 0
        %1179 = vmatmul.mubr.bf16.gmra.mrb[0].mxu0 %v215
        %v1180 = vpop.f32.mrb[0].mxu0
        %v1181 = vadd.f32 0.0, %v1180
        %v1182 = vpop.f32.mrb[0].mxu0
        %v1183 = vpop.f32.mrb[0].mxu0
        %v1184 = vadd.f32 0.0, %v1183
        %v1185 = vpop.f32.mrb[0].mxu0
        %1186 = vmatprep.mubr.bf16.mxu0 0
        %1187 = vmatmul.mubr.bf16.gmra.mrb[0].mxu0 %v216
        %v1188 = vpop.f32.mrb[0].mxu0
        %v1189 = vadd.f32 0.0, %v1188
        %v1190 = vpop.f32.mrb[0].mxu0
        %v1191 = vpop.f32.mrb[0].mxu0
        %v1192 = vadd.f32 0.0, %v1191
        %v1193 = vpop.f32.mrb[0].mxu0
        %1194 = vmatprep.mubr.bf16.mxu0 0
        %1195 = vmatmul.mubr.bf16.gmra.mrb[0].mxu0 %v217
        %v1196 = vpop.f32.mrb[0].mxu0
        %v1197 = vadd.f32 0.0, %v1196
        %v1198 = vpop.f32.mrb[0].mxu0
        %v1199 = vpop.f32.mrb[0].mxu0
        %v1200 = vadd.f32 0.0, %v1199
        %v1201 = vpop.f32.mrb[0].mxu0
        %1202 = vmatprep.mubr.bf16.mxu0 0
        %1203 = vmatmul.mubr.bf16.gmra.mrb[0].mxu0 %v218
        %v1204 = vpop.f32.mrb[0].mxu0
        %v1205 = vadd.f32 0.0, %v1204
        %v1206 = vpop.f32.mrb[0].mxu0
        %v1207 = vpop.f32.mrb[0].mxu0
        %v1208 = vadd.f32 0.0, %v1207
        %v1209 = vpop.f32.mrb[0].mxu0
        %1210 = vmatprep.mubr.bf16.mxu0 0
        %1211 = vmatmul.mubr.bf16.gmra.mrb[0].mxu0 %v219
        %v1212 = vpop.f32.mrb[0].mxu0
        %v1213 = vadd.f32 0.0, %v1212
        %v1214 = vpop.f32.mrb[0].mxu0
        %v1215 = vpop.f32.mrb[0].mxu0
        %v1216 = vadd.f32 0.0, %v1215
        %v1217 = vpop.f32.mrb[0].mxu0
        %1218 = vmatprep.mubr.bf16.mxu0 0
        %1219 = vmatmul.mubr.bf16.gmra.mrb[0].mxu0 %v220
        %v1220 = vpop.f32.mrb[0].mxu0
        %v1221 = vadd.f32 0.0, %v1220
        %v1222 = vpop.f32.mrb[0].mxu0
        %v1223 = vpop.f32.mrb[0].mxu0
        %v1224 = vadd.f32 0.0, %v1223
        %v1225 = vpop.f32.mrb[0].mxu0
        %1226 = vmatprep.mubr.bf16.mxu0 0
        %1227 = vmatmul.mubr.bf16.gmra.mrb[0].mxu0 %v221
        %v1228 = vpop.f32.mrb[0].mxu0
        %v1229 = vadd.f32 0.0, %v1228
        %v1230 = vpop.f32.mrb[0].mxu0
        %v1231 = vpop.f32.mrb[0].mxu0
        %v1232 = vadd.f32 0.0, %v1231
        %v1233 = vpop.f32.mrb[0].mxu0
        %1234 = vmatprep.mubr.bf16.mxu0 0
        %1235 = vmatmul.mubr.bf16.gmra.mrb[0].mxu0 %v222
        %v1236 = vpop.f32.mrb[0].mxu0
        %v1237 = vadd.f32 0.0, %v1236
        %v1238 = vpop.f32.mrb[0].mxu0
        %v1239 = vpop.f32.mrb[0].mxu0
        %v1240 = vadd.f32 0.0, %v1239
        %v1241 = vpop.f32.mrb[0].mxu0
        %1242 = vmatprep.mubr.bf16.mxu0 0
        %1243 = vmatmul.mubr.bf16.gmra.mrb[0].mxu0 %v223
        %v1244 = vpop.f32.mrb[0].mxu0
        %v1245 = vadd.f32 0.0, %v1244
        %v1246 = vpop.f32.mrb[0].mxu0
        %v1247 = vpop.f32.mrb[0].mxu0
        %v1248 = vadd.f32 0.0, %v1247
        %v1249 = vpop.f32.mrb[0].mxu0
        %1250 = vmatprep.mubr.bf16.mxu0 0
        %1251 = vmatmul.mubr.bf16.gmra.mrb[0].mxu0 %v224
        %v1252 = vpop.f32.mrb[0].mxu0
        %v1253 = vadd.f32 0.0, %v1252
        %v1254 = vpop.f32.mrb[0].mxu0
        %v1255 = vpop.f32.mrb[0].mxu0
        %v1256 = vadd.f32 0.0, %v1255
        %v1257 = vpop.f32.mrb[0].mxu0
        %1258 = vmatprep.mubr.bf16.mxu0 0
        %1259 = vmatmul.mubr.bf16.gmra.mrb[0].mxu0 %v225
        %v1260 = vpop.f32.mrb[0].mxu0
        %v1261 = vadd.f32 0.0, %v1260
        %v1262 = vpop.f32.mrb[0].mxu0
        %v1263 = vpop.f32.mrb[0].mxu0
        %v1264 = vadd.f32 0.0, %v1263
        %v1265 = vpop.f32.mrb[0].mxu0
        %1266 = vmatprep.mubr.bf16.mxu0 0
        %1267 = vmatmul.mubr.bf16.gmra.mrb[0].mxu0 %v226
        %v1268 = vpop.f32.mrb[0].mxu0
        %v1269 = vadd.f32 0.0, %v1268
        %v1270 = vpop.f32.mrb[0].mxu0
        %v1271 = vpop.f32.mrb[0].mxu0
        %v1272 = vadd.f32 0.0, %v1271
        %v1273 = vpop.f32.mrb[0].mxu0
        %1274 = vmatprep.mubr.bf16.mxu0 0
        %1275 = vmatmul.mubr.bf16.gmra.mrb[0].mxu0 %v227
        %v1276 = vpop.f32.mrb[0].mxu0
        %v1277 = vadd.f32 0.0, %v1276
        %v1278 = vpop.f32.mrb[0].mxu0
        %v1279 = vpop.f32.mrb[0].mxu0
        %v1280 = vadd.f32 0.0, %v1279
        %v1281 = vpop.f32.mrb[0].mxu0
        %1282 = vmatprep.mubr.bf16.mxu0 0
        %1283 = vmatmul.mubr.bf16.gmra.mrb[0].mxu0 %v228
        %v1284 = vpop.f32.mrb[0].mxu0
        %v1285 = vadd.f32 0.0, %v1284
        %v1286 = vpop.f32.mrb[0].mxu0
        %v1287 = vpop.f32.mrb[0].mxu0
        %v1288 = vadd.f32 0.0, %v1287
        %v1289 = vpop.f32.mrb[0].mxu0
        %1290 = vdwg.mxu0
        %v1291 = vadd.f32 %v683, %v1037
        %v1292 = vadd.f32 %v686, %v1040
        %v1293 = vadd.f32 %v691, %v1045
        %v1294 = vadd.f32 %v694, %v1048
        %v1295 = vadd.f32 %v699, %v1053
        %v1296 = vadd.f32 %v702, %v1056
        %v1297 = vadd.f32 %v707, %v1061
        %v1298 = vadd.f32 %v710, %v1064
        %v1299 = vadd.f32 %v715, %v1069
        %v1300 = vadd.f32 %v718, %v1072
        %v1301 = vadd.f32 %v723, %v1077
        %v1302 = vadd.f32 %v726, %v1080
        %v1303 = vadd.f32 %v731, %v1085
        %v1304 = vadd.f32 %v734, %v1088
        %v1305 = vadd.f32 %v739, %v1093
        %v1306 = vadd.f32 %v742, %v1096
        %v1307 = vadd.f32 %v747, %v1101
        %v1308 = vadd.f32 %v750, %v1104
        %v1309 = vadd.f32 %v755, %v1109
        %v1310 = vadd.f32 %v758, %v1112
        %v1311 = vadd.f32 %v763, %v1117
        %v1312 = vadd.f32 %v766, %v1120
        %v1313 = vadd.f32 %v771, %v1125
        %v1314 = vadd.f32 %v774, %v1128
        %v1315 = vadd.f32 %v779, %v1133
        %v1316 = vadd.f32 %v782, %v1136
        %v1317 = vadd.f32 %v787, %v1141
        %v1318 = vadd.f32 %v790, %v1144
        %v1319 = vadd.f32 %v795, %v1149
        %v1320 = vadd.f32 %v798, %v1152
        %v1321 = vadd.f32 %v803, %v1157
        %v1322 = vadd.f32 %v806, %v1160
        %v1323 = vadd.f32 %v811, %v1165
        %v1324 = vadd.f32 %v814, %v1168
        %v1325 = vadd.f32 %v819, %v1173
        %v1326 = vadd.f32 %v822, %v1176
        %v1327 = vadd.f32 %v827, %v1181
        %v1328 = vadd.f32 %v830, %v1184
        %v1329 = vadd.f32 %v835, %v1189
        %v1330 = vadd.f32 %v838, %v1192
        %v1331 = vadd.f32 %v843, %v1197
        %v1332 = vadd.f32 %v846, %v1200
        %v1333 = vadd.f32 %v851, %v1205
        %v1334 = vadd.f32 %v854, %v1208
        %v1335 = vadd.f32 %v859, %v1213
        %v1336 = vadd.f32 %v862, %v1216
        %v1337 = vadd.f32 %v867, %v1221
        %v1338 = vadd.f32 %v870, %v1224
        %v1339 = vadd.f32 %v875, %v1229
        %v1340 = vadd.f32 %v878, %v1232
        %v1341 = vadd.f32 %v883, %v1237
        %v1342 = vadd.f32 %v886, %v1240
        %v1343 = vadd.f32 %v891, %v1245
        %v1344 = vadd.f32 %v894, %v1248
        %v1345 = vadd.f32 %v899, %v1253
        %v1346 = vadd.f32 %v902, %v1256
        %v1347 = vadd.f32 %v907, %v1261
        %v1348 = vadd.f32 %v910, %v1264
        %v1349 = vadd.f32 %v915, %v1269
        %v1350 = vadd.f32 %v918, %v1272
        %v1351 = vadd.f32 %v923, %v1277
        %v1352 = vadd.f32 %v926, %v1280
        %v1353 = vadd.f32 %v931, %v1285
        %v1354 = vadd.f32 %v934, %v1288
        %v1355 = vrot.slane %v1291, 1
        %v1356 = vrot.slane %v1292, 1
        %v1357 = vrot.slane %v1293, 1
        %v1358 = vrot.slane %v1294, 1
        %v1359 = vrot.slane %v1295, 1
        %v1360 = vrot.slane %v1296, 1
        %v1361 = vrot.slane %v1297, 1
        %v1362 = vrot.slane %v1298, 1
        %v1363 = vrot.slane %v1299, 1
        %v1364 = vrot.slane %v1300, 1
        %v1365 = vrot.slane %v1301, 1
        %v1366 = vrot.slane %v1302, 1
        %v1367 = vrot.slane %v1303, 1
        %v1368 = vrot.slane %v1304, 1
        %v1369 = vrot.slane %v1305, 1
        %v1370 = vrot.slane %v1306, 1
        %v1371 = vrot.slane %v1307, 1
        %v1372 = vrot.slane %v1308, 1
        %v1373 = vrot.slane %v1309, 1
        %v1374 = vrot.slane %v1310, 1
        %v1375 = vrot.slane %v1311, 1
        %v1376 = vrot.slane %v1312, 1
        %v1377 = vrot.slane %v1313, 1
        %v1378 = vrot.slane %v1314, 1
        %v1379 = vrot.slane %v1315, 1
        %v1380 = vrot.slane %v1316, 1
        %v1381 = vrot.slane %v1317, 1
        %v1382 = vrot.slane %v1318, 1
        %v1383 = vrot.slane %v1319, 1
        %v1384 = vrot.slane %v1320, 1
        %v1385 = vrot.slane %v1321, 1
        %v1386 = vrot.slane %v1322, 1
        %v1387 = vrot.slane %v1323, 1
        %v1388 = vrot.slane %v1324, 1
        %v1389 = vrot.slane %v1325, 1
        %v1390 = vrot.slane %v1326, 1
        %v1391 = vrot.slane %v1327, 1
        %v1392 = vrot.slane %v1328, 1
        %v1393 = vrot.slane %v1329, 1
        %v1394 = vrot.slane %v1330, 1
        %v1395 = vrot.slane %v1331, 1
        %v1396 = vrot.slane %v1332, 1
        %v1397 = vrot.slane %v1333, 1
        %v1398 = vrot.slane %v1334, 1
        %v1399 = vrot.slane %v1335, 1
        %v1400 = vrot.slane %v1336, 1
        %v1401 = vrot.slane %v1337, 1
        %v1402 = vrot.slane %v1338, 1
        %v1403 = vrot.slane %v1339, 1
        %v1404 = vrot.slane %v1340, 1
        %v1405 = vrot.slane %v1341, 1
        %v1406 = vrot.slane %v1342, 1
        %v1407 = vrot.slane %v1343, 1
        %v1408 = vrot.slane %v1344, 1
        %v1409 = vrot.slane %v1345, 1
        %v1410 = vrot.slane %v1346, 1
        %v1411 = vrot.slane %v1347, 1
        %v1412 = vrot.slane %v1348, 1
        %v1413 = vrot.slane %v1349, 1
        %v1414 = vrot.slane %v1350, 1
        %v1415 = vrot.slane %v1351, 1
        %v1416 = vrot.slane %v1352, 1
        %v1417 = vrot.slane %v1353, 1
        %v1418 = vrot.slane %v1354, 1
        %v1419 = vlaneseq
        %v1420 = vshrl.u32 %v1419, 7
        %vm1421 = vcmp.lt.s32.totalorder %v1420, 7
        %v1422 = vsel %vm1421, %v1417, %v1418
        %v1423 = vsel %vm1421, %v1416, %v1417
        %v1424 = vsel %vm1421, %v1415, %v1416
        %v1425 = vsel %vm1421, %v1414, %v1415
        %v1426 = vsel %vm1421, %v1413, %v1414
        %v1427 = vsel %vm1421, %v1412, %v1413
        %v1428 = vsel %vm1421, %v1411, %v1412
        %v1429 = vsel %vm1421, %v1410, %v1411
        %v1430 = vsel %vm1421, %v1409, %v1410
        %v1431 = vsel %vm1421, %v1408, %v1409
        %v1432 = vsel %vm1421, %v1407, %v1408
        %v1433 = vsel %vm1421, %v1406, %v1407
        %v1434 = vsel %vm1421, %v1405, %v1406
        %v1435 = vsel %vm1421, %v1404, %v1405
        %v1436 = vsel %vm1421, %v1403, %v1404
        %v1437 = vsel %vm1421, %v1402, %v1403
        %v1438 = vsel %vm1421, %v1401, %v1402
        %v1439 = vsel %vm1421, %v1400, %v1401
        %v1440 = vsel %vm1421, %v1399, %v1400
        %v1441 = vsel %vm1421, %v1398, %v1399
        %v1442 = vsel %vm1421, %v1397, %v1398
        %v1443 = vsel %vm1421, %v1396, %v1397
        %v1444 = vsel %vm1421, %v1395, %v1396
        %v1445 = vsel %vm1421, %v1394, %v1395
        %v1446 = vsel %vm1421, %v1393, %v1394
        %v1447 = vsel %vm1421, %v1392, %v1393
        %v1448 = vsel %vm1421, %v1391, %v1392
        %v1449 = vsel %vm1421, %v1390, %v1391
        %v1450 = vsel %vm1421, %v1389, %v1390
        %v1451 = vsel %vm1421, %v1388, %v1389
        %v1452 = vsel %vm1421, %v1387, %v1388
        %v1453 = vsel %vm1421, %v1386, %v1387
        %v1454 = vsel %vm1421, %v1385, %v1386
        %v1455 = vsel %vm1421, %v1384, %v1385
        %v1456 = vsel %vm1421, %v1383, %v1384
        %v1457 = vsel %vm1421, %v1382, %v1383
        %v1458 = vsel %vm1421, %v1381, %v1382
        %v1459 = vsel %vm1421, %v1380, %v1381
        %v1460 = vsel %vm1421, %v1379, %v1380
        %v1461 = vsel %vm1421, %v1378, %v1379
        %v1462 = vsel %vm1421, %v1377, %v1378
        %v1463 = vsel %vm1421, %v1376, %v1377
        %v1464 = vsel %vm1421, %v1375, %v1376
        %v1465 = vsel %vm1421, %v1374, %v1375
        %v1466 = vsel %vm1421, %v1373, %v1374
        %v1467 = vsel %vm1421, %v1372, %v1373
        %v1468 = vsel %vm1421, %v1371, %v1372
        %v1469 = vsel %vm1421, %v1370, %v1371
        %v1470 = vsel %vm1421, %v1369, %v1370
        %v1471 = vsel %vm1421, %v1368, %v1369
        %v1472 = vsel %vm1421, %v1367, %v1368
        %v1473 = vsel %vm1421, %v1366, %v1367
        %v1474 = vsel %vm1421, %v1365, %v1366
        %v1475 = vsel %vm1421, %v1364, %v1365
        %v1476 = vsel %vm1421, %v1363, %v1364
        %v1477 = vsel %vm1421, %v1362, %v1363
        %v1478 = vsel %vm1421, %v1361, %v1362
        %v1479 = vsel %vm1421, %v1360, %v1361
        %v1480 = vsel %vm1421, %v1359, %v1360
        %v1481 = vsel %vm1421, %v1358, %v1359
        %v1482 = vsel %vm1421, %v1357, %v1358
        %v1483 = vsel %vm1421, %v1356, %v1357
        %v1484 = vsel %vm1421, %v1355, %v1356
        %v1485 = vsel %vm1421, %v1418, %v1355
        %s1486 = scalar_lea.vmem [#allocation4], 64
        %v1487 = vld [vmem:[%s1486] sm:$0xf]
        %v1488 = vld [vmem:[%s1486 + $0x4] sm:$0xf]
        %v1489 = vld [vmem:[%s1486 + $0x8] sm:$0xf]
        %v1490 = vld [vmem:[%s1486 + $0xc] sm:$0xf]
        %v1491 = vld [vmem:[%s1486 + $0x10] sm:$0xf]
        %v1492 = vld [vmem:[%s1486 + $0x14] sm:$0xf]
        %v1493 = vld [vmem:[%s1486 + $0x18] sm:$0xf]
        %v1494 = vld [vmem:[%s1486 + $0x1c] sm:$0xf]
        %v1495 = vld [vmem:[%s1486 + $0x20] sm:$0xf]
        %v1496 = vld [vmem:[%s1486 + $0x24] sm:$0xf]
        %v1497 = vld [vmem:[%s1486 + $0x28] sm:$0xf]
        %v1498 = vld [vmem:[%s1486 + $0x2c] sm:$0xf]
        %v1499 = vld [vmem:[%s1486 + $0x30] sm:$0xf]
        %v1500 = vld [vmem:[%s1486 + $0x34] sm:$0xf]
        %v1501 = vld [vmem:[%s1486 + $0x38] sm:$0xf]
        %v1502 = vld [vmem:[%s1486 + $0x3c] sm:$0xf]
        %v1519 = vunpack.c.l.b16 %v1487
        %v1520 = vunpack.c.l.b16 %v1488
        %v1521 = vunpack.c.l.b16 %v1489
        %v1522 = vunpack.c.l.b16 %v1490
        %v1523 = vunpack.c.l.b16 %v1491
        %v1524 = vunpack.c.l.b16 %v1492
        %v1525 = vunpack.c.l.b16 %v1493
        %v1526 = vunpack.c.l.b16 %v1494
        %v1527 = vunpack.c.l.b16 %v1495
        %v1528 = vunpack.c.l.b16 %v1496
        %v1529 = vunpack.c.l.b16 %v1497
        %v1530 = vunpack.c.l.b16 %v1498
        %v1531 = vunpack.c.l.b16 %v1499
        %v1532 = vunpack.c.l.b16 %v1500
        %v1533 = vunpack.c.l.b16 %v1501
        %v1534 = vunpack.c.l.b16 %v1502
        %v1535 = vpack.c.b16 %v1520, %v1519
        %v1536 = vpack.c.b16 %v1522, %v1521
        %v1537 = vpack.c.b16 %v1524, %v1523
        %v1538 = vpack.c.b16 %v1526, %v1525
        %v1539 = vpack.c.b16 %v1528, %v1527
        %v1540 = vpack.c.b16 %v1530, %v1529
        %v1541 = vpack.c.b16 %v1532, %v1531
        %v1542 = vpack.c.b16 %v1534, %v1533
        %1551 = vmatprep.subr.bf16.mxu0 0
        %1552 = vmatpush1.bf16.msra.mxu0 %v1535
        %1553 = vmatprep.subr.bf16.mxu0 0
        %1554 = vmatpush1.bf16.msra.mxu0 %v1536
        %1555 = vmatprep.subr.bf16.mxu0 0
        %1556 = vmatpush1.bf16.msra.mxu0 %v1537
        %1557 = vmatprep.subr.bf16.mxu0 0
        %1558 = vmatpush1.bf16.msra.mxu0 %v1538
        %1559 = vmatprep.subr.bf16.mxu0 0
        %1560 = vmatpush1.bf16.msra.mxu0 %v1539
        %1561 = vmatprep.subr.bf16.mxu0 0
        %1562 = vmatpush1.bf16.msra.mxu0 %v1540
        %1563 = vmatprep.subr.bf16.mxu0 0
        %1564 = vmatpush1.bf16.msra.mxu0 %v1541
        %1565 = vmatprep.subr.bf16.mxu0 0
        %1566 = vmatpush1.bf16.msra.mxu0 %v1542
        %1567 = vmatprep.subr.bf16.mxu0 0
        %1568 = vmatpush1.bf16.msra.mxu0 0
        %1569 = vmatprep.subr.bf16.mxu0 0
        %1570 = vmatpush1.bf16.msra.mxu0 0
        %1571 = vmatprep.subr.bf16.mxu0 0
        %1572 = vmatpush1.bf16.msra.mxu0 0
        %1573 = vmatprep.subr.bf16.mxu0 0
        %1574 = vmatpush1.bf16.msra.mxu0 0
        %1575 = vmatprep.subr.bf16.mxu0 0
        %1576 = vmatpush1.bf16.msra.mxu0 0
        %1577 = vmatprep.subr.bf16.mxu0 0
        %1578 = vmatpush1.bf16.msra.mxu0 0
        %1579 = vmatprep.subr.bf16.mxu0 0
        %1580 = vmatpush1.bf16.msra.mxu0 0
        %1581 = vmatprep.subr.bf16.mxu0 0
        %1582 = vmatpush1.bf16.msra.mxu0 0
        %1583 = vmatprep.mubr.bf16.mxu0 0
        %1584 = vmatmul.mubr.bf16.gmra.mrb[0].mxu0 %v193
        %v1585 = vpop.f32.mrb[0].mxu0
        %v1586 = vadd.f32 0.0, %v1585
        %v1587 = vpop.f32.mrb[0].mxu0
        %v1588 = vpop.f32.mrb[0].mxu0
        %v1589 = vadd.f32 0.0, %v1588
        %v1590 = vpop.f32.mrb[0].mxu0
        %1591 = vmatprep.mubr.bf16.mxu0 0
        %1592 = vmatmul.mubr.bf16.gmra.mrb[0].mxu0 %v194
        %v1593 = vpop.f32.mrb[0].mxu0
        %v1594 = vadd.f32 0.0, %v1593
        %v1595 = vpop.f32.mrb[0].mxu0
        %v1596 = vpop.f32.mrb[0].mxu0
        %v1597 = vadd.f32 0.0, %v1596
        %v1598 = vpop.f32.mrb[0].mxu0
        %1599 = vmatprep.mubr.bf16.mxu0 0
        %1600 = vmatmul.mubr.bf16.gmra.mrb[0].mxu0 %v195
        %v1601 = vpop.f32.mrb[0].mxu0
        %v1602 = vadd.f32 0.0, %v1601
        %v1603 = vpop.f32.mrb[0].mxu0
        %v1604 = vpop.f32.mrb[0].mxu0
        %v1605 = vadd.f32 0.0, %v1604
        %v1606 = vpop.f32.mrb[0].mxu0
        %1607 = vmatprep.mubr.bf16.mxu0 0
        %1608 = vmatmul.mubr.bf16.gmra.mrb[0].mxu0 %v196
        %v1609 = vpop.f32.mrb[0].mxu0
        %v1610 = vadd.f32 0.0, %v1609
        %v1611 = vpop.f32.mrb[0].mxu0
        %v1612 = vpop.f32.mrb[0].mxu0
        %v1613 = vadd.f32 0.0, %v1612
        %v1614 = vpop.f32.mrb[0].mxu0
        %1615 = vmatprep.mubr.bf16.mxu0 0
        %1616 = vmatmul.mubr.bf16.gmra.mrb[0].mxu0 %v197
        %v1617 = vpop.f32.mrb[0].mxu0
        %v1618 = vadd.f32 0.0, %v1617
        %v1619 = vpop.f32.mrb[0].mxu0
        %v1620 = vpop.f32.mrb[0].mxu0
        %v1621 = vadd.f32 0.0, %v1620
        %v1622 = vpop.f32.mrb[0].mxu0
        %1623 = vmatprep.mubr.bf16.mxu0 0
        %1624 = vmatmul.mubr.bf16.gmra.mrb[0].mxu0 %v198
        %v1625 = vpop.f32.mrb[0].mxu0
        %v1626 = vadd.f32 0.0, %v1625
        %v1627 = vpop.f32.mrb[0].mxu0
        %v1628 = vpop.f32.mrb[0].mxu0
        %v1629 = vadd.f32 0.0, %v1628
        %v1630 = vpop.f32.mrb[0].mxu0
        %1631 = vmatprep.mubr.bf16.mxu0 0
        %1632 = vmatmul.mubr.bf16.gmra.mrb[0].mxu0 %v199
        %v1633 = vpop.f32.mrb[0].mxu0
        %v1634 = vadd.f32 0.0, %v1633
        %v1635 = vpop.f32.mrb[0].mxu0
        %v1636 = vpop.f32.mrb[0].mxu0
        %v1637 = vadd.f32 0.0, %v1636
        %v1638 = vpop.f32.mrb[0].mxu0
        %1639 = vmatprep.mubr.bf16.mxu0 0
        %1640 = vmatmul.mubr.bf16.gmra.mrb[0].mxu0 %v200
        %v1641 = vpop.f32.mrb[0].mxu0
        %v1642 = vadd.f32 0.0, %v1641
        %v1643 = vpop.f32.mrb[0].mxu0
        %v1644 = vpop.f32.mrb[0].mxu0
        %v1645 = vadd.f32 0.0, %v1644
        %v1646 = vpop.f32.mrb[0].mxu0
        %1647 = vmatprep.mubr.bf16.mxu0 0
        %1648 = vmatmul.mubr.bf16.gmra.mrb[0].mxu0 %v201
        %v1649 = vpop.f32.mrb[0].mxu0
        %v1650 = vadd.f32 0.0, %v1649
        %v1651 = vpop.f32.mrb[0].mxu0
        %v1652 = vpop.f32.mrb[0].mxu0
        %v1653 = vadd.f32 0.0, %v1652
        %v1654 = vpop.f32.mrb[0].mxu0
        %1655 = vmatprep.mubr.bf16.mxu0 0
        %1656 = vmatmul.mubr.bf16.gmra.mrb[0].mxu0 %v202
        %v1657 = vpop.f32.mrb[0].mxu0
        %v1658 = vadd.f32 0.0, %v1657
        %v1659 = vpop.f32.mrb[0].mxu0
        %v1660 = vpop.f32.mrb[0].mxu0
        %v1661 = vadd.f32 0.0, %v1660
        %v1662 = vpop.f32.mrb[0].mxu0
        %1663 = vmatprep.mubr.bf16.mxu0 0
        %1664 = vmatmul.mubr.bf16.gmra.mrb[0].mxu0 %v203
        %v1665 = vpop.f32.mrb[0].mxu0
        %v1666 = vadd.f32 0.0, %v1665
        %v1667 = vpop.f32.mrb[0].mxu0
        %v1668 = vpop.f32.mrb[0].mxu0
        %v1669 = vadd.f32 0.0, %v1668
        %v1670 = vpop.f32.mrb[0].mxu0
        %1671 = vmatprep.mubr.bf16.mxu0 0
        %1672 = vmatmul.mubr.bf16.gmra.mrb[0].mxu0 %v204
        %v1673 = vpop.f32.mrb[0].mxu0
        %v1674 = vadd.f32 0.0, %v1673
        %v1675 = vpop.f32.mrb[0].mxu0
        %v1676 = vpop.f32.mrb[0].mxu0
        %v1677 = vadd.f32 0.0, %v1676
        %v1678 = vpop.f32.mrb[0].mxu0
        %1679 = vmatprep.mubr.bf16.mxu0 0
        %1680 = vmatmul.mubr.bf16.gmra.mrb[0].mxu0 %v205
        %v1681 = vpop.f32.mrb[0].mxu0
        %v1682 = vadd.f32 0.0, %v1681
        %v1683 = vpop.f32.mrb[0].mxu0
        %v1684 = vpop.f32.mrb[0].mxu0
        %v1685 = vadd.f32 0.0, %v1684
        %v1686 = vpop.f32.mrb[0].mxu0
        %1687 = vmatprep.mubr.bf16.mxu0 0
        %1688 = vmatmul.mubr.bf16.gmra.mrb[0].mxu0 %v206
        %v1689 = vpop.f32.mrb[0].mxu0
        %v1690 = vadd.f32 0.0, %v1689
        %v1691 = vpop.f32.mrb[0].mxu0
        %v1692 = vpop.f32.mrb[0].mxu0
        %v1693 = vadd.f32 0.0, %v1692
        %v1694 = vpop.f32.mrb[0].mxu0
        %1695 = vmatprep.mubr.bf16.mxu0 0
        %1696 = vmatmul.mubr.bf16.gmra.mrb[0].mxu0 %v207
        %v1697 = vpop.f32.mrb[0].mxu0
        %v1698 = vadd.f32 0.0, %v1697
        %v1699 = vpop.f32.mrb[0].mxu0
        %v1700 = vpop.f32.mrb[0].mxu0
        %v1701 = vadd.f32 0.0, %v1700
        %v1702 = vpop.f32.mrb[0].mxu0
        %1703 = vmatprep.mubr.bf16.mxu0 0
        %1704 = vmatmul.mubr.bf16.gmra.mrb[0].mxu0 %v208
        %v1705 = vpop.f32.mrb[0].mxu0
        %v1706 = vadd.f32 0.0, %v1705
        %v1707 = vpop.f32.mrb[0].mxu0
        %v1708 = vpop.f32.mrb[0].mxu0
        %v1709 = vadd.f32 0.0, %v1708
        %v1710 = vpop.f32.mrb[0].mxu0
        %1711 = vmatprep.mubr.bf16.mxu0 0
        %1712 = vmatmul.mubr.bf16.gmra.mrb[0].mxu0 %v209
        %v1713 = vpop.f32.mrb[0].mxu0
        %v1714 = vadd.f32 0.0, %v1713
        %v1715 = vpop.f32.mrb[0].mxu0
        %v1716 = vpop.f32.mrb[0].mxu0
        %v1717 = vadd.f32 0.0, %v1716
        %v1718 = vpop.f32.mrb[0].mxu0
        %1719 = vmatprep.mubr.bf16.mxu0 0
        %1720 = vmatmul.mubr.bf16.gmra.mrb[0].mxu0 %v210
        %v1721 = vpop.f32.mrb[0].mxu0
        %v1722 = vadd.f32 0.0, %v1721
        %v1723 = vpop.f32.mrb[0].mxu0
        %v1724 = vpop.f32.mrb[0].mxu0
        %v1725 = vadd.f32 0.0, %v1724
        %v1726 = vpop.f32.mrb[0].mxu0
        %1727 = vmatprep.mubr.bf16.mxu0 0
        %1728 = vmatmul.mubr.bf16.gmra.mrb[0].mxu0 %v211
        %v1729 = vpop.f32.mrb[0].mxu0
        %v1730 = vadd.f32 0.0, %v1729
        %v1731 = vpop.f32.mrb[0].mxu0
        %v1732 = vpop.f32.mrb[0].mxu0
        %v1733 = vadd.f32 0.0, %v1732
        %v1734 = vpop.f32.mrb[0].mxu0
        %1735 = vmatprep.mubr.bf16.mxu0 0
        %1736 = vmatmul.mubr.bf16.gmra.mrb[0].mxu0 %v212
        %v1737 = vpop.f32.mrb[0].mxu0
        %v1738 = vadd.f32 0.0, %v1737
        %v1739 = vpop.f32.mrb[0].mxu0
        %v1740 = vpop.f32.mrb[0].mxu0
        %v1741 = vadd.f32 0.0, %v1740
        %v1742 = vpop.f32.mrb[0].mxu0
        %1743 = vmatprep.mubr.bf16.mxu0 0
        %1744 = vmatmul.mubr.bf16.gmra.mrb[0].mxu0 %v213
        %v1745 = vpop.f32.mrb[0].mxu0
        %v1746 = vadd.f32 0.0, %v1745
        %v1747 = vpop.f32.mrb[0].mxu0
        %v1748 = vpop.f32.mrb[0].mxu0
        %v1749 = vadd.f32 0.0, %v1748
        %v1750 = vpop.f32.mrb[0].mxu0
        %1751 = vmatprep.mubr.bf16.mxu0 0
        %1752 = vmatmul.mubr.bf16.gmra.mrb[0].mxu0 %v214
        %v1753 = vpop.f32.mrb[0].mxu0
        %v1754 = vadd.f32 0.0, %v1753
        %v1755 = vpop.f32.mrb[0].mxu0
        %v1756 = vpop.f32.mrb[0].mxu0
        %v1757 = vadd.f32 0.0, %v1756
        %v1758 = vpop.f32.mrb[0].mxu0
        %1759 = vmatprep.mubr.bf16.mxu0 0
        %1760 = vmatmul.mubr.bf16.gmra.mrb[0].mxu0 %v215
        %v1761 = vpop.f32.mrb[0].mxu0
        %v1762 = vadd.f32 0.0, %v1761
        %v1763 = vpop.f32.mrb[0].mxu0
        %v1764 = vpop.f32.mrb[0].mxu0
        %v1765 = vadd.f32 0.0, %v1764
        %v1766 = vpop.f32.mrb[0].mxu0
        %1767 = vmatprep.mubr.bf16.mxu0 0
        %1768 = vmatmul.mubr.bf16.gmra.mrb[0].mxu0 %v216
        %v1769 = vpop.f32.mrb[0].mxu0
        %v1770 = vadd.f32 0.0, %v1769
        %v1771 = vpop.f32.mrb[0].mxu0
        %v1772 = vpop.f32.mrb[0].mxu0
        %v1773 = vadd.f32 0.0, %v1772
        %v1774 = vpop.f32.mrb[0].mxu0
        %1775 = vmatprep.mubr.bf16.mxu0 0
        %1776 = vmatmul.mubr.bf16.gmra.mrb[0].mxu0 %v217
        %v1777 = vpop.f32.mrb[0].mxu0
        %v1778 = vadd.f32 0.0, %v1777
        %v1779 = vpop.f32.mrb[0].mxu0
        %v1780 = vpop.f32.mrb[0].mxu0
        %v1781 = vadd.f32 0.0, %v1780
        %v1782 = vpop.f32.mrb[0].mxu0
        %1783 = vmatprep.mubr.bf16.mxu0 0
        %1784 = vmatmul.mubr.bf16.gmra.mrb[0].mxu0 %v218
        %v1785 = vpop.f32.mrb[0].mxu0
        %v1786 = vadd.f32 0.0, %v1785
        %v1787 = vpop.f32.mrb[0].mxu0
        %v1788 = vpop.f32.mrb[0].mxu0
        %v1789 = vadd.f32 0.0, %v1788
        %v1790 = vpop.f32.mrb[0].mxu0
        %1791 = vmatprep.mubr.bf16.mxu0 0
        %1792 = vmatmul.mubr.bf16.gmra.mrb[0].mxu0 %v219
        %v1793 = vpop.f32.mrb[0].mxu0
        %v1794 = vadd.f32 0.0, %v1793
        %v1795 = vpop.f32.mrb[0].mxu0
        %v1796 = vpop.f32.mrb[0].mxu0
        %v1797 = vadd.f32 0.0, %v1796
        %v1798 = vpop.f32.mrb[0].mxu0
        %1799 = vmatprep.mubr.bf16.mxu0 0
        %1800 = vmatmul.mubr.bf16.gmra.mrb[0].mxu0 %v220
        %v1801 = vpop.f32.mrb[0].mxu0
        %v1802 = vadd.f32 0.0, %v1801
        %v1803 = vpop.f32.mrb[0].mxu0
        %v1804 = vpop.f32.mrb[0].mxu0
        %v1805 = vadd.f32 0.0, %v1804
        %v1806 = vpop.f32.mrb[0].mxu0
        %1807 = vmatprep.mubr.bf16.mxu0 0
        %1808 = vmatmul.mubr.bf16.gmra.mrb[0].mxu0 %v221
        %v1809 = vpop.f32.mrb[0].mxu0
        %v1810 = vadd.f32 0.0, %v1809
        %v1811 = vpop.f32.mrb[0].mxu0
        %v1812 = vpop.f32.mrb[0].mxu0
        %v1813 = vadd.f32 0.0, %v1812
        %v1814 = vpop.f32.mrb[0].mxu0
        %1815 = vmatprep.mubr.bf16.mxu0 0
        %1816 = vmatmul.mubr.bf16.gmra.mrb[0].mxu0 %v222
        %v1817 = vpop.f32.mrb[0].mxu0
        %v1818 = vadd.f32 0.0, %v1817
        %v1819 = vpop.f32.mrb[0].mxu0
        %v1820 = vpop.f32.mrb[0].mxu0
        %v1821 = vadd.f32 0.0, %v1820
        %v1822 = vpop.f32.mrb[0].mxu0
        %1823 = vmatprep.mubr.bf16.mxu0 0
        %1824 = vmatmul.mubr.bf16.gmra.mrb[0].mxu0 %v223
        %v1825 = vpop.f32.mrb[0].mxu0
        %v1826 = vadd.f32 0.0, %v1825
        %v1827 = vpop.f32.mrb[0].mxu0
        %v1828 = vpop.f32.mrb[0].mxu0
        %v1829 = vadd.f32 0.0, %v1828
        %v1830 = vpop.f32.mrb[0].mxu0
        %1831 = vmatprep.mubr.bf16.mxu0 0
        %1832 = vmatmul.mubr.bf16.gmra.mrb[0].mxu0 %v224
        %v1833 = vpop.f32.mrb[0].mxu0
        %v1834 = vadd.f32 0.0, %v1833
        %v1835 = vpop.f32.mrb[0].mxu0
        %v1836 = vpop.f32.mrb[0].mxu0
        %v1837 = vadd.f32 0.0, %v1836
        %v1838 = vpop.f32.mrb[0].mxu0
        %1839 = vdwg.mxu0
        %v1840 = vadd.f32 %v1484, %v1586
        %v1841 = vadd.f32 %v1483, %v1589
        %v1842 = vadd.f32 %v1482, %v1594
        %v1843 = vadd.f32 %v1481, %v1597
        %v1844 = vadd.f32 %v1480, %v1602
        %v1845 = vadd.f32 %v1479, %v1605
        %v1846 = vadd.f32 %v1478, %v1610
        %v1847 = vadd.f32 %v1477, %v1613
        %v1848 = vadd.f32 %v1476, %v1618
        %v1849 = vadd.f32 %v1475, %v1621
        %v1850 = vadd.f32 %v1474, %v1626
        %v1851 = vadd.f32 %v1473, %v1629
        %v1852 = vadd.f32 %v1472, %v1634
        %v1853 = vadd.f32 %v1471, %v1637
        %v1854 = vadd.f32 %v1470, %v1642
        %v1855 = vadd.f32 %v1469, %v1645
        %v1856 = vadd.f32 %v1468, %v1650
        %v1857 = vadd.f32 %v1467, %v1653
        %v1858 = vadd.f32 %v1466, %v1658
        %v1859 = vadd.f32 %v1465, %v1661
        %v1860 = vadd.f32 %v1464, %v1666
        %v1861 = vadd.f32 %v1463, %v1669
        %v1862 = vadd.f32 %v1462, %v1674
        %v1863 = vadd.f32 %v1461, %v1677
        %v1864 = vadd.f32 %v1460, %v1682
        %v1865 = vadd.f32 %v1459, %v1685
        %v1866 = vadd.f32 %v1458, %v1690
        %v1867 = vadd.f32 %v1457, %v1693
        %v1868 = vadd.f32 %v1456, %v1698
        %v1869 = vadd.f32 %v1455, %v1701
        %v1870 = vadd.f32 %v1454, %v1706
        %v1871 = vadd.f32 %v1453, %v1709
        %v1872 = vadd.f32 %v1452, %v1714
        %v1873 = vadd.f32 %v1451, %v1717
        %v1874 = vadd.f32 %v1450, %v1722
        %v1875 = vadd.f32 %v1449, %v1725
        %v1876 = vadd.f32 %v1448, %v1730
        %v1877 = vadd.f32 %v1447, %v1733
        %v1878 = vadd.f32 %v1446, %v1738
        %v1879 = vadd.f32 %v1445, %v1741
        %v1880 = vadd.f32 %v1444, %v1746
        %v1881 = vadd.f32 %v1443, %v1749
        %v1882 = vadd.f32 %v1442, %v1754
        %v1883 = vadd.f32 %v1441, %v1757
        %v1884 = vadd.f32 %v1440, %v1762
        %v1885 = vadd.f32 %v1439, %v1765
        %v1886 = vadd.f32 %v1438, %v1770
        %v1887 = vadd.f32 %v1437, %v1773
        %v1888 = vadd.f32 %v1436, %v1778
        %v1889 = vadd.f32 %v1435, %v1781
        %v1890 = vadd.f32 %v1434, %v1786
        %v1891 = vadd.f32 %v1433, %v1789
        %v1892 = vadd.f32 %v1432, %v1794
        %v1893 = vadd.f32 %v1431, %v1797
        %v1894 = vadd.f32 %v1430, %v1802
        %v1895 = vadd.f32 %v1429, %v1805
        %v1896 = vadd.f32 %v1428, %v1810
        %v1897 = vadd.f32 %v1427, %v1813
        %v1898 = vadd.f32 %v1426, %v1818
        %v1899 = vadd.f32 %v1425, %v1821
        %v1900 = vadd.f32 %v1424, %v1826
        %v1901 = vadd.f32 %v1423, %v1829
        %v1902 = vadd.f32 %v1422, %v1834
        %v1903 = vadd.f32 %v1485, %v1837
        %s1904 = scalar_lea.vmem [#allocation4], 256
        %v1905 = vld [vmem:[%s1904] sm:$0xf]
        %v1906 = vld [vmem:[%s1904 + $0x4] sm:$0xf]
        %v1907 = vld [vmem:[%s1904 + $0x8] sm:$0xf]
        %v1908 = vld [vmem:[%s1904 + $0xc] sm:$0xf]
        %v1909 = vld [vmem:[%s1904 + $0x10] sm:$0xf]
        %v1910 = vld [vmem:[%s1904 + $0x14] sm:$0xf]
        %v1911 = vld [vmem:[%s1904 + $0x18] sm:$0xf]
        %v1912 = vld [vmem:[%s1904 + $0x1c] sm:$0xf]
        %v1913 = vld [vmem:[%s1904 + $0x20] sm:$0xf]
        %v1914 = vld [vmem:[%s1904 + $0x24] sm:$0xf]
        %v1915 = vld [vmem:[%s1904 + $0x28] sm:$0xf]
        %v1916 = vld [vmem:[%s1904 + $0x2c] sm:$0xf]
        %v1917 = vld [vmem:[%s1904 + $0x30] sm:$0xf]
        %v1918 = vld [vmem:[%s1904 + $0x34] sm:$0xf]
        %v1919 = vld [vmem:[%s1904 + $0x38] sm:$0xf]
        %v1920 = vld [vmem:[%s1904 + $0x3c] sm:$0xf]
        %v1937 = vunpack.c.l.b16 %v1905
        %v1938 = vunpack.c.l.b16 %v1906
        %v1939 = vunpack.c.l.b16 %v1907
        %v1940 = vunpack.c.l.b16 %v1908
        %v1941 = vunpack.c.l.b16 %v1909
        %v1942 = vunpack.c.l.b16 %v1910
        %v1943 = vunpack.c.l.b16 %v1911
        %v1944 = vunpack.c.l.b16 %v1912
        %v1945 = vunpack.c.l.b16 %v1913
        %v1946 = vunpack.c.l.b16 %v1914
        %v1947 = vunpack.c.l.b16 %v1915
        %v1948 = vunpack.c.l.b16 %v1916
        %v1949 = vunpack.c.l.b16 %v1917
        %v1950 = vunpack.c.l.b16 %v1918
        %v1951 = vunpack.c.l.b16 %v1919
        %v1952 = vunpack.c.l.b16 %v1920
        %v1953 = vpack.c.b16 %v1938, %v1937
        %v1954 = vpack.c.b16 %v1940, %v1939
        %v1955 = vpack.c.b16 %v1942, %v1941
        %v1956 = vpack.c.b16 %v1944, %v1943
        %v1957 = vpack.c.b16 %v1946, %v1945
        %v1958 = vpack.c.b16 %v1948, %v1947
        %v1959 = vpack.c.b16 %v1950, %v1949
        %v1960 = vpack.c.b16 %v1952, %v1951
        %1969 = vmatprep.subr.bf16.mxu0 0
        %1970 = vmatpush1.bf16.msra.mxu0 %v1953
        %1971 = vmatprep.subr.bf16.mxu0 0
        %1972 = vmatpush1.bf16.msra.mxu0 %v1954
        %1973 = vmatprep.subr.bf16.mxu0 0
        %1974 = vmatpush1.bf16.msra.mxu0 %v1955
        %1975 = vmatprep.subr.bf16.mxu0 0
        %1976 = vmatpush1.bf16.msra.mxu0 %v1956
        %1977 = vmatprep.subr.bf16.mxu0 0
        %1978 = vmatpush1.bf16.msra.mxu0 %v1957
        %1979 = vmatprep.subr.bf16.mxu0 0
        %1980 = vmatpush1.bf16.msra.mxu0 %v1958
        %1981 = vmatprep.subr.bf16.mxu0 0
        %1982 = vmatpush1.bf16.msra.mxu0 %v1959
        %1983 = vmatprep.subr.bf16.mxu0 0
        %1984 = vmatpush1.bf16.msra.mxu0 %v1960
        %1985 = vmatprep.subr.bf16.mxu0 0
        %1986 = vmatpush1.bf16.msra.mxu0 0
        %1987 = vmatprep.subr.bf16.mxu0 0
        %1988 = vmatpush1.bf16.msra.mxu0 0
        %1989 = vmatprep.subr.bf16.mxu0 0
        %1990 = vmatpush1.bf16.msra.mxu0 0
        %1991 = vmatprep.subr.bf16.mxu0 0
        %1992 = vmatpush1.bf16.msra.mxu0 0
        %1993 = vmatprep.subr.bf16.mxu0 0
        %1994 = vmatpush1.bf16.msra.mxu0 0
        %1995 = vmatprep.subr.bf16.mxu0 0
        %1996 = vmatpush1.bf16.msra.mxu0 0
        %1997 = vmatprep.subr.bf16.mxu0 0
        %1998 = vmatpush1.bf16.msra.mxu0 0
        %1999 = vmatprep.subr.bf16.mxu0 0
        %2000 = vmatpush1.bf16.msra.mxu0 0
        %2001 = vmatprep.mubr.bf16.mxu0 0
        %2002 = vmatmul.mubr.bf16.gmra.mrb[0].mxu0 %v195
        %v2003 = vpop.f32.mrb[0].mxu0
        %v2004 = vadd.f32 0.0, %v2003
        %v2005 = vpop.f32.mrb[0].mxu0
        %v2006 = vpop.f32.mrb[0].mxu0
        %v2007 = vadd.f32 0.0, %v2006
        %v2008 = vpop.f32.mrb[0].mxu0
        %2009 = vmatprep.mubr.bf16.mxu0 0
        %2010 = vmatmul.mubr.bf16.gmra.mrb[0].mxu0 %v196
        %v2011 = vpop.f32.mrb[0].mxu0
        %v2012 = vadd.f32 0.0, %v2011
        %v2013 = vpop.f32.mrb[0].mxu0
        %v2014 = vpop.f32.mrb[0].mxu0
        %v2015 = vadd.f32 0.0, %v2014
        %v2016 = vpop.f32.mrb[0].mxu0
        %2017 = vmatprep.mubr.bf16.mxu0 0
        %2018 = vmatmul.mubr.bf16.gmra.mrb[0].mxu0 %v197
        %v2019 = vpop.f32.mrb[0].mxu0
        %v2020 = vadd.f32 0.0, %v2019
        %v2021 = vpop.f32.mrb[0].mxu0
        %v2022 = vpop.f32.mrb[0].mxu0
        %v2023 = vadd.f32 0.0, %v2022
        %v2024 = vpop.f32.mrb[0].mxu0
        %2025 = vmatprep.mubr.bf16.mxu0 0
        %2026 = vmatmul.mubr.bf16.gmra.mrb[0].mxu0 %v198
        %v2027 = vpop.f32.mrb[0].mxu0
        %v2028 = vadd.f32 0.0, %v2027
        %v2029 = vpop.f32.mrb[0].mxu0
        %v2030 = vpop.f32.mrb[0].mxu0
        %v2031 = vadd.f32 0.0, %v2030
        %v2032 = vpop.f32.mrb[0].mxu0
        %2033 = vmatprep.mubr.bf16.mxu0 0
        %2034 = vmatmul.mubr.bf16.gmra.mrb[0].mxu0 %v199
        %v2035 = vpop.f32.mrb[0].mxu0
        %v2036 = vadd.f32 0.0, %v2035
        %v2037 = vpop.f32.mrb[0].mxu0
        %v2038 = vpop.f32.mrb[0].mxu0
        %v2039 = vadd.f32 0.0, %v2038
        %v2040 = vpop.f32.mrb[0].mxu0
        %2041 = vmatprep.mubr.bf16.mxu0 0
        %2042 = vmatmul.mubr.bf16.gmra.mrb[0].mxu0 %v200
        %v2043 = vpop.f32.mrb[0].mxu0
        %v2044 = vadd.f32 0.0, %v2043
        %v2045 = vpop.f32.mrb[0].mxu0
        %v2046 = vpop.f32.mrb[0].mxu0
        %v2047 = vadd.f32 0.0, %v2046
        %v2048 = vpop.f32.mrb[0].mxu0
        %2049 = vmatprep.mubr.bf16.mxu0 0
        %2050 = vmatmul.mubr.bf16.gmra.mrb[0].mxu0 %v201
        %v2051 = vpop.f32.mrb[0].mxu0
        %v2052 = vadd.f32 0.0, %v2051
        %v2053 = vpop.f32.mrb[0].mxu0
        %v2054 = vpop.f32.mrb[0].mxu0
        %v2055 = vadd.f32 0.0, %v2054
        %v2056 = vpop.f32.mrb[0].mxu0
        %2057 = vmatprep.mubr.bf16.mxu0 0
        %2058 = vmatmul.mubr.bf16.gmra.mrb[0].mxu0 %v202
        %v2059 = vpop.f32.mrb[0].mxu0
        %v2060 = vadd.f32 0.0, %v2059
        %v2061 = vpop.f32.mrb[0].mxu0
        %v2062 = vpop.f32.mrb[0].mxu0
        %v2063 = vadd.f32 0.0, %v2062
        %v2064 = vpop.f32.mrb[0].mxu0
        %2065 = vmatprep.mubr.bf16.mxu0 0
        %2066 = vmatmul.mubr.bf16.gmra.mrb[0].mxu0 %v203
        %v2067 = vpop.f32.mrb[0].mxu0
        %v2068 = vadd.f32 0.0, %v2067
        %v2069 = vpop.f32.mrb[0].mxu0
        %v2070 = vpop.f32.mrb[0].mxu0
        %v2071 = vadd.f32 0.0, %v2070
        %v2072 = vpop.f32.mrb[0].mxu0
        %2073 = vmatprep.mubr.bf16.mxu0 0
        %2074 = vmatmul.mubr.bf16.gmra.mrb[0].mxu0 %v204
        %v2075 = vpop.f32.mrb[0].mxu0
        %v2076 = vadd.f32 0.0, %v2075
        %v2077 = vpop.f32.mrb[0].mxu0
        %v2078 = vpop.f32.mrb[0].mxu0
        %v2079 = vadd.f32 0.0, %v2078
        %v2080 = vpop.f32.mrb[0].mxu0
        %2081 = vmatprep.mubr.bf16.mxu0 0
        %2082 = vmatmul.mubr.bf16.gmra.mrb[0].mxu0 %v205
        %v2083 = vpop.f32.mrb[0].mxu0
        %v2084 = vadd.f32 0.0, %v2083
        %v2085 = vpop.f32.mrb[0].mxu0
        %v2086 = vpop.f32.mrb[0].mxu0
        %v2087 = vadd.f32 0.0, %v2086
        %v2088 = vpop.f32.mrb[0].mxu0
        %2089 = vmatprep.mubr.bf16.mxu0 0
        %2090 = vmatmul.mubr.bf16.gmra.mrb[0].mxu0 %v206
        %v2091 = vpop.f32.mrb[0].mxu0
        %v2092 = vadd.f32 0.0, %v2091
        %v2093 = vpop.f32.mrb[0].mxu0
        %v2094 = vpop.f32.mrb[0].mxu0
        %v2095 = vadd.f32 0.0, %v2094
        %v2096 = vpop.f32.mrb[0].mxu0
        %2097 = vmatprep.mubr.bf16.mxu0 0
        %2098 = vmatmul.mubr.bf16.gmra.mrb[0].mxu0 %v207
        %v2099 = vpop.f32.mrb[0].mxu0
        %v2100 = vadd.f32 0.0, %v2099
        %v2101 = vpop.f32.mrb[0].mxu0
        %v2102 = vpop.f32.mrb[0].mxu0
        %v2103 = vadd.f32 0.0, %v2102
        %v2104 = vpop.f32.mrb[0].mxu0
        %2105 = vmatprep.mubr.bf16.mxu0 0
        %2106 = vmatmul.mubr.bf16.gmra.mrb[0].mxu0 %v208
        %v2107 = vpop.f32.mrb[0].mxu0
        %v2108 = vadd.f32 0.0, %v2107
        %v2109 = vpop.f32.mrb[0].mxu0
        %v2110 = vpop.f32.mrb[0].mxu0
        %v2111 = vadd.f32 0.0, %v2110
        %v2112 = vpop.f32.mrb[0].mxu0
        %2113 = vmatprep.mubr.bf16.mxu0 0
        %2114 = vmatmul.mubr.bf16.gmra.mrb[0].mxu0 %v209
        %v2115 = vpop.f32.mrb[0].mxu0
        %v2116 = vadd.f32 0.0, %v2115
        %v2117 = vpop.f32.mrb[0].mxu0
        %v2118 = vpop.f32.mrb[0].mxu0
        %v2119 = vadd.f32 0.0, %v2118
        %v2120 = vpop.f32.mrb[0].mxu0
        %2121 = vmatprep.mubr.bf16.mxu0 0
        %2122 = vmatmul.mubr.bf16.gmra.mrb[0].mxu0 %v210
        %v2123 = vpop.f32.mrb[0].mxu0
        %v2124 = vadd.f32 0.0, %v2123
        %v2125 = vpop.f32.mrb[0].mxu0
        %v2126 = vpop.f32.mrb[0].mxu0
        %v2127 = vadd.f32 0.0, %v2126
        %v2128 = vpop.f32.mrb[0].mxu0
        %2129 = vmatprep.mubr.bf16.mxu0 0
        %2130 = vmatmul.mubr.bf16.gmra.mrb[0].mxu0 %v211
        %v2131 = vpop.f32.mrb[0].mxu0
        %v2132 = vadd.f32 0.0, %v2131
        %v2133 = vpop.f32.mrb[0].mxu0
        %v2134 = vpop.f32.mrb[0].mxu0
        %v2135 = vadd.f32 0.0, %v2134
        %v2136 = vpop.f32.mrb[0].mxu0
        %2137 = vmatprep.mubr.bf16.mxu0 0
        %2138 = vmatmul.mubr.bf16.gmra.mrb[0].mxu0 %v212
        %v2139 = vpop.f32.mrb[0].mxu0
        %v2140 = vadd.f32 0.0, %v2139
        %v2141 = vpop.f32.mrb[0].mxu0
        %v2142 = vpop.f32.mrb[0].mxu0
        %v2143 = vadd.f32 0.0, %v2142
        %v2144 = vpop.f32.mrb[0].mxu0
        %2145 = vmatprep.mubr.bf16.mxu0 0
        %2146 = vmatmul.mubr.bf16.gmra.mrb[0].mxu0 %v213
        %v2147 = vpop.f32.mrb[0].mxu0
        %v2148 = vadd.f32 0.0, %v2147
        %v2149 = vpop.f32.mrb[0].mxu0
        %v2150 = vpop.f32.mrb[0].mxu0
        %v2151 = vadd.f32 0.0, %v2150
        %v2152 = vpop.f32.mrb[0].mxu0
        %2153 = vmatprep.mubr.bf16.mxu0 0
        %2154 = vmatmul.mubr.bf16.gmra.mrb[0].mxu0 %v214
        %v2155 = vpop.f32.mrb[0].mxu0
        %v2156 = vadd.f32 0.0, %v2155
        %v2157 = vpop.f32.mrb[0].mxu0
        %v2158 = vpop.f32.mrb[0].mxu0
        %v2159 = vadd.f32 0.0, %v2158
        %v2160 = vpop.f32.mrb[0].mxu0
        %2161 = vmatprep.mubr.bf16.mxu0 0
        %2162 = vmatmul.mubr.bf16.gmra.mrb[0].mxu0 %v215
        %v2163 = vpop.f32.mrb[0].mxu0
        %v2164 = vadd.f32 0.0, %v2163
        %v2165 = vpop.f32.mrb[0].mxu0
        %v2166 = vpop.f32.mrb[0].mxu0
        %v2167 = vadd.f32 0.0, %v2166
        %v2168 = vpop.f32.mrb[0].mxu0
        %2169 = vmatprep.mubr.bf16.mxu0 0
        %2170 = vmatmul.mubr.bf16.gmra.mrb[0].mxu0 %v216
        %v2171 = vpop.f32.mrb[0].mxu0
        %v2172 = vadd.f32 0.0, %v2171
        %v2173 = vpop.f32.mrb[0].mxu0
        %v2174 = vpop.f32.mrb[0].mxu0
        %v2175 = vadd.f32 0.0, %v2174
        %v2176 = vpop.f32.mrb[0].mxu0
        %2177 = vmatprep.mubr.bf16.mxu0 0
        %2178 = vmatmul.mubr.bf16.gmra.mrb[0].mxu0 %v217
        %v2179 = vpop.f32.mrb[0].mxu0
        %v2180 = vadd.f32 0.0, %v2179
        %v2181 = vpop.f32.mrb[0].mxu0
        %v2182 = vpop.f32.mrb[0].mxu0
        %v2183 = vadd.f32 0.0, %v2182
        %v2184 = vpop.f32.mrb[0].mxu0
        %2185 = vmatprep.mubr.bf16.mxu0 0
        %2186 = vmatmul.mubr.bf16.gmra.mrb[0].mxu0 %v218
        %v2187 = vpop.f32.mrb[0].mxu0
        %v2188 = vadd.f32 0.0, %v2187
        %v2189 = vpop.f32.mrb[0].mxu0
        %v2190 = vpop.f32.mrb[0].mxu0
        %v2191 = vadd.f32 0.0, %v2190
        %v2192 = vpop.f32.mrb[0].mxu0
        %2193 = vmatprep.mubr.bf16.mxu0 0
        %2194 = vmatmul.mubr.bf16.gmra.mrb[0].mxu0 %v219
        %v2195 = vpop.f32.mrb[0].mxu0
        %v2196 = vadd.f32 0.0, %v2195
        %v2197 = vpop.f32.mrb[0].mxu0
        %v2198 = vpop.f32.mrb[0].mxu0
        %v2199 = vadd.f32 0.0, %v2198
        %v2200 = vpop.f32.mrb[0].mxu0
        %2201 = vmatprep.mubr.bf16.mxu0 0
        %2202 = vmatmul.mubr.bf16.gmra.mrb[0].mxu0 %v220
        %v2203 = vpop.f32.mrb[0].mxu0
        %v2204 = vadd.f32 0.0, %v2203
        %v2205 = vpop.f32.mrb[0].mxu0
        %v2206 = vpop.f32.mrb[0].mxu0
        %v2207 = vadd.f32 0.0, %v2206
        %v2208 = vpop.f32.mrb[0].mxu0
        %2209 = vmatprep.mubr.bf16.mxu0 0
        %2210 = vmatmul.mubr.bf16.gmra.mrb[0].mxu0 %v221
        %v2211 = vpop.f32.mrb[0].mxu0
        %v2212 = vadd.f32 0.0, %v2211
        %v2213 = vpop.f32.mrb[0].mxu0
        %v2214 = vpop.f32.mrb[0].mxu0
        %v2215 = vadd.f32 0.0, %v2214
        %v2216 = vpop.f32.mrb[0].mxu0
        %2217 = vmatprep.mubr.bf16.mxu0 0
        %2218 = vmatmul.mubr.bf16.gmra.mrb[0].mxu0 %v222
        %v2219 = vpop.f32.mrb[0].mxu0
        %v2220 = vadd.f32 0.0, %v2219
        %v2221 = vpop.f32.mrb[0].mxu0
        %v2222 = vpop.f32.mrb[0].mxu0
        %v2223 = vadd.f32 0.0, %v2222
        %v2224 = vpop.f32.mrb[0].mxu0
        %2225 = vmatprep.mubr.bf16.mxu0 0
        %2226 = vmatmul.mubr.bf16.gmra.mrb[0].mxu0 %v223
        %v2227 = vpop.f32.mrb[0].mxu0
        %v2228 = vadd.f32 0.0, %v2227
        %v2229 = vpop.f32.mrb[0].mxu0
        %v2230 = vpop.f32.mrb[0].mxu0
        %v2231 = vadd.f32 0.0, %v2230
        %v2232 = vpop.f32.mrb[0].mxu0
        %2233 = vmatprep.mubr.bf16.mxu0 0
        %2234 = vmatmul.mubr.bf16.gmra.mrb[0].mxu0 %v224
        %v2235 = vpop.f32.mrb[0].mxu0
        %v2236 = vadd.f32 0.0, %v2235
        %v2237 = vpop.f32.mrb[0].mxu0
        %v2238 = vpop.f32.mrb[0].mxu0
        %v2239 = vadd.f32 0.0, %v2238
        %v2240 = vpop.f32.mrb[0].mxu0
        %2241 = vmatprep.mubr.bf16.mxu0 0
        %2242 = vmatmul.mubr.bf16.gmra.mrb[0].mxu0 %v225
        %v2243 = vpop.f32.mrb[0].mxu0
        %v2244 = vadd.f32 0.0, %v2243
        %v2245 = vpop.f32.mrb[0].mxu0
        %v2246 = vpop.f32.mrb[0].mxu0
        %v2247 = vadd.f32 0.0, %v2246
        %v2248 = vpop.f32.mrb[0].mxu0
        %2249 = vmatprep.mubr.bf16.mxu0 0
        %2250 = vmatmul.mubr.bf16.gmra.mrb[0].mxu0 %v226
        %v2251 = vpop.f32.mrb[0].mxu0
        %v2252 = vadd.f32 0.0, %v2251
        %v2253 = vpop.f32.mrb[0].mxu0
        %v2254 = vpop.f32.mrb[0].mxu0
        %v2255 = vadd.f32 0.0, %v2254
        %v2256 = vpop.f32.mrb[0].mxu0
        %2257 = vdwg.mxu0
        %v2258 = vadd.f32 %v1840, %v2004
        %v2259 = vadd.f32 %v1841, %v2007
        %v2260 = vadd.f32 %v1842, %v2012
        %v2261 = vadd.f32 %v1843, %v2015
        %v2262 = vadd.f32 %v1844, %v2020
        %v2263 = vadd.f32 %v1845, %v2023
        %v2264 = vadd.f32 %v1846, %v2028
        %v2265 = vadd.f32 %v1847, %v2031
        %v2266 = vadd.f32 %v1848, %v2036
        %v2267 = vadd.f32 %v1849, %v2039
        %v2268 = vadd.f32 %v1850, %v2044
        %v2269 = vadd.f32 %v1851, %v2047
        %v2270 = vadd.f32 %v1852, %v2052
        %v2271 = vadd.f32 %v1853, %v2055
        %v2272 = vadd.f32 %v1854, %v2060
        %v2273 = vadd.f32 %v1855, %v2063
        %v2274 = vadd.f32 %v1856, %v2068
        %v2275 = vadd.f32 %v1857, %v2071
        %v2276 = vadd.f32 %v1858, %v2076
        %v2277 = vadd.f32 %v1859, %v2079
        %v2278 = vadd.f32 %v1860, %v2084
        %v2279 = vadd.f32 %v1861, %v2087
        %v2280 = vadd.f32 %v1862, %v2092
        %v2281 = vadd.f32 %v1863, %v2095
        %v2282 = vadd.f32 %v1864, %v2100
        %v2283 = vadd.f32 %v1865, %v2103
        %v2284 = vadd.f32 %v1866, %v2108
        %v2285 = vadd.f32 %v1867, %v2111
        %v2286 = vadd.f32 %v1868, %v2116
        %v2287 = vadd.f32 %v1869, %v2119
        %v2288 = vadd.f32 %v1870, %v2124
        %v2289 = vadd.f32 %v1871, %v2127
        %v2290 = vadd.f32 %v1872, %v2132
        %v2291 = vadd.f32 %v1873, %v2135
        %v2292 = vadd.f32 %v1874, %v2140
        %v2293 = vadd.f32 %v1875, %v2143
        %v2294 = vadd.f32 %v1876, %v2148
        %v2295 = vadd.f32 %v1877, %v2151
        %v2296 = vadd.f32 %v1878, %v2156
        %v2297 = vadd.f32 %v1879, %v2159
        %v2298 = vadd.f32 %v1880, %v2164
        %v2299 = vadd.f32 %v1881, %v2167
        %v2300 = vadd.f32 %v1882, %v2172
        %v2301 = vadd.f32 %v1883, %v2175
        %v2302 = vadd.f32 %v1884, %v2180
        %v2303 = vadd.f32 %v1885, %v2183
        %v2304 = vadd.f32 %v1886, %v2188
        %v2305 = vadd.f32 %v1887, %v2191
        %v2306 = vadd.f32 %v1888, %v2196
        %v2307 = vadd.f32 %v1889, %v2199
        %v2308 = vadd.f32 %v1890, %v2204
        %v2309 = vadd.f32 %v1891, %v2207
        %v2310 = vadd.f32 %v1892, %v2212
        %v2311 = vadd.f32 %v1893, %v2215
        %v2312 = vadd.f32 %v1894, %v2220
        %v2313 = vadd.f32 %v1895, %v2223
        %v2314 = vadd.f32 %v1896, %v2228
        %v2315 = vadd.f32 %v1897, %v2231
        %v2316 = vadd.f32 %v1898, %v2236
        %v2317 = vadd.f32 %v1899, %v2239
        %v2318 = vadd.f32 %v1900, %v2244
        %v2319 = vadd.f32 %v1901, %v2247
        %v2320 = vadd.f32 %v1902, %v2252
        %v2321 = vadd.f32 %v1903, %v2255
        %s2322 = scalar_lea.vmem [#allocation4], 448
        %v2323 = vld [vmem:[%s2322] sm:$0xf]
        %v2324 = vld [vmem:[%s2322 + $0x4] sm:$0xf]
        %v2325 = vld [vmem:[%s2322 + $0x8] sm:$0xf]
        %v2326 = vld [vmem:[%s2322 + $0xc] sm:$0xf]
        %v2327 = vld [vmem:[%s2322 + $0x10] sm:$0xf]
        %v2328 = vld [vmem:[%s2322 + $0x14] sm:$0xf]
        %v2329 = vld [vmem:[%s2322 + $0x18] sm:$0xf]
        %v2330 = vld [vmem:[%s2322 + $0x1c] sm:$0xf]
        %v2331 = vld [vmem:[%s2322 + $0x20] sm:$0xf]
        %v2332 = vld [vmem:[%s2322 + $0x24] sm:$0xf]
        %v2333 = vld [vmem:[%s2322 + $0x28] sm:$0xf]
        %v2334 = vld [vmem:[%s2322 + $0x2c] sm:$0xf]
        %v2335 = vld [vmem:[%s2322 + $0x30] sm:$0xf]
        %v2336 = vld [vmem:[%s2322 + $0x34] sm:$0xf]
        %v2337 = vld [vmem:[%s2322 + $0x38] sm:$0xf]
        %v2338 = vld [vmem:[%s2322 + $0x3c] sm:$0xf]
        %v2355 = vunpack.c.l.b16 %v2323
        %v2356 = vunpack.c.l.b16 %v2324
        %v2357 = vunpack.c.l.b16 %v2325
        %v2358 = vunpack.c.l.b16 %v2326
        %v2359 = vunpack.c.l.b16 %v2327
        %v2360 = vunpack.c.l.b16 %v2328
        %v2361 = vunpack.c.l.b16 %v2329
        %v2362 = vunpack.c.l.b16 %v2330
        %v2363 = vunpack.c.l.b16 %v2331
        %v2364 = vunpack.c.l.b16 %v2332
        %v2365 = vunpack.c.l.b16 %v2333
        %v2366 = vunpack.c.l.b16 %v2334
        %v2367 = vunpack.c.l.b16 %v2335
        %v2368 = vunpack.c.l.b16 %v2336
        %v2369 = vunpack.c.l.b16 %v2337
        %v2370 = vunpack.c.l.b16 %v2338
        %v2371 = vpack.c.b16 %v2356, %v2355
        %v2372 = vpack.c.b16 %v2358, %v2357
        %v2373 = vpack.c.b16 %v2360, %v2359
        %v2374 = vpack.c.b16 %v2362, %v2361
        %v2375 = vpack.c.b16 %v2364, %v2363
        %v2376 = vpack.c.b16 %v2366, %v2365
        %v2377 = vpack.c.b16 %v2368, %v2367
        %v2378 = vpack.c.b16 %v2370, %v2369
        %2387 = vmatprep.subr.bf16.mxu0 0
        %2388 = vmatpush1.bf16.msra.mxu0 %v2371
        %2389 = vmatprep.subr.bf16.mxu0 0
        %2390 = vmatpush1.bf16.msra.mxu0 %v2372
        %2391 = vmatprep.subr.bf16.mxu0 0
        %2392 = vmatpush1.bf16.msra.mxu0 %v2373
        %2393 = vmatprep.subr.bf16.mxu0 0
        %2394 = vmatpush1.bf16.msra.mxu0 %v2374
        %2395 = vmatprep.subr.bf16.mxu0 0
        %2396 = vmatpush1.bf16.msra.mxu0 %v2375
        %2397 = vmatprep.subr.bf16.mxu0 0
        %2398 = vmatpush1.bf16.msra.mxu0 %v2376
        %2399 = vmatprep.subr.bf16.mxu0 0
        %2400 = vmatpush1.bf16.msra.mxu0 %v2377
        %2401 = vmatprep.subr.bf16.mxu0 0
        %2402 = vmatpush1.bf16.msra.mxu0 %v2378
        %2403 = vmatprep.subr.bf16.mxu0 0
        %2404 = vmatpush1.bf16.msra.mxu0 0
        %2405 = vmatprep.subr.bf16.mxu0 0
        %2406 = vmatpush1.bf16.msra.mxu0 0
        %2407 = vmatprep.subr.bf16.mxu0 0
        %2408 = vmatpush1.bf16.msra.mxu0 0
        %2409 = vmatprep.subr.bf16.mxu0 0
        %2410 = vmatpush1.bf16.msra.mxu0 0
        %2411 = vmatprep.subr.bf16.mxu0 0
        %2412 = vmatpush1.bf16.msra.mxu0 0
        %2413 = vmatprep.subr.bf16.mxu0 0
        %2414 = vmatpush1.bf16.msra.mxu0 0
        %2415 = vmatprep.subr.bf16.mxu0 0
        %2416 = vmatpush1.bf16.msra.mxu0 0
        %2417 = vmatprep.subr.bf16.mxu0 0
        %2418 = vmatpush1.bf16.msra.mxu0 0
        %2419 = vmatprep.mubr.bf16.mxu0 0
        %2420 = vmatmul.mubr.bf16.gmra.mrb[0].mxu0 %v197
        %v2421 = vpop.f32.mrb[0].mxu0
        %v2422 = vadd.f32 0.0, %v2421
        %v2423 = vpop.f32.mrb[0].mxu0
        %v2424 = vpop.f32.mrb[0].mxu0
        %v2425 = vadd.f32 0.0, %v2424
        %v2426 = vpop.f32.mrb[0].mxu0
        %2427 = vmatprep.mubr.bf16.mxu0 0
        %2428 = vmatmul.mubr.bf16.gmra.mrb[0].mxu0 %v198
        %v2429 = vpop.f32.mrb[0].mxu0
        %v2430 = vadd.f32 0.0, %v2429
        %v2431 = vpop.f32.mrb[0].mxu0
        %v2432 = vpop.f32.mrb[0].mxu0
        %v2433 = vadd.f32 0.0, %v2432
        %v2434 = vpop.f32.mrb[0].mxu0
        %2435 = vmatprep.mubr.bf16.mxu0 0
        %2436 = vmatmul.mubr.bf16.gmra.mrb[0].mxu0 %v199
        %v2437 = vpop.f32.mrb[0].mxu0
        %v2438 = vadd.f32 0.0, %v2437
        %v2439 = vpop.f32.mrb[0].mxu0
        %v2440 = vpop.f32.mrb[0].mxu0
        %v2441 = vadd.f32 0.0, %v2440
        %v2442 = vpop.f32.mrb[0].mxu0
        %2443 = vmatprep.mubr.bf16.mxu0 0
        %2444 = vmatmul.mubr.bf16.gmra.mrb[0].mxu0 %v200
        %v2445 = vpop.f32.mrb[0].mxu0
        %v2446 = vadd.f32 0.0, %v2445
        %v2447 = vpop.f32.mrb[0].mxu0
        %v2448 = vpop.f32.mrb[0].mxu0
        %v2449 = vadd.f32 0.0, %v2448
        %v2450 = vpop.f32.mrb[0].mxu0
        %2451 = vmatprep.mubr.bf16.mxu0 0
        %2452 = vmatmul.mubr.bf16.gmra.mrb[0].mxu0 %v201
        %v2453 = vpop.f32.mrb[0].mxu0
        %v2454 = vadd.f32 0.0, %v2453
        %v2455 = vpop.f32.mrb[0].mxu0
        %v2456 = vpop.f32.mrb[0].mxu0
        %v2457 = vadd.f32 0.0, %v2456
        %v2458 = vpop.f32.mrb[0].mxu0
        %2459 = vmatprep.mubr.bf16.mxu0 0
        %2460 = vmatmul.mubr.bf16.gmra.mrb[0].mxu0 %v202
        %v2461 = vpop.f32.mrb[0].mxu0
        %v2462 = vadd.f32 0.0, %v2461
        %v2463 = vpop.f32.mrb[0].mxu0
        %v2464 = vpop.f32.mrb[0].mxu0
        %v2465 = vadd.f32 0.0, %v2464
        %v2466 = vpop.f32.mrb[0].mxu0
        %2467 = vmatprep.mubr.bf16.mxu0 0
        %2468 = vmatmul.mubr.bf16.gmra.mrb[0].mxu0 %v203
        %v2469 = vpop.f32.mrb[0].mxu0
        %v2470 = vadd.f32 0.0, %v2469
        %v2471 = vpop.f32.mrb[0].mxu0
        %v2472 = vpop.f32.mrb[0].mxu0
        %v2473 = vadd.f32 0.0, %v2472
        %v2474 = vpop.f32.mrb[0].mxu0
        %2475 = vmatprep.mubr.bf16.mxu0 0
        %2476 = vmatmul.mubr.bf16.gmra.mrb[0].mxu0 %v204
        %v2477 = vpop.f32.mrb[0].mxu0
        %v2478 = vadd.f32 0.0, %v2477
        %v2479 = vpop.f32.mrb[0].mxu0
        %v2480 = vpop.f32.mrb[0].mxu0
        %v2481 = vadd.f32 0.0, %v2480
        %v2482 = vpop.f32.mrb[0].mxu0
        %2483 = vmatprep.mubr.bf16.mxu0 0
        %2484 = vmatmul.mubr.bf16.gmra.mrb[0].mxu0 %v205
        %v2485 = vpop.f32.mrb[0].mxu0
        %v2486 = vadd.f32 0.0, %v2485
        %v2487 = vpop.f32.mrb[0].mxu0
        %v2488 = vpop.f32.mrb[0].mxu0
        %v2489 = vadd.f32 0.0, %v2488
        %v2490 = vpop.f32.mrb[0].mxu0
        %2491 = vmatprep.mubr.bf16.mxu0 0
        %2492 = vmatmul.mubr.bf16.gmra.mrb[0].mxu0 %v206
        %v2493 = vpop.f32.mrb[0].mxu0
        %v2494 = vadd.f32 0.0, %v2493
        %v2495 = vpop.f32.mrb[0].mxu0
        %v2496 = vpop.f32.mrb[0].mxu0
        %v2497 = vadd.f32 0.0, %v2496
        %v2498 = vpop.f32.mrb[0].mxu0
        %2499 = vmatprep.mubr.bf16.mxu0 0
        %2500 = vmatmul.mubr.bf16.gmra.mrb[0].mxu0 %v207
        %v2501 = vpop.f32.mrb[0].mxu0
        %v2502 = vadd.f32 0.0, %v2501
        %v2503 = vpop.f32.mrb[0].mxu0
        %v2504 = vpop.f32.mrb[0].mxu0
        %v2505 = vadd.f32 0.0, %v2504
        %v2506 = vpop.f32.mrb[0].mxu0
        %2507 = vmatprep.mubr.bf16.mxu0 0
        %2508 = vmatmul.mubr.bf16.gmra.mrb[0].mxu0 %v208
        %v2509 = vpop.f32.mrb[0].mxu0
        %v2510 = vadd.f32 0.0, %v2509
        %v2511 = vpop.f32.mrb[0].mxu0
        %v2512 = vpop.f32.mrb[0].mxu0
        %v2513 = vadd.f32 0.0, %v2512
        %v2514 = vpop.f32.mrb[0].mxu0
        %2515 = vmatprep.mubr.bf16.mxu0 0
        %2516 = vmatmul.mubr.bf16.gmra.mrb[0].mxu0 %v209
        %v2517 = vpop.f32.mrb[0].mxu0
        %v2518 = vadd.f32 0.0, %v2517
        %v2519 = vpop.f32.mrb[0].mxu0
        %v2520 = vpop.f32.mrb[0].mxu0
        %v2521 = vadd.f32 0.0, %v2520
        %v2522 = vpop.f32.mrb[0].mxu0
        %2523 = vmatprep.mubr.bf16.mxu0 0
        %2524 = vmatmul.mubr.bf16.gmra.mrb[0].mxu0 %v210
        %v2525 = vpop.f32.mrb[0].mxu0
        %v2526 = vadd.f32 0.0, %v2525
        %v2527 = vpop.f32.mrb[0].mxu0
        %v2528 = vpop.f32.mrb[0].mxu0
        %v2529 = vadd.f32 0.0, %v2528
        %v2530 = vpop.f32.mrb[0].mxu0
        %2531 = vmatprep.mubr.bf16.mxu0 0
        %2532 = vmatmul.mubr.bf16.gmra.mrb[0].mxu0 %v211
        %v2533 = vpop.f32.mrb[0].mxu0
        %v2534 = vadd.f32 0.0, %v2533
        %v2535 = vpop.f32.mrb[0].mxu0
        %v2536 = vpop.f32.mrb[0].mxu0
        %v2537 = vadd.f32 0.0, %v2536
        %v2538 = vpop.f32.mrb[0].mxu0
        %2539 = vmatprep.mubr.bf16.mxu0 0
        %2540 = vmatmul.mubr.bf16.gmra.mrb[0].mxu0 %v212
        %v2541 = vpop.f32.mrb[0].mxu0
        %v2542 = vadd.f32 0.0, %v2541
        %v2543 = vpop.f32.mrb[0].mxu0
        %v2544 = vpop.f32.mrb[0].mxu0
        %v2545 = vadd.f32 0.0, %v2544
        %v2546 = vpop.f32.mrb[0].mxu0
        %2547 = vmatprep.mubr.bf16.mxu0 0
        %2548 = vmatmul.mubr.bf16.gmra.mrb[0].mxu0 %v213
        %v2549 = vpop.f32.mrb[0].mxu0
        %v2550 = vadd.f32 0.0, %v2549
        %v2551 = vpop.f32.mrb[0].mxu0
        %v2552 = vpop.f32.mrb[0].mxu0
        %v2553 = vadd.f32 0.0, %v2552
        %v2554 = vpop.f32.mrb[0].mxu0
        %2555 = vmatprep.mubr.bf16.mxu0 0
        %2556 = vmatmul.mubr.bf16.gmra.mrb[0].mxu0 %v214
        %v2557 = vpop.f32.mrb[0].mxu0
        %v2558 = vadd.f32 0.0, %v2557
        %v2559 = vpop.f32.mrb[0].mxu0
        %v2560 = vpop.f32.mrb[0].mxu0
        %v2561 = vadd.f32 0.0, %v2560
        %v2562 = vpop.f32.mrb[0].mxu0
        %2563 = vmatprep.mubr.bf16.mxu0 0
        %2564 = vmatmul.mubr.bf16.gmra.mrb[0].mxu0 %v215
        %v2565 = vpop.f32.mrb[0].mxu0
        %v2566 = vadd.f32 0.0, %v2565
        %v2567 = vpop.f32.mrb[0].mxu0
        %v2568 = vpop.f32.mrb[0].mxu0
        %v2569 = vadd.f32 0.0, %v2568
        %v2570 = vpop.f32.mrb[0].mxu0
        %2571 = vmatprep.mubr.bf16.mxu0 0
        %2572 = vmatmul.mubr.bf16.gmra.mrb[0].mxu0 %v216
        %v2573 = vpop.f32.mrb[0].mxu0
        %v2574 = vadd.f32 0.0, %v2573
        %v2575 = vpop.f32.mrb[0].mxu0
        %v2576 = vpop.f32.mrb[0].mxu0
        %v2577 = vadd.f32 0.0, %v2576
        %v2578 = vpop.f32.mrb[0].mxu0
        %2579 = vmatprep.mubr.bf16.mxu0 0
        %2580 = vmatmul.mubr.bf16.gmra.mrb[0].mxu0 %v217
        %v2581 = vpop.f32.mrb[0].mxu0
        %v2582 = vadd.f32 0.0, %v2581
        %v2583 = vpop.f32.mrb[0].mxu0
        %v2584 = vpop.f32.mrb[0].mxu0
        %v2585 = vadd.f32 0.0, %v2584
        %v2586 = vpop.f32.mrb[0].mxu0
        %2587 = vmatprep.mubr.bf16.mxu0 0
        %2588 = vmatmul.mubr.bf16.gmra.mrb[0].mxu0 %v218
        %v2589 = vpop.f32.mrb[0].mxu0
        %v2590 = vadd.f32 0.0, %v2589
        %v2591 = vpop.f32.mrb[0].mxu0
        %v2592 = vpop.f32.mrb[0].mxu0
        %v2593 = vadd.f32 0.0, %v2592
        %v2594 = vpop.f32.mrb[0].mxu0
        %2595 = vmatprep.mubr.bf16.mxu0 0
        %2596 = vmatmul.mubr.bf16.gmra.mrb[0].mxu0 %v219
        %v2597 = vpop.f32.mrb[0].mxu0
        %v2598 = vadd.f32 0.0, %v2597
        %v2599 = vpop.f32.mrb[0].mxu0
        %v2600 = vpop.f32.mrb[0].mxu0
        %v2601 = vadd.f32 0.0, %v2600
        %v2602 = vpop.f32.mrb[0].mxu0
        %2603 = vmatprep.mubr.bf16.mxu0 0
        %2604 = vmatmul.mubr.bf16.gmra.mrb[0].mxu0 %v220
        %v2605 = vpop.f32.mrb[0].mxu0
        %v2606 = vadd.f32 0.0, %v2605
        %v2607 = vpop.f32.mrb[0].mxu0
        %v2608 = vpop.f32.mrb[0].mxu0
        %v2609 = vadd.f32 0.0, %v2608
        %v2610 = vpop.f32.mrb[0].mxu0
        %2611 = vmatprep.mubr.bf16.mxu0 0
        %2612 = vmatmul.mubr.bf16.gmra.mrb[0].mxu0 %v221
        %v2613 = vpop.f32.mrb[0].mxu0
        %v2614 = vadd.f32 0.0, %v2613
        %v2615 = vpop.f32.mrb[0].mxu0
        %v2616 = vpop.f32.mrb[0].mxu0
        %v2617 = vadd.f32 0.0, %v2616
        %v2618 = vpop.f32.mrb[0].mxu0
        %2619 = vmatprep.mubr.bf16.mxu0 0
        %2620 = vmatmul.mubr.bf16.gmra.mrb[0].mxu0 %v222
        %v2621 = vpop.f32.mrb[0].mxu0
        %v2622 = vadd.f32 0.0, %v2621
        %v2623 = vpop.f32.mrb[0].mxu0
        %v2624 = vpop.f32.mrb[0].mxu0
        %v2625 = vadd.f32 0.0, %v2624
        %v2626 = vpop.f32.mrb[0].mxu0
        %2627 = vmatprep.mubr.bf16.mxu0 0
        %2628 = vmatmul.mubr.bf16.gmra.mrb[0].mxu0 %v223
        %v2629 = vpop.f32.mrb[0].mxu0
        %v2630 = vadd.f32 0.0, %v2629
        %v2631 = vpop.f32.mrb[0].mxu0
        %v2632 = vpop.f32.mrb[0].mxu0
        %v2633 = vadd.f32 0.0, %v2632
        %v2634 = vpop.f32.mrb[0].mxu0
        %2635 = vmatprep.mubr.bf16.mxu0 0
        %2636 = vmatmul.mubr.bf16.gmra.mrb[0].mxu0 %v224
        %v2637 = vpop.f32.mrb[0].mxu0
        %v2638 = vadd.f32 0.0, %v2637
        %v2639 = vpop.f32.mrb[0].mxu0
        %v2640 = vpop.f32.mrb[0].mxu0
        %v2641 = vadd.f32 0.0, %v2640
        %v2642 = vpop.f32.mrb[0].mxu0
        %2643 = vmatprep.mubr.bf16.mxu0 0
        %2644 = vmatmul.mubr.bf16.gmra.mrb[0].mxu0 %v225
        %v2645 = vpop.f32.mrb[0].mxu0
        %v2646 = vadd.f32 0.0, %v2645
        %v2647 = vpop.f32.mrb[0].mxu0
        %v2648 = vpop.f32.mrb[0].mxu0
        %v2649 = vadd.f32 0.0, %v2648
        %v2650 = vpop.f32.mrb[0].mxu0
        %2651 = vmatprep.mubr.bf16.mxu0 0
        %2652 = vmatmul.mubr.bf16.gmra.mrb[0].mxu0 %v226
        %v2653 = vpop.f32.mrb[0].mxu0
        %v2654 = vadd.f32 0.0, %v2653
        %v2655 = vpop.f32.mrb[0].mxu0
        %v2656 = vpop.f32.mrb[0].mxu0
        %v2657 = vadd.f32 0.0, %v2656
        %v2658 = vpop.f32.mrb[0].mxu0
        %2659 = vmatprep.mubr.bf16.mxu0 0
        %2660 = vmatmul.mubr.bf16.gmra.mrb[0].mxu0 %v227
        %v2661 = vpop.f32.mrb[0].mxu0
        %v2662 = vadd.f32 0.0, %v2661
        %v2663 = vpop.f32.mrb[0].mxu0
        %v2664 = vpop.f32.mrb[0].mxu0
        %v2665 = vadd.f32 0.0, %v2664
        %v2666 = vpop.f32.mrb[0].mxu0
        %2667 = vmatprep.mubr.bf16.mxu0 0
        %2668 = vmatmul.mubr.bf16.gmra.mrb[0].mxu0 %v228
        %v2669 = vpop.f32.mrb[0].mxu0
        %v2670 = vadd.f32 0.0, %v2669
        %v2671 = vpop.f32.mrb[0].mxu0
        %v2672 = vpop.f32.mrb[0].mxu0
        %v2673 = vadd.f32 0.0, %v2672
        %v2674 = vpop.f32.mrb[0].mxu0
        %2675 = vdwg.mxu0
        %v2676 = vadd.f32 %v2258, %v2422
        %v2677 = vadd.f32 %v2259, %v2425
        %v2678 = vadd.f32 %v2260, %v2430
        %v2679 = vadd.f32 %v2261, %v2433
        %v2680 = vadd.f32 %v2262, %v2438
        %v2681 = vadd.f32 %v2263, %v2441
        %v2682 = vadd.f32 %v2264, %v2446
        %v2683 = vadd.f32 %v2265, %v2449
        %v2684 = vadd.f32 %v2266, %v2454
        %v2685 = vadd.f32 %v2267, %v2457
        %v2686 = vadd.f32 %v2268, %v2462
        %v2687 = vadd.f32 %v2269, %v2465
        %v2688 = vadd.f32 %v2270, %v2470
        %v2689 = vadd.f32 %v2271, %v2473
        %v2690 = vadd.f32 %v2272, %v2478
        %v2691 = vadd.f32 %v2273, %v2481
        %v2692 = vadd.f32 %v2274, %v2486
        %v2693 = vadd.f32 %v2275, %v2489
        %v2694 = vadd.f32 %v2276, %v2494
        %v2695 = vadd.f32 %v2277, %v2497
        %v2696 = vadd.f32 %v2278, %v2502
        %v2697 = vadd.f32 %v2279, %v2505
        %v2698 = vadd.f32 %v2280, %v2510
        %v2699 = vadd.f32 %v2281, %v2513
        %v2700 = vadd.f32 %v2282, %v2518
        %v2701 = vadd.f32 %v2283, %v2521
        %v2702 = vadd.f32 %v2284, %v2526
        %v2703 = vadd.f32 %v2285, %v2529
        %v2704 = vadd.f32 %v2286, %v2534
        %v2705 = vadd.f32 %v2287, %v2537
        %v2706 = vadd.f32 %v2288, %v2542
        %v2707 = vadd.f32 %v2289, %v2545
        %v2708 = vadd.f32 %v2290, %v2550
        %v2709 = vadd.f32 %v2291, %v2553
        %v2710 = vadd.f32 %v2292, %v2558
        %v2711 = vadd.f32 %v2293, %v2561
        %v2712 = vadd.f32 %v2294, %v2566
        %v2713 = vadd.f32 %v2295, %v2569
        %v2714 = vadd.f32 %v2296, %v2574
        %v2715 = vadd.f32 %v2297, %v2577
        %v2716 = vadd.f32 %v2298, %v2582
        %v2717 = vadd.f32 %v2299, %v2585
        %v2718 = vadd.f32 %v2300, %v2590
        %v2719 = vadd.f32 %v2301, %v2593
        %v2720 = vadd.f32 %v2302, %v2598
        %v2721 = vadd.f32 %v2303, %v2601
        %v2722 = vadd.f32 %v2304, %v2606
        %v2723 = vadd.f32 %v2305, %v2609
        %v2724 = vadd.f32 %v2306, %v2614
        %v2725 = vadd.f32 %v2307, %v2617
        %v2726 = vadd.f32 %v2308, %v2622
        %v2727 = vadd.f32 %v2309, %v2625
        %v2728 = vadd.f32 %v2310, %v2630
        %v2729 = vadd.f32 %v2311, %v2633
        %v2730 = vadd.f32 %v2312, %v2638
        %v2731 = vadd.f32 %v2313, %v2641
        %v2732 = vadd.f32 %v2314, %v2646
        %v2733 = vadd.f32 %v2315, %v2649
        %v2734 = vadd.f32 %v2316, %v2654
        %v2735 = vadd.f32 %v2317, %v2657
        %v2736 = vadd.f32 %v2318, %v2662
        %v2737 = vadd.f32 %v2319, %v2665
        %v2738 = vadd.f32 %v2320, %v2670
        %v2739 = vadd.f32 %v2321, %v2673
        %v2740 = vrot.slane %v2676, 1
        %v2741 = vrot.slane %v2677, 1
        %v2742 = vrot.slane %v2678, 1
        %v2743 = vrot.slane %v2679, 1
        %v2744 = vrot.slane %v2680, 1
        %v2745 = vrot.slane %v2681, 1
        %v2746 = vrot.slane %v2682, 1
        %v2747 = vrot.slane %v2683, 1
        %v2748 = vrot.slane %v2684, 1
        %v2749 = vrot.slane %v2685, 1
        %v2750 = vrot.slane %v2686, 1
        %v2751 = vrot.slane %v2687, 1
        %v2752 = vrot.slane %v2688, 1
        %v2753 = vrot.slane %v2689, 1
        %v2754 = vrot.slane %v2690, 1
        %v2755 = vrot.slane %v2691, 1
        %v2756 = vrot.slane %v2692, 1
        %v2757 = vrot.slane %v2693, 1
        %v2758 = vrot.slane %v2694, 1
        %v2759 = vrot.slane %v2695, 1
        %v2760 = vrot.slane %v2696, 1
        %v2761 = vrot.slane %v2697, 1
        %v2762 = vrot.slane %v2698, 1
        %v2763 = vrot.slane %v2699, 1
        %v2764 = vrot.slane %v2700, 1
        %v2765 = vrot.slane %v2701, 1
        %v2766 = vrot.slane %v2702, 1
        %v2767 = vrot.slane %v2703, 1
        %v2768 = vrot.slane %v2704, 1
        %v2769 = vrot.slane %v2705, 1
        %v2770 = vrot.slane %v2706, 1
        %v2771 = vrot.slane %v2707, 1
        %v2772 = vrot.slane %v2708, 1
        %v2773 = vrot.slane %v2709, 1
        %v2774 = vrot.slane %v2710, 1
        %v2775 = vrot.slane %v2711, 1
        %v2776 = vrot.slane %v2712, 1
        %v2777 = vrot.slane %v2713, 1
        %v2778 = vrot.slane %v2714, 1
        %v2779 = vrot.slane %v2715, 1
        %v2780 = vrot.slane %v2716, 1
        %v2781 = vrot.slane %v2717, 1
        %v2782 = vrot.slane %v2718, 1
        %v2783 = vrot.slane %v2719, 1
        %v2784 = vrot.slane %v2720, 1
        %v2785 = vrot.slane %v2721, 1
        %v2786 = vrot.slane %v2722, 1
        %v2787 = vrot.slane %v2723, 1
        %v2788 = vrot.slane %v2724, 1
        %v2789 = vrot.slane %v2725, 1
        %v2790 = vrot.slane %v2726, 1
        %v2791 = vrot.slane %v2727, 1
        %v2792 = vrot.slane %v2728, 1
        %v2793 = vrot.slane %v2729, 1
        %v2794 = vrot.slane %v2730, 1
        %v2795 = vrot.slane %v2731, 1
        %v2796 = vrot.slane %v2732, 1
        %v2797 = vrot.slane %v2733, 1
        %v2798 = vrot.slane %v2734, 1
        %v2799 = vrot.slane %v2735, 1
        %v2800 = vrot.slane %v2736, 1
        %v2801 = vrot.slane %v2737, 1
        %v2802 = vrot.slane %v2738, 1
        %v2803 = vrot.slane %v2739, 1
        %v2804 = vsel %vm1421, %v2802, %v2803
        %v2805 = vsel %vm1421, %v2801, %v2802
        %v2806 = vsel %vm1421, %v2800, %v2801
        %v2807 = vsel %vm1421, %v2799, %v2800
        %v2808 = vsel %vm1421, %v2798, %v2799
        %v2809 = vsel %vm1421, %v2797, %v2798
        %v2810 = vsel %vm1421, %v2796, %v2797
        %v2811 = vsel %vm1421, %v2795, %v2796
        %v2812 = vsel %vm1421, %v2794, %v2795
        %v2813 = vsel %vm1421, %v2793, %v2794
        %v2814 = vsel %vm1421, %v2792, %v2793
        %v2815 = vsel %vm1421, %v2791, %v2792
        %v2816 = vsel %vm1421, %v2790, %v2791
        %v2817 = vsel %vm1421, %v2789, %v2790
        %v2818 = vsel %vm1421, %v2788, %v2789
        %v2819 = vsel %vm1421, %v2787, %v2788
        %v2820 = vsel %vm1421, %v2786, %v2787
        %v2821 = vsel %vm1421, %v2785, %v2786
        %v2822 = vsel %vm1421, %v2784, %v2785
        %v2823 = vsel %vm1421, %v2783, %v2784
        %v2824 = vsel %vm1421, %v2782, %v2783
        %v2825 = vsel %vm1421, %v2781, %v2782
        %v2826 = vsel %vm1421, %v2780, %v2781
        %v2827 = vsel %vm1421, %v2779, %v2780
        %v2828 = vsel %vm1421, %v2778, %v2779
        %v2829 = vsel %vm1421, %v2777, %v2778
        %v2830 = vsel %vm1421, %v2776, %v2777
        %v2831 = vsel %vm1421, %v2775, %v2776
        %v2832 = vsel %vm1421, %v2774, %v2775
        %v2833 = vsel %vm1421, %v2773, %v2774
        %v2834 = vsel %vm1421, %v2772, %v2773
        %v2835 = vsel %vm1421, %v2771, %v2772
        %v2836 = vsel %vm1421, %v2770, %v2771
        %v2837 = vsel %vm1421, %v2769, %v2770
        %v2838 = vsel %vm1421, %v2768, %v2769
        %v2839 = vsel %vm1421, %v2767, %v2768
        %v2840 = vsel %vm1421, %v2766, %v2767
        %v2841 = vsel %vm1421, %v2765, %v2766
        %v2842 = vsel %vm1421, %v2764, %v2765
        %v2843 = vsel %vm1421, %v2763, %v2764
        %v2844 = vsel %vm1421, %v2762, %v2763
        %v2845 = vsel %vm1421, %v2761, %v2762
        %v2846 = vsel %vm1421, %v2760, %v2761
        %v2847 = vsel %vm1421, %v2759, %v2760
        %v2848 = vsel %vm1421, %v2758, %v2759
        %v2849 = vsel %vm1421, %v2757, %v2758
        %v2850 = vsel %vm1421, %v2756, %v2757
        %v2851 = vsel %vm1421, %v2755, %v2756
        %v2852 = vsel %vm1421, %v2754, %v2755
        %v2853 = vsel %vm1421, %v2753, %v2754
        %v2854 = vsel %vm1421, %v2752, %v2753
        %v2855 = vsel %vm1421, %v2751, %v2752
        %v2856 = vsel %vm1421, %v2750, %v2751
        %v2857 = vsel %vm1421, %v2749, %v2750
        %v2858 = vsel %vm1421, %v2748, %v2749
        %v2859 = vsel %vm1421, %v2747, %v2748
        %v2860 = vsel %vm1421, %v2746, %v2747
        %v2861 = vsel %vm1421, %v2745, %v2746
        %v2862 = vsel %vm1421, %v2744, %v2745
        %v2863 = vsel %vm1421, %v2743, %v2744
        %v2864 = vsel %vm1421, %v2742, %v2743
        %v2865 = vsel %vm1421, %v2741, %v2742
        %v2866 = vsel %vm1421, %v2740, %v2741
        %v2867 = vsel %vm1421, %v2803, %v2740
        %v2868 = vld [vmem:[#allocation4] sm:$0xf]
        %v2869 = vld [vmem:[#allocation4 + $0x4] sm:$0xf]
        %v2870 = vld [vmem:[#allocation4 + $0x8] sm:$0xf]
        %v2871 = vld [vmem:[#allocation4 + $0xc] sm:$0xf]
        %v2872 = vld [vmem:[#allocation4 + $0x10] sm:$0xf]
        %v2873 = vld [vmem:[#allocation4 + $0x14] sm:$0xf]
        %v2874 = vld [vmem:[#allocation4 + $0x18] sm:$0xf]
        %v2875 = vld [vmem:[#allocation4 + $0x1c] sm:$0xf]
        %v2876 = vld [vmem:[#allocation4 + $0x20] sm:$0xf]
        %v2877 = vld [vmem:[#allocation4 + $0x24] sm:$0xf]
        %v2878 = vld [vmem:[#allocation4 + $0x28] sm:$0xf]
        %v2879 = vld [vmem:[#allocation4 + $0x2c] sm:$0xf]
        %v2880 = vld [vmem:[#allocation4 + $0x30] sm:$0xf]
        %v2881 = vld [vmem:[#allocation4 + $0x34] sm:$0xf]
        %v2882 = vld [vmem:[#allocation4 + $0x38] sm:$0xf]
        %v2883 = vld [vmem:[#allocation4 + $0x3c] sm:$0xf]
        %v2900 = vunpack.c.l.b16 %v2868
        %v2901 = vunpack.c.l.b16 %v2869
        %v2902 = vunpack.c.l.b16 %v2870
        %v2903 = vunpack.c.l.b16 %v2871
        %v2904 = vunpack.c.l.b16 %v2872
        %v2905 = vunpack.c.l.b16 %v2873
        %v2906 = vunpack.c.l.b16 %v2874
        %v2907 = vunpack.c.l.b16 %v2875
        %v2908 = vunpack.c.l.b16 %v2876
        %v2909 = vunpack.c.l.b16 %v2877
        %v2910 = vunpack.c.l.b16 %v2878
        %v2911 = vunpack.c.l.b16 %v2879
        %v2912 = vunpack.c.l.b16 %v2880
        %v2913 = vunpack.c.l.b16 %v2881
        %v2914 = vunpack.c.l.b16 %v2882
        %v2915 = vunpack.c.l.b16 %v2883
        %v2916 = vpack.c.b16 %v2901, %v2900
        %v2917 = vpack.c.b16 %v2903, %v2902
        %v2918 = vpack.c.b16 %v2905, %v2904
        %v2919 = vpack.c.b16 %v2907, %v2906
        %v2920 = vpack.c.b16 %v2909, %v2908
        %v2921 = vpack.c.b16 %v2911, %v2910
        %v2922 = vpack.c.b16 %v2913, %v2912
        %v2923 = vpack.c.b16 %v2915, %v2914
        %2932 = vmatprep.subr.bf16.mxu0 0
        %2933 = vmatpush1.bf16.msra.mxu0 %v2916
        %2934 = vmatprep.subr.bf16.mxu0 0
        %2935 = vmatpush1.bf16.msra.mxu0 %v2917
        %2936 = vmatprep.subr.bf16.mxu0 0
        %2937 = vmatpush1.bf16.msra.mxu0 %v2918
        %2938 = vmatprep.subr.bf16.mxu0 0
        %2939 = vmatpush1.bf16.msra.mxu0 %v2919
        %2940 = vmatprep.subr.bf16.mxu0 0
        %2941 = vmatpush1.bf16.msra.mxu0 %v2920
        %2942 = vmatprep.subr.bf16.mxu0 0
        %2943 = vmatpush1.bf16.msra.mxu0 %v2921
        %2944 = vmatprep.subr.bf16.mxu0 0
        %2945 = vmatpush1.bf16.msra.mxu0 %v2922
        %2946 = vmatprep.subr.bf16.mxu0 0
        %2947 = vmatpush1.bf16.msra.mxu0 %v2923
        %2948 = vmatprep.subr.bf16.mxu0 0
        %2949 = vmatpush1.bf16.msra.mxu0 0
        %2950 = vmatprep.subr.bf16.mxu0 0
        %2951 = vmatpush1.bf16.msra.mxu0 0
        %2952 = vmatprep.subr.bf16.mxu0 0
        %2953 = vmatpush1.bf16.msra.mxu0 0
        %2954 = vmatprep.subr.bf16.mxu0 0
        %2955 = vmatpush1.bf16.msra.mxu0 0
        %2956 = vmatprep.subr.bf16.mxu0 0
        %2957 = vmatpush1.bf16.msra.mxu0 0
        %2958 = vmatprep.subr.bf16.mxu0 0
        %2959 = vmatpush1.bf16.msra.mxu0 0
        %2960 = vmatprep.subr.bf16.mxu0 0
        %2961 = vmatpush1.bf16.msra.mxu0 0
        %2962 = vmatprep.subr.bf16.mxu0 0
        %2963 = vmatpush1.bf16.msra.mxu0 0
        %2964 = vmatprep.mubr.bf16.mxu0 0
        %2965 = vmatmul.mubr.bf16.gmra.mrb[0].mxu0 %v193
        %v2966 = vpop.f32.mrb[0].mxu0
        %v2967 = vadd.f32 0.0, %v2966
        %v2968 = vpop.f32.mrb[0].mxu0
        %v2969 = vpop.f32.mrb[0].mxu0
        %v2970 = vadd.f32 0.0, %v2969
        %v2971 = vpop.f32.mrb[0].mxu0
        %2972 = vmatprep.mubr.bf16.mxu0 0
        %2973 = vmatmul.mubr.bf16.gmra.mrb[0].mxu0 %v194
        %v2974 = vpop.f32.mrb[0].mxu0
        %v2975 = vadd.f32 0.0, %v2974
        %v2976 = vpop.f32.mrb[0].mxu0
        %v2977 = vpop.f32.mrb[0].mxu0
        %v2978 = vadd.f32 0.0, %v2977
        %v2979 = vpop.f32.mrb[0].mxu0
        %2980 = vmatprep.mubr.bf16.mxu0 0
        %2981 = vmatmul.mubr.bf16.gmra.mrb[0].mxu0 %v195
        %v2982 = vpop.f32.mrb[0].mxu0
        %v2983 = vadd.f32 0.0, %v2982
        %v2984 = vpop.f32.mrb[0].mxu0
        %v2985 = vpop.f32.mrb[0].mxu0
        %v2986 = vadd.f32 0.0, %v2985
        %v2987 = vpop.f32.mrb[0].mxu0
        %2988 = vmatprep.mubr.bf16.mxu0 0
        %2989 = vmatmul.mubr.bf16.gmra.mrb[0].mxu0 %v196
        %v2990 = vpop.f32.mrb[0].mxu0
        %v2991 = vadd.f32 0.0, %v2990
        %v2992 = vpop.f32.mrb[0].mxu0
        %v2993 = vpop.f32.mrb[0].mxu0
        %v2994 = vadd.f32 0.0, %v2993
        %v2995 = vpop.f32.mrb[0].mxu0
        %2996 = vmatprep.mubr.bf16.mxu0 0
        %2997 = vmatmul.mubr.bf16.gmra.mrb[0].mxu0 %v197
        %v2998 = vpop.f32.mrb[0].mxu0
        %v2999 = vadd.f32 0.0, %v2998
        %v3000 = vpop.f32.mrb[0].mxu0
        %v3001 = vpop.f32.mrb[0].mxu0
        %v3002 = vadd.f32 0.0, %v3001
        %v3003 = vpop.f32.mrb[0].mxu0
        %3004 = vmatprep.mubr.bf16.mxu0 0
        %3005 = vmatmul.mubr.bf16.gmra.mrb[0].mxu0 %v198
        %v3006 = vpop.f32.mrb[0].mxu0
        %v3007 = vadd.f32 0.0, %v3006
        %v3008 = vpop.f32.mrb[0].mxu0
        %v3009 = vpop.f32.mrb[0].mxu0
        %v3010 = vadd.f32 0.0, %v3009
        %v3011 = vpop.f32.mrb[0].mxu0
        %3012 = vmatprep.mubr.bf16.mxu0 0
        %3013 = vmatmul.mubr.bf16.gmra.mrb[0].mxu0 %v199
        %v3014 = vpop.f32.mrb[0].mxu0
        %v3015 = vadd.f32 0.0, %v3014
        %v3016 = vpop.f32.mrb[0].mxu0
        %v3017 = vpop.f32.mrb[0].mxu0
        %v3018 = vadd.f32 0.0, %v3017
        %v3019 = vpop.f32.mrb[0].mxu0
        %3020 = vmatprep.mubr.bf16.mxu0 0
        %3021 = vmatmul.mubr.bf16.gmra.mrb[0].mxu0 %v200
        %v3022 = vpop.f32.mrb[0].mxu0
        %v3023 = vadd.f32 0.0, %v3022
        %v3024 = vpop.f32.mrb[0].mxu0
        %v3025 = vpop.f32.mrb[0].mxu0
        %v3026 = vadd.f32 0.0, %v3025
        %v3027 = vpop.f32.mrb[0].mxu0
        %3028 = vmatprep.mubr.bf16.mxu0 0
        %3029 = vmatmul.mubr.bf16.gmra.mrb[0].mxu0 %v201
        %v3030 = vpop.f32.mrb[0].mxu0
        %v3031 = vadd.f32 0.0, %v3030
        %v3032 = vpop.f32.mrb[0].mxu0
        %v3033 = vpop.f32.mrb[0].mxu0
        %v3034 = vadd.f32 0.0, %v3033
        %v3035 = vpop.f32.mrb[0].mxu0
        %3036 = vmatprep.mubr.bf16.mxu0 0
        %3037 = vmatmul.mubr.bf16.gmra.mrb[0].mxu0 %v202
        %v3038 = vpop.f32.mrb[0].mxu0
        %v3039 = vadd.f32 0.0, %v3038
        %v3040 = vpop.f32.mrb[0].mxu0
        %v3041 = vpop.f32.mrb[0].mxu0
        %v3042 = vadd.f32 0.0, %v3041
        %v3043 = vpop.f32.mrb[0].mxu0
        %3044 = vmatprep.mubr.bf16.mxu0 0
        %3045 = vmatmul.mubr.bf16.gmra.mrb[0].mxu0 %v203
        %v3046 = vpop.f32.mrb[0].mxu0
        %v3047 = vadd.f32 0.0, %v3046
        %v3048 = vpop.f32.mrb[0].mxu0
        %v3049 = vpop.f32.mrb[0].mxu0
        %v3050 = vadd.f32 0.0, %v3049
        %v3051 = vpop.f32.mrb[0].mxu0
        %3052 = vmatprep.mubr.bf16.mxu0 0
        %3053 = vmatmul.mubr.bf16.gmra.mrb[0].mxu0 %v204
        %v3054 = vpop.f32.mrb[0].mxu0
        %v3055 = vadd.f32 0.0, %v3054
        %v3056 = vpop.f32.mrb[0].mxu0
        %v3057 = vpop.f32.mrb[0].mxu0
        %v3058 = vadd.f32 0.0, %v3057
        %v3059 = vpop.f32.mrb[0].mxu0
        %3060 = vmatprep.mubr.bf16.mxu0 0
        %3061 = vmatmul.mubr.bf16.gmra.mrb[0].mxu0 %v205
        %v3062 = vpop.f32.mrb[0].mxu0
        %v3063 = vadd.f32 0.0, %v3062
        %v3064 = vpop.f32.mrb[0].mxu0
        %v3065 = vpop.f32.mrb[0].mxu0
        %v3066 = vadd.f32 0.0, %v3065
        %v3067 = vpop.f32.mrb[0].mxu0
        %3068 = vmatprep.mubr.bf16.mxu0 0
        %3069 = vmatmul.mubr.bf16.gmra.mrb[0].mxu0 %v206
        %v3070 = vpop.f32.mrb[0].mxu0
        %v3071 = vadd.f32 0.0, %v3070
        %v3072 = vpop.f32.mrb[0].mxu0
        %v3073 = vpop.f32.mrb[0].mxu0
        %v3074 = vadd.f32 0.0, %v3073
        %v3075 = vpop.f32.mrb[0].mxu0
        %3076 = vmatprep.mubr.bf16.mxu0 0
        %3077 = vmatmul.mubr.bf16.gmra.mrb[0].mxu0 %v207
        %v3078 = vpop.f32.mrb[0].mxu0
        %v3079 = vadd.f32 0.0, %v3078
        %v3080 = vpop.f32.mrb[0].mxu0
        %v3081 = vpop.f32.mrb[0].mxu0
        %v3082 = vadd.f32 0.0, %v3081
        %v3083 = vpop.f32.mrb[0].mxu0
        %3084 = vmatprep.mubr.bf16.mxu0 0
        %3085 = vmatmul.mubr.bf16.gmra.mrb[0].mxu0 %v208
        %v3086 = vpop.f32.mrb[0].mxu0
        %v3087 = vadd.f32 0.0, %v3086
        %v3088 = vpop.f32.mrb[0].mxu0
        %v3089 = vpop.f32.mrb[0].mxu0
        %v3090 = vadd.f32 0.0, %v3089
        %v3091 = vpop.f32.mrb[0].mxu0
        %3092 = vmatprep.mubr.bf16.mxu0 0
        %3093 = vmatmul.mubr.bf16.gmra.mrb[0].mxu0 %v209
        %v3094 = vpop.f32.mrb[0].mxu0
        %v3095 = vadd.f32 0.0, %v3094
        %v3096 = vpop.f32.mrb[0].mxu0
        %v3097 = vpop.f32.mrb[0].mxu0
        %v3098 = vadd.f32 0.0, %v3097
        %v3099 = vpop.f32.mrb[0].mxu0
        %3100 = vmatprep.mubr.bf16.mxu0 0
        %3101 = vmatmul.mubr.bf16.gmra.mrb[0].mxu0 %v210
        %v3102 = vpop.f32.mrb[0].mxu0
        %v3103 = vadd.f32 0.0, %v3102
        %v3104 = vpop.f32.mrb[0].mxu0
        %v3105 = vpop.f32.mrb[0].mxu0
        %v3106 = vadd.f32 0.0, %v3105
        %v3107 = vpop.f32.mrb[0].mxu0
        %3108 = vmatprep.mubr.bf16.mxu0 0
        %3109 = vmatmul.mubr.bf16.gmra.mrb[0].mxu0 %v211
        %v3110 = vpop.f32.mrb[0].mxu0
        %v3111 = vadd.f32 0.0, %v3110
        %v3112 = vpop.f32.mrb[0].mxu0
        %v3113 = vpop.f32.mrb[0].mxu0
        %v3114 = vadd.f32 0.0, %v3113
        %v3115 = vpop.f32.mrb[0].mxu0
        %3116 = vmatprep.mubr.bf16.mxu0 0
        %3117 = vmatmul.mubr.bf16.gmra.mrb[0].mxu0 %v212
        %v3118 = vpop.f32.mrb[0].mxu0
        %v3119 = vadd.f32 0.0, %v3118
        %v3120 = vpop.f32.mrb[0].mxu0
        %v3121 = vpop.f32.mrb[0].mxu0
        %v3122 = vadd.f32 0.0, %v3121
        %v3123 = vpop.f32.mrb[0].mxu0
        %3124 = vmatprep.mubr.bf16.mxu0 0
        %3125 = vmatmul.mubr.bf16.gmra.mrb[0].mxu0 %v213
        %v3126 = vpop.f32.mrb[0].mxu0
        %v3127 = vadd.f32 0.0, %v3126
        %v3128 = vpop.f32.mrb[0].mxu0
        %v3129 = vpop.f32.mrb[0].mxu0
        %v3130 = vadd.f32 0.0, %v3129
        %v3131 = vpop.f32.mrb[0].mxu0
        %3132 = vmatprep.mubr.bf16.mxu0 0
        %3133 = vmatmul.mubr.bf16.gmra.mrb[0].mxu0 %v214
        %v3134 = vpop.f32.mrb[0].mxu0
        %v3135 = vadd.f32 0.0, %v3134
        %v3136 = vpop.f32.mrb[0].mxu0
        %v3137 = vpop.f32.mrb[0].mxu0
        %v3138 = vadd.f32 0.0, %v3137
        %v3139 = vpop.f32.mrb[0].mxu0
        %3140 = vmatprep.mubr.bf16.mxu0 0
        %3141 = vmatmul.mubr.bf16.gmra.mrb[0].mxu0 %v215
        %v3142 = vpop.f32.mrb[0].mxu0
        %v3143 = vadd.f32 0.0, %v3142
        %v3144 = vpop.f32.mrb[0].mxu0
        %v3145 = vpop.f32.mrb[0].mxu0
        %v3146 = vadd.f32 0.0, %v3145
        %v3147 = vpop.f32.mrb[0].mxu0
        %3148 = vmatprep.mubr.bf16.mxu0 0
        %3149 = vmatmul.mubr.bf16.gmra.mrb[0].mxu0 %v216
        %v3150 = vpop.f32.mrb[0].mxu0
        %v3151 = vadd.f32 0.0, %v3150
        %v3152 = vpop.f32.mrb[0].mxu0
        %v3153 = vpop.f32.mrb[0].mxu0
        %v3154 = vadd.f32 0.0, %v3153
        %v3155 = vpop.f32.mrb[0].mxu0
        %3156 = vmatprep.mubr.bf16.mxu0 0
        %3157 = vmatmul.mubr.bf16.gmra.mrb[0].mxu0 %v217
        %v3158 = vpop.f32.mrb[0].mxu0
        %v3159 = vadd.f32 0.0, %v3158
        %v3160 = vpop.f32.mrb[0].mxu0
        %v3161 = vpop.f32.mrb[0].mxu0
        %v3162 = vadd.f32 0.0, %v3161
        %v3163 = vpop.f32.mrb[0].mxu0
        %3164 = vmatprep.mubr.bf16.mxu0 0
        %3165 = vmatmul.mubr.bf16.gmra.mrb[0].mxu0 %v218
        %v3166 = vpop.f32.mrb[0].mxu0
        %v3167 = vadd.f32 0.0, %v3166
        %v3168 = vpop.f32.mrb[0].mxu0
        %v3169 = vpop.f32.mrb[0].mxu0
        %v3170 = vadd.f32 0.0, %v3169
        %v3171 = vpop.f32.mrb[0].mxu0
        %3172 = vmatprep.mubr.bf16.mxu0 0
        %3173 = vmatmul.mubr.bf16.gmra.mrb[0].mxu0 %v219
        %v3174 = vpop.f32.mrb[0].mxu0
        %v3175 = vadd.f32 0.0, %v3174
        %v3176 = vpop.f32.mrb[0].mxu0
        %v3177 = vpop.f32.mrb[0].mxu0
        %v3178 = vadd.f32 0.0, %v3177
        %v3179 = vpop.f32.mrb[0].mxu0
        %3180 = vmatprep.mubr.bf16.mxu0 0
        %3181 = vmatmul.mubr.bf16.gmra.mrb[0].mxu0 %v220
        %v3182 = vpop.f32.mrb[0].mxu0
        %v3183 = vadd.f32 0.0, %v3182
        %v3184 = vpop.f32.mrb[0].mxu0
        %v3185 = vpop.f32.mrb[0].mxu0
        %v3186 = vadd.f32 0.0, %v3185
        %v3187 = vpop.f32.mrb[0].mxu0
        %3188 = vmatprep.mubr.bf16.mxu0 0
        %3189 = vmatmul.mubr.bf16.gmra.mrb[0].mxu0 %v221
        %v3190 = vpop.f32.mrb[0].mxu0
        %v3191 = vadd.f32 0.0, %v3190
        %v3192 = vpop.f32.mrb[0].mxu0
        %v3193 = vpop.f32.mrb[0].mxu0
        %v3194 = vadd.f32 0.0, %v3193
        %v3195 = vpop.f32.mrb[0].mxu0
        %3196 = vmatprep.mubr.bf16.mxu0 0
        %3197 = vmatmul.mubr.bf16.gmra.mrb[0].mxu0 %v222
        %v3198 = vpop.f32.mrb[0].mxu0
        %v3199 = vadd.f32 0.0, %v3198
        %v3200 = vpop.f32.mrb[0].mxu0
        %v3201 = vpop.f32.mrb[0].mxu0
        %v3202 = vadd.f32 0.0, %v3201
        %v3203 = vpop.f32.mrb[0].mxu0
        %3204 = vmatprep.mubr.bf16.mxu0 0
        %3205 = vmatmul.mubr.bf16.gmra.mrb[0].mxu0 %v223
        %v3206 = vpop.f32.mrb[0].mxu0
        %v3207 = vadd.f32 0.0, %v3206
        %v3208 = vpop.f32.mrb[0].mxu0
        %v3209 = vpop.f32.mrb[0].mxu0
        %v3210 = vadd.f32 0.0, %v3209
        %v3211 = vpop.f32.mrb[0].mxu0
        %3212 = vmatprep.mubr.bf16.mxu0 0
        %3213 = vmatmul.mubr.bf16.gmra.mrb[0].mxu0 %v224
        %v3214 = vpop.f32.mrb[0].mxu0
        %v3215 = vadd.f32 0.0, %v3214
        %v3216 = vpop.f32.mrb[0].mxu0
        %v3217 = vpop.f32.mrb[0].mxu0
        %v3218 = vadd.f32 0.0, %v3217
        %v3219 = vpop.f32.mrb[0].mxu0
        %3220 = vdwg.mxu0
        %v3221 = vadd.f32 %v2866, %v2967
        %v3222 = vadd.f32 %v2865, %v2970
        %v3223 = vadd.f32 %v2864, %v2975
        %v3224 = vadd.f32 %v2863, %v2978
        %v3225 = vadd.f32 %v2862, %v2983
        %v3226 = vadd.f32 %v2861, %v2986
        %v3227 = vadd.f32 %v2860, %v2991
        %v3228 = vadd.f32 %v2859, %v2994
        %v3229 = vadd.f32 %v2858, %v2999
        %v3230 = vadd.f32 %v2857, %v3002
        %v3231 = vadd.f32 %v2856, %v3007
        %v3232 = vadd.f32 %v2855, %v3010
        %v3233 = vadd.f32 %v2854, %v3015
        %v3234 = vadd.f32 %v2853, %v3018
        %v3235 = vadd.f32 %v2852, %v3023
        %v3236 = vadd.f32 %v2851, %v3026
        %v3237 = vadd.f32 %v2850, %v3031
        %v3238 = vadd.f32 %v2849, %v3034
        %v3239 = vadd.f32 %v2848, %v3039
        %v3240 = vadd.f32 %v2847, %v3042
        %v3241 = vadd.f32 %v2846, %v3047
        %v3242 = vadd.f32 %v2845, %v3050
        %v3243 = vadd.f32 %v2844, %v3055
        %v3244 = vadd.f32 %v2843, %v3058
        %v3245 = vadd.f32 %v2842, %v3063
        %v3246 = vadd.f32 %v2841, %v3066
        %v3247 = vadd.f32 %v2840, %v3071
        %v3248 = vadd.f32 %v2839, %v3074
        %v3249 = vadd.f32 %v2838, %v3079
        %v3250 = vadd.f32 %v2837, %v3082
        %v3251 = vadd.f32 %v2836, %v3087
        %v3252 = vadd.f32 %v2835, %v3090
        %v3253 = vadd.f32 %v2834, %v3095
        %v3254 = vadd.f32 %v2833, %v3098
        %v3255 = vadd.f32 %v2832, %v3103
        %v3256 = vadd.f32 %v2831, %v3106
        %v3257 = vadd.f32 %v2830, %v3111
        %v3258 = vadd.f32 %v2829, %v3114
        %v3259 = vadd.f32 %v2828, %v3119
        %v3260 = vadd.f32 %v2827, %v3122
        %v3261 = vadd.f32 %v2826, %v3127
        %v3262 = vadd.f32 %v2825, %v3130
        %v3263 = vadd.f32 %v2824, %v3135
        %v3264 = vadd.f32 %v2823, %v3138
        %v3265 = vadd.f32 %v2822, %v3143
        %v3266 = vadd.f32 %v2821, %v3146
        %v3267 = vadd.f32 %v2820, %v3151
        %v3268 = vadd.f32 %v2819, %v3154
        %v3269 = vadd.f32 %v2818, %v3159
        %v3270 = vadd.f32 %v2817, %v3162
        %v3271 = vadd.f32 %v2816, %v3167
        %v3272 = vadd.f32 %v2815, %v3170
        %v3273 = vadd.f32 %v2814, %v3175
        %v3274 = vadd.f32 %v2813, %v3178
        %v3275 = vadd.f32 %v2812, %v3183
        %v3276 = vadd.f32 %v2811, %v3186
        %v3277 = vadd.f32 %v2810, %v3191
        %v3278 = vadd.f32 %v2809, %v3194
        %v3279 = vadd.f32 %v2808, %v3199
        %v3280 = vadd.f32 %v2807, %v3202
        %v3281 = vadd.f32 %v2806, %v3207
        %v3282 = vadd.f32 %v2805, %v3210
        %v3283 = vadd.f32 %v2804, %v3215
        %v3284 = vadd.f32 %v2867, %v3218
        %s3285 = scalar_lea.vmem [#allocation4], 192
        %v3286 = vld [vmem:[%s3285] sm:$0xf]
        %v3287 = vld [vmem:[%s3285 + $0x4] sm:$0xf]
        %v3288 = vld [vmem:[%s3285 + $0x8] sm:$0xf]
        %v3289 = vld [vmem:[%s3285 + $0xc] sm:$0xf]
        %v3290 = vld [vmem:[%s3285 + $0x10] sm:$0xf]
        %v3291 = vld [vmem:[%s3285 + $0x14] sm:$0xf]
        %v3292 = vld [vmem:[%s3285 + $0x18] sm:$0xf]
        %v3293 = vld [vmem:[%s3285 + $0x1c] sm:$0xf]
        %v3294 = vld [vmem:[%s3285 + $0x20] sm:$0xf]
        %v3295 = vld [vmem:[%s3285 + $0x24] sm:$0xf]
        %v3296 = vld [vmem:[%s3285 + $0x28] sm:$0xf]
        %v3297 = vld [vmem:[%s3285 + $0x2c] sm:$0xf]
        %v3298 = vld [vmem:[%s3285 + $0x30] sm:$0xf]
        %v3299 = vld [vmem:[%s3285 + $0x34] sm:$0xf]
        %v3300 = vld [vmem:[%s3285 + $0x38] sm:$0xf]
        %v3301 = vld [vmem:[%s3285 + $0x3c] sm:$0xf]
        %v3318 = vunpack.c.l.b16 %v3286
        %v3319 = vunpack.c.l.b16 %v3287
        %v3320 = vunpack.c.l.b16 %v3288
        %v3321 = vunpack.c.l.b16 %v3289
        %v3322 = vunpack.c.l.b16 %v3290
        %v3323 = vunpack.c.l.b16 %v3291
        %v3324 = vunpack.c.l.b16 %v3292
        %v3325 = vunpack.c.l.b16 %v3293
        %v3326 = vunpack.c.l.b16 %v3294
        %v3327 = vunpack.c.l.b16 %v3295
        %v3328 = vunpack.c.l.b16 %v3296
        %v3329 = vunpack.c.l.b16 %v3297
        %v3330 = vunpack.c.l.b16 %v3298
        %v3331 = vunpack.c.l.b16 %v3299
        %v3332 = vunpack.c.l.b16 %v3300
        %v3333 = vunpack.c.l.b16 %v3301
        %v3334 = vpack.c.b16 %v3319, %v3318
        %v3335 = vpack.c.b16 %v3321, %v3320
        %v3336 = vpack.c.b16 %v3323, %v3322
        %v3337 = vpack.c.b16 %v3325, %v3324
        %v3338 = vpack.c.b16 %v3327, %v3326
        %v3339 = vpack.c.b16 %v3329, %v3328
        %v3340 = vpack.c.b16 %v3331, %v3330
        %v3341 = vpack.c.b16 %v3333, %v3332
        %3350 = vmatprep.subr.bf16.mxu0 0
        %3351 = vmatpush1.bf16.msra.mxu0 %v3334
        %3352 = vmatprep.subr.bf16.mxu0 0
        %3353 = vmatpush1.bf16.msra.mxu0 %v3335
        %3354 = vmatprep.subr.bf16.mxu0 0
        %3355 = vmatpush1.bf16.msra.mxu0 %v3336
        %3356 = vmatprep.subr.bf16.mxu0 0
        %3357 = vmatpush1.bf16.msra.mxu0 %v3337
        %3358 = vmatprep.subr.bf16.mxu0 0
        %3359 = vmatpush1.bf16.msra.mxu0 %v3338
        %3360 = vmatprep.subr.bf16.mxu0 0
        %3361 = vmatpush1.bf16.msra.mxu0 %v3339
        %3362 = vmatprep.subr.bf16.mxu0 0
        %3363 = vmatpush1.bf16.msra.mxu0 %v3340
        %3364 = vmatprep.subr.bf16.mxu0 0
        %3365 = vmatpush1.bf16.msra.mxu0 %v3341
        %3366 = vmatprep.subr.bf16.mxu0 0
        %3367 = vmatpush1.bf16.msra.mxu0 0
        %3368 = vmatprep.subr.bf16.mxu0 0
        %3369 = vmatpush1.bf16.msra.mxu0 0
        %3370 = vmatprep.subr.bf16.mxu0 0
        %3371 = vmatpush1.bf16.msra.mxu0 0
        %3372 = vmatprep.subr.bf16.mxu0 0
        %3373 = vmatpush1.bf16.msra.mxu0 0
        %3374 = vmatprep.subr.bf16.mxu0 0
        %3375 = vmatpush1.bf16.msra.mxu0 0
        %3376 = vmatprep.subr.bf16.mxu0 0
        %3377 = vmatpush1.bf16.msra.mxu0 0
        %3378 = vmatprep.subr.bf16.mxu0 0
        %3379 = vmatpush1.bf16.msra.mxu0 0
        %3380 = vmatprep.subr.bf16.mxu0 0
        %3381 = vmatpush1.bf16.msra.mxu0 0
        %3382 = vmatprep.mubr.bf16.mxu0 0
        %3383 = vmatmul.mubr.bf16.gmra.mrb[0].mxu0 %v195
        %v3384 = vpop.f32.mrb[0].mxu0
        %v3385 = vadd.f32 0.0, %v3384
        %v3386 = vpop.f32.mrb[0].mxu0
        %v3387 = vpop.f32.mrb[0].mxu0
        %v3388 = vadd.f32 0.0, %v3387
        %v3389 = vpop.f32.mrb[0].mxu0
        %3390 = vmatprep.mubr.bf16.mxu0 0
        %3391 = vmatmul.mubr.bf16.gmra.mrb[0].mxu0 %v196
        %v3392 = vpop.f32.mrb[0].mxu0
        %v3393 = vadd.f32 0.0, %v3392
        %v3394 = vpop.f32.mrb[0].mxu0
        %v3395 = vpop.f32.mrb[0].mxu0
        %v3396 = vadd.f32 0.0, %v3395
        %v3397 = vpop.f32.mrb[0].mxu0
        %3398 = vmatprep.mubr.bf16.mxu0 0
        %3399 = vmatmul.mubr.bf16.gmra.mrb[0].mxu0 %v197
        %v3400 = vpop.f32.mrb[0].mxu0
        %v3401 = vadd.f32 0.0, %v3400
        %v3402 = vpop.f32.mrb[0].mxu0
        %v3403 = vpop.f32.mrb[0].mxu0
        %v3404 = vadd.f32 0.0, %v3403
        %v3405 = vpop.f32.mrb[0].mxu0
        %3406 = vmatprep.mubr.bf16.mxu0 0
        %3407 = vmatmul.mubr.bf16.gmra.mrb[0].mxu0 %v198
        %v3408 = vpop.f32.mrb[0].mxu0
        %v3409 = vadd.f32 0.0, %v3408
        %v3410 = vpop.f32.mrb[0].mxu0
        %v3411 = vpop.f32.mrb[0].mxu0
        %v3412 = vadd.f32 0.0, %v3411
        %v3413 = vpop.f32.mrb[0].mxu0
        %3414 = vmatprep.mubr.bf16.mxu0 0
        %3415 = vmatmul.mubr.bf16.gmra.mrb[0].mxu0 %v199
        %v3416 = vpop.f32.mrb[0].mxu0
        %v3417 = vadd.f32 0.0, %v3416
        %v3418 = vpop.f32.mrb[0].mxu0
        %v3419 = vpop.f32.mrb[0].mxu0
        %v3420 = vadd.f32 0.0, %v3419
        %v3421 = vpop.f32.mrb[0].mxu0
        %3422 = vmatprep.mubr.bf16.mxu0 0
        %3423 = vmatmul.mubr.bf16.gmra.mrb[0].mxu0 %v200
        %v3424 = vpop.f32.mrb[0].mxu0
        %v3425 = vadd.f32 0.0, %v3424
        %v3426 = vpop.f32.mrb[0].mxu0
        %v3427 = vpop.f32.mrb[0].mxu0
        %v3428 = vadd.f32 0.0, %v3427
        %v3429 = vpop.f32.mrb[0].mxu0
        %3430 = vmatprep.mubr.bf16.mxu0 0
        %3431 = vmatmul.mubr.bf16.gmra.mrb[0].mxu0 %v201
        %v3432 = vpop.f32.mrb[0].mxu0
        %v3433 = vadd.f32 0.0, %v3432
        %v3434 = vpop.f32.mrb[0].mxu0
        %v3435 = vpop.f32.mrb[0].mxu0
        %v3436 = vadd.f32 0.0, %v3435
        %v3437 = vpop.f32.mrb[0].mxu0
        %3438 = vmatprep.mubr.bf16.mxu0 0
        %3439 = vmatmul.mubr.bf16.gmra.mrb[0].mxu0 %v202
        %v3440 = vpop.f32.mrb[0].mxu0
        %v3441 = vadd.f32 0.0, %v3440
        %v3442 = vpop.f32.mrb[0].mxu0
        %v3443 = vpop.f32.mrb[0].mxu0
        %v3444 = vadd.f32 0.0, %v3443
        %v3445 = vpop.f32.mrb[0].mxu0
        %3446 = vmatprep.mubr.bf16.mxu0 0
        %3447 = vmatmul.mubr.bf16.gmra.mrb[0].mxu0 %v203
        %v3448 = vpop.f32.mrb[0].mxu0
        %v3449 = vadd.f32 0.0, %v3448
        %v3450 = vpop.f32.mrb[0].mxu0
        %v3451 = vpop.f32.mrb[0].mxu0
        %v3452 = vadd.f32 0.0, %v3451
        %v3453 = vpop.f32.mrb[0].mxu0
        %3454 = vmatprep.mubr.bf16.mxu0 0
        %3455 = vmatmul.mubr.bf16.gmra.mrb[0].mxu0 %v204
        %v3456 = vpop.f32.mrb[0].mxu0
        %v3457 = vadd.f32 0.0, %v3456
        %v3458 = vpop.f32.mrb[0].mxu0
        %v3459 = vpop.f32.mrb[0].mxu0
        %v3460 = vadd.f32 0.0, %v3459
        %v3461 = vpop.f32.mrb[0].mxu0
        %3462 = vmatprep.mubr.bf16.mxu0 0
        %3463 = vmatmul.mubr.bf16.gmra.mrb[0].mxu0 %v205
        %v3464 = vpop.f32.mrb[0].mxu0
        %v3465 = vadd.f32 0.0, %v3464
        %v3466 = vpop.f32.mrb[0].mxu0
        %v3467 = vpop.f32.mrb[0].mxu0
        %v3468 = vadd.f32 0.0, %v3467
        %v3469 = vpop.f32.mrb[0].mxu0
        %3470 = vmatprep.mubr.bf16.mxu0 0
        %3471 = vmatmul.mubr.bf16.gmra.mrb[0].mxu0 %v206
        %v3472 = vpop.f32.mrb[0].mxu0
        %v3473 = vadd.f32 0.0, %v3472
        %v3474 = vpop.f32.mrb[0].mxu0
        %v3475 = vpop.f32.mrb[0].mxu0
        %v3476 = vadd.f32 0.0, %v3475
        %v3477 = vpop.f32.mrb[0].mxu0
        %3478 = vmatprep.mubr.bf16.mxu0 0
        %3479 = vmatmul.mubr.bf16.gmra.mrb[0].mxu0 %v207
        %v3480 = vpop.f32.mrb[0].mxu0
        %v3481 = vadd.f32 0.0, %v3480
        %v3482 = vpop.f32.mrb[0].mxu0
        %v3483 = vpop.f32.mrb[0].mxu0
        %v3484 = vadd.f32 0.0, %v3483
        %v3485 = vpop.f32.mrb[0].mxu0
        %3486 = vmatprep.mubr.bf16.mxu0 0
        %3487 = vmatmul.mubr.bf16.gmra.mrb[0].mxu0 %v208
        %v3488 = vpop.f32.mrb[0].mxu0
        %v3489 = vadd.f32 0.0, %v3488
        %v3490 = vpop.f32.mrb[0].mxu0
        %v3491 = vpop.f32.mrb[0].mxu0
        %v3492 = vadd.f32 0.0, %v3491
        %v3493 = vpop.f32.mrb[0].mxu0
        %3494 = vmatprep.mubr.bf16.mxu0 0
        %3495 = vmatmul.mubr.bf16.gmra.mrb[0].mxu0 %v209
        %v3496 = vpop.f32.mrb[0].mxu0
        %v3497 = vadd.f32 0.0, %v3496
        %v3498 = vpop.f32.mrb[0].mxu0
        %v3499 = vpop.f32.mrb[0].mxu0
        %v3500 = vadd.f32 0.0, %v3499
        %v3501 = vpop.f32.mrb[0].mxu0
        %3502 = vmatprep.mubr.bf16.mxu0 0
        %3503 = vmatmul.mubr.bf16.gmra.mrb[0].mxu0 %v210
        %v3504 = vpop.f32.mrb[0].mxu0
        %v3505 = vadd.f32 0.0, %v3504
        %v3506 = vpop.f32.mrb[0].mxu0
        %v3507 = vpop.f32.mrb[0].mxu0
        %v3508 = vadd.f32 0.0, %v3507
        %v3509 = vpop.f32.mrb[0].mxu0
        %3510 = vmatprep.mubr.bf16.mxu0 0
        %3511 = vmatmul.mubr.bf16.gmra.mrb[0].mxu0 %v211
        %v3512 = vpop.f32.mrb[0].mxu0
        %v3513 = vadd.f32 0.0, %v3512
        %v3514 = vpop.f32.mrb[0].mxu0
        %v3515 = vpop.f32.mrb[0].mxu0
        %v3516 = vadd.f32 0.0, %v3515
        %v3517 = vpop.f32.mrb[0].mxu0
        %3518 = vmatprep.mubr.bf16.mxu0 0
        %3519 = vmatmul.mubr.bf16.gmra.mrb[0].mxu0 %v212
        %v3520 = vpop.f32.mrb[0].mxu0
        %v3521 = vadd.f32 0.0, %v3520
        %v3522 = vpop.f32.mrb[0].mxu0
        %v3523 = vpop.f32.mrb[0].mxu0
        %v3524 = vadd.f32 0.0, %v3523
        %v3525 = vpop.f32.mrb[0].mxu0
        %3526 = vmatprep.mubr.bf16.mxu0 0
        %3527 = vmatmul.mubr.bf16.gmra.mrb[0].mxu0 %v213
        %v3528 = vpop.f32.mrb[0].mxu0
        %v3529 = vadd.f32 0.0, %v3528
        %v3530 = vpop.f32.mrb[0].mxu0
        %v3531 = vpop.f32.mrb[0].mxu0
        %v3532 = vadd.f32 0.0, %v3531
        %v3533 = vpop.f32.mrb[0].mxu0
        %3534 = vmatprep.mubr.bf16.mxu0 0
        %3535 = vmatmul.mubr.bf16.gmra.mrb[0].mxu0 %v214
        %v3536 = vpop.f32.mrb[0].mxu0
        %v3537 = vadd.f32 0.0, %v3536
        %v3538 = vpop.f32.mrb[0].mxu0
        %v3539 = vpop.f32.mrb[0].mxu0
        %v3540 = vadd.f32 0.0, %v3539
        %v3541 = vpop.f32.mrb[0].mxu0
        %3542 = vmatprep.mubr.bf16.mxu0 0
        %3543 = vmatmul.mubr.bf16.gmra.mrb[0].mxu0 %v215
        %v3544 = vpop.f32.mrb[0].mxu0
        %v3545 = vadd.f32 0.0, %v3544
        %v3546 = vpop.f32.mrb[0].mxu0
        %v3547 = vpop.f32.mrb[0].mxu0
        %v3548 = vadd.f32 0.0, %v3547
        %v3549 = vpop.f32.mrb[0].mxu0
        %3550 = vmatprep.mubr.bf16.mxu0 0
        %3551 = vmatmul.mubr.bf16.gmra.mrb[0].mxu0 %v216
        %v3552 = vpop.f32.mrb[0].mxu0
        %v3553 = vadd.f32 0.0, %v3552
        %v3554 = vpop.f32.mrb[0].mxu0
        %v3555 = vpop.f32.mrb[0].mxu0
        %v3556 = vadd.f32 0.0, %v3555
        %v3557 = vpop.f32.mrb[0].mxu0
        %3558 = vmatprep.mubr.bf16.mxu0 0
        %3559 = vmatmul.mubr.bf16.gmra.mrb[0].mxu0 %v217
        %v3560 = vpop.f32.mrb[0].mxu0
        %v3561 = vadd.f32 0.0, %v3560
        %v3562 = vpop.f32.mrb[0].mxu0
        %v3563 = vpop.f32.mrb[0].mxu0
        %v3564 = vadd.f32 0.0, %v3563
        %v3565 = vpop.f32.mrb[0].mxu0
        %3566 = vmatprep.mubr.bf16.mxu0 0
        %3567 = vmatmul.mubr.bf16.gmra.mrb[0].mxu0 %v218
        %v3568 = vpop.f32.mrb[0].mxu0
        %v3569 = vadd.f32 0.0, %v3568
        %v3570 = vpop.f32.mrb[0].mxu0
        %v3571 = vpop.f32.mrb[0].mxu0
        %v3572 = vadd.f32 0.0, %v3571
        %v3573 = vpop.f32.mrb[0].mxu0
        %3574 = vmatprep.mubr.bf16.mxu0 0
        %3575 = vmatmul.mubr.bf16.gmra.mrb[0].mxu0 %v219
        %v3576 = vpop.f32.mrb[0].mxu0
        %v3577 = vadd.f32 0.0, %v3576
        %v3578 = vpop.f32.mrb[0].mxu0
        %v3579 = vpop.f32.mrb[0].mxu0
        %v3580 = vadd.f32 0.0, %v3579
        %v3581 = vpop.f32.mrb[0].mxu0
        %3582 = vmatprep.mubr.bf16.mxu0 0
        %3583 = vmatmul.mubr.bf16.gmra.mrb[0].mxu0 %v220
        %v3584 = vpop.f32.mrb[0].mxu0
        %v3585 = vadd.f32 0.0, %v3584
        %v3586 = vpop.f32.mrb[0].mxu0
        %v3587 = vpop.f32.mrb[0].mxu0
        %v3588 = vadd.f32 0.0, %v3587
        %v3589 = vpop.f32.mrb[0].mxu0
        %3590 = vmatprep.mubr.bf16.mxu0 0
        %3591 = vmatmul.mubr.bf16.gmra.mrb[0].mxu0 %v221
        %v3592 = vpop.f32.mrb[0].mxu0
        %v3593 = vadd.f32 0.0, %v3592
        %v3594 = vpop.f32.mrb[0].mxu0
        %v3595 = vpop.f32.mrb[0].mxu0
        %v3596 = vadd.f32 0.0, %v3595
        %v3597 = vpop.f32.mrb[0].mxu0
        %3598 = vmatprep.mubr.bf16.mxu0 0
        %3599 = vmatmul.mubr.bf16.gmra.mrb[0].mxu0 %v222
        %v3600 = vpop.f32.mrb[0].mxu0
        %v3601 = vadd.f32 0.0, %v3600
        %v3602 = vpop.f32.mrb[0].mxu0
        %v3603 = vpop.f32.mrb[0].mxu0
        %v3604 = vadd.f32 0.0, %v3603
        %v3605 = vpop.f32.mrb[0].mxu0
        %3606 = vmatprep.mubr.bf16.mxu0 0
        %3607 = vmatmul.mubr.bf16.gmra.mrb[0].mxu0 %v223
        %v3608 = vpop.f32.mrb[0].mxu0
        %v3609 = vadd.f32 0.0, %v3608
        %v3610 = vpop.f32.mrb[0].mxu0
        %v3611 = vpop.f32.mrb[0].mxu0
        %v3612 = vadd.f32 0.0, %v3611
        %v3613 = vpop.f32.mrb[0].mxu0
        %3614 = vmatprep.mubr.bf16.mxu0 0
        %3615 = vmatmul.mubr.bf16.gmra.mrb[0].mxu0 %v224
        %v3616 = vpop.f32.mrb[0].mxu0
        %v3617 = vadd.f32 0.0, %v3616
        %v3618 = vpop.f32.mrb[0].mxu0
        %v3619 = vpop.f32.mrb[0].mxu0
        %v3620 = vadd.f32 0.0, %v3619
        %v3621 = vpop.f32.mrb[0].mxu0
        %3622 = vmatprep.mubr.bf16.mxu0 0
        %3623 = vmatmul.mubr.bf16.gmra.mrb[0].mxu0 %v225
        %v3624 = vpop.f32.mrb[0].mxu0
        %v3625 = vadd.f32 0.0, %v3624
        %v3626 = vpop.f32.mrb[0].mxu0
        %v3627 = vpop.f32.mrb[0].mxu0
        %v3628 = vadd.f32 0.0, %v3627
        %v3629 = vpop.f32.mrb[0].mxu0
        %3630 = vmatprep.mubr.bf16.mxu0 0
        %3631 = vmatmul.mubr.bf16.gmra.mrb[0].mxu0 %v226
        %v3632 = vpop.f32.mrb[0].mxu0
        %v3633 = vadd.f32 0.0, %v3632
        %v3634 = vpop.f32.mrb[0].mxu0
        %v3635 = vpop.f32.mrb[0].mxu0
        %v3636 = vadd.f32 0.0, %v3635
        %v3637 = vpop.f32.mrb[0].mxu0
        %3638 = vdwg.mxu0
        %v3639 = vadd.f32 %v3221, %v3385
        %v3640 = vadd.f32 %v3222, %v3388
        %v3641 = vadd.f32 %v3223, %v3393
        %v3642 = vadd.f32 %v3224, %v3396
        %v3643 = vadd.f32 %v3225, %v3401
        %v3644 = vadd.f32 %v3226, %v3404
        %v3645 = vadd.f32 %v3227, %v3409
        %v3646 = vadd.f32 %v3228, %v3412
        %v3647 = vadd.f32 %v3229, %v3417
        %v3648 = vadd.f32 %v3230, %v3420
        %v3649 = vadd.f32 %v3231, %v3425
        %v3650 = vadd.f32 %v3232, %v3428
        %v3651 = vadd.f32 %v3233, %v3433
        %v3652 = vadd.f32 %v3234, %v3436
        %v3653 = vadd.f32 %v3235, %v3441
        %v3654 = vadd.f32 %v3236, %v3444
        %v3655 = vadd.f32 %v3237, %v3449
        %v3656 = vadd.f32 %v3238, %v3452
        %v3657 = vadd.f32 %v3239, %v3457
        %v3658 = vadd.f32 %v3240, %v3460
        %v3659 = vadd.f32 %v3241, %v3465
        %v3660 = vadd.f32 %v3242, %v3468
        %v3661 = vadd.f32 %v3243, %v3473
        %v3662 = vadd.f32 %v3244, %v3476
        %v3663 = vadd.f32 %v3245, %v3481
        %v3664 = vadd.f32 %v3246, %v3484
        %v3665 = vadd.f32 %v3247, %v3489
        %v3666 = vadd.f32 %v3248, %v3492
        %v3667 = vadd.f32 %v3249, %v3497
        %v3668 = vadd.f32 %v3250, %v3500
        %v3669 = vadd.f32 %v3251, %v3505
        %v3670 = vadd.f32 %v3252, %v3508
        %v3671 = vadd.f32 %v3253, %v3513
        %v3672 = vadd.f32 %v3254, %v3516
        %v3673 = vadd.f32 %v3255, %v3521
        %v3674 = vadd.f32 %v3256, %v3524
        %v3675 = vadd.f32 %v3257, %v3529
        %v3676 = vadd.f32 %v3258, %v3532
        %v3677 = vadd.f32 %v3259, %v3537
        %v3678 = vadd.f32 %v3260, %v3540
        %v3679 = vadd.f32 %v3261, %v3545
        %v3680 = vadd.f32 %v3262, %v3548
        %v3681 = vadd.f32 %v3263, %v3553
        %v3682 = vadd.f32 %v3264, %v3556
        %v3683 = vadd.f32 %v3265, %v3561
        %v3684 = vadd.f32 %v3266, %v3564
        %v3685 = vadd.f32 %v3267, %v3569
        %v3686 = vadd.f32 %v3268, %v3572
        %v3687 = vadd.f32 %v3269, %v3577
        %v3688 = vadd.f32 %v3270, %v3580
        %v3689 = vadd.f32 %v3271, %v3585
        %v3690 = vadd.f32 %v3272, %v3588
        %v3691 = vadd.f32 %v3273, %v3593
        %v3692 = vadd.f32 %v3274, %v3596
        %v3693 = vadd.f32 %v3275, %v3601
        %v3694 = vadd.f32 %v3276, %v3604
        %v3695 = vadd.f32 %v3277, %v3609
        %v3696 = vadd.f32 %v3278, %v3612
        %v3697 = vadd.f32 %v3279, %v3617
        %v3698 = vadd.f32 %v3280, %v3620
        %v3699 = vadd.f32 %v3281, %v3625
        %v3700 = vadd.f32 %v3282, %v3628
        %v3701 = vadd.f32 %v3283, %v3633
        %v3702 = vadd.f32 %v3284, %v3636
        %s3703 = scalar_lea.vmem [#allocation4], 384
        %v3704 = vld [vmem:[%s3703] sm:$0xf]
        %v3705 = vld [vmem:[%s3703 + $0x4] sm:$0xf]
        %v3706 = vld [vmem:[%s3703 + $0x8] sm:$0xf]
        %v3707 = vld [vmem:[%s3703 + $0xc] sm:$0xf]
        %v3708 = vld [vmem:[%s3703 + $0x10] sm:$0xf]
        %v3709 = vld [vmem:[%s3703 + $0x14] sm:$0xf]
        %v3710 = vld [vmem:[%s3703 + $0x18] sm:$0xf]
        %v3711 = vld [vmem:[%s3703 + $0x1c] sm:$0xf]
        %v3712 = vld [vmem:[%s3703 + $0x20] sm:$0xf]
        %v3713 = vld [vmem:[%s3703 + $0x24] sm:$0xf]
        %v3714 = vld [vmem:[%s3703 + $0x28] sm:$0xf]
        %v3715 = vld [vmem:[%s3703 + $0x2c] sm:$0xf]
        %v3716 = vld [vmem:[%s3703 + $0x30] sm:$0xf]
        %v3717 = vld [vmem:[%s3703 + $0x34] sm:$0xf]
        %v3718 = vld [vmem:[%s3703 + $0x38] sm:$0xf]
        %v3719 = vld [vmem:[%s3703 + $0x3c] sm:$0xf]
        %v3736 = vunpack.c.l.b16 %v3704
        %v3737 = vunpack.c.l.b16 %v3705
        %v3738 = vunpack.c.l.b16 %v3706
        %v3739 = vunpack.c.l.b16 %v3707
        %v3740 = vunpack.c.l.b16 %v3708
        %v3741 = vunpack.c.l.b16 %v3709
        %v3742 = vunpack.c.l.b16 %v3710
        %v3743 = vunpack.c.l.b16 %v3711
        %v3744 = vunpack.c.l.b16 %v3712
        %v3745 = vunpack.c.l.b16 %v3713
        %v3746 = vunpack.c.l.b16 %v3714
        %v3747 = vunpack.c.l.b16 %v3715
        %v3748 = vunpack.c.l.b16 %v3716
        %v3749 = vunpack.c.l.b16 %v3717
        %v3750 = vunpack.c.l.b16 %v3718
        %v3751 = vunpack.c.l.b16 %v3719
        %v3752 = vpack.c.b16 %v3737, %v3736
        %v3753 = vpack.c.b16 %v3739, %v3738
        %v3754 = vpack.c.b16 %v3741, %v3740
        %v3755 = vpack.c.b16 %v3743, %v3742
        %v3756 = vpack.c.b16 %v3745, %v3744
        %v3757 = vpack.c.b16 %v3747, %v3746
        %v3758 = vpack.c.b16 %v3749, %v3748
        %v3759 = vpack.c.b16 %v3751, %v3750
        %3768 = vmatprep.subr.bf16.mxu0 0
        %3769 = vmatpush1.bf16.msra.mxu0 %v3752
        %3770 = vmatprep.subr.bf16.mxu0 0
        %3771 = vmatpush1.bf16.msra.mxu0 %v3753
        %3772 = vmatprep.subr.bf16.mxu0 0
        %3773 = vmatpush1.bf16.msra.mxu0 %v3754
        %3774 = vmatprep.subr.bf16.mxu0 0
        %3775 = vmatpush1.bf16.msra.mxu0 %v3755
        %3776 = vmatprep.subr.bf16.mxu0 0
        %3777 = vmatpush1.bf16.msra.mxu0 %v3756
        %3778 = vmatprep.subr.bf16.mxu0 0
        %3779 = vmatpush1.bf16.msra.mxu0 %v3757
        %3780 = vmatprep.subr.bf16.mxu0 0
        %3781 = vmatpush1.bf16.msra.mxu0 %v3758
        %3782 = vmatprep.subr.bf16.mxu0 0
        %3783 = vmatpush1.bf16.msra.mxu0 %v3759
        %3784 = vmatprep.subr.bf16.mxu0 0
        %3785 = vmatpush1.bf16.msra.mxu0 0
        %3786 = vmatprep.subr.bf16.mxu0 0
        %3787 = vmatpush1.bf16.msra.mxu0 0
        %3788 = vmatprep.subr.bf16.mxu0 0
        %3789 = vmatpush1.bf16.msra.mxu0 0
        %3790 = vmatprep.subr.bf16.mxu0 0
        %3791 = vmatpush1.bf16.msra.mxu0 0
        %3792 = vmatprep.subr.bf16.mxu0 0
        %3793 = vmatpush1.bf16.msra.mxu0 0
        %3794 = vmatprep.subr.bf16.mxu0 0
        %3795 = vmatpush1.bf16.msra.mxu0 0
        %3796 = vmatprep.subr.bf16.mxu0 0
        %3797 = vmatpush1.bf16.msra.mxu0 0
        %3798 = vmatprep.subr.bf16.mxu0 0
        %3799 = vmatpush1.bf16.msra.mxu0 0
        %3800 = vmatprep.mubr.bf16.mxu0 0
        %3801 = vmatmul.mubr.bf16.gmra.mrb[0].mxu0 %v197
        %v3802 = vpop.f32.mrb[0].mxu0
        %v3803 = vadd.f32 0.0, %v3802
        %v3804 = vpop.f32.mrb[0].mxu0
        %v3805 = vpop.f32.mrb[0].mxu0
        %v3806 = vadd.f32 0.0, %v3805
        %v3807 = vpop.f32.mrb[0].mxu0
        %3808 = vmatprep.mubr.bf16.mxu0 0
        %3809 = vmatmul.mubr.bf16.gmra.mrb[0].mxu0 %v198
        %v3810 = vpop.f32.mrb[0].mxu0
        %v3811 = vadd.f32 0.0, %v3810
        %v3812 = vpop.f32.mrb[0].mxu0
        %v3813 = vpop.f32.mrb[0].mxu0
        %v3814 = vadd.f32 0.0, %v3813
        %v3815 = vpop.f32.mrb[0].mxu0
        %3816 = vmatprep.mubr.bf16.mxu0 0
        %3817 = vmatmul.mubr.bf16.gmra.mrb[0].mxu0 %v199
        %v3818 = vpop.f32.mrb[0].mxu0
        %v3819 = vadd.f32 0.0, %v3818
        %v3820 = vpop.f32.mrb[0].mxu0
        %v3821 = vpop.f32.mrb[0].mxu0
        %v3822 = vadd.f32 0.0, %v3821
        %v3823 = vpop.f32.mrb[0].mxu0
        %3824 = vmatprep.mubr.bf16.mxu0 0
        %3825 = vmatmul.mubr.bf16.gmra.mrb[0].mxu0 %v200
        %v3826 = vpop.f32.mrb[0].mxu0
        %v3827 = vadd.f32 0.0, %v3826
        %v3828 = vpop.f32.mrb[0].mxu0
        %v3829 = vpop.f32.mrb[0].mxu0
        %v3830 = vadd.f32 0.0, %v3829
        %v3831 = vpop.f32.mrb[0].mxu0
        %3832 = vmatprep.mubr.bf16.mxu0 0
        %3833 = vmatmul.mubr.bf16.gmra.mrb[0].mxu0 %v201
        %v3834 = vpop.f32.mrb[0].mxu0
        %v3835 = vadd.f32 0.0, %v3834
        %v3836 = vpop.f32.mrb[0].mxu0
        %v3837 = vpop.f32.mrb[0].mxu0
        %v3838 = vadd.f32 0.0, %v3837
        %v3839 = vpop.f32.mrb[0].mxu0
        %3840 = vmatprep.mubr.bf16.mxu0 0
        %3841 = vmatmul.mubr.bf16.gmra.mrb[0].mxu0 %v202
        %v3842 = vpop.f32.mrb[0].mxu0
        %v3843 = vadd.f32 0.0, %v3842
        %v3844 = vpop.f32.mrb[0].mxu0
        %v3845 = vpop.f32.mrb[0].mxu0
        %v3846 = vadd.f32 0.0, %v3845
        %v3847 = vpop.f32.mrb[0].mxu0
        %3848 = vmatprep.mubr.bf16.mxu0 0
        %3849 = vmatmul.mubr.bf16.gmra.mrb[0].mxu0 %v203
        %v3850 = vpop.f32.mrb[0].mxu0
        %v3851 = vadd.f32 0.0, %v3850
        %v3852 = vpop.f32.mrb[0].mxu0
        %v3853 = vpop.f32.mrb[0].mxu0
        %v3854 = vadd.f32 0.0, %v3853
        %v3855 = vpop.f32.mrb[0].mxu0
        %3856 = vmatprep.mubr.bf16.mxu0 0
        %3857 = vmatmul.mubr.bf16.gmra.mrb[0].mxu0 %v204
        %v3858 = vpop.f32.mrb[0].mxu0
        %v3859 = vadd.f32 0.0, %v3858
        %v3860 = vpop.f32.mrb[0].mxu0
        %v3861 = vpop.f32.mrb[0].mxu0
        %v3862 = vadd.f32 0.0, %v3861
        %v3863 = vpop.f32.mrb[0].mxu0
        %3864 = vmatprep.mubr.bf16.mxu0 0
        %3865 = vmatmul.mubr.bf16.gmra.mrb[0].mxu0 %v205
        %v3866 = vpop.f32.mrb[0].mxu0
        %v3867 = vadd.f32 0.0, %v3866
        %v3868 = vpop.f32.mrb[0].mxu0
        %v3869 = vpop.f32.mrb[0].mxu0
        %v3870 = vadd.f32 0.0, %v3869
        %v3871 = vpop.f32.mrb[0].mxu0
        %3872 = vmatprep.mubr.bf16.mxu0 0
        %3873 = vmatmul.mubr.bf16.gmra.mrb[0].mxu0 %v206
        %v3874 = vpop.f32.mrb[0].mxu0
        %v3875 = vadd.f32 0.0, %v3874
        %v3876 = vpop.f32.mrb[0].mxu0
        %v3877 = vpop.f32.mrb[0].mxu0
        %v3878 = vadd.f32 0.0, %v3877
        %v3879 = vpop.f32.mrb[0].mxu0
        %3880 = vmatprep.mubr.bf16.mxu0 0
        %3881 = vmatmul.mubr.bf16.gmra.mrb[0].mxu0 %v207
        %v3882 = vpop.f32.mrb[0].mxu0
        %v3883 = vadd.f32 0.0, %v3882
        %v3884 = vpop.f32.mrb[0].mxu0
        %v3885 = vpop.f32.mrb[0].mxu0
        %v3886 = vadd.f32 0.0, %v3885
        %v3887 = vpop.f32.mrb[0].mxu0
        %3888 = vmatprep.mubr.bf16.mxu0 0
        %3889 = vmatmul.mubr.bf16.gmra.mrb[0].mxu0 %v208
        %v3890 = vpop.f32.mrb[0].mxu0
        %v3891 = vadd.f32 0.0, %v3890
        %v3892 = vpop.f32.mrb[0].mxu0
        %v3893 = vpop.f32.mrb[0].mxu0
        %v3894 = vadd.f32 0.0, %v3893
        %v3895 = vpop.f32.mrb[0].mxu0
        %3896 = vmatprep.mubr.bf16.mxu0 0
        %3897 = vmatmul.mubr.bf16.gmra.mrb[0].mxu0 %v209
        %v3898 = vpop.f32.mrb[0].mxu0
        %v3899 = vadd.f32 0.0, %v3898
        %v3900 = vpop.f32.mrb[0].mxu0
        %v3901 = vpop.f32.mrb[0].mxu0
        %v3902 = vadd.f32 0.0, %v3901
        %v3903 = vpop.f32.mrb[0].mxu0
        %3904 = vmatprep.mubr.bf16.mxu0 0
        %3905 = vmatmul.mubr.bf16.gmra.mrb[0].mxu0 %v210
        %v3906 = vpop.f32.mrb[0].mxu0
        %v3907 = vadd.f32 0.0, %v3906
        %v3908 = vpop.f32.mrb[0].mxu0
        %v3909 = vpop.f32.mrb[0].mxu0
        %v3910 = vadd.f32 0.0, %v3909
        %v3911 = vpop.f32.mrb[0].mxu0
        %3912 = vmatprep.mubr.bf16.mxu0 0
        %3913 = vmatmul.mubr.bf16.gmra.mrb[0].mxu0 %v211
        %v3914 = vpop.f32.mrb[0].mxu0
        %v3915 = vadd.f32 0.0, %v3914
        %v3916 = vpop.f32.mrb[0].mxu0
        %v3917 = vpop.f32.mrb[0].mxu0
        %v3918 = vadd.f32 0.0, %v3917
        %v3919 = vpop.f32.mrb[0].mxu0
        %3920 = vmatprep.mubr.bf16.mxu0 0
        %3921 = vmatmul.mubr.bf16.gmra.mrb[0].mxu0 %v212
        %v3922 = vpop.f32.mrb[0].mxu0
        %v3923 = vadd.f32 0.0, %v3922
        %v3924 = vpop.f32.mrb[0].mxu0
        %v3925 = vpop.f32.mrb[0].mxu0
        %v3926 = vadd.f32 0.0, %v3925
        %v3927 = vpop.f32.mrb[0].mxu0
        %3928 = vmatprep.mubr.bf16.mxu0 0
        %3929 = vmatmul.mubr.bf16.gmra.mrb[0].mxu0 %v213
        %v3930 = vpop.f32.mrb[0].mxu0
        %v3931 = vadd.f32 0.0, %v3930
        %v3932 = vpop.f32.mrb[0].mxu0
        %v3933 = vpop.f32.mrb[0].mxu0
        %v3934 = vadd.f32 0.0, %v3933
        %v3935 = vpop.f32.mrb[0].mxu0
        %3936 = vmatprep.mubr.bf16.mxu0 0
        %3937 = vmatmul.mubr.bf16.gmra.mrb[0].mxu0 %v214
        %v3938 = vpop.f32.mrb[0].mxu0
        %v3939 = vadd.f32 0.0, %v3938
        %v3940 = vpop.f32.mrb[0].mxu0
        %v3941 = vpop.f32.mrb[0].mxu0
        %v3942 = vadd.f32 0.0, %v3941
        %v3943 = vpop.f32.mrb[0].mxu0
        %3944 = vmatprep.mubr.bf16.mxu0 0
        %3945 = vmatmul.mubr.bf16.gmra.mrb[0].mxu0 %v215
        %v3946 = vpop.f32.mrb[0].mxu0
        %v3947 = vadd.f32 0.0, %v3946
        %v3948 = vpop.f32.mrb[0].mxu0
        %v3949 = vpop.f32.mrb[0].mxu0
        %v3950 = vadd.f32 0.0, %v3949
        %v3951 = vpop.f32.mrb[0].mxu0
        %3952 = vmatprep.mubr.bf16.mxu0 0
        %3953 = vmatmul.mubr.bf16.gmra.mrb[0].mxu0 %v216
        %v3954 = vpop.f32.mrb[0].mxu0
        %v3955 = vadd.f32 0.0, %v3954
        %v3956 = vpop.f32.mrb[0].mxu0
        %v3957 = vpop.f32.mrb[0].mxu0
        %v3958 = vadd.f32 0.0, %v3957
        %v3959 = vpop.f32.mrb[0].mxu0
        %3960 = vmatprep.mubr.bf16.mxu0 0
        %3961 = vmatmul.mubr.bf16.gmra.mrb[0].mxu0 %v217
        %v3962 = vpop.f32.mrb[0].mxu0
        %v3963 = vadd.f32 0.0, %v3962
        %v3964 = vpop.f32.mrb[0].mxu0
        %v3965 = vpop.f32.mrb[0].mxu0
        %v3966 = vadd.f32 0.0, %v3965
        %v3967 = vpop.f32.mrb[0].mxu0
        %3968 = vmatprep.mubr.bf16.mxu0 0
        %3969 = vmatmul.mubr.bf16.gmra.mrb[0].mxu0 %v218
        %v3970 = vpop.f32.mrb[0].mxu0
        %v3971 = vadd.f32 0.0, %v3970
        %v3972 = vpop.f32.mrb[0].mxu0
        %v3973 = vpop.f32.mrb[0].mxu0
        %v3974 = vadd.f32 0.0, %v3973
        %v3975 = vpop.f32.mrb[0].mxu0
        %3976 = vmatprep.mubr.bf16.mxu0 0
        %3977 = vmatmul.mubr.bf16.gmra.mrb[0].mxu0 %v219
        %v3978 = vpop.f32.mrb[0].mxu0
        %v3979 = vadd.f32 0.0, %v3978
        %v3980 = vpop.f32.mrb[0].mxu0
        %v3981 = vpop.f32.mrb[0].mxu0
        %v3982 = vadd.f32 0.0, %v3981
        %v3983 = vpop.f32.mrb[0].mxu0
        %3984 = vmatprep.mubr.bf16.mxu0 0
        %3985 = vmatmul.mubr.bf16.gmra.mrb[0].mxu0 %v220
        %v3986 = vpop.f32.mrb[0].mxu0
        %v3987 = vadd.f32 0.0, %v3986
        %v3988 = vpop.f32.mrb[0].mxu0
        %v3989 = vpop.f32.mrb[0].mxu0
        %v3990 = vadd.f32 0.0, %v3989
        %v3991 = vpop.f32.mrb[0].mxu0
        %3992 = vmatprep.mubr.bf16.mxu0 0
        %3993 = vmatmul.mubr.bf16.gmra.mrb[0].mxu0 %v221
        %v3994 = vpop.f32.mrb[0].mxu0
        %v3995 = vadd.f32 0.0, %v3994
        %v3996 = vpop.f32.mrb[0].mxu0
        %v3997 = vpop.f32.mrb[0].mxu0
        %v3998 = vadd.f32 0.0, %v3997
        %v3999 = vpop.f32.mrb[0].mxu0
        %4000 = vmatprep.mubr.bf16.mxu0 0
        %4001 = vmatmul.mubr.bf16.gmra.mrb[0].mxu0 %v222
        %v4002 = vpop.f32.mrb[0].mxu0
        %v4003 = vadd.f32 0.0, %v4002
        %v4004 = vpop.f32.mrb[0].mxu0
        %v4005 = vpop.f32.mrb[0].mxu0
        %v4006 = vadd.f32 0.0, %v4005
        %v4007 = vpop.f32.mrb[0].mxu0
        %4008 = vmatprep.mubr.bf16.mxu0 0
        %4009 = vmatmul.mubr.bf16.gmra.mrb[0].mxu0 %v223
        %v4010 = vpop.f32.mrb[0].mxu0
        %v4011 = vadd.f32 0.0, %v4010
        %v4012 = vpop.f32.mrb[0].mxu0
        %v4013 = vpop.f32.mrb[0].mxu0
        %v4014 = vadd.f32 0.0, %v4013
        %v4015 = vpop.f32.mrb[0].mxu0
        %4016 = vmatprep.mubr.bf16.mxu0 0
        %4017 = vmatmul.mubr.bf16.gmra.mrb[0].mxu0 %v224
        %v4018 = vpop.f32.mrb[0].mxu0
        %v4019 = vadd.f32 0.0, %v4018
        %v4020 = vpop.f32.mrb[0].mxu0
        %v4021 = vpop.f32.mrb[0].mxu0
        %v4022 = vadd.f32 0.0, %v4021
        %v4023 = vpop.f32.mrb[0].mxu0
        %4024 = vmatprep.mubr.bf16.mxu0 0
        %4025 = vmatmul.mubr.bf16.gmra.mrb[0].mxu0 %v225
        %v4026 = vpop.f32.mrb[0].mxu0
        %v4027 = vadd.f32 0.0, %v4026
        %v4028 = vpop.f32.mrb[0].mxu0
        %v4029 = vpop.f32.mrb[0].mxu0
        %v4030 = vadd.f32 0.0, %v4029
        %v4031 = vpop.f32.mrb[0].mxu0
        %4032 = vmatprep.mubr.bf16.mxu0 0
        %4033 = vmatmul.mubr.bf16.gmra.mrb[0].mxu0 %v226
        %v4034 = vpop.f32.mrb[0].mxu0
        %v4035 = vadd.f32 0.0, %v4034
        %v4036 = vpop.f32.mrb[0].mxu0
        %v4037 = vpop.f32.mrb[0].mxu0
        %v4038 = vadd.f32 0.0, %v4037
        %v4039 = vpop.f32.mrb[0].mxu0
        %4040 = vmatprep.mubr.bf16.mxu0 0
        %4041 = vmatmul.mubr.bf16.gmra.mrb[0].mxu0 %v227
        %v4042 = vpop.f32.mrb[0].mxu0
        %v4043 = vadd.f32 0.0, %v4042
        %v4044 = vpop.f32.mrb[0].mxu0
        %v4045 = vpop.f32.mrb[0].mxu0
        %v4046 = vadd.f32 0.0, %v4045
        %v4047 = vpop.f32.mrb[0].mxu0
        %4048 = vmatprep.mubr.bf16.mxu0 0
        %4049 = vmatmul.mubr.bf16.gmra.mrb[0].mxu0 %v228
        %v4050 = vpop.f32.mrb[0].mxu0
        %v4051 = vadd.f32 0.0, %v4050
        %v4052 = vpop.f32.mrb[0].mxu0
        %v4053 = vpop.f32.mrb[0].mxu0
        %v4054 = vadd.f32 0.0, %v4053
        %v4055 = vpop.f32.mrb[0].mxu0
        %4056 = vdwg.mxu0
        %v4057 = vadd.f32 %v3639, %v3803
        %v4058 = vadd.f32 %v3640, %v3806
        %v4059 = vadd.f32 %v3641, %v3811
        %v4060 = vadd.f32 %v3642, %v3814
        %v4061 = vadd.f32 %v3643, %v3819
        %v4062 = vadd.f32 %v3644, %v3822
        %v4063 = vadd.f32 %v3645, %v3827
        %v4064 = vadd.f32 %v3646, %v3830
        %v4065 = vadd.f32 %v3647, %v3835
        %v4066 = vadd.f32 %v3648, %v3838
        %v4067 = vadd.f32 %v3649, %v3843
        %v4068 = vadd.f32 %v3650, %v3846
        %v4069 = vadd.f32 %v3651, %v3851
        %v4070 = vadd.f32 %v3652, %v3854
        %v4071 = vadd.f32 %v3653, %v3859
        %v4072 = vadd.f32 %v3654, %v3862
        %v4073 = vadd.f32 %v3655, %v3867
        %v4074 = vadd.f32 %v3656, %v3870
        %v4075 = vadd.f32 %v3657, %v3875
        %v4076 = vadd.f32 %v3658, %v3878
        %v4077 = vadd.f32 %v3659, %v3883
        %v4078 = vadd.f32 %v3660, %v3886
        %v4079 = vadd.f32 %v3661, %v3891
        %v4080 = vadd.f32 %v3662, %v3894
        %v4081 = vadd.f32 %v3663, %v3899
        %v4082 = vadd.f32 %v3664, %v3902
        %v4083 = vadd.f32 %v3665, %v3907
        %v4084 = vadd.f32 %v3666, %v3910
        %v4085 = vadd.f32 %v3667, %v3915
        %v4086 = vadd.f32 %v3668, %v3918
        %v4087 = vadd.f32 %v3669, %v3923
        %v4088 = vadd.f32 %v3670, %v3926
        %v4089 = vadd.f32 %v3671, %v3931
        %v4090 = vadd.f32 %v3672, %v3934
        %v4091 = vadd.f32 %v3673, %v3939
        %v4092 = vadd.f32 %v3674, %v3942
        %v4093 = vadd.f32 %v3675, %v3947
        %v4094 = vadd.f32 %v3676, %v3950
        %v4095 = vadd.f32 %v3677, %v3955
        %v4096 = vadd.f32 %v3678, %v3958
        %v4097 = vadd.f32 %v3679, %v3963
        %v4098 = vadd.f32 %v3680, %v3966
        %v4099 = vadd.f32 %v3681, %v3971
        %v4100 = vadd.f32 %v3682, %v3974
        %v4101 = vadd.f32 %v3683, %v3979
        %v4102 = vadd.f32 %v3684, %v3982
        %v4103 = vadd.f32 %v3685, %v3987
        %v4104 = vadd.f32 %v3686, %v3990
        %v4105 = vadd.f32 %v3687, %v3995
        %v4106 = vadd.f32 %v3688, %v3998
        %v4107 = vadd.f32 %v3689, %v4003
        %v4108 = vadd.f32 %v3690, %v4006
        %v4109 = vadd.f32 %v3691, %v4011
        %v4110 = vadd.f32 %v3692, %v4014
        %v4111 = vadd.f32 %v3693, %v4019
        %v4112 = vadd.f32 %v3694, %v4022
        %v4113 = vadd.f32 %v3695, %v4027
        %v4114 = vadd.f32 %v3696, %v4030
        %v4115 = vadd.f32 %v3697, %v4035
        %v4116 = vadd.f32 %v3698, %v4038
        %v4117 = vadd.f32 %v3699, %v4043
        %v4118 = vadd.f32 %v3700, %v4046
        %v4119 = vadd.f32 %v3701, %v4051
        %v4120 = vadd.f32 %v3702, %v4054
        %v4121 = vld [vmem:[%s2] sm:$0x1]
        %v4123 = vlaneseq
        %v4124 = vshrl.u32 %v4123, 7
        %v4125 = vsub.s32 0, %v4124
        %v4126 = vrot.slane %v4121, %v4125
        %v4128 = vadd.f32 %v4057, %v4126
        %v4129 = vadd.f32 %v4058, %v4126
        %v4130 = vadd.f32 %v4059, %v4126
        %v4131 = vadd.f32 %v4060, %v4126
        %v4132 = vadd.f32 %v4061, %v4126
        %v4133 = vadd.f32 %v4062, %v4126
        %v4134 = vadd.f32 %v4063, %v4126
        %v4135 = vadd.f32 %v4064, %v4126
        %v4136 = vadd.f32 %v4065, %v4126
        %v4137 = vadd.f32 %v4066, %v4126
        %v4138 = vadd.f32 %v4067, %v4126
        %v4139 = vadd.f32 %v4068, %v4126
        %v4140 = vadd.f32 %v4069, %v4126
        %v4141 = vadd.f32 %v4070, %v4126
        %v4142 = vadd.f32 %v4071, %v4126
        %v4143 = vadd.f32 %v4072, %v4126
        %v4144 = vadd.f32 %v4073, %v4126
        %v4145 = vadd.f32 %v4074, %v4126
        %v4146 = vadd.f32 %v4075, %v4126
        %v4147 = vadd.f32 %v4076, %v4126
        %v4148 = vadd.f32 %v4077, %v4126
        %v4149 = vadd.f32 %v4078, %v4126
        %v4150 = vadd.f32 %v4079, %v4126
        %v4151 = vadd.f32 %v4080, %v4126
        %v4152 = vadd.f32 %v4081, %v4126
        %v4153 = vadd.f32 %v4082, %v4126
        %v4154 = vadd.f32 %v4083, %v4126
        %v4155 = vadd.f32 %v4084, %v4126
        %v4156 = vadd.f32 %v4085, %v4126
        %v4157 = vadd.f32 %v4086, %v4126
        %v4158 = vadd.f32 %v4087, %v4126
        %v4159 = vadd.f32 %v4088, %v4126
        %v4160 = vadd.f32 %v4089, %v4126
        %v4161 = vadd.f32 %v4090, %v4126
        %v4162 = vadd.f32 %v4091, %v4126
        %v4163 = vadd.f32 %v4092, %v4126
        %v4164 = vadd.f32 %v4093, %v4126
        %v4165 = vadd.f32 %v4094, %v4126
        %v4166 = vadd.f32 %v4095, %v4126
        %v4167 = vadd.f32 %v4096, %v4126
        %v4168 = vadd.f32 %v4097, %v4126
        %v4169 = vadd.f32 %v4098, %v4126
        %v4170 = vadd.f32 %v4099, %v4126
        %v4171 = vadd.f32 %v4100, %v4126
        %v4172 = vadd.f32 %v4101, %v4126
        %v4173 = vadd.f32 %v4102, %v4126
        %v4174 = vadd.f32 %v4103, %v4126
        %v4175 = vadd.f32 %v4104, %v4126
        %v4176 = vadd.f32 %v4105, %v4126
        %v4177 = vadd.f32 %v4106, %v4126
        %v4178 = vadd.f32 %v4107, %v4126
        %v4179 = vadd.f32 %v4108, %v4126
        %v4180 = vadd.f32 %v4109, %v4126
        %v4181 = vadd.f32 %v4110, %v4126
        %v4182 = vadd.f32 %v4111, %v4126
        %v4183 = vadd.f32 %v4112, %v4126
        %v4184 = vadd.f32 %v4113, %v4126
        %v4185 = vadd.f32 %v4114, %v4126
        %v4186 = vadd.f32 %v4115, %v4126
        %v4187 = vadd.f32 %v4116, %v4126
        %v4188 = vadd.f32 %v4117, %v4126
        %v4189 = vadd.f32 %v4118, %v4126
        %v4190 = vadd.f32 %v4119, %v4126
        %v4191 = vadd.f32 %v4120, %v4126
        %4192 = vst [vmem:[%s151] sm:$0xff] %v4128
        %4193 = vst [vmem:[%s151 + $0x8] sm:$0xff] %v4129
        %4194 = vst [vmem:[%s151 + $0x10] sm:$0xff] %v4130
        %4195 = vst [vmem:[%s151 + $0x18] sm:$0xff] %v4131
        %4196 = vst [vmem:[%s151 + $0x20] sm:$0xff] %v4132
        %4197 = vst [vmem:[%s151 + $0x28] sm:$0xff] %v4133
        %4198 = vst [vmem:[%s151 + $0x30] sm:$0xff] %v4134
        %4199 = vst [vmem:[%s151 + $0x38] sm:$0xff] %v4135
        %4200 = vst [vmem:[%s151 + $0x40] sm:$0xff] %v4136
        %4201 = vst [vmem:[%s151 + $0x48] sm:$0xff] %v4137
        %4202 = vst [vmem:[%s151 + $0x50] sm:$0xff] %v4138
        %4203 = vst [vmem:[%s151 + $0x58] sm:$0xff] %v4139
        %4204 = vst [vmem:[%s151 + $0x60] sm:$0xff] %v4140
        %4205 = vst [vmem:[%s151 + $0x68] sm:$0xff] %v4141
        %4206 = vst [vmem:[%s151 + $0x70] sm:$0xff] %v4142
        %4207 = vst [vmem:[%s151 + $0x78] sm:$0xff] %v4143
        %4208 = vst [vmem:[%s151 + $0x80] sm:$0xff] %v4144
        %4209 = vst [vmem:[%s151 + $0x88] sm:$0xff] %v4145
        %4210 = vst [vmem:[%s151 + $0x90] sm:$0xff] %v4146
        %4211 = vst [vmem:[%s151 + $0x98] sm:$0xff] %v4147
        %4212 = vst [vmem:[%s151 + $0xa0] sm:$0xff] %v4148
        %4213 = vst [vmem:[%s151 + $0xa8] sm:$0xff] %v4149
        %4214 = vst [vmem:[%s151 + $0xb0] sm:$0xff] %v4150
        %4215 = vst [vmem:[%s151 + $0xb8] sm:$0xff] %v4151
        %4216 = vst [vmem:[%s151 + $0xc0] sm:$0xff] %v4152
        %4217 = vst [vmem:[%s151 + $0xc8] sm:$0xff] %v4153
        %4218 = vst [vmem:[%s151 + $0xd0] sm:$0xff] %v4154
        %4219 = vst [vmem:[%s151 + $0xd8] sm:$0xff] %v4155
        %4220 = vst [vmem:[%s151 + $0xe0] sm:$0xff] %v4156
        %4221 = vst [vmem:[%s151 + $0xe8] sm:$0xff] %v4157
        %4222 = vst [vmem:[%s151 + $0xf0] sm:$0xff] %v4158
        %4223 = vst [vmem:[%s151 + $0xf8] sm:$0xff] %v4159
        %4224 = vst [vmem:[%s151 + $0x100] sm:$0xff] %v4160
        %4225 = vst [vmem:[%s151 + $0x108] sm:$0xff] %v4161
        %4226 = vst [vmem:[%s151 + $0x110] sm:$0xff] %v4162
        %4227 = vst [vmem:[%s151 + $0x118] sm:$0xff] %v4163
        %4228 = vst [vmem:[%s151 + $0x120] sm:$0xff] %v4164
        %4229 = vst [vmem:[%s151 + $0x128] sm:$0xff] %v4165
        %4230 = vst [vmem:[%s151 + $0x130] sm:$0xff] %v4166
        %4231 = vst [vmem:[%s151 + $0x138] sm:$0xff] %v4167
        %4232 = vst [vmem:[%s151 + $0x140] sm:$0xff] %v4168
        %4233 = vst [vmem:[%s151 + $0x148] sm:$0xff] %v4169
        %4234 = vst [vmem:[%s151 + $0x150] sm:$0xff] %v4170
        %4235 = vst [vmem:[%s151 + $0x158] sm:$0xff] %v4171
        %4236 = vst [vmem:[%s151 + $0x160] sm:$0xff] %v4172
        %4237 = vst [vmem:[%s151 + $0x168] sm:$0xff] %v4173
        %4238 = vst [vmem:[%s151 + $0x170] sm:$0xff] %v4174
        %4239 = vst [vmem:[%s151 + $0x178] sm:$0xff] %v4175
        %4240 = vst [vmem:[%s151 + $0x180] sm:$0xff] %v4176
        %4241 = vst [vmem:[%s151 + $0x188] sm:$0xff] %v4177
        %4242 = vst [vmem:[%s151 + $0x190] sm:$0xff] %v4178
        %4243 = vst [vmem:[%s151 + $0x198] sm:$0xff] %v4179
        %4244 = vst [vmem:[%s151 + $0x1a0] sm:$0xff] %v4180
        %4245 = vst [vmem:[%s151 + $0x1a8] sm:$0xff] %v4181
        %4246 = vst [vmem:[%s151 + $0x1b0] sm:$0xff] %v4182
        %4247 = vst [vmem:[%s151 + $0x1b8] sm:$0xff] %v4183
        %4248 = vst [vmem:[%s151 + $0x1c0] sm:$0xff] %v4184
        %4249 = vst [vmem:[%s151 + $0x1c8] sm:$0xff] %v4185
        %4250 = vst [vmem:[%s151 + $0x1d0] sm:$0xff] %v4186
        %4251 = vst [vmem:[%s151 + $0x1d8] sm:$0xff] %v4187
        %4252 = vst [vmem:[%s151 + $0x1e0] sm:$0xff] %v4188
        %4253 = vst [vmem:[%s151 + $0x1e8] sm:$0xff] %v4189
        %4254 = vst [vmem:[%s151 + $0x1f0] sm:$0xff] %v4190
        %4255 = vst [vmem:[%s151 + $0x1f8] sm:$0xff] %v4191
        %s4256 = sand.u32 %s82, 1
        %s4257 = scalar_lea.sflag [#allocation6], %s4256
        %s4258 = sand.u32 %s82, 1
        %s4259 = smul.addr %s4258, 512
        %s4260 = scalar_lea.vmem [#allocation7], %s4259
        // Predicated region
        $region41: #{tpu_custom_call.1} parent=27 // pred_check
          %p4261 = pneg %p92
        $region42: #{tpu_custom_call.1} parent=27 // pred_check_branch
          %4263 = sbr.rel (%p4261) target = $region44
        $region43: #{tpu_custom_call.1} parent=27 // pred_region
          %s4264 = smul.u32 16, %s23
          %s4266 = ssub.s32 8192, 8192
          %4267 = vsyncadd %s4257, %s4266
          %s4268 = smul.addr %s4264, 4
          %s4269 = smul.addr %s22, 64
          %s4270 = sadd.s32 %s4268, %s4269
          %s4271 = smul.addr %s4270, 128
          %s4272 = scalar_lea.hbm %s3, %s4271
          %s4273 = sshll.u32 %s4260, 4
          %s4274 = int_to_ptr.vmem [resolvable:$true] %s4273
          %4279 = dma.vmem_to_hbm [thread:$0]  %s4274, 8192, %s4272, %s4257, 128, 128, 8
        $region44: #{tpu_custom_call.1} parent=27 // pred_fallthru
          _
      $region28: #{tpu_custom_call.1} parent=5 // pred_fallthru
        _
      %p4280 = scmp.le.s32.totalorder 2, %s13
      // Predicated region
      $region45: #{tpu_custom_call.1} parent=5 // pred_check
        %p4281 = pneg %p4280
      $region46: #{tpu_custom_call.1} parent=5 // pred_check_branch
        %4283 = sbr.rel (%p4281) target = $region48
      $region47: #{tpu_custom_call.1} parent=5 // pred_region
        %s4284 = ssub.s32 %s13, 2
        // Predicated region
        $region49: #{tpu_custom_call.1} parent=47 // pred_check
          %p4285 = pneg %p98
        $region50: #{tpu_custom_call.1} parent=47 // pred_check_branch
          %4287 = sbr.rel (%p4285) target = $region52
        $region51: #{tpu_custom_call.1} parent=47 // pred_region
          %s4288 = sand.u32 %s83, 1
          %s4289 = scalar_lea.sflag [#allocation6], %s4288
          %s4290 = sand.u32 %s83, 1
          %s4291 = smul.addr %s4290, 512
          %s4292 = scalar_lea.vmem [#allocation7], %s4291
          %4293 = dma.done %s4289, 8192
        $region52: #{tpu_custom_call.1} parent=47 // pred_fallthru
          _
      $region48: #{tpu_custom_call.1} parent=5 // pred_fallthru
        _
    $region6: #{tpu_custom_call.1} parent=1 // loop_footer
      %s17 = sadd.s32 1, %s13
    $region7: #{tpu_custom_call.1} parent=1 // loop_footer_branch
      %12 = sbr.rel target = $region3
    $region8: #{tpu_custom_call.1} parent=1 // loop_exit
      _
    %4294 = vsyncpa [#allocation5], 1
    %s4295 = scalar_lea.sflag [#allocation5], 1
    %4296 = vsyncpa %s4295, 1
    %4297 = vsyncpa [#allocation6], 1
    %s4298 = scalar_lea.sflag [#allocation6], 1
    %4299 = vsyncpa %s4298, 1
  %4300 = vsyncmov [#allocation3]
  %s4301 = vpop.sfrf %4300
  %p4302 = scmp.eq.s32.totalorder %s4301, 0
  %p4303 = pneg %p4302
  %4305 = shalt.err (%p4303)
  %s4306 = scalar_lea.sflag [#allocation3], 1
  %4307 = vsyncmov %s4306
  %s4308 = vpop.sfrf %4307
  %p4309 = scmp.eq.s32.totalorder %s4308, 0
  %p4310 = pneg %p4309
  %4312 = shalt.err (%p4310)

// kernel: tpu_custom_call.1
$region0: #{tpu_custom_call.1}
  #allocation0 [shape = 'u32[]', space=smem, size = 0x4, offset = 0x4, fixed_abs, tag = 'smem constant byte address 0x4 - core index']
  #allocation1 [shape = 'u32[144,128]{1,0:T(1,128)}', space=vmem, size = 0x12000, scoped, tag = 'internal scratch']
  #allocation2 [shape = 'bf16[2,18,32,128]{3,2,1,0:T(16,128)(2,1)}', space=vmem, size = 0x48000, scoped, tag = 'scratch operand']
  #allocation3 [shape = 's32[2]{0}', space=sflag, size = 0x8, scoped, tag = 'scratch operand']
  #allocation8 [shape = 's32[]', space=sflag, size = 0x4, offset = 0, fixed_abs, tag = 'sflag constant byte address 0x0 - dummy sync flag']
  #allocation9 [shape = 's32[]', space=sflag, size = 0x4, offset = 0, fixed_abs, tag = 'sflag constant byte address 0x0 - dummy sync flag']
  #allocation10 [shape = 'u32[]', space=smem, size = 0x4, offset = 0x44, fixed_abs, tag = 'smem constant byte address 0x44 - assertion arg 0']
  #allocation11 [shape = 'u32[]', space=smem, size = 0x4, offset = 0x48, fixed_abs, tag = 'smem constant byte address 0x48 - assertion arg 1']
  %s0 = inlined_call_operand.hbm [shape: bf16[2,18,32,128], index: 0, kind: input, shape index: {}]
  %s1 = inlined_call_operand.hbm [shape: bf16[9,128,128], index: 1, kind: input, shape index: {}]
  %s2 = inlined_call_operand.vmem [shape: f32[1,128], index: 2, kind: input, shape index: {}]
  %s3 = inlined_call_operand.hbm [shape: f32[2,16,32,128], index: 3, kind: output, shape index: {}]
  %s4 = sld [smem:[#allocation0]]
  $region53: #{tpu_custom_call.1} parent=0
    _
  %s6 = ssub.s32 1, %s4
  %s7 = scalar_select 0, %s6, %s4
  $region1: #{tpu_custom_call.1} parent=0
    #allocation4 [shape = 'u8[294912]{0}', space=vmem, size = 0x48000, scoped, tag = 'input window, operand 1, single buffered']
    #allocation5 [shape = 's32[2]{0}', space=sflag, size = 0x8, scoped, tag = 'scoped memory for tpu_custom_call.1']
    #allocation6 [shape = 's32[2]{0}', space=sflag, size = 0x8, scoped, tag = 'scoped memory for tpu_custom_call.1']
    #allocation7 [shape = 'u8[524288]{0}', space=vmem, size = 0x80000, scoped, tag = 'output window, operand 0']
    %8 = vsyncpa [#allocation5], 0
    %9 = vsyncpa [#allocation6], 0
    %s10 = scalar_lea.sflag [#allocation6], 1
    %11 = vsyncpa %s10, 0
    loop: start=0, step=1, limit=4
    $region2: #{tpu_custom_call.1} parent=1 // loop_pre_header
      _
    $region3: #{tpu_custom_call.1} parent=1 // loop_header
      %s13 = sphi 0, %s17
      %p14 = scmp.ge.s32.totalorder %s13, 4
      %s20 = sphi 0, %s32
      %s21 = sphi 0, %s28
      %s22 = sphi 0, %s20
      %s23 = sphi 0, %s21
      %s24 = sphi 0, %s22
      %s25 = sphi 0, %s23
      %s33 = sphi 0, %s33
      %s35 = sphi 0, %s33
      %s36 = sphi 0, %s35
      %s50 = sphi 0, %s36
      %s54 = sphi 0, %s54
      %s56 = sphi 0, %s54
      %s57 = sphi 0, %s56
      %s71 = sphi 0, %s57
      %s79 = sphi 0, %s81
      %s82 = sphi 0, %s79
      %s83 = sphi 0, %s82
      %s99 = sphi 0, %s83
    $region4: #{tpu_custom_call.1} parent=1 // loop_header_branch
      %16 = sbr.rel (%p14) target = $region8
    $region5: #{tpu_custom_call.1} parent=1 // loop_body
      %s18 = ssub.s32 %s13, 1
      %s19 = ssub.s32 %s13, 2
      %s26 = sadd.s32 1, %s21
      %p27 = scmp.ge.s32.totalorder %s26, 1
      %s28 = scalar_select %p27, 0, %s26
      %s29 = sadd.s32 1, %s20
      %s30 = scalar_select %p27, %s29, %s20
      %p31 = scmp.ge.s32.totalorder %s30, 2
      %s32 = scalar_select %p31, 0, %s30
      %s34 = sadd.s32 %s33, 1
      %p37 = scmp.eq.s32.totalorder %s13, 1
      %p38 = scmp.ne.s32.totalorder %s33, %s35
      %p39 = scmp.eq.s32.totalorder %s13, 0
      %p40 = por %p38, %p39
      %p41 = scmp.ne.s32.totalorder %s33, %s35
      %p42 = scmp.eq.s32.totalorder %s18, 1
      %p43 = por %p41, %p42
      %p44 = scmp.ne.s32.totalorder %s35, %s36
      %p45 = scmp.eq.s32.totalorder %s18, 0
      %p46 = por %p44, %p45
      %p47 = scmp.ne.s32.totalorder %s35, %s36
      %p48 = scmp.eq.s32.totalorder %s19, 1
      %p49 = por %p47, %p48
      %p51 = scmp.ne.s32.totalorder %s36, %s50
      %p52 = scmp.eq.s32.totalorder %s19, 0
      %p53 = por %p51, %p52
      %s55 = sadd.s32 %s54, 1
      %p58 = scmp.eq.s32.totalorder %s13, 1
      %p59 = scmp.ne.s32.totalorder %s54, %s56
      %p60 = scmp.eq.s32.totalorder %s13, 0
      %p61 = por %p59, %p60
      %p62 = scmp.ne.s32.totalorder %s54, %s56
      %p63 = scmp.eq.s32.totalorder %s18, 1
      %p64 = por %p62, %p63
      %p65 = scmp.ne.s32.totalorder %s56, %s57
      %p66 = scmp.eq.s32.totalorder %s18, 0
      %p67 = por %p65, %p66
      %p68 = scmp.ne.s32.totalorder %s56, %s57
      %p69 = scmp.eq.s32.totalorder %s19, 1
      %p70 = por %p68, %p69
      %p72 = scmp.ne.s32.totalorder %s57, %s71
      %p73 = scmp.eq.s32.totalorder %s19, 0
      %p74 = por %p72, %p73
      %s75 = ssub.s32 %s20, %s32
      %s76 = ssub.s32 %s21, %s28
      %s77 = sor.u32 %s75, %s76
      %p78 = scmp.eq.s32.totalorder %s77, 0
      %s80 = sadd.s32 %s79, 1
      %s81 = scalar_select %p78, %s79, %s80
      %p84 = pneg %p78
      %p85 = scmp.eq.s32.totalorder %s13, 1
      %p86 = por %p84, %p85
      %p87 = scmp.ne.s32.totalorder %s79, %s82
      %p88 = scmp.eq.s32.totalorder %s13, 0
      %p89 = por %p87, %p88
      %p90 = scmp.ne.s32.totalorder %s79, %s82
      %p91 = scmp.eq.s32.totalorder %s18, 1
      %p92 = por %p90, %p91
      %p93 = scmp.ne.s32.totalorder %s82, %s83
      %p94 = scmp.eq.s32.totalorder %s18, 0
      %p95 = por %p93, %p94
      %p96 = scmp.ne.s32.totalorder %s82, %s83
      %p97 = scmp.eq.s32.totalorder %s19, 1
      %p98 = por %p96, %p97
      %p100 = scmp.ne.s32.totalorder %s83, %s99
      %p101 = scmp.eq.s32.totalorder %s19, 0
      %p102 = por %p100, %p101
      %p103 = scmp.le.s32.totalorder 1, %s13
      %p104 = scmp.lt.s32.totalorder %s13, 3
      %p105 = pnand %p103, %p104
      %p106 = pneg %p105
      // Predicated region
      $region9: #{tpu_custom_call.1} parent=5 // pred_check
        _
      $region10: #{tpu_custom_call.1} parent=5 // pred_check_branch
        %108 = sbr.rel (%p105) target = $region12
      $region11: #{tpu_custom_call.1} parent=5 // pred_region
        %s109 = ssub.s32 %s13, 1
        // Predicated region
        $region13: #{tpu_custom_call.1} parent=11 // pred_check
          %p110 = pneg %p46
        $region14: #{tpu_custom_call.1} parent=11 // pred_check_branch
          %112 = sbr.rel (%p110) target = $region16
        $region15: #{tpu_custom_call.1} parent=11 // pred_region
          %s114 = ssub.s32 9216, 9216
          %115 = vsyncadd [#allocation5], %s114
          %s116 = sshll.u32 [#allocation4], 4
          %s117 = int_to_ptr.vmem [resolvable:$true] %s116
          %122 = dma.hbm_to_vmem [thread:$0]  %s1, 9216, %s117, [#allocation5], 64, 64, 4
        $region16: #{tpu_custom_call.1} parent=11 // pred_fallthru
          _
        // Predicated region
        $region17: #{tpu_custom_call.1} parent=11 // pred_check
          %p123 = pneg %p67
        $region18: #{tpu_custom_call.1} parent=11 // pred_check_branch
          %125 = sbr.rel (%p123) target = $region20
        $region19: #{tpu_custom_call.1} parent=11 // pred_region
          _
        $region20: #{tpu_custom_call.1} parent=11 // pred_fallthru
          _
      $region12: #{tpu_custom_call.1} parent=5 // pred_fallthru
        _
      %p126 = scmp.lt.s32.totalorder %s13, 2
      // Predicated region
      $region21: #{tpu_custom_call.1} parent=5 // pred_check
        %p127 = pneg %p126
      $region22: #{tpu_custom_call.1} parent=5 // pred_check_branch
        %129 = sbr.rel (%p127) target = $region24
      $region23: #{tpu_custom_call.1} parent=5 // pred_region
        _
      $region24: #{tpu_custom_call.1} parent=5 // pred_fallthru
        _
      %p130 = scmp.le.s32.totalorder 1, %s13
      %p131 = scmp.lt.s32.totalorder %s13, 3
      %p132 = pnand %p130, %p131
      %p133 = pneg %p132
      // Predicated region
      $region25: #{tpu_custom_call.1} parent=5 // pred_check
        _
      $region26: #{tpu_custom_call.1} parent=5 // pred_check_branch
        %135 = sbr.rel (%p132) target = $region28
      $region27: #{tpu_custom_call.1} parent=5 // pred_region
        %s136 = ssub.s32 %s13, 1
        // Predicated region
        $region29: #{tpu_custom_call.1} parent=27 // pred_check
          %p137 = pneg %p46
        $region30: #{tpu_custom_call.1} parent=27 // pred_check_branch
          %139 = sbr.rel (%p137) target = $region32
        $region31: #{tpu_custom_call.1} parent=27 // pred_region
          %140 = dma.done [#allocation5], 9216
        $region32: #{tpu_custom_call.1} parent=27 // pred_fallthru
          _
        %p141 = pneg %p46
        %p142 = pneg %p43
        %p143 = pneg %p67
        %p144 = pneg %p64
        %p145 = pneg %p95
        %p146 = pneg %p92
        %s147 = sand.u32 %s82, 1
        %s148 = scalar_lea.sflag [#allocation6], %s147
        %s149 = sand.u32 %s82, 1
        %s150 = smul.addr %s149, 512
        %s151 = scalar_lea.vmem [#allocation7], %s150
        %s152 = smul.u32 16, %s23
        %p154 = scmp.lt.s32.totalorder %s23, 0
        %s155 = ssub.s32 0, %s23
        %s156 = scalar_select %p154, %s155, %s23
        %s157 = sand.u32 %s156, 1
        %s158 = ssub.s32 0, %s157
        %s159 = scalar_select %p154, %s158, %s157
        %p160 = scmp.ne.s32.totalorder %s159, 0
        %p161 = scmp.lt.s32.totalorder %s159, 0
        %p162 = pnand %p161, %p160
        %p163 = pneg %p162
        %s164 = sadd.s32 %s159, 2
        %s165 = scalar_select %p163, %s164, %s159
        %p166 = scmp.eq.s32.totalorder %s23, 0
        // Predicated region
        $region33: #{tpu_custom_call.1} parent=27 // pred_check
          %p167 = pneg %p166
        $region34: #{tpu_custom_call.1} parent=27 // pred_check_branch
          %169 = sbr.rel (%p167) target = $region36
        $region35: #{tpu_custom_call.1} parent=27 // pred_region
          %s170 = smul.u32 %s22, 72
          %s171 = smul.addr %s170, 64
          %s172 = scalar_lea.hbm %s0, %s171
          // Predicated region
          $region37: #{tpu_custom_call.1} parent=35 // pred_check
            _
          $region38: #{tpu_custom_call.1} parent=35 // pred_check_branch
            %174 = sbr.rel target = $region40
          $region39: #{tpu_custom_call.1} parent=35 // pred_region
            %175 = sst [smem:[#allocation10]] [#allocation9]
            %176 = sst [smem:[#allocation11]] [#allocation8]
          $region40: #{tpu_custom_call.1} parent=35 // pred_fallthru
            _
          %178 = shalt.err (0)
          %s180 = sshll.u32 [#allocation2], 4
          %s181 = int_to_ptr.vmem [resolvable:$true] %s180
          %183 = dma.hbm_to_vmem [thread:$0]  %s172, 4608, %s181, [#allocation3]
        $region36: #{tpu_custom_call.1} parent=27 // pred_fallthru
          _
        %s184 = smul.u32 %s165, 36
        %s185 = smul.addr %s184, 8
        %s186 = scalar_lea.vmem [#allocation2], %s185
        %s187 = scalar_lea.sflag [#allocation3], %s165
        %s188 = smul.u32 4, 18
        %s189 = smul.u32 %s188, 4
        %s190 = smul.u32 %s189, 1
        %s191 = sshll.u32 %s190, 4
        %192 = dma.done %s187, %s191
        %v193 = vld [vmem:[%s186] sm:$0xff]
        %v194 = vld [vmem:[%s186 + $0x8] sm:$0xff]
        %v195 = vld [vmem:[%s186 + $0x10] sm:$0xff]
        %v196 = vld [vmem:[%s186 + $0x18] sm:$0xff]
        %v197 = vld [vmem:[%s186 + $0x20] sm:$0xff]
        %v198 = vld [vmem:[%s186 + $0x28] sm:$0xff]
        %v199 = vld [vmem:[%s186 + $0x30] sm:$0xff]
        %v200 = vld [vmem:[%s186 + $0x38] sm:$0xff]
        %v201 = vld [vmem:[%s186 + $0x40] sm:$0xff]
        %v202 = vld [vmem:[%s186 + $0x48] sm:$0xff]
        %v203 = vld [vmem:[%s186 + $0x50] sm:$0xff]
        %v204 = vld [vmem:[%s186 + $0x58] sm:$0xff]
        %v205 = vld [vmem:[%s186 + $0x60] sm:$0xff]
        %v206 = vld [vmem:[%s186 + $0x68] sm:$0xff]
        %v207 = vld [vmem:[%s186 + $0x70] sm:$0xff]
        %v208 = vld [vmem:[%s186 + $0x78] sm:$0xff]
        %v209 = vld [vmem:[%s186 + $0x80] sm:$0xff]
        %v210 = vld [vmem:[%s186 + $0x88] sm:$0xff]
        %v211 = vld [vmem:[%s186 + $0x90] sm:$0xff]
        %v212 = vld [vmem:[%s186 + $0x98] sm:$0xff]
        %v213 = vld [vmem:[%s186 + $0xa0] sm:$0xff]
        %v214 = vld [vmem:[%s186 + $0xa8] sm:$0xff]
        %v215 = vld [vmem:[%s186 + $0xb0] sm:$0xff]
        %v216 = vld [vmem:[%s186 + $0xb8] sm:$0xff]
        %v217 = vld [vmem:[%s186 + $0xc0] sm:$0xff]
        %v218 = vld [vmem:[%s186 + $0xc8] sm:$0xff]
        %v219 = vld [vmem:[%s186 + $0xd0] sm:$0xff]
        %v220 = vld [vmem:[%s186 + $0xd8] sm:$0xff]
        %v221 = vld [vmem:[%s186 + $0xe0] sm:$0xff]
        %v222 = vld [vmem:[%s186 + $0xe8] sm:$0xff]
        %v223 = vld [vmem:[%s186 + $0xf0] sm:$0xff]
        %v224 = vld [vmem:[%s186 + $0xf8] sm:$0xff]
        %v225 = vld [vmem:[%s186 + $0x100] sm:$0xff]
        %v226 = vld [vmem:[%s186 + $0x108] sm:$0xff]
        %v227 = vld [vmem:[%s186 + $0x110] sm:$0xff]
        %v228 = vld [vmem:[%s186 + $0x118] sm:$0xff]
        %s229 = scalar_lea.vmem [#allocation4], 128
        %v230 = vld [vmem:[%s229] sm:$0xf]
        %v231 = vld [vmem:[%s229 + $0x4] sm:$0xf]
        %v232 = vld [vmem:[%s229 + $0x8] sm:$0xf]
        %v233 = vld [vmem:[%s229 + $0xc] sm:$0xf]
        %v234 = vld [vmem:[%s229 + $0x10] sm:$0xf]
        %v235 = vld [vmem:[%s229 + $0x14] sm:$0xf]
        %v236 = vld [vmem:[%s229 + $0x18] sm:$0xf]
        %v237 = vld [vmem:[%s229 + $0x1c] sm:$0xf]
        %v238 = vld [vmem:[%s229 + $0x20] sm:$0xf]
        %v239 = vld [vmem:[%s229 + $0x24] sm:$0xf]
        %v240 = vld [vmem:[%s229 + $0x28] sm:$0xf]
        %v241 = vld [vmem:[%s229 + $0x2c] sm:$0xf]
        %v242 = vld [vmem:[%s229 + $0x30] sm:$0xf]
        %v243 = vld [vmem:[%s229 + $0x34] sm:$0xf]
        %v244 = vld [vmem:[%s229 + $0x38] sm:$0xf]
        %v245 = vld [vmem:[%s229 + $0x3c] sm:$0xf]
        %s246 = scalar_lea.vmem [#allocation4], 320
        %v247 = vld [vmem:[%s246] sm:$0xf]
        %v248 = vld [vmem:[%s246 + $0x4] sm:$0xf]
        %v249 = vld [vmem:[%s246 + $0x8] sm:$0xf]
        %v250 = vld [vmem:[%s246 + $0xc] sm:$0xf]
        %v251 = vld [vmem:[%s246 + $0x10] sm:$0xf]
        %v252 = vld [vmem:[%s246 + $0x14] sm:$0xf]
        %v253 = vld [vmem:[%s246 + $0x18] sm:$0xf]
        %v254 = vld [vmem:[%s246 + $0x1c] sm:$0xf]
        %v255 = vld [vmem:[%s246 + $0x20] sm:$0xf]
        %v256 = vld [vmem:[%s246 + $0x24] sm:$0xf]
        %v257 = vld [vmem:[%s246 + $0x28] sm:$0xf]
        %v258 = vld [vmem:[%s246 + $0x2c] sm:$0xf]
        %v259 = vld [vmem:[%s246 + $0x30] sm:$0xf]
        %v260 = vld [vmem:[%s246 + $0x34] sm:$0xf]
        %v261 = vld [vmem:[%s246 + $0x38] sm:$0xf]
        %v262 = vld [vmem:[%s246 + $0x3c] sm:$0xf]
        %v279 = vunpack.c.l.b16 %v247
        %v280 = vunpack.c.l.b16 %v248
        %v281 = vunpack.c.l.b16 %v249
        %v282 = vunpack.c.l.b16 %v250
        %v283 = vunpack.c.l.b16 %v251
        %v284 = vunpack.c.l.b16 %v252
        %v285 = vunpack.c.l.b16 %v253
        %v286 = vunpack.c.l.b16 %v254
        %v287 = vunpack.c.l.b16 %v255
        %v288 = vunpack.c.l.b16 %v256
        %v289 = vunpack.c.l.b16 %v257
        %v290 = vunpack.c.l.b16 %v258
        %v291 = vunpack.c.l.b16 %v259
        %v292 = vunpack.c.l.b16 %v260
        %v293 = vunpack.c.l.b16 %v261
        %v294 = vunpack.c.l.b16 %v262
        %v295 = vpack.c.b16 %v280, %v279
        %v296 = vpack.c.b16 %v282, %v281
        %v297 = vpack.c.b16 %v284, %v283
        %v298 = vpack.c.b16 %v286, %v285
        %v299 = vpack.c.b16 %v288, %v287
        %v300 = vpack.c.b16 %v290, %v289
        %v301 = vpack.c.b16 %v292, %v291
        %v302 = vpack.c.b16 %v294, %v293
        %311 = vmatprep.subr.bf16.mxu0 0
        %312 = vmatpush1.bf16.msra.mxu0 %v295
        %313 = vmatprep.subr.bf16.mxu0 0
        %314 = vmatpush1.bf16.msra.mxu0 %v296
        %315 = vmatprep.subr.bf16.mxu0 0
        %316 = vmatpush1.bf16.msra.mxu0 %v297
        %317 = vmatprep.subr.bf16.mxu0 0
        %318 = vmatpush1.bf16.msra.mxu0 %v298
        %319 = vmatprep.subr.bf16.mxu0 0
        %320 = vmatpush1.bf16.msra.mxu0 %v299
        %321 = vmatprep.subr.bf16.mxu0 0
        %322 = vmatpush1.bf16.msra.mxu0 %v300
        %323 = vmatprep.subr.bf16.mxu0 0
        %324 = vmatpush1.bf16.msra.mxu0 %v301
        %325 = vmatprep.subr.bf16.mxu0 0
        %326 = vmatpush1.bf16.msra.mxu0 %v302
        %327 = vmatprep.subr.bf16.mxu0 0
        %328 = vmatpush1.bf16.msra.mxu0 0
        %329 = vmatprep.subr.bf16.mxu0 0
        %330 = vmatpush1.bf16.msra.mxu0 0
        %331 = vmatprep.subr.bf16.mxu0 0
        %332 = vmatpush1.bf16.msra.mxu0 0
        %333 = vmatprep.subr.bf16.mxu0 0
        %334 = vmatpush1.bf16.msra.mxu0 0
        %335 = vmatprep.subr.bf16.mxu0 0
        %336 = vmatpush1.bf16.msra.mxu0 0
        %337 = vmatprep.subr.bf16.mxu0 0
        %338 = vmatpush1.bf16.msra.mxu0 0
        %339 = vmatprep.subr.bf16.mxu0 0
        %340 = vmatpush1.bf16.msra.mxu0 0
        %341 = vmatprep.subr.bf16.mxu0 0
        %342 = vmatpush1.bf16.msra.mxu0 0
        %343 = vmatprep.mubr.bf16.mxu0 0
        %344 = vmatmul.mubr.bf16.gmra.mrb[0].mxu0 %v195
        %v345 = vpop.f32.mrb[0].mxu0
        %v346 = vadd.f32 0.0, %v345
        %v347 = vpop.f32.mrb[0].mxu0
        %v348 = vpop.f32.mrb[0].mxu0
        %v349 = vadd.f32 0.0, %v348
        %v350 = vpop.f32.mrb[0].mxu0
        %351 = vmatprep.mubr.bf16.mxu0 0
        %352 = vmatmul.mubr.bf16.gmra.mrb[0].mxu0 %v196
        %v353 = vpop.f32.mrb[0].mxu0
        %v354 = vadd.f32 0.0, %v353
        %v355 = vpop.f32.mrb[0].mxu0
        %v356 = vpop.f32.mrb[0].mxu0
        %v357 = vadd.f32 0.0, %v356
        %v358 = vpop.f32.mrb[0].mxu0
        %359 = vmatprep.mubr.bf16.mxu0 0
        %360 = vmatmul.mubr.bf16.gmra.mrb[0].mxu0 %v197
        %v361 = vpop.f32.mrb[0].mxu0
        %v362 = vadd.f32 0.0, %v361
        %v363 = vpop.f32.mrb[0].mxu0
        %v364 = vpop.f32.mrb[0].mxu0
        %v365 = vadd.f32 0.0, %v364
        %v366 = vpop.f32.mrb[0].mxu0
        %367 = vmatprep.mubr.bf16.mxu0 0
        %368 = vmatmul.mubr.bf16.gmra.mrb[0].mxu0 %v198
        %v369 = vpop.f32.mrb[0].mxu0
        %v370 = vadd.f32 0.0, %v369
        %v371 = vpop.f32.mrb[0].mxu0
        %v372 = vpop.f32.mrb[0].mxu0
        %v373 = vadd.f32 0.0, %v372
        %v374 = vpop.f32.mrb[0].mxu0
        %375 = vmatprep.mubr.bf16.mxu0 0
        %376 = vmatmul.mubr.bf16.gmra.mrb[0].mxu0 %v199
        %v377 = vpop.f32.mrb[0].mxu0
        %v378 = vadd.f32 0.0, %v377
        %v379 = vpop.f32.mrb[0].mxu0
        %v380 = vpop.f32.mrb[0].mxu0
        %v381 = vadd.f32 0.0, %v380
        %v382 = vpop.f32.mrb[0].mxu0
        %383 = vmatprep.mubr.bf16.mxu0 0
        %384 = vmatmul.mubr.bf16.gmra.mrb[0].mxu0 %v200
        %v385 = vpop.f32.mrb[0].mxu0
        %v386 = vadd.f32 0.0, %v385
        %v387 = vpop.f32.mrb[0].mxu0
        %v388 = vpop.f32.mrb[0].mxu0
        %v389 = vadd.f32 0.0, %v388
        %v390 = vpop.f32.mrb[0].mxu0
        %391 = vmatprep.mubr.bf16.mxu0 0
        %392 = vmatmul.mubr.bf16.gmra.mrb[0].mxu0 %v201
        %v393 = vpop.f32.mrb[0].mxu0
        %v394 = vadd.f32 0.0, %v393
        %v395 = vpop.f32.mrb[0].mxu0
        %v396 = vpop.f32.mrb[0].mxu0
        %v397 = vadd.f32 0.0, %v396
        %v398 = vpop.f32.mrb[0].mxu0
        %399 = vmatprep.mubr.bf16.mxu0 0
        %400 = vmatmul.mubr.bf16.gmra.mrb[0].mxu0 %v202
        %v401 = vpop.f32.mrb[0].mxu0
        %v402 = vadd.f32 0.0, %v401
        %v403 = vpop.f32.mrb[0].mxu0
        %v404 = vpop.f32.mrb[0].mxu0
        %v405 = vadd.f32 0.0, %v404
        %v406 = vpop.f32.mrb[0].mxu0
        %407 = vmatprep.mubr.bf16.mxu0 0
        %408 = vmatmul.mubr.bf16.gmra.mrb[0].mxu0 %v203
        %v409 = vpop.f32.mrb[0].mxu0
        %v410 = vadd.f32 0.0, %v409
        %v411 = vpop.f32.mrb[0].mxu0
        %v412 = vpop.f32.mrb[0].mxu0
        %v413 = vadd.f32 0.0, %v412
        %v414 = vpop.f32.mrb[0].mxu0
        %415 = vmatprep.mubr.bf16.mxu0 0
        %416 = vmatmul.mubr.bf16.gmra.mrb[0].mxu0 %v204
        %v417 = vpop.f32.mrb[0].mxu0
        %v418 = vadd.f32 0.0, %v417
        %v419 = vpop.f32.mrb[0].mxu0
        %v420 = vpop.f32.mrb[0].mxu0
        %v421 = vadd.f32 0.0, %v420
        %v422 = vpop.f32.mrb[0].mxu0
        %423 = vmatprep.mubr.bf16.mxu0 0
        %424 = vmatmul.mubr.bf16.gmra.mrb[0].mxu0 %v205
        %v425 = vpop.f32.mrb[0].mxu0
        %v426 = vadd.f32 0.0, %v425
        %v427 = vpop.f32.mrb[0].mxu0
        %v428 = vpop.f32.mrb[0].mxu0
        %v429 = vadd.f32 0.0, %v428
        %v430 = vpop.f32.mrb[0].mxu0
        %431 = vmatprep.mubr.bf16.mxu0 0
        %432 = vmatmul.mubr.bf16.gmra.mrb[0].mxu0 %v206
        %v433 = vpop.f32.mrb[0].mxu0
        %v434 = vadd.f32 0.0, %v433
        %v435 = vpop.f32.mrb[0].mxu0
        %v436 = vpop.f32.mrb[0].mxu0
        %v437 = vadd.f32 0.0, %v436
        %v438 = vpop.f32.mrb[0].mxu0
        %439 = vmatprep.mubr.bf16.mxu0 0
        %440 = vmatmul.mubr.bf16.gmra.mrb[0].mxu0 %v207
        %v441 = vpop.f32.mrb[0].mxu0
        %v442 = vadd.f32 0.0, %v441
        %v443 = vpop.f32.mrb[0].mxu0
        %v444 = vpop.f32.mrb[0].mxu0
        %v445 = vadd.f32 0.0, %v444
        %v446 = vpop.f32.mrb[0].mxu0
        %447 = vmatprep.mubr.bf16.mxu0 0
        %448 = vmatmul.mubr.bf16.gmra.mrb[0].mxu0 %v208
        %v449 = vpop.f32.mrb[0].mxu0
        %v450 = vadd.f32 0.0, %v449
        %v451 = vpop.f32.mrb[0].mxu0
        %v452 = vpop.f32.mrb[0].mxu0
        %v453 = vadd.f32 0.0, %v452
        %v454 = vpop.f32.mrb[0].mxu0
        %455 = vmatprep.mubr.bf16.mxu0 0
        %456 = vmatmul.mubr.bf16.gmra.mrb[0].mxu0 %v209
        %v457 = vpop.f32.mrb[0].mxu0
        %v458 = vadd.f32 0.0, %v457
        %v459 = vpop.f32.mrb[0].mxu0
        %v460 = vpop.f32.mrb[0].mxu0
        %v461 = vadd.f32 0.0, %v460
        %v462 = vpop.f32.mrb[0].mxu0
        %463 = vmatprep.mubr.bf16.mxu0 0
        %464 = vmatmul.mubr.bf16.gmra.mrb[0].mxu0 %v210
        %v465 = vpop.f32.mrb[0].mxu0
        %v466 = vadd.f32 0.0, %v465
        %v467 = vpop.f32.mrb[0].mxu0
        %v468 = vpop.f32.mrb[0].mxu0
        %v469 = vadd.f32 0.0, %v468
        %v470 = vpop.f32.mrb[0].mxu0
        %471 = vmatprep.mubr.bf16.mxu0 0
        %472 = vmatmul.mubr.bf16.gmra.mrb[0].mxu0 %v211
        %v473 = vpop.f32.mrb[0].mxu0
        %v474 = vadd.f32 0.0, %v473
        %v475 = vpop.f32.mrb[0].mxu0
        %v476 = vpop.f32.mrb[0].mxu0
        %v477 = vadd.f32 0.0, %v476
        %v478 = vpop.f32.mrb[0].mxu0
        %479 = vmatprep.mubr.bf16.mxu0 0
        %480 = vmatmul.mubr.bf16.gmra.mrb[0].mxu0 %v212
        %v481 = vpop.f32.mrb[0].mxu0
        %v482 = vadd.f32 0.0, %v481
        %v483 = vpop.f32.mrb[0].mxu0
        %v484 = vpop.f32.mrb[0].mxu0
        %v485 = vadd.f32 0.0, %v484
        %v486 = vpop.f32.mrb[0].mxu0
        %487 = vmatprep.mubr.bf16.mxu0 0
        %488 = vmatmul.mubr.bf16.gmra.mrb[0].mxu0 %v213
        %v489 = vpop.f32.mrb[0].mxu0
        %v490 = vadd.f32 0.0, %v489
        %v491 = vpop.f32.mrb[0].mxu0
        %v492 = vpop.f32.mrb[0].mxu0
        %v493 = vadd.f32 0.0, %v492
        %v494 = vpop.f32.mrb[0].mxu0
        %495 = vmatprep.mubr.bf16.mxu0 0
        %496 = vmatmul.mubr.bf16.gmra.mrb[0].mxu0 %v214
        %v497 = vpop.f32.mrb[0].mxu0
        %v498 = vadd.f32 0.0, %v497
        %v499 = vpop.f32.mrb[0].mxu0
        %v500 = vpop.f32.mrb[0].mxu0
        %v501 = vadd.f32 0.0, %v500
        %v502 = vpop.f32.mrb[0].mxu0
        %503 = vmatprep.mubr.bf16.mxu0 0
        %504 = vmatmul.mubr.bf16.gmra.mrb[0].mxu0 %v215
        %v505 = vpop.f32.mrb[0].mxu0
        %v506 = vadd.f32 0.0, %v505
        %v507 = vpop.f32.mrb[0].mxu0
        %v508 = vpop.f32.mrb[0].mxu0
        %v509 = vadd.f32 0.0, %v508
        %v510 = vpop.f32.mrb[0].mxu0
        %511 = vmatprep.mubr.bf16.mxu0 0
        %512 = vmatmul.mubr.bf16.gmra.mrb[0].mxu0 %v216
        %v513 = vpop.f32.mrb[0].mxu0
        %v514 = vadd.f32 0.0, %v513
        %v515 = vpop.f32.mrb[0].mxu0
        %v516 = vpop.f32.mrb[0].mxu0
        %v517 = vadd.f32 0.0, %v516
        %v518 = vpop.f32.mrb[0].mxu0
        %519 = vmatprep.mubr.bf16.mxu0 0
        %520 = vmatmul.mubr.bf16.gmra.mrb[0].mxu0 %v217
        %v521 = vpop.f32.mrb[0].mxu0
        %v522 = vadd.f32 0.0, %v521
        %v523 = vpop.f32.mrb[0].mxu0
        %v524 = vpop.f32.mrb[0].mxu0
        %v525 = vadd.f32 0.0, %v524
        %v526 = vpop.f32.mrb[0].mxu0
        %527 = vmatprep.mubr.bf16.mxu0 0
        %528 = vmatmul.mubr.bf16.gmra.mrb[0].mxu0 %v218
        %v529 = vpop.f32.mrb[0].mxu0
        %v530 = vadd.f32 0.0, %v529
        %v531 = vpop.f32.mrb[0].mxu0
        %v532 = vpop.f32.mrb[0].mxu0
        %v533 = vadd.f32 0.0, %v532
        %v534 = vpop.f32.mrb[0].mxu0
        %535 = vmatprep.mubr.bf16.mxu0 0
        %536 = vmatmul.mubr.bf16.gmra.mrb[0].mxu0 %v219
        %v537 = vpop.f32.mrb[0].mxu0
        %v538 = vadd.f32 0.0, %v537
        %v539 = vpop.f32.mrb[0].mxu0
        %v540 = vpop.f32.mrb[0].mxu0
        %v541 = vadd.f32 0.0, %v540
        %v542 = vpop.f32.mrb[0].mxu0
        %543 = vmatprep.mubr.bf16.mxu0 0
        %544 = vmatmul.mubr.bf16.gmra.mrb[0].mxu0 %v220
        %v545 = vpop.f32.mrb[0].mxu0
        %v546 = vadd.f32 0.0, %v545
        %v547 = vpop.f32.mrb[0].mxu0
        %v548 = vpop.f32.mrb[0].mxu0
        %v549 = vadd.f32 0.0, %v548
        %v550 = vpop.f32.mrb[0].mxu0
        %551 = vmatprep.mubr.bf16.mxu0 0
        %552 = vmatmul.mubr.bf16.gmra.mrb[0].mxu0 %v221
        %v553 = vpop.f32.mrb[0].mxu0
        %v554 = vadd.f32 0.0, %v553
        %v555 = vpop.f32.mrb[0].mxu0
        %v556 = vpop.f32.mrb[0].mxu0
        %v557 = vadd.f32 0.0, %v556
        %v558 = vpop.f32.mrb[0].mxu0
        %559 = vmatprep.mubr.bf16.mxu0 0
        %560 = vmatmul.mubr.bf16.gmra.mrb[0].mxu0 %v222
        %v561 = vpop.f32.mrb[0].mxu0
        %v562 = vadd.f32 0.0, %v561
        %v563 = vpop.f32.mrb[0].mxu0
        %v564 = vpop.f32.mrb[0].mxu0
        %v565 = vadd.f32 0.0, %v564
        %v566 = vpop.f32.mrb[0].mxu0
        %567 = vmatprep.mubr.bf16.mxu0 0
        %568 = vmatmul.mubr.bf16.gmra.mrb[0].mxu0 %v223
        %v569 = vpop.f32.mrb[0].mxu0
        %v570 = vadd.f32 0.0, %v569
        %v571 = vpop.f32.mrb[0].mxu0
        %v572 = vpop.f32.mrb[0].mxu0
        %v573 = vadd.f32 0.0, %v572
        %v574 = vpop.f32.mrb[0].mxu0
        %575 = vmatprep.mubr.bf16.mxu0 0
        %576 = vmatmul.mubr.bf16.gmra.mrb[0].mxu0 %v224
        %v577 = vpop.f32.mrb[0].mxu0
        %v578 = vadd.f32 0.0, %v577
        %v579 = vpop.f32.mrb[0].mxu0
        %v580 = vpop.f32.mrb[0].mxu0
        %v581 = vadd.f32 0.0, %v580
        %v582 = vpop.f32.mrb[0].mxu0
        %583 = vmatprep.mubr.bf16.mxu0 0
        %584 = vmatmul.mubr.bf16.gmra.mrb[0].mxu0 %v225
        %v585 = vpop.f32.mrb[0].mxu0
        %v586 = vadd.f32 0.0, %v585
        %v587 = vpop.f32.mrb[0].mxu0
        %v588 = vpop.f32.mrb[0].mxu0
        %v589 = vadd.f32 0.0, %v588
        %v590 = vpop.f32.mrb[0].mxu0
        %591 = vmatprep.mubr.bf16.mxu0 0
        %592 = vmatmul.mubr.bf16.gmra.mrb[0].mxu0 %v226
        %v593 = vpop.f32.mrb[0].mxu0
        %v594 = vadd.f32 0.0, %v593
        %v595 = vpop.f32.mrb[0].mxu0
        %v596 = vpop.f32.mrb[0].mxu0
        %v597 = vadd.f32 0.0, %v596
        %v598 = vpop.f32.mrb[0].mxu0
        %599 = vdwg.mxu0
        %v616 = vunpack.c.l.b16 %v230
        %v617 = vunpack.c.l.b16 %v231
        %v618 = vunpack.c.l.b16 %v232
        %v619 = vunpack.c.l.b16 %v233
        %v620 = vunpack.c.l.b16 %v234
        %v621 = vunpack.c.l.b16 %v235
        %v622 = vunpack.c.l.b16 %v236
        %v623 = vunpack.c.l.b16 %v237
        %v624 = vunpack.c.l.b16 %v238
        %v625 = vunpack.c.l.b16 %v239
        %v626 = vunpack.c.l.b16 %v240
        %v627 = vunpack.c.l.b16 %v241
        %v628 = vunpack.c.l.b16 %v242
        %v629 = vunpack.c.l.b16 %v243
        %v630 = vunpack.c.l.b16 %v244
        %v631 = vunpack.c.l.b16 %v245
        %v632 = vpack.c.b16 %v617, %v616
        %v633 = vpack.c.b16 %v619, %v618
        %v634 = vpack.c.b16 %v621, %v620
        %v635 = vpack.c.b16 %v623, %v622
        %v636 = vpack.c.b16 %v625, %v624
        %v637 = vpack.c.b16 %v627, %v626
        %v638 = vpack.c.b16 %v629, %v628
        %v639 = vpack.c.b16 %v631, %v630
        %648 = vmatprep.subr.bf16.mxu0 0
        %649 = vmatpush1.bf16.msra.mxu0 %v632
        %650 = vmatprep.subr.bf16.mxu0 0
        %651 = vmatpush1.bf16.msra.mxu0 %v633
        %652 = vmatprep.subr.bf16.mxu0 0
        %653 = vmatpush1.bf16.msra.mxu0 %v634
        %654 = vmatprep.subr.bf16.mxu0 0
        %655 = vmatpush1.bf16.msra.mxu0 %v635
        %656 = vmatprep.subr.bf16.mxu0 0
        %657 = vmatpush1.bf16.msra.mxu0 %v636
        %658 = vmatprep.subr.bf16.mxu0 0
        %659 = vmatpush1.bf16.msra.mxu0 %v637
        %660 = vmatprep.subr.bf16.mxu0 0
        %661 = vmatpush1.bf16.msra.mxu0 %v638
        %662 = vmatprep.subr.bf16.mxu0 0
        %663 = vmatpush1.bf16.msra.mxu0 %v639
        %664 = vmatprep.subr.bf16.mxu0 0
        %665 = vmatpush1.bf16.msra.mxu0 0
        %666 = vmatprep.subr.bf16.mxu0 0
        %667 = vmatpush1.bf16.msra.mxu0 0
        %668 = vmatprep.subr.bf16.mxu0 0
        %669 = vmatpush1.bf16.msra.mxu0 0
        %670 = vmatprep.subr.bf16.mxu0 0
        %671 = vmatpush1.bf16.msra.mxu0 0
        %672 = vmatprep.subr.bf16.mxu0 0
        %673 = vmatpush1.bf16.msra.mxu0 0
        %674 = vmatprep.subr.bf16.mxu0 0
        %675 = vmatpush1.bf16.msra.mxu0 0
        %676 = vmatprep.subr.bf16.mxu0 0
        %677 = vmatpush1.bf16.msra.mxu0 0
        %678 = vmatprep.subr.bf16.mxu0 0
        %679 = vmatpush1.bf16.msra.mxu0 0
        %680 = vmatprep.mubr.bf16.mxu0 0
        %681 = vmatmul.mubr.bf16.gmra.mrb[0].mxu0 %v193
        %v682 = vpop.f32.mrb[0].mxu0
        %v683 = vadd.f32 %v346, %v682
        %v684 = vpop.f32.mrb[0].mxu0
        %v685 = vpop.f32.mrb[0].mxu0
        %v686 = vadd.f32 %v349, %v685
        %v687 = vpop.f32.mrb[0].mxu0
        %688 = vmatprep.mubr.bf16.mxu0 0
        %689 = vmatmul.mubr.bf16.gmra.mrb[0].mxu0 %v194
        %v690 = vpop.f32.mrb[0].mxu0
        %v691 = vadd.f32 %v354, %v690
        %v692 = vpop.f32.mrb[0].mxu0
        %v693 = vpop.f32.mrb[0].mxu0
        %v694 = vadd.f32 %v357, %v693
        %v695 = vpop.f32.mrb[0].mxu0
        %696 = vmatprep.mubr.bf16.mxu0 0
        %697 = vmatmul.mubr.bf16.gmra.mrb[0].mxu0 %v195
        %v698 = vpop.f32.mrb[0].mxu0
        %v699 = vadd.f32 %v362, %v698
        %v700 = vpop.f32.mrb[0].mxu0
        %v701 = vpop.f32.mrb[0].mxu0
        %v702 = vadd.f32 %v365, %v701
        %v703 = vpop.f32.mrb[0].mxu0
        %704 = vmatprep.mubr.bf16.mxu0 0
        %705 = vmatmul.mubr.bf16.gmra.mrb[0].mxu0 %v196
        %v706 = vpop.f32.mrb[0].mxu0
        %v707 = vadd.f32 %v370, %v706
        %v708 = vpop.f32.mrb[0].mxu0
        %v709 = vpop.f32.mrb[0].mxu0
        %v710 = vadd.f32 %v373, %v709
        %v711 = vpop.f32.mrb[0].mxu0
        %712 = vmatprep.mubr.bf16.mxu0 0
        %713 = vmatmul.mubr.bf16.gmra.mrb[0].mxu0 %v197
        %v714 = vpop.f32.mrb[0].mxu0
        %v715 = vadd.f32 %v378, %v714
        %v716 = vpop.f32.mrb[0].mxu0
        %v717 = vpop.f32.mrb[0].mxu0
        %v718 = vadd.f32 %v381, %v717
        %v719 = vpop.f32.mrb[0].mxu0
        %720 = vmatprep.mubr.bf16.mxu0 0
        %721 = vmatmul.mubr.bf16.gmra.mrb[0].mxu0 %v198
        %v722 = vpop.f32.mrb[0].mxu0
        %v723 = vadd.f32 %v386, %v722
        %v724 = vpop.f32.mrb[0].mxu0
        %v725 = vpop.f32.mrb[0].mxu0
        %v726 = vadd.f32 %v389, %v725
        %v727 = vpop.f32.mrb[0].mxu0
        %728 = vmatprep.mubr.bf16.mxu0 0
        %729 = vmatmul.mubr.bf16.gmra.mrb[0].mxu0 %v199
        %v730 = vpop.f32.mrb[0].mxu0
        %v731 = vadd.f32 %v394, %v730
        %v732 = vpop.f32.mrb[0].mxu0
        %v733 = vpop.f32.mrb[0].mxu0
        %v734 = vadd.f32 %v397, %v733
        %v735 = vpop.f32.mrb[0].mxu0
        %736 = vmatprep.mubr.bf16.mxu0 0
        %737 = vmatmul.mubr.bf16.gmra.mrb[0].mxu0 %v200
        %v738 = vpop.f32.mrb[0].mxu0
        %v739 = vadd.f32 %v402, %v738
        %v740 = vpop.f32.mrb[0].mxu0
        %v741 = vpop.f32.mrb[0].mxu0
        %v742 = vadd.f32 %v405, %v741
        %v743 = vpop.f32.mrb[0].mxu0
        %744 = vmatprep.mubr.bf16.mxu0 0
        %745 = vmatmul.mubr.bf16.gmra.mrb[0].mxu0 %v201
        %v746 = vpop.f32.mrb[0].mxu0
        %v747 = vadd.f32 %v410, %v746
        %v748 = vpop.f32.mrb[0].mxu0
        %v749 = vpop.f32.mrb[0].mxu0
        %v750 = vadd.f32 %v413, %v749
        %v751 = vpop.f32.mrb[0].mxu0
        %752 = vmatprep.mubr.bf16.mxu0 0
        %753 = vmatmul.mubr.bf16.gmra.mrb[0].mxu0 %v202
        %v754 = vpop.f32.mrb[0].mxu0
        %v755 = vadd.f32 %v418, %v754
        %v756 = vpop.f32.mrb[0].mxu0
        %v757 = vpop.f32.mrb[0].mxu0
        %v758 = vadd.f32 %v421, %v757
        %v759 = vpop.f32.mrb[0].mxu0
        %760 = vmatprep.mubr.bf16.mxu0 0
        %761 = vmatmul.mubr.bf16.gmra.mrb[0].mxu0 %v203
        %v762 = vpop.f32.mrb[0].mxu0
        %v763 = vadd.f32 %v426, %v762
        %v764 = vpop.f32.mrb[0].mxu0
        %v765 = vpop.f32.mrb[0].mxu0
        %v766 = vadd.f32 %v429, %v765
        %v767 = vpop.f32.mrb[0].mxu0
        %768 = vmatprep.mubr.bf16.mxu0 0
        %769 = vmatmul.mubr.bf16.gmra.mrb[0].mxu0 %v204
        %v770 = vpop.f32.mrb[0].mxu0
        %v771 = vadd.f32 %v434, %v770
        %v772 = vpop.f32.mrb[0].mxu0
        %v773 = vpop.f32.mrb[0].mxu0
        %v774 = vadd.f32 %v437, %v773
        %v775 = vpop.f32.mrb[0].mxu0
        %776 = vmatprep.mubr.bf16.mxu0 0
        %777 = vmatmul.mubr.bf16.gmra.mrb[0].mxu0 %v205
        %v778 = vpop.f32.mrb[0].mxu0
        %v779 = vadd.f32 %v442, %v778
        %v780 = vpop.f32.mrb[0].mxu0
        %v781 = vpop.f32.mrb[0].mxu0
        %v782 = vadd.f32 %v445, %v781
        %v783 = vpop.f32.mrb[0].mxu0
        %784 = vmatprep.mubr.bf16.mxu0 0
        %785 = vmatmul.mubr.bf16.gmra.mrb[0].mxu0 %v206
        %v786 = vpop.f32.mrb[0].mxu0
        %v787 = vadd.f32 %v450, %v786
        %v788 = vpop.f32.mrb[0].mxu0
        %v789 = vpop.f32.mrb[0].mxu0
        %v790 = vadd.f32 %v453, %v789
        %v791 = vpop.f32.mrb[0].mxu0
        %792 = vmatprep.mubr.bf16.mxu0 0
        %793 = vmatmul.mubr.bf16.gmra.mrb[0].mxu0 %v207
        %v794 = vpop.f32.mrb[0].mxu0
        %v795 = vadd.f32 %v458, %v794
        %v796 = vpop.f32.mrb[0].mxu0
        %v797 = vpop.f32.mrb[0].mxu0
        %v798 = vadd.f32 %v461, %v797
        %v799 = vpop.f32.mrb[0].mxu0
        %800 = vmatprep.mubr.bf16.mxu0 0
        %801 = vmatmul.mubr.bf16.gmra.mrb[0].mxu0 %v208
        %v802 = vpop.f32.mrb[0].mxu0
        %v803 = vadd.f32 %v466, %v802
        %v804 = vpop.f32.mrb[0].mxu0
        %v805 = vpop.f32.mrb[0].mxu0
        %v806 = vadd.f32 %v469, %v805
        %v807 = vpop.f32.mrb[0].mxu0
        %808 = vmatprep.mubr.bf16.mxu0 0
        %809 = vmatmul.mubr.bf16.gmra.mrb[0].mxu0 %v209
        %v810 = vpop.f32.mrb[0].mxu0
        %v811 = vadd.f32 %v474, %v810
        %v812 = vpop.f32.mrb[0].mxu0
        %v813 = vpop.f32.mrb[0].mxu0
        %v814 = vadd.f32 %v477, %v813
        %v815 = vpop.f32.mrb[0].mxu0
        %816 = vmatprep.mubr.bf16.mxu0 0
        %817 = vmatmul.mubr.bf16.gmra.mrb[0].mxu0 %v210
        %v818 = vpop.f32.mrb[0].mxu0
        %v819 = vadd.f32 %v482, %v818
        %v820 = vpop.f32.mrb[0].mxu0
        %v821 = vpop.f32.mrb[0].mxu0
        %v822 = vadd.f32 %v485, %v821
        %v823 = vpop.f32.mrb[0].mxu0
        %824 = vmatprep.mubr.bf16.mxu0 0
        %825 = vmatmul.mubr.bf16.gmra.mrb[0].mxu0 %v211
        %v826 = vpop.f32.mrb[0].mxu0
        %v827 = vadd.f32 %v490, %v826
        %v828 = vpop.f32.mrb[0].mxu0
        %v829 = vpop.f32.mrb[0].mxu0
        %v830 = vadd.f32 %v493, %v829
        %v831 = vpop.f32.mrb[0].mxu0
        %832 = vmatprep.mubr.bf16.mxu0 0
        %833 = vmatmul.mubr.bf16.gmra.mrb[0].mxu0 %v212
        %v834 = vpop.f32.mrb[0].mxu0
        %v835 = vadd.f32 %v498, %v834
        %v836 = vpop.f32.mrb[0].mxu0
        %v837 = vpop.f32.mrb[0].mxu0
        %v838 = vadd.f32 %v501, %v837
        %v839 = vpop.f32.mrb[0].mxu0
        %840 = vmatprep.mubr.bf16.mxu0 0
        %841 = vmatmul.mubr.bf16.gmra.mrb[0].mxu0 %v213
        %v842 = vpop.f32.mrb[0].mxu0
        %v843 = vadd.f32 %v506, %v842
        %v844 = vpop.f32.mrb[0].mxu0
        %v845 = vpop.f32.mrb[0].mxu0
        %v846 = vadd.f32 %v509, %v845
        %v847 = vpop.f32.mrb[0].mxu0
        %848 = vmatprep.mubr.bf16.mxu0 0
        %849 = vmatmul.mubr.bf16.gmra.mrb[0].mxu0 %v214
        %v850 = vpop.f32.mrb[0].mxu0
        %v851 = vadd.f32 %v514, %v850
        %v852 = vpop.f32.mrb[0].mxu0
        %v853 = vpop.f32.mrb[0].mxu0
        %v854 = vadd.f32 %v517, %v853
        %v855 = vpop.f32.mrb[0].mxu0
        %856 = vmatprep.mubr.bf16.mxu0 0
        %857 = vmatmul.mubr.bf16.gmra.mrb[0].mxu0 %v215
        %v858 = vpop.f32.mrb[0].mxu0
        %v859 = vadd.f32 %v522, %v858
        %v860 = vpop.f32.mrb[0].mxu0
        %v861 = vpop.f32.mrb[0].mxu0
        %v862 = vadd.f32 %v525, %v861
        %v863 = vpop.f32.mrb[0].mxu0
        %864 = vmatprep.mubr.bf16.mxu0 0
        %865 = vmatmul.mubr.bf16.gmra.mrb[0].mxu0 %v216
        %v866 = vpop.f32.mrb[0].mxu0
        %v867 = vadd.f32 %v530, %v866
        %v868 = vpop.f32.mrb[0].mxu0
        %v869 = vpop.f32.mrb[0].mxu0
        %v870 = vadd.f32 %v533, %v869
        %v871 = vpop.f32.mrb[0].mxu0
        %872 = vmatprep.mubr.bf16.mxu0 0
        %873 = vmatmul.mubr.bf16.gmra.mrb[0].mxu0 %v217
        %v874 = vpop.f32.mrb[0].mxu0
        %v875 = vadd.f32 %v538, %v874
        %v876 = vpop.f32.mrb[0].mxu0
        %v877 = vpop.f32.mrb[0].mxu0
        %v878 = vadd.f32 %v541, %v877
        %v879 = vpop.f32.mrb[0].mxu0
        %880 = vmatprep.mubr.bf16.mxu0 0
        %881 = vmatmul.mubr.bf16.gmra.mrb[0].mxu0 %v218
        %v882 = vpop.f32.mrb[0].mxu0
        %v883 = vadd.f32 %v546, %v882
        %v884 = vpop.f32.mrb[0].mxu0
        %v885 = vpop.f32.mrb[0].mxu0
        %v886 = vadd.f32 %v549, %v885
        %v887 = vpop.f32.mrb[0].mxu0
        %888 = vmatprep.mubr.bf16.mxu0 0
        %889 = vmatmul.mubr.bf16.gmra.mrb[0].mxu0 %v219
        %v890 = vpop.f32.mrb[0].mxu0
        %v891 = vadd.f32 %v554, %v890
        %v892 = vpop.f32.mrb[0].mxu0
        %v893 = vpop.f32.mrb[0].mxu0
        %v894 = vadd.f32 %v557, %v893
        %v895 = vpop.f32.mrb[0].mxu0
        %896 = vmatprep.mubr.bf16.mxu0 0
        %897 = vmatmul.mubr.bf16.gmra.mrb[0].mxu0 %v220
        %v898 = vpop.f32.mrb[0].mxu0
        %v899 = vadd.f32 %v562, %v898
        %v900 = vpop.f32.mrb[0].mxu0
        %v901 = vpop.f32.mrb[0].mxu0
        %v902 = vadd.f32 %v565, %v901
        %v903 = vpop.f32.mrb[0].mxu0
        %904 = vmatprep.mubr.bf16.mxu0 0
        %905 = vmatmul.mubr.bf16.gmra.mrb[0].mxu0 %v221
        %v906 = vpop.f32.mrb[0].mxu0
        %v907 = vadd.f32 %v570, %v906
        %v908 = vpop.f32.mrb[0].mxu0
        %v909 = vpop.f32.mrb[0].mxu0
        %v910 = vadd.f32 %v573, %v909
        %v911 = vpop.f32.mrb[0].mxu0
        %912 = vmatprep.mubr.bf16.mxu0 0
        %913 = vmatmul.mubr.bf16.gmra.mrb[0].mxu0 %v222
        %v914 = vpop.f32.mrb[0].mxu0
        %v915 = vadd.f32 %v578, %v914
        %v916 = vpop.f32.mrb[0].mxu0
        %v917 = vpop.f32.mrb[0].mxu0
        %v918 = vadd.f32 %v581, %v917
        %v919 = vpop.f32.mrb[0].mxu0
        %920 = vmatprep.mubr.bf16.mxu0 0
        %921 = vmatmul.mubr.bf16.gmra.mrb[0].mxu0 %v223
        %v922 = vpop.f32.mrb[0].mxu0
        %v923 = vadd.f32 %v586, %v922
        %v924 = vpop.f32.mrb[0].mxu0
        %v925 = vpop.f32.mrb[0].mxu0
        %v926 = vadd.f32 %v589, %v925
        %v927 = vpop.f32.mrb[0].mxu0
        %928 = vmatprep.mubr.bf16.mxu0 0
        %929 = vmatmul.mubr.bf16.gmra.mrb[0].mxu0 %v224
        %v930 = vpop.f32.mrb[0].mxu0
        %v931 = vadd.f32 %v594, %v930
        %v932 = vpop.f32.mrb[0].mxu0
        %v933 = vpop.f32.mrb[0].mxu0
        %v934 = vadd.f32 %v597, %v933
        %v935 = vpop.f32.mrb[0].mxu0
        %936 = vdwg.mxu0
        %s937 = scalar_lea.vmem [#allocation4], 512
        %v938 = vld [vmem:[%s937] sm:$0xf]
        %v939 = vld [vmem:[%s937 + $0x4] sm:$0xf]
        %v940 = vld [vmem:[%s937 + $0x8] sm:$0xf]
        %v941 = vld [vmem:[%s937 + $0xc] sm:$0xf]
        %v942 = vld [vmem:[%s937 + $0x10] sm:$0xf]
        %v943 = vld [vmem:[%s937 + $0x14] sm:$0xf]
        %v944 = vld [vmem:[%s937 + $0x18] sm:$0xf]
        %v945 = vld [vmem:[%s937 + $0x1c] sm:$0xf]
        %v946 = vld [vmem:[%s937 + $0x20] sm:$0xf]
        %v947 = vld [vmem:[%s937 + $0x24] sm:$0xf]
        %v948 = vld [vmem:[%s937 + $0x28] sm:$0xf]
        %v949 = vld [vmem:[%s937 + $0x2c] sm:$0xf]
        %v950 = vld [vmem:[%s937 + $0x30] sm:$0xf]
        %v951 = vld [vmem:[%s937 + $0x34] sm:$0xf]
        %v952 = vld [vmem:[%s937 + $0x38] sm:$0xf]
        %v953 = vld [vmem:[%s937 + $0x3c] sm:$0xf]
        %v970 = vunpack.c.l.b16 %v938
        %v971 = vunpack.c.l.b16 %v939
        %v972 = vunpack.c.l.b16 %v940
        %v973 = vunpack.c.l.b16 %v941
        %v974 = vunpack.c.l.b16 %v942
        %v975 = vunpack.c.l.b16 %v943
        %v976 = vunpack.c.l.b16 %v944
        %v977 = vunpack.c.l.b16 %v945
        %v978 = vunpack.c.l.b16 %v946
        %v979 = vunpack.c.l.b16 %v947
        %v980 = vunpack.c.l.b16 %v948
        %v981 = vunpack.c.l.b16 %v949
        %v982 = vunpack.c.l.b16 %v950
        %v983 = vunpack.c.l.b16 %v951
        %v984 = vunpack.c.l.b16 %v952
        %v985 = vunpack.c.l.b16 %v953
        %v986 = vpack.c.b16 %v971, %v970
        %v987 = vpack.c.b16 %v973, %v972
        %v988 = vpack.c.b16 %v975, %v974
        %v989 = vpack.c.b16 %v977, %v976
        %v990 = vpack.c.b16 %v979, %v978
        %v991 = vpack.c.b16 %v981, %v980
        %v992 = vpack.c.b16 %v983, %v982
        %v993 = vpack.c.b16 %v985, %v984
        %1002 = vmatprep.subr.bf16.mxu0 0
        %1003 = vmatpush1.bf16.msra.mxu0 %v986
        %1004 = vmatprep.subr.bf16.mxu0 0
        %1005 = vmatpush1.bf16.msra.mxu0 %v987
        %1006 = vmatprep.subr.bf16.mxu0 0
        %1007 = vmatpush1.bf16.msra.mxu0 %v988
        %1008 = vmatprep.subr.bf16.mxu0 0
        %1009 = vmatpush1.bf16.msra.mxu0 %v989
        %1010 = vmatprep.subr.bf16.mxu0 0
        %1011 = vmatpush1.bf16.msra.mxu0 %v990
        %1012 = vmatprep.subr.bf16.mxu0 0
        %1013 = vmatpush1.bf16.msra.mxu0 %v991
        %1014 = vmatprep.subr.bf16.mxu0 0
        %1015 = vmatpush1.bf16.msra.mxu0 %v992
        %1016 = vmatprep.subr.bf16.mxu0 0
        %1017 = vmatpush1.bf16.msra.mxu0 %v993
        %1018 = vmatprep.subr.bf16.mxu0 0
        %1019 = vmatpush1.bf16.msra.mxu0 0
        %1020 = vmatprep.subr.bf16.mxu0 0
        %1021 = vmatpush1.bf16.msra.mxu0 0
        %1022 = vmatprep.subr.bf16.mxu0 0
        %1023 = vmatpush1.bf16.msra.mxu0 0
        %1024 = vmatprep.subr.bf16.mxu0 0
        %1025 = vmatpush1.bf16.msra.mxu0 0
        %1026 = vmatprep.subr.bf16.mxu0 0
        %1027 = vmatpush1.bf16.msra.mxu0 0
        %1028 = vmatprep.subr.bf16.mxu0 0
        %1029 = vmatpush1.bf16.msra.mxu0 0
        %1030 = vmatprep.subr.bf16.mxu0 0
        %1031 = vmatpush1.bf16.msra.mxu0 0
        %1032 = vmatprep.subr.bf16.mxu0 0
        %1033 = vmatpush1.bf16.msra.mxu0 0
        %1034 = vmatprep.mubr.bf16.mxu0 0
        %1035 = vmatmul.mubr.bf16.gmra.mrb[0].mxu0 %v197
        %v1036 = vpop.f32.mrb[0].mxu0
        %v1037 = vadd.f32 0.0, %v1036
        %v1038 = vpop.f32.mrb[0].mxu0
        %v1039 = vpop.f32.mrb[0].mxu0
        %v1040 = vadd.f32 0.0, %v1039
        %v1041 = vpop.f32.mrb[0].mxu0
        %1042 = vmatprep.mubr.bf16.mxu0 0
        %1043 = vmatmul.mubr.bf16.gmra.mrb[0].mxu0 %v198
        %v1044 = vpop.f32.mrb[0].mxu0
        %v1045 = vadd.f32 0.0, %v1044
        %v1046 = vpop.f32.mrb[0].mxu0
        %v1047 = vpop.f32.mrb[0].mxu0
        %v1048 = vadd.f32 0.0, %v1047
        %v1049 = vpop.f32.mrb[0].mxu0
        %1050 = vmatprep.mubr.bf16.mxu0 0
        %1051 = vmatmul.mubr.bf16.gmra.mrb[0].mxu0 %v199
        %v1052 = vpop.f32.mrb[0].mxu0
        %v1053 = vadd.f32 0.0, %v1052
        %v1054 = vpop.f32.mrb[0].mxu0
        %v1055 = vpop.f32.mrb[0].mxu0
        %v1056 = vadd.f32 0.0, %v1055
        %v1057 = vpop.f32.mrb[0].mxu0
        %1058 = vmatprep.mubr.bf16.mxu0 0
        %1059 = vmatmul.mubr.bf16.gmra.mrb[0].mxu0 %v200
        %v1060 = vpop.f32.mrb[0].mxu0
        %v1061 = vadd.f32 0.0, %v1060
        %v1062 = vpop.f32.mrb[0].mxu0
        %v1063 = vpop.f32.mrb[0].mxu0
        %v1064 = vadd.f32 0.0, %v1063
        %v1065 = vpop.f32.mrb[0].mxu0
        %1066 = vmatprep.mubr.bf16.mxu0 0
        %1067 = vmatmul.mubr.bf16.gmra.mrb[0].mxu0 %v201
        %v1068 = vpop.f32.mrb[0].mxu0
        %v1069 = vadd.f32 0.0, %v1068
        %v1070 = vpop.f32.mrb[0].mxu0
        %v1071 = vpop.f32.mrb[0].mxu0
        %v1072 = vadd.f32 0.0, %v1071
        %v1073 = vpop.f32.mrb[0].mxu0
        %1074 = vmatprep.mubr.bf16.mxu0 0
        %1075 = vmatmul.mubr.bf16.gmra.mrb[0].mxu0 %v202
        %v1076 = vpop.f32.mrb[0].mxu0
        %v1077 = vadd.f32 0.0, %v1076
        %v1078 = vpop.f32.mrb[0].mxu0
        %v1079 = vpop.f32.mrb[0].mxu0
        %v1080 = vadd.f32 0.0, %v1079
        %v1081 = vpop.f32.mrb[0].mxu0
        %1082 = vmatprep.mubr.bf16.mxu0 0
        %1083 = vmatmul.mubr.bf16.gmra.mrb[0].mxu0 %v203
        %v1084 = vpop.f32.mrb[0].mxu0
        %v1085 = vadd.f32 0.0, %v1084
        %v1086 = vpop.f32.mrb[0].mxu0
        %v1087 = vpop.f32.mrb[0].mxu0
        %v1088 = vadd.f32 0.0, %v1087
        %v1089 = vpop.f32.mrb[0].mxu0
        %1090 = vmatprep.mubr.bf16.mxu0 0
        %1091 = vmatmul.mubr.bf16.gmra.mrb[0].mxu0 %v204
        %v1092 = vpop.f32.mrb[0].mxu0
        %v1093 = vadd.f32 0.0, %v1092
        %v1094 = vpop.f32.mrb[0].mxu0
        %v1095 = vpop.f32.mrb[0].mxu0
        %v1096 = vadd.f32 0.0, %v1095
        %v1097 = vpop.f32.mrb[0].mxu0
        %1098 = vmatprep.mubr.bf16.mxu0 0
        %1099 = vmatmul.mubr.bf16.gmra.mrb[0].mxu0 %v205
        %v1100 = vpop.f32.mrb[0].mxu0
        %v1101 = vadd.f32 0.0, %v1100
        %v1102 = vpop.f32.mrb[0].mxu0
        %v1103 = vpop.f32.mrb[0].mxu0
        %v1104 = vadd.f32 0.0, %v1103
        %v1105 = vpop.f32.mrb[0].mxu0
        %1106 = vmatprep.mubr.bf16.mxu0 0
        %1107 = vmatmul.mubr.bf16.gmra.mrb[0].mxu0 %v206
        %v1108 = vpop.f32.mrb[0].mxu0
        %v1109 = vadd.f32 0.0, %v1108
        %v1110 = vpop.f32.mrb[0].mxu0
        %v1111 = vpop.f32.mrb[0].mxu0
        %v1112 = vadd.f32 0.0, %v1111
        %v1113 = vpop.f32.mrb[0].mxu0
        %1114 = vmatprep.mubr.bf16.mxu0 0
        %1115 = vmatmul.mubr.bf16.gmra.mrb[0].mxu0 %v207
        %v1116 = vpop.f32.mrb[0].mxu0
        %v1117 = vadd.f32 0.0, %v1116
        %v1118 = vpop.f32.mrb[0].mxu0
        %v1119 = vpop.f32.mrb[0].mxu0
        %v1120 = vadd.f32 0.0, %v1119
        %v1121 = vpop.f32.mrb[0].mxu0
        %1122 = vmatprep.mubr.bf16.mxu0 0
        %1123 = vmatmul.mubr.bf16.gmra.mrb[0].mxu0 %v208
        %v1124 = vpop.f32.mrb[0].mxu0
        %v1125 = vadd.f32 0.0, %v1124
        %v1126 = vpop.f32.mrb[0].mxu0
        %v1127 = vpop.f32.mrb[0].mxu0
        %v1128 = vadd.f32 0.0, %v1127
        %v1129 = vpop.f32.mrb[0].mxu0
        %1130 = vmatprep.mubr.bf16.mxu0 0
        %1131 = vmatmul.mubr.bf16.gmra.mrb[0].mxu0 %v209
        %v1132 = vpop.f32.mrb[0].mxu0
        %v1133 = vadd.f32 0.0, %v1132
        %v1134 = vpop.f32.mrb[0].mxu0
        %v1135 = vpop.f32.mrb[0].mxu0
        %v1136 = vadd.f32 0.0, %v1135
        %v1137 = vpop.f32.mrb[0].mxu0
        %1138 = vmatprep.mubr.bf16.mxu0 0
        %1139 = vmatmul.mubr.bf16.gmra.mrb[0].mxu0 %v210
        %v1140 = vpop.f32.mrb[0].mxu0
        %v1141 = vadd.f32 0.0, %v1140
        %v1142 = vpop.f32.mrb[0].mxu0
        %v1143 = vpop.f32.mrb[0].mxu0
        %v1144 = vadd.f32 0.0, %v1143
        %v1145 = vpop.f32.mrb[0].mxu0
        %1146 = vmatprep.mubr.bf16.mxu0 0
        %1147 = vmatmul.mubr.bf16.gmra.mrb[0].mxu0 %v211
        %v1148 = vpop.f32.mrb[0].mxu0
        %v1149 = vadd.f32 0.0, %v1148
        %v1150 = vpop.f32.mrb[0].mxu0
        %v1151 = vpop.f32.mrb[0].mxu0
        %v1152 = vadd.f32 0.0, %v1151
        %v1153 = vpop.f32.mrb[0].mxu0
        %1154 = vmatprep.mubr.bf16.mxu0 0
        %1155 = vmatmul.mubr.bf16.gmra.mrb[0].mxu0 %v212
        %v1156 = vpop.f32.mrb[0].mxu0
        %v1157 = vadd.f32 0.0, %v1156
        %v1158 = vpop.f32.mrb[0].mxu0
        %v1159 = vpop.f32.mrb[0].mxu0
        %v1160 = vadd.f32 0.0, %v1159
        %v1161 = vpop.f32.mrb[0].mxu0
        %1162 = vmatprep.mubr.bf16.mxu0 0
        %1163 = vmatmul.mubr.bf16.gmra.mrb[0].mxu0 %v213
        %v1164 = vpop.f32.mrb[0].mxu0
        %v1165 = vadd.f32 0.0, %v1164
        %v1166 = vpop.f32.mrb[0].mxu0
        %v1167 = vpop.f32.mrb[0].mxu0
        %v1168 = vadd.f32 0.0, %v1167
        %v1169 = vpop.f32.mrb[0].mxu0
        %1170 = vmatprep.mubr.bf16.mxu0 0
        %1171 = vmatmul.mubr.bf16.gmra.mrb[0].mxu0 %v214
        %v1172 = vpop.f32.mrb[0].mxu0
        %v1173 = vadd.f32 0.0, %v1172
        %v1174 = vpop.f32.mrb[0].mxu0
        %v1175 = vpop.f32.mrb[0].mxu0
        %v1176 = vadd.f32 0.0, %v1175
        %v1177 = vpop.f32.mrb[0].mxu0
        %1178 = vmatprep.mubr.bf16.mxu0 0
        %1179 = vmatmul.mubr.bf16.gmra.mrb[0].mxu0 %v215
        %v1180 = vpop.f32.mrb[0].mxu0
        %v1181 = vadd.f32 0.0, %v1180
        %v1182 = vpop.f32.mrb[0].mxu0
        %v1183 = vpop.f32.mrb[0].mxu0
        %v1184 = vadd.f32 0.0, %v1183
        %v1185 = vpop.f32.mrb[0].mxu0
        %1186 = vmatprep.mubr.bf16.mxu0 0
        %1187 = vmatmul.mubr.bf16.gmra.mrb[0].mxu0 %v216
        %v1188 = vpop.f32.mrb[0].mxu0
        %v1189 = vadd.f32 0.0, %v1188
        %v1190 = vpop.f32.mrb[0].mxu0
        %v1191 = vpop.f32.mrb[0].mxu0
        %v1192 = vadd.f32 0.0, %v1191
        %v1193 = vpop.f32.mrb[0].mxu0
        %1194 = vmatprep.mubr.bf16.mxu0 0
        %1195 = vmatmul.mubr.bf16.gmra.mrb[0].mxu0 %v217
        %v1196 = vpop.f32.mrb[0].mxu0
        %v1197 = vadd.f32 0.0, %v1196
        %v1198 = vpop.f32.mrb[0].mxu0
        %v1199 = vpop.f32.mrb[0].mxu0
        %v1200 = vadd.f32 0.0, %v1199
        %v1201 = vpop.f32.mrb[0].mxu0
        %1202 = vmatprep.mubr.bf16.mxu0 0
        %1203 = vmatmul.mubr.bf16.gmra.mrb[0].mxu0 %v218
        %v1204 = vpop.f32.mrb[0].mxu0
        %v1205 = vadd.f32 0.0, %v1204
        %v1206 = vpop.f32.mrb[0].mxu0
        %v1207 = vpop.f32.mrb[0].mxu0
        %v1208 = vadd.f32 0.0, %v1207
        %v1209 = vpop.f32.mrb[0].mxu0
        %1210 = vmatprep.mubr.bf16.mxu0 0
        %1211 = vmatmul.mubr.bf16.gmra.mrb[0].mxu0 %v219
        %v1212 = vpop.f32.mrb[0].mxu0
        %v1213 = vadd.f32 0.0, %v1212
        %v1214 = vpop.f32.mrb[0].mxu0
        %v1215 = vpop.f32.mrb[0].mxu0
        %v1216 = vadd.f32 0.0, %v1215
        %v1217 = vpop.f32.mrb[0].mxu0
        %1218 = vmatprep.mubr.bf16.mxu0 0
        %1219 = vmatmul.mubr.bf16.gmra.mrb[0].mxu0 %v220
        %v1220 = vpop.f32.mrb[0].mxu0
        %v1221 = vadd.f32 0.0, %v1220
        %v1222 = vpop.f32.mrb[0].mxu0
        %v1223 = vpop.f32.mrb[0].mxu0
        %v1224 = vadd.f32 0.0, %v1223
        %v1225 = vpop.f32.mrb[0].mxu0
        %1226 = vmatprep.mubr.bf16.mxu0 0
        %1227 = vmatmul.mubr.bf16.gmra.mrb[0].mxu0 %v221
        %v1228 = vpop.f32.mrb[0].mxu0
        %v1229 = vadd.f32 0.0, %v1228
        %v1230 = vpop.f32.mrb[0].mxu0
        %v1231 = vpop.f32.mrb[0].mxu0
        %v1232 = vadd.f32 0.0, %v1231
        %v1233 = vpop.f32.mrb[0].mxu0
        %1234 = vmatprep.mubr.bf16.mxu0 0
        %1235 = vmatmul.mubr.bf16.gmra.mrb[0].mxu0 %v222
        %v1236 = vpop.f32.mrb[0].mxu0
        %v1237 = vadd.f32 0.0, %v1236
        %v1238 = vpop.f32.mrb[0].mxu0
        %v1239 = vpop.f32.mrb[0].mxu0
        %v1240 = vadd.f32 0.0, %v1239
        %v1241 = vpop.f32.mrb[0].mxu0
        %1242 = vmatprep.mubr.bf16.mxu0 0
        %1243 = vmatmul.mubr.bf16.gmra.mrb[0].mxu0 %v223
        %v1244 = vpop.f32.mrb[0].mxu0
        %v1245 = vadd.f32 0.0, %v1244
        %v1246 = vpop.f32.mrb[0].mxu0
        %v1247 = vpop.f32.mrb[0].mxu0
        %v1248 = vadd.f32 0.0, %v1247
        %v1249 = vpop.f32.mrb[0].mxu0
        %1250 = vmatprep.mubr.bf16.mxu0 0
        %1251 = vmatmul.mubr.bf16.gmra.mrb[0].mxu0 %v224
        %v1252 = vpop.f32.mrb[0].mxu0
        %v1253 = vadd.f32 0.0, %v1252
        %v1254 = vpop.f32.mrb[0].mxu0
        %v1255 = vpop.f32.mrb[0].mxu0
        %v1256 = vadd.f32 0.0, %v1255
        %v1257 = vpop.f32.mrb[0].mxu0
        %1258 = vmatprep.mubr.bf16.mxu0 0
        %1259 = vmatmul.mubr.bf16.gmra.mrb[0].mxu0 %v225
        %v1260 = vpop.f32.mrb[0].mxu0
        %v1261 = vadd.f32 0.0, %v1260
        %v1262 = vpop.f32.mrb[0].mxu0
        %v1263 = vpop.f32.mrb[0].mxu0
        %v1264 = vadd.f32 0.0, %v1263
        %v1265 = vpop.f32.mrb[0].mxu0
        %1266 = vmatprep.mubr.bf16.mxu0 0
        %1267 = vmatmul.mubr.bf16.gmra.mrb[0].mxu0 %v226
        %v1268 = vpop.f32.mrb[0].mxu0
        %v1269 = vadd.f32 0.0, %v1268
        %v1270 = vpop.f32.mrb[0].mxu0
        %v1271 = vpop.f32.mrb[0].mxu0
        %v1272 = vadd.f32 0.0, %v1271
        %v1273 = vpop.f32.mrb[0].mxu0
        %1274 = vmatprep.mubr.bf16.mxu0 0
        %1275 = vmatmul.mubr.bf16.gmra.mrb[0].mxu0 %v227
        %v1276 = vpop.f32.mrb[0].mxu0
        %v1277 = vadd.f32 0.0, %v1276
        %v1278 = vpop.f32.mrb[0].mxu0
        %v1279 = vpop.f32.mrb[0].mxu0
        %v1280 = vadd.f32 0.0, %v1279
        %v1281 = vpop.f32.mrb[0].mxu0
        %1282 = vmatprep.mubr.bf16.mxu0 0
        %1283 = vmatmul.mubr.bf16.gmra.mrb[0].mxu0 %v228
        %v1284 = vpop.f32.mrb[0].mxu0
        %v1285 = vadd.f32 0.0, %v1284
        %v1286 = vpop.f32.mrb[0].mxu0
        %v1287 = vpop.f32.mrb[0].mxu0
        %v1288 = vadd.f32 0.0, %v1287
        %v1289 = vpop.f32.mrb[0].mxu0
        %1290 = vdwg.mxu0
        %v1291 = vadd.f32 %v683, %v1037
        %v1292 = vadd.f32 %v686, %v1040
        %v1293 = vadd.f32 %v691, %v1045
        %v1294 = vadd.f32 %v694, %v1048
        %v1295 = vadd.f32 %v699, %v1053
        %v1296 = vadd.f32 %v702, %v1056
        %v1297 = vadd.f32 %v707, %v1061
        %v1298 = vadd.f32 %v710, %v1064
        %v1299 = vadd.f32 %v715, %v1069
        %v1300 = vadd.f32 %v718, %v1072
        %v1301 = vadd.f32 %v723, %v1077
        %v1302 = vadd.f32 %v726, %v1080
        %v1303 = vadd.f32 %v731, %v1085
        %v1304 = vadd.f32 %v734, %v1088
        %v1305 = vadd.f32 %v739, %v1093
        %v1306 = vadd.f32 %v742, %v1096
        %v1307 = vadd.f32 %v747, %v1101
        %v1308 = vadd.f32 %v750, %v1104
        %v1309 = vadd.f32 %v755, %v1109
        %v1310 = vadd.f32 %v758, %v1112
        %v1311 = vadd.f32 %v763, %v1117
        %v1312 = vadd.f32 %v766, %v1120
        %v1313 = vadd.f32 %v771, %v1125
        %v1314 = vadd.f32 %v774, %v1128
        %v1315 = vadd.f32 %v779, %v1133
        %v1316 = vadd.f32 %v782, %v1136
        %v1317 = vadd.f32 %v787, %v1141
        %v1318 = vadd.f32 %v790, %v1144
        %v1319 = vadd.f32 %v795, %v1149
        %v1320 = vadd.f32 %v798, %v1152
        %v1321 = vadd.f32 %v803, %v1157
        %v1322 = vadd.f32 %v806, %v1160
        %v1323 = vadd.f32 %v811, %v1165
        %v1324 = vadd.f32 %v814, %v1168
        %v1325 = vadd.f32 %v819, %v1173
        %v1326 = vadd.f32 %v822, %v1176
        %v1327 = vadd.f32 %v827, %v1181
        %v1328 = vadd.f32 %v830, %v1184
        %v1329 = vadd.f32 %v835, %v1189
        %v1330 = vadd.f32 %v838, %v1192
        %v1331 = vadd.f32 %v843, %v1197
        %v1332 = vadd.f32 %v846, %v1200
        %v1333 = vadd.f32 %v851, %v1205
        %v1334 = vadd.f32 %v854, %v1208
        %v1335 = vadd.f32 %v859, %v1213
        %v1336 = vadd.f32 %v862, %v1216
        %v1337 = vadd.f32 %v867, %v1221
        %v1338 = vadd.f32 %v870, %v1224
        %v1339 = vadd.f32 %v875, %v1229
        %v1340 = vadd.f32 %v878, %v1232
        %v1341 = vadd.f32 %v883, %v1237
        %v1342 = vadd.f32 %v886, %v1240
        %v1343 = vadd.f32 %v891, %v1245
        %v1344 = vadd.f32 %v894, %v1248
        %v1345 = vadd.f32 %v899, %v1253
        %v1346 = vadd.f32 %v902, %v1256
        %v1347 = vadd.f32 %v907, %v1261
        %v1348 = vadd.f32 %v910, %v1264
        %v1349 = vadd.f32 %v915, %v1269
        %v1350 = vadd.f32 %v918, %v1272
        %v1351 = vadd.f32 %v923, %v1277
        %v1352 = vadd.f32 %v926, %v1280
        %v1353 = vadd.f32 %v931, %v1285
        %v1354 = vadd.f32 %v934, %v1288
        %v1355 = vrot.slane %v1291, 1
        %v1356 = vrot.slane %v1292, 1
        %v1357 = vrot.slane %v1293, 1
        %v1358 = vrot.slane %v1294, 1
        %v1359 = vrot.slane %v1295, 1
        %v1360 = vrot.slane %v1296, 1
        %v1361 = vrot.slane %v1297, 1
        %v1362 = vrot.slane %v1298, 1
        %v1363 = vrot.slane %v1299, 1
        %v1364 = vrot.slane %v1300, 1
        %v1365 = vrot.slane %v1301, 1
        %v1366 = vrot.slane %v1302, 1
        %v1367 = vrot.slane %v1303, 1
        %v1368 = vrot.slane %v1304, 1
        %v1369 = vrot.slane %v1305, 1
        %v1370 = vrot.slane %v1306, 1
        %v1371 = vrot.slane %v1307, 1
        %v1372 = vrot.slane %v1308, 1
        %v1373 = vrot.slane %v1309, 1
        %v1374 = vrot.slane %v1310, 1
        %v1375 = vrot.slane %v1311, 1
        %v1376 = vrot.slane %v1312, 1
        %v1377 = vrot.slane %v1313, 1
        %v1378 = vrot.slane %v1314, 1
        %v1379 = vrot.slane %v1315, 1
        %v1380 = vrot.slane %v1316, 1
        %v1381 = vrot.slane %v1317, 1
        %v1382 = vrot.slane %v1318, 1
        %v1383 = vrot.slane %v1319, 1
        %v1384 = vrot.slane %v1320, 1
        %v1385 = vrot.slane %v1321, 1
        %v1386 = vrot.slane %v1322, 1
        %v1387 = vrot.slane %v1323, 1
        %v1388 = vrot.slane %v1324, 1
        %v1389 = vrot.slane %v1325, 1
        %v1390 = vrot.slane %v1326, 1
        %v1391 = vrot.slane %v1327, 1
        %v1392 = vrot.slane %v1328, 1
        %v1393 = vrot.slane %v1329, 1
        %v1394 = vrot.slane %v1330, 1
        %v1395 = vrot.slane %v1331, 1
        %v1396 = vrot.slane %v1332, 1
        %v1397 = vrot.slane %v1333, 1
        %v1398 = vrot.slane %v1334, 1
        %v1399 = vrot.slane %v1335, 1
        %v1400 = vrot.slane %v1336, 1
        %v1401 = vrot.slane %v1337, 1
        %v1402 = vrot.slane %v1338, 1
        %v1403 = vrot.slane %v1339, 1
        %v1404 = vrot.slane %v1340, 1
        %v1405 = vrot.slane %v1341, 1
        %v1406 = vrot.slane %v1342, 1
        %v1407 = vrot.slane %v1343, 1
        %v1408 = vrot.slane %v1344, 1
        %v1409 = vrot.slane %v1345, 1
        %v1410 = vrot.slane %v1346, 1
        %v1411 = vrot.slane %v1347, 1
        %v1412 = vrot.slane %v1348, 1
        %v1413 = vrot.slane %v1349, 1
        %v1414 = vrot.slane %v1350, 1
        %v1415 = vrot.slane %v1351, 1
        %v1416 = vrot.slane %v1352, 1
        %v1417 = vrot.slane %v1353, 1
        %v1418 = vrot.slane %v1354, 1
        %v1419 = vlaneseq
        %v1420 = vshrl.u32 %v1419, 7
        %vm1421 = vcmp.lt.s32.totalorder %v1420, 7
        %v1422 = vsel %vm1421, %v1417, %v1418
        %v1423 = vsel %vm1421, %v1416, %v1417
        %v1424 = vsel %vm1421, %v1415, %v1416
        %v1425 = vsel %vm1421, %v1414, %v1415
        %v1426 = vsel %vm1421, %v1413, %v1414
        %v1427 = vsel %vm1421, %v1412, %v1413
        %v1428 = vsel %vm1421, %v1411, %v1412
        %v1429 = vsel %vm1421, %v1410, %v1411
        %v1430 = vsel %vm1421, %v1409, %v1410
        %v1431 = vsel %vm1421, %v1408, %v1409
        %v1432 = vsel %vm1421, %v1407, %v1408
        %v1433 = vsel %vm1421, %v1406, %v1407
        %v1434 = vsel %vm1421, %v1405, %v1406
        %v1435 = vsel %vm1421, %v1404, %v1405
        %v1436 = vsel %vm1421, %v1403, %v1404
        %v1437 = vsel %vm1421, %v1402, %v1403
        %v1438 = vsel %vm1421, %v1401, %v1402
        %v1439 = vsel %vm1421, %v1400, %v1401
        %v1440 = vsel %vm1421, %v1399, %v1400
        %v1441 = vsel %vm1421, %v1398, %v1399
        %v1442 = vsel %vm1421, %v1397, %v1398
        %v1443 = vsel %vm1421, %v1396, %v1397
        %v1444 = vsel %vm1421, %v1395, %v1396
        %v1445 = vsel %vm1421, %v1394, %v1395
        %v1446 = vsel %vm1421, %v1393, %v1394
        %v1447 = vsel %vm1421, %v1392, %v1393
        %v1448 = vsel %vm1421, %v1391, %v1392
        %v1449 = vsel %vm1421, %v1390, %v1391
        %v1450 = vsel %vm1421, %v1389, %v1390
        %v1451 = vsel %vm1421, %v1388, %v1389
        %v1452 = vsel %vm1421, %v1387, %v1388
        %v1453 = vsel %vm1421, %v1386, %v1387
        %v1454 = vsel %vm1421, %v1385, %v1386
        %v1455 = vsel %vm1421, %v1384, %v1385
        %v1456 = vsel %vm1421, %v1383, %v1384
        %v1457 = vsel %vm1421, %v1382, %v1383
        %v1458 = vsel %vm1421, %v1381, %v1382
        %v1459 = vsel %vm1421, %v1380, %v1381
        %v1460 = vsel %vm1421, %v1379, %v1380
        %v1461 = vsel %vm1421, %v1378, %v1379
        %v1462 = vsel %vm1421, %v1377, %v1378
        %v1463 = vsel %vm1421, %v1376, %v1377
        %v1464 = vsel %vm1421, %v1375, %v1376
        %v1465 = vsel %vm1421, %v1374, %v1375
        %v1466 = vsel %vm1421, %v1373, %v1374
        %v1467 = vsel %vm1421, %v1372, %v1373
        %v1468 = vsel %vm1421, %v1371, %v1372
        %v1469 = vsel %vm1421, %v1370, %v1371
        %v1470 = vsel %vm1421, %v1369, %v1370
        %v1471 = vsel %vm1421, %v1368, %v1369
        %v1472 = vsel %vm1421, %v1367, %v1368
        %v1473 = vsel %vm1421, %v1366, %v1367
        %v1474 = vsel %vm1421, %v1365, %v1366
        %v1475 = vsel %vm1421, %v1364, %v1365
        %v1476 = vsel %vm1421, %v1363, %v1364
        %v1477 = vsel %vm1421, %v1362, %v1363
        %v1478 = vsel %vm1421, %v1361, %v1362
        %v1479 = vsel %vm1421, %v1360, %v1361
        %v1480 = vsel %vm1421, %v1359, %v1360
        %v1481 = vsel %vm1421, %v1358, %v1359
        %v1482 = vsel %vm1421, %v1357, %v1358
        %v1483 = vsel %vm1421, %v1356, %v1357
        %v1484 = vsel %vm1421, %v1355, %v1356
        %v1485 = vsel %vm1421, %v1418, %v1355
        %s1486 = scalar_lea.vmem [#allocation4], 64
        %v1487 = vld [vmem:[%s1486] sm:$0xf]
        %v1488 = vld [vmem:[%s1486 + $0x4] sm:$0xf]
        %v1489 = vld [vmem:[%s1486 + $0x8] sm:$0xf]
        %v1490 = vld [vmem:[%s1486 + $0xc] sm:$0xf]
        %v1491 = vld [vmem:[%s1486 + $0x10] sm:$0xf]
        %v1492 = vld [vmem:[%s1486 + $0x14] sm:$0xf]
        %v1493 = vld [vmem:[%s1486 + $0x18] sm:$0xf]
        %v1494 = vld [vmem:[%s1486 + $0x1c] sm:$0xf]
        %v1495 = vld [vmem:[%s1486 + $0x20] sm:$0xf]
        %v1496 = vld [vmem:[%s1486 + $0x24] sm:$0xf]
        %v1497 = vld [vmem:[%s1486 + $0x28] sm:$0xf]
        %v1498 = vld [vmem:[%s1486 + $0x2c] sm:$0xf]
        %v1499 = vld [vmem:[%s1486 + $0x30] sm:$0xf]
        %v1500 = vld [vmem:[%s1486 + $0x34] sm:$0xf]
        %v1501 = vld [vmem:[%s1486 + $0x38] sm:$0xf]
        %v1502 = vld [vmem:[%s1486 + $0x3c] sm:$0xf]
        %v1519 = vunpack.c.l.b16 %v1487
        %v1520 = vunpack.c.l.b16 %v1488
        %v1521 = vunpack.c.l.b16 %v1489
        %v1522 = vunpack.c.l.b16 %v1490
        %v1523 = vunpack.c.l.b16 %v1491
        %v1524 = vunpack.c.l.b16 %v1492
        %v1525 = vunpack.c.l.b16 %v1493
        %v1526 = vunpack.c.l.b16 %v1494
        %v1527 = vunpack.c.l.b16 %v1495
        %v1528 = vunpack.c.l.b16 %v1496
        %v1529 = vunpack.c.l.b16 %v1497
        %v1530 = vunpack.c.l.b16 %v1498
        %v1531 = vunpack.c.l.b16 %v1499
        %v1532 = vunpack.c.l.b16 %v1500
        %v1533 = vunpack.c.l.b16 %v1501
        %v1534 = vunpack.c.l.b16 %v1502
        %v1535 = vpack.c.b16 %v1520, %v1519
        %v1536 = vpack.c.b16 %v1522, %v1521
        %v1537 = vpack.c.b16 %v1524, %v1523
        %v1538 = vpack.c.b16 %v1526, %v1525
        %v1539 = vpack.c.b16 %v1528, %v1527
        %v1540 = vpack.c.b16 %v1530, %v1529
        %v1541 = vpack.c.b16 %v1532, %v1531
        %v1542 = vpack.c.b16 %v1534, %v1533
        %1551 = vmatprep.subr.bf16.mxu0 0
        %1552 = vmatpush1.bf16.msra.mxu0 %v1535
        %1553 = vmatprep.subr.bf16.mxu0 0
        %1554 = vmatpush1.bf16.msra.mxu0 %v1536
        %1555 = vmatprep.subr.bf16.mxu0 0
        %1556 = vmatpush1.bf16.msra.mxu0 %v1537
        %1557 = vmatprep.subr.bf16.mxu0 0
        %1558 = vmatpush1.bf16.msra.mxu0 %v1538
        %1559 = vmatprep.subr.bf16.mxu0 0
        %1560 = vmatpush1.bf16.msra.mxu0 %v1539
        %1561 = vmatprep.subr.bf16.mxu0 0
        %1562 = vmatpush1.bf16.msra.mxu0 %v1540
        %1563 = vmatprep.subr.bf16.mxu0 0
        %1564 = vmatpush1.bf16.msra.mxu0 %v1541
        %1565 = vmatprep.subr.bf16.mxu0 0
        %1566 = vmatpush1.bf16.msra.mxu0 %v1542
        %1567 = vmatprep.subr.bf16.mxu0 0
        %1568 = vmatpush1.bf16.msra.mxu0 0
        %1569 = vmatprep.subr.bf16.mxu0 0
        %1570 = vmatpush1.bf16.msra.mxu0 0
        %1571 = vmatprep.subr.bf16.mxu0 0
        %1572 = vmatpush1.bf16.msra.mxu0 0
        %1573 = vmatprep.subr.bf16.mxu0 0
        %1574 = vmatpush1.bf16.msra.mxu0 0
        %1575 = vmatprep.subr.bf16.mxu0 0
        %1576 = vmatpush1.bf16.msra.mxu0 0
        %1577 = vmatprep.subr.bf16.mxu0 0
        %1578 = vmatpush1.bf16.msra.mxu0 0
        %1579 = vmatprep.subr.bf16.mxu0 0
        %1580 = vmatpush1.bf16.msra.mxu0 0
        %1581 = vmatprep.subr.bf16.mxu0 0
        %1582 = vmatpush1.bf16.msra.mxu0 0
        %1583 = vmatprep.mubr.bf16.mxu0 0
        %1584 = vmatmul.mubr.bf16.gmra.mrb[0].mxu0 %v193
        %v1585 = vpop.f32.mrb[0].mxu0
        %v1586 = vadd.f32 0.0, %v1585
        %v1587 = vpop.f32.mrb[0].mxu0
        %v1588 = vpop.f32.mrb[0].mxu0
        %v1589 = vadd.f32 0.0, %v1588
        %v1590 = vpop.f32.mrb[0].mxu0
        %1591 = vmatprep.mubr.bf16.mxu0 0
        %1592 = vmatmul.mubr.bf16.gmra.mrb[0].mxu0 %v194
        %v1593 = vpop.f32.mrb[0].mxu0
        %v1594 = vadd.f32 0.0, %v1593
        %v1595 = vpop.f32.mrb[0].mxu0
        %v1596 = vpop.f32.mrb[0].mxu0
        %v1597 = vadd.f32 0.0, %v1596
        %v1598 = vpop.f32.mrb[0].mxu0
        %1599 = vmatprep.mubr.bf16.mxu0 0
        %1600 = vmatmul.mubr.bf16.gmra.mrb[0].mxu0 %v195
        %v1601 = vpop.f32.mrb[0].mxu0
        %v1602 = vadd.f32 0.0, %v1601
        %v1603 = vpop.f32.mrb[0].mxu0
        %v1604 = vpop.f32.mrb[0].mxu0
        %v1605 = vadd.f32 0.0, %v1604
        %v1606 = vpop.f32.mrb[0].mxu0
        %1607 = vmatprep.mubr.bf16.mxu0 0
        %1608 = vmatmul.mubr.bf16.gmra.mrb[0].mxu0 %v196
        %v1609 = vpop.f32.mrb[0].mxu0
        %v1610 = vadd.f32 0.0, %v1609
        %v1611 = vpop.f32.mrb[0].mxu0
        %v1612 = vpop.f32.mrb[0].mxu0
        %v1613 = vadd.f32 0.0, %v1612
        %v1614 = vpop.f32.mrb[0].mxu0
        %1615 = vmatprep.mubr.bf16.mxu0 0
        %1616 = vmatmul.mubr.bf16.gmra.mrb[0].mxu0 %v197
        %v1617 = vpop.f32.mrb[0].mxu0
        %v1618 = vadd.f32 0.0, %v1617
        %v1619 = vpop.f32.mrb[0].mxu0
        %v1620 = vpop.f32.mrb[0].mxu0
        %v1621 = vadd.f32 0.0, %v1620
        %v1622 = vpop.f32.mrb[0].mxu0
        %1623 = vmatprep.mubr.bf16.mxu0 0
        %1624 = vmatmul.mubr.bf16.gmra.mrb[0].mxu0 %v198
        %v1625 = vpop.f32.mrb[0].mxu0
        %v1626 = vadd.f32 0.0, %v1625
        %v1627 = vpop.f32.mrb[0].mxu0
        %v1628 = vpop.f32.mrb[0].mxu0
        %v1629 = vadd.f32 0.0, %v1628
        %v1630 = vpop.f32.mrb[0].mxu0
        %1631 = vmatprep.mubr.bf16.mxu0 0
        %1632 = vmatmul.mubr.bf16.gmra.mrb[0].mxu0 %v199
        %v1633 = vpop.f32.mrb[0].mxu0
        %v1634 = vadd.f32 0.0, %v1633
        %v1635 = vpop.f32.mrb[0].mxu0
        %v1636 = vpop.f32.mrb[0].mxu0
        %v1637 = vadd.f32 0.0, %v1636
        %v1638 = vpop.f32.mrb[0].mxu0
        %1639 = vmatprep.mubr.bf16.mxu0 0
        %1640 = vmatmul.mubr.bf16.gmra.mrb[0].mxu0 %v200
        %v1641 = vpop.f32.mrb[0].mxu0
        %v1642 = vadd.f32 0.0, %v1641
        %v1643 = vpop.f32.mrb[0].mxu0
        %v1644 = vpop.f32.mrb[0].mxu0
        %v1645 = vadd.f32 0.0, %v1644
        %v1646 = vpop.f32.mrb[0].mxu0
        %1647 = vmatprep.mubr.bf16.mxu0 0
        %1648 = vmatmul.mubr.bf16.gmra.mrb[0].mxu0 %v201
        %v1649 = vpop.f32.mrb[0].mxu0
        %v1650 = vadd.f32 0.0, %v1649
        %v1651 = vpop.f32.mrb[0].mxu0
        %v1652 = vpop.f32.mrb[0].mxu0
        %v1653 = vadd.f32 0.0, %v1652
        %v1654 = vpop.f32.mrb[0].mxu0
        %1655 = vmatprep.mubr.bf16.mxu0 0
        %1656 = vmatmul.mubr.bf16.gmra.mrb[0].mxu0 %v202
        %v1657 = vpop.f32.mrb[0].mxu0
        %v1658 = vadd.f32 0.0, %v1657
        %v1659 = vpop.f32.mrb[0].mxu0
        %v1660 = vpop.f32.mrb[0].mxu0
        %v1661 = vadd.f32 0.0, %v1660
        %v1662 = vpop.f32.mrb[0].mxu0
        %1663 = vmatprep.mubr.bf16.mxu0 0
        %1664 = vmatmul.mubr.bf16.gmra.mrb[0].mxu0 %v203
        %v1665 = vpop.f32.mrb[0].mxu0
        %v1666 = vadd.f32 0.0, %v1665
        %v1667 = vpop.f32.mrb[0].mxu0
        %v1668 = vpop.f32.mrb[0].mxu0
        %v1669 = vadd.f32 0.0, %v1668
        %v1670 = vpop.f32.mrb[0].mxu0
        %1671 = vmatprep.mubr.bf16.mxu0 0
        %1672 = vmatmul.mubr.bf16.gmra.mrb[0].mxu0 %v204
        %v1673 = vpop.f32.mrb[0].mxu0
        %v1674 = vadd.f32 0.0, %v1673
        %v1675 = vpop.f32.mrb[0].mxu0
        %v1676 = vpop.f32.mrb[0].mxu0
        %v1677 = vadd.f32 0.0, %v1676
        %v1678 = vpop.f32.mrb[0].mxu0
        %1679 = vmatprep.mubr.bf16.mxu0 0
        %1680 = vmatmul.mubr.bf16.gmra.mrb[0].mxu0 %v205
        %v1681 = vpop.f32.mrb[0].mxu0
        %v1682 = vadd.f32 0.0, %v1681
        %v1683 = vpop.f32.mrb[0].mxu0
        %v1684 = vpop.f32.mrb[0].mxu0
        %v1685 = vadd.f32 0.0, %v1684
        %v1686 = vpop.f32.mrb[0].mxu0
        %1687 = vmatprep.mubr.bf16.mxu0 0
        %1688 = vmatmul.mubr.bf16.gmra.mrb[0].mxu0 %v206
        %v1689 = vpop.f32.mrb[0].mxu0
        %v1690 = vadd.f32 0.0, %v1689
        %v1691 = vpop.f32.mrb[0].mxu0
        %v1692 = vpop.f32.mrb[0].mxu0
        %v1693 = vadd.f32 0.0, %v1692
        %v1694 = vpop.f32.mrb[0].mxu0
        %1695 = vmatprep.mubr.bf16.mxu0 0
        %1696 = vmatmul.mubr.bf16.gmra.mrb[0].mxu0 %v207
        %v1697 = vpop.f32.mrb[0].mxu0
        %v1698 = vadd.f32 0.0, %v1697
        %v1699 = vpop.f32.mrb[0].mxu0
        %v1700 = vpop.f32.mrb[0].mxu0
        %v1701 = vadd.f32 0.0, %v1700
        %v1702 = vpop.f32.mrb[0].mxu0
        %1703 = vmatprep.mubr.bf16.mxu0 0
        %1704 = vmatmul.mubr.bf16.gmra.mrb[0].mxu0 %v208
        %v1705 = vpop.f32.mrb[0].mxu0
        %v1706 = vadd.f32 0.0, %v1705
        %v1707 = vpop.f32.mrb[0].mxu0
        %v1708 = vpop.f32.mrb[0].mxu0
        %v1709 = vadd.f32 0.0, %v1708
        %v1710 = vpop.f32.mrb[0].mxu0
        %1711 = vmatprep.mubr.bf16.mxu0 0
        %1712 = vmatmul.mubr.bf16.gmra.mrb[0].mxu0 %v209
        %v1713 = vpop.f32.mrb[0].mxu0
        %v1714 = vadd.f32 0.0, %v1713
        %v1715 = vpop.f32.mrb[0].mxu0
        %v1716 = vpop.f32.mrb[0].mxu0
        %v1717 = vadd.f32 0.0, %v1716
        %v1718 = vpop.f32.mrb[0].mxu0
        %1719 = vmatprep.mubr.bf16.mxu0 0
        %1720 = vmatmul.mubr.bf16.gmra.mrb[0].mxu0 %v210
        %v1721 = vpop.f32.mrb[0].mxu0
        %v1722 = vadd.f32 0.0, %v1721
        %v1723 = vpop.f32.mrb[0].mxu0
        %v1724 = vpop.f32.mrb[0].mxu0
        %v1725 = vadd.f32 0.0, %v1724
        %v1726 = vpop.f32.mrb[0].mxu0
        %1727 = vmatprep.mubr.bf16.mxu0 0
        %1728 = vmatmul.mubr.bf16.gmra.mrb[0].mxu0 %v211
        %v1729 = vpop.f32.mrb[0].mxu0
        %v1730 = vadd.f32 0.0, %v1729
        %v1731 = vpop.f32.mrb[0].mxu0
        %v1732 = vpop.f32.mrb[0].mxu0
        %v1733 = vadd.f32 0.0, %v1732
        %v1734 = vpop.f32.mrb[0].mxu0
        %1735 = vmatprep.mubr.bf16.mxu0 0
        %1736 = vmatmul.mubr.bf16.gmra.mrb[0].mxu0 %v212
        %v1737 = vpop.f32.mrb[0].mxu0
        %v1738 = vadd.f32 0.0, %v1737
        %v1739 = vpop.f32.mrb[0].mxu0
        %v1740 = vpop.f32.mrb[0].mxu0
        %v1741 = vadd.f32 0.0, %v1740
        %v1742 = vpop.f32.mrb[0].mxu0
        %1743 = vmatprep.mubr.bf16.mxu0 0
        %1744 = vmatmul.mubr.bf16.gmra.mrb[0].mxu0 %v213
        %v1745 = vpop.f32.mrb[0].mxu0
        %v1746 = vadd.f32 0.0, %v1745
        %v1747 = vpop.f32.mrb[0].mxu0
        %v1748 = vpop.f32.mrb[0].mxu0
        %v1749 = vadd.f32 0.0, %v1748
        %v1750 = vpop.f32.mrb[0].mxu0
        %1751 = vmatprep.mubr.bf16.mxu0 0
        %1752 = vmatmul.mubr.bf16.gmra.mrb[0].mxu0 %v214
        %v1753 = vpop.f32.mrb[0].mxu0
        %v1754 = vadd.f32 0.0, %v1753
        %v1755 = vpop.f32.mrb[0].mxu0
        %v1756 = vpop.f32.mrb[0].mxu0
        %v1757 = vadd.f32 0.0, %v1756
        %v1758 = vpop.f32.mrb[0].mxu0
        %1759 = vmatprep.mubr.bf16.mxu0 0
        %1760 = vmatmul.mubr.bf16.gmra.mrb[0].mxu0 %v215
        %v1761 = vpop.f32.mrb[0].mxu0
        %v1762 = vadd.f32 0.0, %v1761
        %v1763 = vpop.f32.mrb[0].mxu0
        %v1764 = vpop.f32.mrb[0].mxu0
        %v1765 = vadd.f32 0.0, %v1764
        %v1766 = vpop.f32.mrb[0].mxu0
        %1767 = vmatprep.mubr.bf16.mxu0 0
        %1768 = vmatmul.mubr.bf16.gmra.mrb[0].mxu0 %v216
        %v1769 = vpop.f32.mrb[0].mxu0
        %v1770 = vadd.f32 0.0, %v1769
        %v1771 = vpop.f32.mrb[0].mxu0
        %v1772 = vpop.f32.mrb[0].mxu0
        %v1773 = vadd.f32 0.0, %v1772
        %v1774 = vpop.f32.mrb[0].mxu0
        %1775 = vmatprep.mubr.bf16.mxu0 0
        %1776 = vmatmul.mubr.bf16.gmra.mrb[0].mxu0 %v217
        %v1777 = vpop.f32.mrb[0].mxu0
        %v1778 = vadd.f32 0.0, %v1777
        %v1779 = vpop.f32.mrb[0].mxu0
        %v1780 = vpop.f32.mrb[0].mxu0
        %v1781 = vadd.f32 0.0, %v1780
        %v1782 = vpop.f32.mrb[0].mxu0
        %1783 = vmatprep.mubr.bf16.mxu0 0
        %1784 = vmatmul.mubr.bf16.gmra.mrb[0].mxu0 %v218
        %v1785 = vpop.f32.mrb[0].mxu0
        %v1786 = vadd.f32 0.0, %v1785
        %v1787 = vpop.f32.mrb[0].mxu0
        %v1788 = vpop.f32.mrb[0].mxu0
        %v1789 = vadd.f32 0.0, %v1788
        %v1790 = vpop.f32.mrb[0].mxu0
        %1791 = vmatprep.mubr.bf16.mxu0 0
        %1792 = vmatmul.mubr.bf16.gmra.mrb[0].mxu0 %v219
        %v1793 = vpop.f32.mrb[0].mxu0
        %v1794 = vadd.f32 0.0, %v1793
        %v1795 = vpop.f32.mrb[0].mxu0
        %v1796 = vpop.f32.mrb[0].mxu0
        %v1797 = vadd.f32 0.0, %v1796
        %v1798 = vpop.f32.mrb[0].mxu0
        %1799 = vmatprep.mubr.bf16.mxu0 0
        %1800 = vmatmul.mubr.bf16.gmra.mrb[0].mxu0 %v220
        %v1801 = vpop.f32.mrb[0].mxu0
        %v1802 = vadd.f32 0.0, %v1801
        %v1803 = vpop.f32.mrb[0].mxu0
        %v1804 = vpop.f32.mrb[0].mxu0
        %v1805 = vadd.f32 0.0, %v1804
        %v1806 = vpop.f32.mrb[0].mxu0
        %1807 = vmatprep.mubr.bf16.mxu0 0
        %1808 = vmatmul.mubr.bf16.gmra.mrb[0].mxu0 %v221
        %v1809 = vpop.f32.mrb[0].mxu0
        %v1810 = vadd.f32 0.0, %v1809
        %v1811 = vpop.f32.mrb[0].mxu0
        %v1812 = vpop.f32.mrb[0].mxu0
        %v1813 = vadd.f32 0.0, %v1812
        %v1814 = vpop.f32.mrb[0].mxu0
        %1815 = vmatprep.mubr.bf16.mxu0 0
        %1816 = vmatmul.mubr.bf16.gmra.mrb[0].mxu0 %v222
        %v1817 = vpop.f32.mrb[0].mxu0
        %v1818 = vadd.f32 0.0, %v1817
        %v1819 = vpop.f32.mrb[0].mxu0
        %v1820 = vpop.f32.mrb[0].mxu0
        %v1821 = vadd.f32 0.0, %v1820
        %v1822 = vpop.f32.mrb[0].mxu0
        %1823 = vmatprep.mubr.bf16.mxu0 0
        %1824 = vmatmul.mubr.bf16.gmra.mrb[0].mxu0 %v223
        %v1825 = vpop.f32.mrb[0].mxu0
        %v1826 = vadd.f32 0.0, %v1825
        %v1827 = vpop.f32.mrb[0].mxu0
        %v1828 = vpop.f32.mrb[0].mxu0
        %v1829 = vadd.f32 0.0, %v1828
        %v1830 = vpop.f32.mrb[0].mxu0
        %1831 = vmatprep.mubr.bf16.mxu0 0
        %1832 = vmatmul.mubr.bf16.gmra.mrb[0].mxu0 %v224
        %v1833 = vpop.f32.mrb[0].mxu0
        %v1834 = vadd.f32 0.0, %v1833
        %v1835 = vpop.f32.mrb[0].mxu0
        %v1836 = vpop.f32.mrb[0].mxu0
        %v1837 = vadd.f32 0.0, %v1836
        %v1838 = vpop.f32.mrb[0].mxu0
        %1839 = vdwg.mxu0
        %v1840 = vadd.f32 %v1484, %v1586
        %v1841 = vadd.f32 %v1483, %v1589
        %v1842 = vadd.f32 %v1482, %v1594
        %v1843 = vadd.f32 %v1481, %v1597
        %v1844 = vadd.f32 %v1480, %v1602
        %v1845 = vadd.f32 %v1479, %v1605
        %v1846 = vadd.f32 %v1478, %v1610
        %v1847 = vadd.f32 %v1477, %v1613
        %v1848 = vadd.f32 %v1476, %v1618
        %v1849 = vadd.f32 %v1475, %v1621
        %v1850 = vadd.f32 %v1474, %v1626
        %v1851 = vadd.f32 %v1473, %v1629
        %v1852 = vadd.f32 %v1472, %v1634
        %v1853 = vadd.f32 %v1471, %v1637
        %v1854 = vadd.f32 %v1470, %v1642
        %v1855 = vadd.f32 %v1469, %v1645
        %v1856 = vadd.f32 %v1468, %v1650
        %v1857 = vadd.f32 %v1467, %v1653
        %v1858 = vadd.f32 %v1466, %v1658
        %v1859 = vadd.f32 %v1465, %v1661
        %v1860 = vadd.f32 %v1464, %v1666
        %v1861 = vadd.f32 %v1463, %v1669
        %v1862 = vadd.f32 %v1462, %v1674
        %v1863 = vadd.f32 %v1461, %v1677
        %v1864 = vadd.f32 %v1460, %v1682
        %v1865 = vadd.f32 %v1459, %v1685
        %v1866 = vadd.f32 %v1458, %v1690
        %v1867 = vadd.f32 %v1457, %v1693
        %v1868 = vadd.f32 %v1456, %v1698
        %v1869 = vadd.f32 %v1455, %v1701
        %v1870 = vadd.f32 %v1454, %v1706
        %v1871 = vadd.f32 %v1453, %v1709
        %v1872 = vadd.f32 %v1452, %v1714
        %v1873 = vadd.f32 %v1451, %v1717
        %v1874 = vadd.f32 %v1450, %v1722
        %v1875 = vadd.f32 %v1449, %v1725
        %v1876 = vadd.f32 %v1448, %v1730
        %v1877 = vadd.f32 %v1447, %v1733
        %v1878 = vadd.f32 %v1446, %v1738
        %v1879 = vadd.f32 %v1445, %v1741
        %v1880 = vadd.f32 %v1444, %v1746
        %v1881 = vadd.f32 %v1443, %v1749
        %v1882 = vadd.f32 %v1442, %v1754
        %v1883 = vadd.f32 %v1441, %v1757
        %v1884 = vadd.f32 %v1440, %v1762
        %v1885 = vadd.f32 %v1439, %v1765
        %v1886 = vadd.f32 %v1438, %v1770
        %v1887 = vadd.f32 %v1437, %v1773
        %v1888 = vadd.f32 %v1436, %v1778
        %v1889 = vadd.f32 %v1435, %v1781
        %v1890 = vadd.f32 %v1434, %v1786
        %v1891 = vadd.f32 %v1433, %v1789
        %v1892 = vadd.f32 %v1432, %v1794
        %v1893 = vadd.f32 %v1431, %v1797
        %v1894 = vadd.f32 %v1430, %v1802
        %v1895 = vadd.f32 %v1429, %v1805
        %v1896 = vadd.f32 %v1428, %v1810
        %v1897 = vadd.f32 %v1427, %v1813
        %v1898 = vadd.f32 %v1426, %v1818
        %v1899 = vadd.f32 %v1425, %v1821
        %v1900 = vadd.f32 %v1424, %v1826
        %v1901 = vadd.f32 %v1423, %v1829
        %v1902 = vadd.f32 %v1422, %v1834
        %v1903 = vadd.f32 %v1485, %v1837
        %s1904 = scalar_lea.vmem [#allocation4], 256
        %v1905 = vld [vmem:[%s1904] sm:$0xf]
        %v1906 = vld [vmem:[%s1904 + $0x4] sm:$0xf]
        %v1907 = vld [vmem:[%s1904 + $0x8] sm:$0xf]
        %v1908 = vld [vmem:[%s1904 + $0xc] sm:$0xf]
        %v1909 = vld [vmem:[%s1904 + $0x10] sm:$0xf]
        %v1910 = vld [vmem:[%s1904 + $0x14] sm:$0xf]
        %v1911 = vld [vmem:[%s1904 + $0x18] sm:$0xf]
        %v1912 = vld [vmem:[%s1904 + $0x1c] sm:$0xf]
        %v1913 = vld [vmem:[%s1904 + $0x20] sm:$0xf]
        %v1914 = vld [vmem:[%s1904 + $0x24] sm:$0xf]
        %v1915 = vld [vmem:[%s1904 + $0x28] sm:$0xf]
        %v1916 = vld [vmem:[%s1904 + $0x2c] sm:$0xf]
        %v1917 = vld [vmem:[%s1904 + $0x30] sm:$0xf]
        %v1918 = vld [vmem:[%s1904 + $0x34] sm:$0xf]
        %v1919 = vld [vmem:[%s1904 + $0x38] sm:$0xf]
        %v1920 = vld [vmem:[%s1904 + $0x3c] sm:$0xf]
        %v1937 = vunpack.c.l.b16 %v1905
        %v1938 = vunpack.c.l.b16 %v1906
        %v1939 = vunpack.c.l.b16 %v1907
        %v1940 = vunpack.c.l.b16 %v1908
        %v1941 = vunpack.c.l.b16 %v1909
        %v1942 = vunpack.c.l.b16 %v1910
        %v1943 = vunpack.c.l.b16 %v1911
        %v1944 = vunpack.c.l.b16 %v1912
        %v1945 = vunpack.c.l.b16 %v1913
        %v1946 = vunpack.c.l.b16 %v1914
        %v1947 = vunpack.c.l.b16 %v1915
        %v1948 = vunpack.c.l.b16 %v1916
        %v1949 = vunpack.c.l.b16 %v1917
        %v1950 = vunpack.c.l.b16 %v1918
        %v1951 = vunpack.c.l.b16 %v1919
        %v1952 = vunpack.c.l.b16 %v1920
        %v1953 = vpack.c.b16 %v1938, %v1937
        %v1954 = vpack.c.b16 %v1940, %v1939
        %v1955 = vpack.c.b16 %v1942, %v1941
        %v1956 = vpack.c.b16 %v1944, %v1943
        %v1957 = vpack.c.b16 %v1946, %v1945
        %v1958 = vpack.c.b16 %v1948, %v1947
        %v1959 = vpack.c.b16 %v1950, %v1949
        %v1960 = vpack.c.b16 %v1952, %v1951
        %1969 = vmatprep.subr.bf16.mxu0 0
        %1970 = vmatpush1.bf16.msra.mxu0 %v1953
        %1971 = vmatprep.subr.bf16.mxu0 0
        %1972 = vmatpush1.bf16.msra.mxu0 %v1954
        %1973 = vmatprep.subr.bf16.mxu0 0
        %1974 = vmatpush1.bf16.msra.mxu0 %v1955
        %1975 = vmatprep.subr.bf16.mxu0 0
        %1976 = vmatpush1.bf16.msra.mxu0 %v1956
        %1977 = vmatprep.subr.bf16.mxu0 0
        %1978 = vmatpush1.bf16.msra.mxu0 %v1957
        %1979 = vmatprep.subr.bf16.mxu0 0
        %1980 = vmatpush1.bf16.msra.mxu0 %v1958
        %1981 = vmatprep.subr.bf16.mxu0 0
        %1982 = vmatpush1.bf16.msra.mxu0 %v1959
        %1983 = vmatprep.subr.bf16.mxu0 0
        %1984 = vmatpush1.bf16.msra.mxu0 %v1960
        %1985 = vmatprep.subr.bf16.mxu0 0
        %1986 = vmatpush1.bf16.msra.mxu0 0
        %1987 = vmatprep.subr.bf16.mxu0 0
        %1988 = vmatpush1.bf16.msra.mxu0 0
        %1989 = vmatprep.subr.bf16.mxu0 0
        %1990 = vmatpush1.bf16.msra.mxu0 0
        %1991 = vmatprep.subr.bf16.mxu0 0
        %1992 = vmatpush1.bf16.msra.mxu0 0
        %1993 = vmatprep.subr.bf16.mxu0 0
        %1994 = vmatpush1.bf16.msra.mxu0 0
        %1995 = vmatprep.subr.bf16.mxu0 0
        %1996 = vmatpush1.bf16.msra.mxu0 0
        %1997 = vmatprep.subr.bf16.mxu0 0
        %1998 = vmatpush1.bf16.msra.mxu0 0
        %1999 = vmatprep.subr.bf16.mxu0 0
        %2000 = vmatpush1.bf16.msra.mxu0 0
        %2001 = vmatprep.mubr.bf16.mxu0 0
        %2002 = vmatmul.mubr.bf16.gmra.mrb[0].mxu0 %v195
        %v2003 = vpop.f32.mrb[0].mxu0
        %v2004 = vadd.f32 0.0, %v2003
        %v2005 = vpop.f32.mrb[0].mxu0
        %v2006 = vpop.f32.mrb[0].mxu0
        %v2007 = vadd.f32 0.0, %v2006
        %v2008 = vpop.f32.mrb[0].mxu0
        %2009 = vmatprep.mubr.bf16.mxu0 0
        %2010 = vmatmul.mubr.bf16.gmra.mrb[0].mxu0 %v196
        %v2011 = vpop.f32.mrb[0].mxu0
        %v2012 = vadd.f32 0.0, %v2011
        %v2013 = vpop.f32.mrb[0].mxu0
        %v2014 = vpop.f32.mrb[0].mxu0
        %v2015 = vadd.f32 0.0, %v2014
        %v2016 = vpop.f32.mrb[0].mxu0
        %2017 = vmatprep.mubr.bf16.mxu0 0
        %2018 = vmatmul.mubr.bf16.gmra.mrb[0].mxu0 %v197
        %v2019 = vpop.f32.mrb[0].mxu0
        %v2020 = vadd.f32 0.0, %v2019
        %v2021 = vpop.f32.mrb[0].mxu0
        %v2022 = vpop.f32.mrb[0].mxu0
        %v2023 = vadd.f32 0.0, %v2022
        %v2024 = vpop.f32.mrb[0].mxu0
        %2025 = vmatprep.mubr.bf16.mxu0 0
        %2026 = vmatmul.mubr.bf16.gmra.mrb[0].mxu0 %v198
        %v2027 = vpop.f32.mrb[0].mxu0
        %v2028 = vadd.f32 0.0, %v2027
        %v2029 = vpop.f32.mrb[0].mxu0
        %v2030 = vpop.f32.mrb[0].mxu0
        %v2031 = vadd.f32 0.0, %v2030
        %v2032 = vpop.f32.mrb[0].mxu0
        %2033 = vmatprep.mubr.bf16.mxu0 0
        %2034 = vmatmul.mubr.bf16.gmra.mrb[0].mxu0 %v199
        %v2035 = vpop.f32.mrb[0].mxu0
        %v2036 = vadd.f32 0.0, %v2035
        %v2037 = vpop.f32.mrb[0].mxu0
        %v2038 = vpop.f32.mrb[0].mxu0
        %v2039 = vadd.f32 0.0, %v2038
        %v2040 = vpop.f32.mrb[0].mxu0
        %2041 = vmatprep.mubr.bf16.mxu0 0
        %2042 = vmatmul.mubr.bf16.gmra.mrb[0].mxu0 %v200
        %v2043 = vpop.f32.mrb[0].mxu0
        %v2044 = vadd.f32 0.0, %v2043
        %v2045 = vpop.f32.mrb[0].mxu0
        %v2046 = vpop.f32.mrb[0].mxu0
        %v2047 = vadd.f32 0.0, %v2046
        %v2048 = vpop.f32.mrb[0].mxu0
        %2049 = vmatprep.mubr.bf16.mxu0 0
        %2050 = vmatmul.mubr.bf16.gmra.mrb[0].mxu0 %v201
        %v2051 = vpop.f32.mrb[0].mxu0
        %v2052 = vadd.f32 0.0, %v2051
        %v2053 = vpop.f32.mrb[0].mxu0
        %v2054 = vpop.f32.mrb[0].mxu0
        %v2055 = vadd.f32 0.0, %v2054
        %v2056 = vpop.f32.mrb[0].mxu0
        %2057 = vmatprep.mubr.bf16.mxu0 0
        %2058 = vmatmul.mubr.bf16.gmra.mrb[0].mxu0 %v202
        %v2059 = vpop.f32.mrb[0].mxu0
        %v2060 = vadd.f32 0.0, %v2059
        %v2061 = vpop.f32.mrb[0].mxu0
        %v2062 = vpop.f32.mrb[0].mxu0
        %v2063 = vadd.f32 0.0, %v2062
        %v2064 = vpop.f32.mrb[0].mxu0
        %2065 = vmatprep.mubr.bf16.mxu0 0
        %2066 = vmatmul.mubr.bf16.gmra.mrb[0].mxu0 %v203
        %v2067 = vpop.f32.mrb[0].mxu0
        %v2068 = vadd.f32 0.0, %v2067
        %v2069 = vpop.f32.mrb[0].mxu0
        %v2070 = vpop.f32.mrb[0].mxu0
        %v2071 = vadd.f32 0.0, %v2070
        %v2072 = vpop.f32.mrb[0].mxu0
        %2073 = vmatprep.mubr.bf16.mxu0 0
        %2074 = vmatmul.mubr.bf16.gmra.mrb[0].mxu0 %v204
        %v2075 = vpop.f32.mrb[0].mxu0
        %v2076 = vadd.f32 0.0, %v2075
        %v2077 = vpop.f32.mrb[0].mxu0
        %v2078 = vpop.f32.mrb[0].mxu0
        %v2079 = vadd.f32 0.0, %v2078
        %v2080 = vpop.f32.mrb[0].mxu0
        %2081 = vmatprep.mubr.bf16.mxu0 0
        %2082 = vmatmul.mubr.bf16.gmra.mrb[0].mxu0 %v205
        %v2083 = vpop.f32.mrb[0].mxu0
        %v2084 = vadd.f32 0.0, %v2083
        %v2085 = vpop.f32.mrb[0].mxu0
        %v2086 = vpop.f32.mrb[0].mxu0
        %v2087 = vadd.f32 0.0, %v2086
        %v2088 = vpop.f32.mrb[0].mxu0
        %2089 = vmatprep.mubr.bf16.mxu0 0
        %2090 = vmatmul.mubr.bf16.gmra.mrb[0].mxu0 %v206
        %v2091 = vpop.f32.mrb[0].mxu0
        %v2092 = vadd.f32 0.0, %v2091
        %v2093 = vpop.f32.mrb[0].mxu0
        %v2094 = vpop.f32.mrb[0].mxu0
        %v2095 = vadd.f32 0.0, %v2094
        %v2096 = vpop.f32.mrb[0].mxu0
        %2097 = vmatprep.mubr.bf16.mxu0 0
        %2098 = vmatmul.mubr.bf16.gmra.mrb[0].mxu0 %v207
        %v2099 = vpop.f32.mrb[0].mxu0
        %v2100 = vadd.f32 0.0, %v2099
        %v2101 = vpop.f32.mrb[0].mxu0
        %v2102 = vpop.f32.mrb[0].mxu0
        %v2103 = vadd.f32 0.0, %v2102
        %v2104 = vpop.f32.mrb[0].mxu0
        %2105 = vmatprep.mubr.bf16.mxu0 0
        %2106 = vmatmul.mubr.bf16.gmra.mrb[0].mxu0 %v208
        %v2107 = vpop.f32.mrb[0].mxu0
        %v2108 = vadd.f32 0.0, %v2107
        %v2109 = vpop.f32.mrb[0].mxu0
        %v2110 = vpop.f32.mrb[0].mxu0
        %v2111 = vadd.f32 0.0, %v2110
        %v2112 = vpop.f32.mrb[0].mxu0
        %2113 = vmatprep.mubr.bf16.mxu0 0
        %2114 = vmatmul.mubr.bf16.gmra.mrb[0].mxu0 %v209
        %v2115 = vpop.f32.mrb[0].mxu0
        %v2116 = vadd.f32 0.0, %v2115
        %v2117 = vpop.f32.mrb[0].mxu0
        %v2118 = vpop.f32.mrb[0].mxu0
        %v2119 = vadd.f32 0.0, %v2118
        %v2120 = vpop.f32.mrb[0].mxu0
        %2121 = vmatprep.mubr.bf16.mxu0 0
        %2122 = vmatmul.mubr.bf16.gmra.mrb[0].mxu0 %v210
        %v2123 = vpop.f32.mrb[0].mxu0
        %v2124 = vadd.f32 0.0, %v2123
        %v2125 = vpop.f32.mrb[0].mxu0
        %v2126 = vpop.f32.mrb[0].mxu0
        %v2127 = vadd.f32 0.0, %v2126
        %v2128 = vpop.f32.mrb[0].mxu0
        %2129 = vmatprep.mubr.bf16.mxu0 0
        %2130 = vmatmul.mubr.bf16.gmra.mrb[0].mxu0 %v211
        %v2131 = vpop.f32.mrb[0].mxu0
        %v2132 = vadd.f32 0.0, %v2131
        %v2133 = vpop.f32.mrb[0].mxu0
        %v2134 = vpop.f32.mrb[0].mxu0
        %v2135 = vadd.f32 0.0, %v2134
        %v2136 = vpop.f32.mrb[0].mxu0
        %2137 = vmatprep.mubr.bf16.mxu0 0
        %2138 = vmatmul.mubr.bf16.gmra.mrb[0].mxu0 %v212
        %v2139 = vpop.f32.mrb[0].mxu0
        %v2140 = vadd.f32 0.0, %v2139
        %v2141 = vpop.f32.mrb[0].mxu0
        %v2142 = vpop.f32.mrb[0].mxu0
        %v2143 = vadd.f32 0.0, %v2142
        %v2144 = vpop.f32.mrb[0].mxu0
        %2145 = vmatprep.mubr.bf16.mxu0 0
        %2146 = vmatmul.mubr.bf16.gmra.mrb[0].mxu0 %v213
        %v2147 = vpop.f32.mrb[0].mxu0
        %v2148 = vadd.f32 0.0, %v2147
        %v2149 = vpop.f32.mrb[0].mxu0
        %v2150 = vpop.f32.mrb[0].mxu0
        %v2151 = vadd.f32 0.0, %v2150
        %v2152 = vpop.f32.mrb[0].mxu0
        %2153 = vmatprep.mubr.bf16.mxu0 0
        %2154 = vmatmul.mubr.bf16.gmra.mrb[0].mxu0 %v214
        %v2155 = vpop.f32.mrb[0].mxu0
        %v2156 = vadd.f32 0.0, %v2155
        %v2157 = vpop.f32.mrb[0].mxu0
        %v2158 = vpop.f32.mrb[0].mxu0
        %v2159 = vadd.f32 0.0, %v2158
        %v2160 = vpop.f32.mrb[0].mxu0
        %2161 = vmatprep.mubr.bf16.mxu0 0
        %2162 = vmatmul.mubr.bf16.gmra.mrb[0].mxu0 %v215
        %v2163 = vpop.f32.mrb[0].mxu0
        %v2164 = vadd.f32 0.0, %v2163
        %v2165 = vpop.f32.mrb[0].mxu0
        %v2166 = vpop.f32.mrb[0].mxu0
        %v2167 = vadd.f32 0.0, %v2166
        %v2168 = vpop.f32.mrb[0].mxu0
        %2169 = vmatprep.mubr.bf16.mxu0 0
        %2170 = vmatmul.mubr.bf16.gmra.mrb[0].mxu0 %v216
        %v2171 = vpop.f32.mrb[0].mxu0
        %v2172 = vadd.f32 0.0, %v2171
        %v2173 = vpop.f32.mrb[0].mxu0
        %v2174 = vpop.f32.mrb[0].mxu0
        %v2175 = vadd.f32 0.0, %v2174
        %v2176 = vpop.f32.mrb[0].mxu0
        %2177 = vmatprep.mubr.bf16.mxu0 0
        %2178 = vmatmul.mubr.bf16.gmra.mrb[0].mxu0 %v217
        %v2179 = vpop.f32.mrb[0].mxu0
        %v2180 = vadd.f32 0.0, %v2179
        %v2181 = vpop.f32.mrb[0].mxu0
        %v2182 = vpop.f32.mrb[0].mxu0
        %v2183 = vadd.f32 0.0, %v2182
        %v2184 = vpop.f32.mrb[0].mxu0
        %2185 = vmatprep.mubr.bf16.mxu0 0
        %2186 = vmatmul.mubr.bf16.gmra.mrb[0].mxu0 %v218
        %v2187 = vpop.f32.mrb[0].mxu0
        %v2188 = vadd.f32 0.0, %v2187
        %v2189 = vpop.f32.mrb[0].mxu0
        %v2190 = vpop.f32.mrb[0].mxu0
        %v2191 = vadd.f32 0.0, %v2190
        %v2192 = vpop.f32.mrb[0].mxu0
        %2193 = vmatprep.mubr.bf16.mxu0 0
        %2194 = vmatmul.mubr.bf16.gmra.mrb[0].mxu0 %v219
        %v2195 = vpop.f32.mrb[0].mxu0
        %v2196 = vadd.f32 0.0, %v2195
        %v2197 = vpop.f32.mrb[0].mxu0
        %v2198 = vpop.f32.mrb[0].mxu0
        %v2199 = vadd.f32 0.0, %v2198
        %v2200 = vpop.f32.mrb[0].mxu0
        %2201 = vmatprep.mubr.bf16.mxu0 0
        %2202 = vmatmul.mubr.bf16.gmra.mrb[0].mxu0 %v220
        %v2203 = vpop.f32.mrb[0].mxu0
        %v2204 = vadd.f32 0.0, %v2203
        %v2205 = vpop.f32.mrb[0].mxu0
        %v2206 = vpop.f32.mrb[0].mxu0
        %v2207 = vadd.f32 0.0, %v2206
        %v2208 = vpop.f32.mrb[0].mxu0
        %2209 = vmatprep.mubr.bf16.mxu0 0
        %2210 = vmatmul.mubr.bf16.gmra.mrb[0].mxu0 %v221
        %v2211 = vpop.f32.mrb[0].mxu0
        %v2212 = vadd.f32 0.0, %v2211
        %v2213 = vpop.f32.mrb[0].mxu0
        %v2214 = vpop.f32.mrb[0].mxu0
        %v2215 = vadd.f32 0.0, %v2214
        %v2216 = vpop.f32.mrb[0].mxu0
        %2217 = vmatprep.mubr.bf16.mxu0 0
        %2218 = vmatmul.mubr.bf16.gmra.mrb[0].mxu0 %v222
        %v2219 = vpop.f32.mrb[0].mxu0
        %v2220 = vadd.f32 0.0, %v2219
        %v2221 = vpop.f32.mrb[0].mxu0
        %v2222 = vpop.f32.mrb[0].mxu0
        %v2223 = vadd.f32 0.0, %v2222
        %v2224 = vpop.f32.mrb[0].mxu0
        %2225 = vmatprep.mubr.bf16.mxu0 0
        %2226 = vmatmul.mubr.bf16.gmra.mrb[0].mxu0 %v223
        %v2227 = vpop.f32.mrb[0].mxu0
        %v2228 = vadd.f32 0.0, %v2227
        %v2229 = vpop.f32.mrb[0].mxu0
        %v2230 = vpop.f32.mrb[0].mxu0
        %v2231 = vadd.f32 0.0, %v2230
        %v2232 = vpop.f32.mrb[0].mxu0
        %2233 = vmatprep.mubr.bf16.mxu0 0
        %2234 = vmatmul.mubr.bf16.gmra.mrb[0].mxu0 %v224
        %v2235 = vpop.f32.mrb[0].mxu0
        %v2236 = vadd.f32 0.0, %v2235
        %v2237 = vpop.f32.mrb[0].mxu0
        %v2238 = vpop.f32.mrb[0].mxu0
        %v2239 = vadd.f32 0.0, %v2238
        %v2240 = vpop.f32.mrb[0].mxu0
        %2241 = vmatprep.mubr.bf16.mxu0 0
        %2242 = vmatmul.mubr.bf16.gmra.mrb[0].mxu0 %v225
        %v2243 = vpop.f32.mrb[0].mxu0
        %v2244 = vadd.f32 0.0, %v2243
        %v2245 = vpop.f32.mrb[0].mxu0
        %v2246 = vpop.f32.mrb[0].mxu0
        %v2247 = vadd.f32 0.0, %v2246
        %v2248 = vpop.f32.mrb[0].mxu0
        %2249 = vmatprep.mubr.bf16.mxu0 0
        %2250 = vmatmul.mubr.bf16.gmra.mrb[0].mxu0 %v226
        %v2251 = vpop.f32.mrb[0].mxu0
        %v2252 = vadd.f32 0.0, %v2251
        %v2253 = vpop.f32.mrb[0].mxu0
        %v2254 = vpop.f32.mrb[0].mxu0
        %v2255 = vadd.f32 0.0, %v2254
        %v2256 = vpop.f32.mrb[0].mxu0
        %2257 = vdwg.mxu0
        %v2258 = vadd.f32 %v1840, %v2004
        %v2259 = vadd.f32 %v1841, %v2007
        %v2260 = vadd.f32 %v1842, %v2012
        %v2261 = vadd.f32 %v1843, %v2015
        %v2262 = vadd.f32 %v1844, %v2020
        %v2263 = vadd.f32 %v1845, %v2023
        %v2264 = vadd.f32 %v1846, %v2028
        %v2265 = vadd.f32 %v1847, %v2031
        %v2266 = vadd.f32 %v1848, %v2036
        %v2267 = vadd.f32 %v1849, %v2039
        %v2268 = vadd.f32 %v1850, %v2044
        %v2269 = vadd.f32 %v1851, %v2047
        %v2270 = vadd.f32 %v1852, %v2052
        %v2271 = vadd.f32 %v1853, %v2055
        %v2272 = vadd.f32 %v1854, %v2060
        %v2273 = vadd.f32 %v1855, %v2063
        %v2274 = vadd.f32 %v1856, %v2068
        %v2275 = vadd.f32 %v1857, %v2071
        %v2276 = vadd.f32 %v1858, %v2076
        %v2277 = vadd.f32 %v1859, %v2079
        %v2278 = vadd.f32 %v1860, %v2084
        %v2279 = vadd.f32 %v1861, %v2087
        %v2280 = vadd.f32 %v1862, %v2092
        %v2281 = vadd.f32 %v1863, %v2095
        %v2282 = vadd.f32 %v1864, %v2100
        %v2283 = vadd.f32 %v1865, %v2103
        %v2284 = vadd.f32 %v1866, %v2108
        %v2285 = vadd.f32 %v1867, %v2111
        %v2286 = vadd.f32 %v1868, %v2116
        %v2287 = vadd.f32 %v1869, %v2119
        %v2288 = vadd.f32 %v1870, %v2124
        %v2289 = vadd.f32 %v1871, %v2127
        %v2290 = vadd.f32 %v1872, %v2132
        %v2291 = vadd.f32 %v1873, %v2135
        %v2292 = vadd.f32 %v1874, %v2140
        %v2293 = vadd.f32 %v1875, %v2143
        %v2294 = vadd.f32 %v1876, %v2148
        %v2295 = vadd.f32 %v1877, %v2151
        %v2296 = vadd.f32 %v1878, %v2156
        %v2297 = vadd.f32 %v1879, %v2159
        %v2298 = vadd.f32 %v1880, %v2164
        %v2299 = vadd.f32 %v1881, %v2167
        %v2300 = vadd.f32 %v1882, %v2172
        %v2301 = vadd.f32 %v1883, %v2175
        %v2302 = vadd.f32 %v1884, %v2180
        %v2303 = vadd.f32 %v1885, %v2183
        %v2304 = vadd.f32 %v1886, %v2188
        %v2305 = vadd.f32 %v1887, %v2191
        %v2306 = vadd.f32 %v1888, %v2196
        %v2307 = vadd.f32 %v1889, %v2199
        %v2308 = vadd.f32 %v1890, %v2204
        %v2309 = vadd.f32 %v1891, %v2207
        %v2310 = vadd.f32 %v1892, %v2212
        %v2311 = vadd.f32 %v1893, %v2215
        %v2312 = vadd.f32 %v1894, %v2220
        %v2313 = vadd.f32 %v1895, %v2223
        %v2314 = vadd.f32 %v1896, %v2228
        %v2315 = vadd.f32 %v1897, %v2231
        %v2316 = vadd.f32 %v1898, %v2236
        %v2317 = vadd.f32 %v1899, %v2239
        %v2318 = vadd.f32 %v1900, %v2244
        %v2319 = vadd.f32 %v1901, %v2247
        %v2320 = vadd.f32 %v1902, %v2252
        %v2321 = vadd.f32 %v1903, %v2255
        %s2322 = scalar_lea.vmem [#allocation4], 448
        %v2323 = vld [vmem:[%s2322] sm:$0xf]
        %v2324 = vld [vmem:[%s2322 + $0x4] sm:$0xf]
        %v2325 = vld [vmem:[%s2322 + $0x8] sm:$0xf]
        %v2326 = vld [vmem:[%s2322 + $0xc] sm:$0xf]
        %v2327 = vld [vmem:[%s2322 + $0x10] sm:$0xf]
        %v2328 = vld [vmem:[%s2322 + $0x14] sm:$0xf]
        %v2329 = vld [vmem:[%s2322 + $0x18] sm:$0xf]
        %v2330 = vld [vmem:[%s2322 + $0x1c] sm:$0xf]
        %v2331 = vld [vmem:[%s2322 + $0x20] sm:$0xf]
        %v2332 = vld [vmem:[%s2322 + $0x24] sm:$0xf]
        %v2333 = vld [vmem:[%s2322 + $0x28] sm:$0xf]
        %v2334 = vld [vmem:[%s2322 + $0x2c] sm:$0xf]
        %v2335 = vld [vmem:[%s2322 + $0x30] sm:$0xf]
        %v2336 = vld [vmem:[%s2322 + $0x34] sm:$0xf]
        %v2337 = vld [vmem:[%s2322 + $0x38] sm:$0xf]
        %v2338 = vld [vmem:[%s2322 + $0x3c] sm:$0xf]
        %v2355 = vunpack.c.l.b16 %v2323
        %v2356 = vunpack.c.l.b16 %v2324
        %v2357 = vunpack.c.l.b16 %v2325
        %v2358 = vunpack.c.l.b16 %v2326
        %v2359 = vunpack.c.l.b16 %v2327
        %v2360 = vunpack.c.l.b16 %v2328
        %v2361 = vunpack.c.l.b16 %v2329
        %v2362 = vunpack.c.l.b16 %v2330
        %v2363 = vunpack.c.l.b16 %v2331
        %v2364 = vunpack.c.l.b16 %v2332
        %v2365 = vunpack.c.l.b16 %v2333
        %v2366 = vunpack.c.l.b16 %v2334
        %v2367 = vunpack.c.l.b16 %v2335
        %v2368 = vunpack.c.l.b16 %v2336
        %v2369 = vunpack.c.l.b16 %v2337
        %v2370 = vunpack.c.l.b16 %v2338
        %v2371 = vpack.c.b16 %v2356, %v2355
        %v2372 = vpack.c.b16 %v2358, %v2357
        %v2373 = vpack.c.b16 %v2360, %v2359
        %v2374 = vpack.c.b16 %v2362, %v2361
        %v2375 = vpack.c.b16 %v2364, %v2363
        %v2376 = vpack.c.b16 %v2366, %v2365
        %v2377 = vpack.c.b16 %v2368, %v2367
        %v2378 = vpack.c.b16 %v2370, %v2369
        %2387 = vmatprep.subr.bf16.mxu0 0
        %2388 = vmatpush1.bf16.msra.mxu0 %v2371
        %2389 = vmatprep.subr.bf16.mxu0 0
        %2390 = vmatpush1.bf16.msra.mxu0 %v2372
        %2391 = vmatprep.subr.bf16.mxu0 0
        %2392 = vmatpush1.bf16.msra.mxu0 %v2373
        %2393 = vmatprep.subr.bf16.mxu0 0
        %2394 = vmatpush1.bf16.msra.mxu0 %v2374
        %2395 = vmatprep.subr.bf16.mxu0 0
        %2396 = vmatpush1.bf16.msra.mxu0 %v2375
        %2397 = vmatprep.subr.bf16.mxu0 0
        %2398 = vmatpush1.bf16.msra.mxu0 %v2376
        %2399 = vmatprep.subr.bf16.mxu0 0
        %2400 = vmatpush1.bf16.msra.mxu0 %v2377
        %2401 = vmatprep.subr.bf16.mxu0 0
        %2402 = vmatpush1.bf16.msra.mxu0 %v2378
        %2403 = vmatprep.subr.bf16.mxu0 0
        %2404 = vmatpush1.bf16.msra.mxu0 0
        %2405 = vmatprep.subr.bf16.mxu0 0
        %2406 = vmatpush1.bf16.msra.mxu0 0
        %2407 = vmatprep.subr.bf16.mxu0 0
        %2408 = vmatpush1.bf16.msra.mxu0 0
        %2409 = vmatprep.subr.bf16.mxu0 0
        %2410 = vmatpush1.bf16.msra.mxu0 0
        %2411 = vmatprep.subr.bf16.mxu0 0
        %2412 = vmatpush1.bf16.msra.mxu0 0
        %2413 = vmatprep.subr.bf16.mxu0 0
        %2414 = vmatpush1.bf16.msra.mxu0 0
        %2415 = vmatprep.subr.bf16.mxu0 0
        %2416 = vmatpush1.bf16.msra.mxu0 0
        %2417 = vmatprep.subr.bf16.mxu0 0
        %2418 = vmatpush1.bf16.msra.mxu0 0
        %2419 = vmatprep.mubr.bf16.mxu0 0
        %2420 = vmatmul.mubr.bf16.gmra.mrb[0].mxu0 %v197
        %v2421 = vpop.f32.mrb[0].mxu0
        %v2422 = vadd.f32 0.0, %v2421
        %v2423 = vpop.f32.mrb[0].mxu0
        %v2424 = vpop.f32.mrb[0].mxu0
        %v2425 = vadd.f32 0.0, %v2424
        %v2426 = vpop.f32.mrb[0].mxu0
        %2427 = vmatprep.mubr.bf16.mxu0 0
        %2428 = vmatmul.mubr.bf16.gmra.mrb[0].mxu0 %v198
        %v2429 = vpop.f32.mrb[0].mxu0
        %v2430 = vadd.f32 0.0, %v2429
        %v2431 = vpop.f32.mrb[0].mxu0
        %v2432 = vpop.f32.mrb[0].mxu0
        %v2433 = vadd.f32 0.0, %v2432
        %v2434 = vpop.f32.mrb[0].mxu0
        %2435 = vmatprep.mubr.bf16.mxu0 0
        %2436 = vmatmul.mubr.bf16.gmra.mrb[0].mxu0 %v199
        %v2437 = vpop.f32.mrb[0].mxu0
        %v2438 = vadd.f32 0.0, %v2437
        %v2439 = vpop.f32.mrb[0].mxu0
        %v2440 = vpop.f32.mrb[0].mxu0
        %v2441 = vadd.f32 0.0, %v2440
        %v2442 = vpop.f32.mrb[0].mxu0
        %2443 = vmatprep.mubr.bf16.mxu0 0
        %2444 = vmatmul.mubr.bf16.gmra.mrb[0].mxu0 %v200
        %v2445 = vpop.f32.mrb[0].mxu0
        %v2446 = vadd.f32 0.0, %v2445
        %v2447 = vpop.f32.mrb[0].mxu0
        %v2448 = vpop.f32.mrb[0].mxu0
        %v2449 = vadd.f32 0.0, %v2448
        %v2450 = vpop.f32.mrb[0].mxu0
        %2451 = vmatprep.mubr.bf16.mxu0 0
        %2452 = vmatmul.mubr.bf16.gmra.mrb[0].mxu0 %v201
        %v2453 = vpop.f32.mrb[0].mxu0
        %v2454 = vadd.f32 0.0, %v2453
        %v2455 = vpop.f32.mrb[0].mxu0
        %v2456 = vpop.f32.mrb[0].mxu0
        %v2457 = vadd.f32 0.0, %v2456
        %v2458 = vpop.f32.mrb[0].mxu0
        %2459 = vmatprep.mubr.bf16.mxu0 0
        %2460 = vmatmul.mubr.bf16.gmra.mrb[0].mxu0 %v202
        %v2461 = vpop.f32.mrb[0].mxu0
        %v2462 = vadd.f32 0.0, %v2461
        %v2463 = vpop.f32.mrb[0].mxu0
        %v2464 = vpop.f32.mrb[0].mxu0
        %v2465 = vadd.f32 0.0, %v2464
        %v2466 = vpop.f32.mrb[0].mxu0
        %2467 = vmatprep.mubr.bf16.mxu0 0
        %2468 = vmatmul.mubr.bf16.gmra.mrb[0].mxu0 %v203
        %v2469 = vpop.f32.mrb[0].mxu0
        %v2470 = vadd.f32 0.0, %v2469
        %v2471 = vpop.f32.mrb[0].mxu0
        %v2472 = vpop.f32.mrb[0].mxu0
        %v2473 = vadd.f32 0.0, %v2472
        %v2474 = vpop.f32.mrb[0].mxu0
        %2475 = vmatprep.mubr.bf16.mxu0 0
        %2476 = vmatmul.mubr.bf16.gmra.mrb[0].mxu0 %v204
        %v2477 = vpop.f32.mrb[0].mxu0
        %v2478 = vadd.f32 0.0, %v2477
        %v2479 = vpop.f32.mrb[0].mxu0
        %v2480 = vpop.f32.mrb[0].mxu0
        %v2481 = vadd.f32 0.0, %v2480
        %v2482 = vpop.f32.mrb[0].mxu0
        %2483 = vmatprep.mubr.bf16.mxu0 0
        %2484 = vmatmul.mubr.bf16.gmra.mrb[0].mxu0 %v205
        %v2485 = vpop.f32.mrb[0].mxu0
        %v2486 = vadd.f32 0.0, %v2485
        %v2487 = vpop.f32.mrb[0].mxu0
        %v2488 = vpop.f32.mrb[0].mxu0
        %v2489 = vadd.f32 0.0, %v2488
        %v2490 = vpop.f32.mrb[0].mxu0
        %2491 = vmatprep.mubr.bf16.mxu0 0
        %2492 = vmatmul.mubr.bf16.gmra.mrb[0].mxu0 %v206
        %v2493 = vpop.f32.mrb[0].mxu0
        %v2494 = vadd.f32 0.0, %v2493
        %v2495 = vpop.f32.mrb[0].mxu0
        %v2496 = vpop.f32.mrb[0].mxu0
        %v2497 = vadd.f32 0.0, %v2496
        %v2498 = vpop.f32.mrb[0].mxu0
        %2499 = vmatprep.mubr.bf16.mxu0 0
        %2500 = vmatmul.mubr.bf16.gmra.mrb[0].mxu0 %v207
        %v2501 = vpop.f32.mrb[0].mxu0
        %v2502 = vadd.f32 0.0, %v2501
        %v2503 = vpop.f32.mrb[0].mxu0
        %v2504 = vpop.f32.mrb[0].mxu0
        %v2505 = vadd.f32 0.0, %v2504
        %v2506 = vpop.f32.mrb[0].mxu0
        %2507 = vmatprep.mubr.bf16.mxu0 0
        %2508 = vmatmul.mubr.bf16.gmra.mrb[0].mxu0 %v208
        %v2509 = vpop.f32.mrb[0].mxu0
        %v2510 = vadd.f32 0.0, %v2509
        %v2511 = vpop.f32.mrb[0].mxu0
        %v2512 = vpop.f32.mrb[0].mxu0
        %v2513 = vadd.f32 0.0, %v2512
        %v2514 = vpop.f32.mrb[0].mxu0
        %2515 = vmatprep.mubr.bf16.mxu0 0
        %2516 = vmatmul.mubr.bf16.gmra.mrb[0].mxu0 %v209
        %v2517 = vpop.f32.mrb[0].mxu0
        %v2518 = vadd.f32 0.0, %v2517
        %v2519 = vpop.f32.mrb[0].mxu0
        %v2520 = vpop.f32.mrb[0].mxu0
        %v2521 = vadd.f32 0.0, %v2520
        %v2522 = vpop.f32.mrb[0].mxu0
        %2523 = vmatprep.mubr.bf16.mxu0 0
        %2524 = vmatmul.mubr.bf16.gmra.mrb[0].mxu0 %v210
        %v2525 = vpop.f32.mrb[0].mxu0
        %v2526 = vadd.f32 0.0, %v2525
        %v2527 = vpop.f32.mrb[0].mxu0
        %v2528 = vpop.f32.mrb[0].mxu0
        %v2529 = vadd.f32 0.0, %v2528
        %v2530 = vpop.f32.mrb[0].mxu0
        %2531 = vmatprep.mubr.bf16.mxu0 0
        %2532 = vmatmul.mubr.bf16.gmra.mrb[0].mxu0 %v211
        %v2533 = vpop.f32.mrb[0].mxu0
        %v2534 = vadd.f32 0.0, %v2533
        %v2535 = vpop.f32.mrb[0].mxu0
        %v2536 = vpop.f32.mrb[0].mxu0
        %v2537 = vadd.f32 0.0, %v2536
        %v2538 = vpop.f32.mrb[0].mxu0
        %2539 = vmatprep.mubr.bf16.mxu0 0
        %2540 = vmatmul.mubr.bf16.gmra.mrb[0].mxu0 %v212
        %v2541 = vpop.f32.mrb[0].mxu0
        %v2542 = vadd.f32 0.0, %v2541
        %v2543 = vpop.f32.mrb[0].mxu0
        %v2544 = vpop.f32.mrb[0].mxu0
        %v2545 = vadd.f32 0.0, %v2544
        %v2546 = vpop.f32.mrb[0].mxu0
        %2547 = vmatprep.mubr.bf16.mxu0 0
        %2548 = vmatmul.mubr.bf16.gmra.mrb[0].mxu0 %v213
        %v2549 = vpop.f32.mrb[0].mxu0
        %v2550 = vadd.f32 0.0, %v2549
        %v2551 = vpop.f32.mrb[0].mxu0
        %v2552 = vpop.f32.mrb[0].mxu0
        %v2553 = vadd.f32 0.0, %v2552
        %v2554 = vpop.f32.mrb[0].mxu0
        %2555 = vmatprep.mubr.bf16.mxu0 0
        %2556 = vmatmul.mubr.bf16.gmra.mrb[0].mxu0 %v214
        %v2557 = vpop.f32.mrb[0].mxu0
        %v2558 = vadd.f32 0.0, %v2557
        %v2559 = vpop.f32.mrb[0].mxu0
        %v2560 = vpop.f32.mrb[0].mxu0
        %v2561 = vadd.f32 0.0, %v2560
        %v2562 = vpop.f32.mrb[0].mxu0
        %2563 = vmatprep.mubr.bf16.mxu0 0
        %2564 = vmatmul.mubr.bf16.gmra.mrb[0].mxu0 %v215
        %v2565 = vpop.f32.mrb[0].mxu0
        %v2566 = vadd.f32 0.0, %v2565
        %v2567 = vpop.f32.mrb[0].mxu0
        %v2568 = vpop.f32.mrb[0].mxu0
        %v2569 = vadd.f32 0.0, %v2568
        %v2570 = vpop.f32.mrb[0].mxu0
        %2571 = vmatprep.mubr.bf16.mxu0 0
        %2572 = vmatmul.mubr.bf16.gmra.mrb[0].mxu0 %v216
        %v2573 = vpop.f32.mrb[0].mxu0
        %v2574 = vadd.f32 0.0, %v2573
        %v2575 = vpop.f32.mrb[0].mxu0
        %v2576 = vpop.f32.mrb[0].mxu0
        %v2577 = vadd.f32 0.0, %v2576
        %v2578 = vpop.f32.mrb[0].mxu0
        %2579 = vmatprep.mubr.bf16.mxu0 0
        %2580 = vmatmul.mubr.bf16.gmra.mrb[0].mxu0 %v217
        %v2581 = vpop.f32.mrb[0].mxu0
        %v2582 = vadd.f32 0.0, %v2581
        %v2583 = vpop.f32.mrb[0].mxu0
        %v2584 = vpop.f32.mrb[0].mxu0
        %v2585 = vadd.f32 0.0, %v2584
        %v2586 = vpop.f32.mrb[0].mxu0
        %2587 = vmatprep.mubr.bf16.mxu0 0
        %2588 = vmatmul.mubr.bf16.gmra.mrb[0].mxu0 %v218
        %v2589 = vpop.f32.mrb[0].mxu0
        %v2590 = vadd.f32 0.0, %v2589
        %v2591 = vpop.f32.mrb[0].mxu0
        %v2592 = vpop.f32.mrb[0].mxu0
        %v2593 = vadd.f32 0.0, %v2592
        %v2594 = vpop.f32.mrb[0].mxu0
        %2595 = vmatprep.mubr.bf16.mxu0 0
        %2596 = vmatmul.mubr.bf16.gmra.mrb[0].mxu0 %v219
        %v2597 = vpop.f32.mrb[0].mxu0
        %v2598 = vadd.f32 0.0, %v2597
        %v2599 = vpop.f32.mrb[0].mxu0
        %v2600 = vpop.f32.mrb[0].mxu0
        %v2601 = vadd.f32 0.0, %v2600
        %v2602 = vpop.f32.mrb[0].mxu0
        %2603 = vmatprep.mubr.bf16.mxu0 0
        %2604 = vmatmul.mubr.bf16.gmra.mrb[0].mxu0 %v220
        %v2605 = vpop.f32.mrb[0].mxu0
        %v2606 = vadd.f32 0.0, %v2605
        %v2607 = vpop.f32.mrb[0].mxu0
        %v2608 = vpop.f32.mrb[0].mxu0
        %v2609 = vadd.f32 0.0, %v2608
        %v2610 = vpop.f32.mrb[0].mxu0
        %2611 = vmatprep.mubr.bf16.mxu0 0
        %2612 = vmatmul.mubr.bf16.gmra.mrb[0].mxu0 %v221
        %v2613 = vpop.f32.mrb[0].mxu0
        %v2614 = vadd.f32 0.0, %v2613
        %v2615 = vpop.f32.mrb[0].mxu0
        %v2616 = vpop.f32.mrb[0].mxu0
        %v2617 = vadd.f32 0.0, %v2616
        %v2618 = vpop.f32.mrb[0].mxu0
        %2619 = vmatprep.mubr.bf16.mxu0 0
        %2620 = vmatmul.mubr.bf16.gmra.mrb[0].mxu0 %v222
        %v2621 = vpop.f32.mrb[0].mxu0
        %v2622 = vadd.f32 0.0, %v2621
        %v2623 = vpop.f32.mrb[0].mxu0
        %v2624 = vpop.f32.mrb[0].mxu0
        %v2625 = vadd.f32 0.0, %v2624
        %v2626 = vpop.f32.mrb[0].mxu0
        %2627 = vmatprep.mubr.bf16.mxu0 0
        %2628 = vmatmul.mubr.bf16.gmra.mrb[0].mxu0 %v223
        %v2629 = vpop.f32.mrb[0].mxu0
        %v2630 = vadd.f32 0.0, %v2629
        %v2631 = vpop.f32.mrb[0].mxu0
        %v2632 = vpop.f32.mrb[0].mxu0
        %v2633 = vadd.f32 0.0, %v2632
        %v2634 = vpop.f32.mrb[0].mxu0
        %2635 = vmatprep.mubr.bf16.mxu0 0
        %2636 = vmatmul.mubr.bf16.gmra.mrb[0].mxu0 %v224
        %v2637 = vpop.f32.mrb[0].mxu0
        %v2638 = vadd.f32 0.0, %v2637
        %v2639 = vpop.f32.mrb[0].mxu0
        %v2640 = vpop.f32.mrb[0].mxu0
        %v2641 = vadd.f32 0.0, %v2640
        %v2642 = vpop.f32.mrb[0].mxu0
        %2643 = vmatprep.mubr.bf16.mxu0 0
        %2644 = vmatmul.mubr.bf16.gmra.mrb[0].mxu0 %v225
        %v2645 = vpop.f32.mrb[0].mxu0
        %v2646 = vadd.f32 0.0, %v2645
        %v2647 = vpop.f32.mrb[0].mxu0
        %v2648 = vpop.f32.mrb[0].mxu0
        %v2649 = vadd.f32 0.0, %v2648
        %v2650 = vpop.f32.mrb[0].mxu0
        %2651 = vmatprep.mubr.bf16.mxu0 0
        %2652 = vmatmul.mubr.bf16.gmra.mrb[0].mxu0 %v226
        %v2653 = vpop.f32.mrb[0].mxu0
        %v2654 = vadd.f32 0.0, %v2653
        %v2655 = vpop.f32.mrb[0].mxu0
        %v2656 = vpop.f32.mrb[0].mxu0
        %v2657 = vadd.f32 0.0, %v2656
        %v2658 = vpop.f32.mrb[0].mxu0
        %2659 = vmatprep.mubr.bf16.mxu0 0
        %2660 = vmatmul.mubr.bf16.gmra.mrb[0].mxu0 %v227
        %v2661 = vpop.f32.mrb[0].mxu0
        %v2662 = vadd.f32 0.0, %v2661
        %v2663 = vpop.f32.mrb[0].mxu0
        %v2664 = vpop.f32.mrb[0].mxu0
        %v2665 = vadd.f32 0.0, %v2664
        %v2666 = vpop.f32.mrb[0].mxu0
        %2667 = vmatprep.mubr.bf16.mxu0 0
        %2668 = vmatmul.mubr.bf16.gmra.mrb[0].mxu0 %v228
        %v2669 = vpop.f32.mrb[0].mxu0
        %v2670 = vadd.f32 0.0, %v2669
        %v2671 = vpop.f32.mrb[0].mxu0
        %v2672 = vpop.f32.mrb[0].mxu0
        %v2673 = vadd.f32 0.0, %v2672
        %v2674 = vpop.f32.mrb[0].mxu0
        %2675 = vdwg.mxu0
        %v2676 = vadd.f32 %v2258, %v2422
        %v2677 = vadd.f32 %v2259, %v2425
        %v2678 = vadd.f32 %v2260, %v2430
        %v2679 = vadd.f32 %v2261, %v2433
        %v2680 = vadd.f32 %v2262, %v2438
        %v2681 = vadd.f32 %v2263, %v2441
        %v2682 = vadd.f32 %v2264, %v2446
        %v2683 = vadd.f32 %v2265, %v2449
        %v2684 = vadd.f32 %v2266, %v2454
        %v2685 = vadd.f32 %v2267, %v2457
        %v2686 = vadd.f32 %v2268, %v2462
        %v2687 = vadd.f32 %v2269, %v2465
        %v2688 = vadd.f32 %v2270, %v2470
        %v2689 = vadd.f32 %v2271, %v2473
        %v2690 = vadd.f32 %v2272, %v2478
        %v2691 = vadd.f32 %v2273, %v2481
        %v2692 = vadd.f32 %v2274, %v2486
        %v2693 = vadd.f32 %v2275, %v2489
        %v2694 = vadd.f32 %v2276, %v2494
        %v2695 = vadd.f32 %v2277, %v2497
        %v2696 = vadd.f32 %v2278, %v2502
        %v2697 = vadd.f32 %v2279, %v2505
        %v2698 = vadd.f32 %v2280, %v2510
        %v2699 = vadd.f32 %v2281, %v2513
        %v2700 = vadd.f32 %v2282, %v2518
        %v2701 = vadd.f32 %v2283, %v2521
        %v2702 = vadd.f32 %v2284, %v2526
        %v2703 = vadd.f32 %v2285, %v2529
        %v2704 = vadd.f32 %v2286, %v2534
        %v2705 = vadd.f32 %v2287, %v2537
        %v2706 = vadd.f32 %v2288, %v2542
        %v2707 = vadd.f32 %v2289, %v2545
        %v2708 = vadd.f32 %v2290, %v2550
        %v2709 = vadd.f32 %v2291, %v2553
        %v2710 = vadd.f32 %v2292, %v2558
        %v2711 = vadd.f32 %v2293, %v2561
        %v2712 = vadd.f32 %v2294, %v2566
        %v2713 = vadd.f32 %v2295, %v2569
        %v2714 = vadd.f32 %v2296, %v2574
        %v2715 = vadd.f32 %v2297, %v2577
        %v2716 = vadd.f32 %v2298, %v2582
        %v2717 = vadd.f32 %v2299, %v2585
        %v2718 = vadd.f32 %v2300, %v2590
        %v2719 = vadd.f32 %v2301, %v2593
        %v2720 = vadd.f32 %v2302, %v2598
        %v2721 = vadd.f32 %v2303, %v2601
        %v2722 = vadd.f32 %v2304, %v2606
        %v2723 = vadd.f32 %v2305, %v2609
        %v2724 = vadd.f32 %v2306, %v2614
        %v2725 = vadd.f32 %v2307, %v2617
        %v2726 = vadd.f32 %v2308, %v2622
        %v2727 = vadd.f32 %v2309, %v2625
        %v2728 = vadd.f32 %v2310, %v2630
        %v2729 = vadd.f32 %v2311, %v2633
        %v2730 = vadd.f32 %v2312, %v2638
        %v2731 = vadd.f32 %v2313, %v2641
        %v2732 = vadd.f32 %v2314, %v2646
        %v2733 = vadd.f32 %v2315, %v2649
        %v2734 = vadd.f32 %v2316, %v2654
        %v2735 = vadd.f32 %v2317, %v2657
        %v2736 = vadd.f32 %v2318, %v2662
        %v2737 = vadd.f32 %v2319, %v2665
        %v2738 = vadd.f32 %v2320, %v2670
        %v2739 = vadd.f32 %v2321, %v2673
        %v2740 = vrot.slane %v2676, 1
        %v2741 = vrot.slane %v2677, 1
        %v2742 = vrot.slane %v2678, 1
        %v2743 = vrot.slane %v2679, 1
        %v2744 = vrot.slane %v2680, 1
        %v2745 = vrot.slane %v2681, 1
        %v2746 = vrot.slane %v2682, 1
        %v2747 = vrot.slane %v2683, 1
        %v2748 = vrot.slane %v2684, 1
        %v2749 = vrot.slane %v2685, 1
        %v2750 = vrot.slane %v2686, 1
        %v2751 = vrot.slane %v2687, 1
        %v2752 = vrot.slane %v2688, 1
        %v2753 = vrot.slane %v2689, 1
        %v2754 = vrot.slane %v2690, 1
        %v2755 = vrot.slane %v2691, 1
        %v2756 = vrot.slane %v2692, 1
        %v2757 = vrot.slane %v2693, 1
        %v2758 = vrot.slane %v2694, 1
        %v2759 = vrot.slane %v2695, 1
        %v2760 = vrot.slane %v2696, 1
        %v2761 = vrot.slane %v2697, 1
        %v2762 = vrot.slane %v2698, 1
        %v2763 = vrot.slane %v2699, 1
        %v2764 = vrot.slane %v2700, 1
        %v2765 = vrot.slane %v2701, 1
        %v2766 = vrot.slane %v2702, 1
        %v2767 = vrot.slane %v2703, 1
        %v2768 = vrot.slane %v2704, 1
        %v2769 = vrot.slane %v2705, 1
        %v2770 = vrot.slane %v2706, 1
        %v2771 = vrot.slane %v2707, 1
        %v2772 = vrot.slane %v2708, 1
        %v2773 = vrot.slane %v2709, 1
        %v2774 = vrot.slane %v2710, 1
        %v2775 = vrot.slane %v2711, 1
        %v2776 = vrot.slane %v2712, 1
        %v2777 = vrot.slane %v2713, 1
        %v2778 = vrot.slane %v2714, 1
        %v2779 = vrot.slane %v2715, 1
        %v2780 = vrot.slane %v2716, 1
        %v2781 = vrot.slane %v2717, 1
        %v2782 = vrot.slane %v2718, 1
        %v2783 = vrot.slane %v2719, 1
        %v2784 = vrot.slane %v2720, 1
        %v2785 = vrot.slane %v2721, 1
        %v2786 = vrot.slane %v2722, 1
        %v2787 = vrot.slane %v2723, 1
        %v2788 = vrot.slane %v2724, 1
        %v2789 = vrot.slane %v2725, 1
        %v2790 = vrot.slane %v2726, 1
        %v2791 = vrot.slane %v2727, 1
        %v2792 = vrot.slane %v2728, 1
        %v2793 = vrot.slane %v2729, 1
        %v2794 = vrot.slane %v2730, 1
        %v2795 = vrot.slane %v2731, 1
        %v2796 = vrot.slane %v2732, 1
        %v2797 = vrot.slane %v2733, 1
        %v2798 = vrot.slane %v2734, 1
        %v2799 = vrot.slane %v2735, 1
        %v2800 = vrot.slane %v2736, 1
        %v2801 = vrot.slane %v2737, 1
        %v2802 = vrot.slane %v2738, 1
        %v2803 = vrot.slane %v2739, 1
        %v2804 = vsel %vm1421, %v2802, %v2803
        %v2805 = vsel %vm1421, %v2801, %v2802
        %v2806 = vsel %vm1421, %v2800, %v2801
        %v2807 = vsel %vm1421, %v2799, %v2800
        %v2808 = vsel %vm1421, %v2798, %v2799
        %v2809 = vsel %vm1421, %v2797, %v2798
        %v2810 = vsel %vm1421, %v2796, %v2797
        %v2811 = vsel %vm1421, %v2795, %v2796
        %v2812 = vsel %vm1421, %v2794, %v2795
        %v2813 = vsel %vm1421, %v2793, %v2794
        %v2814 = vsel %vm1421, %v2792, %v2793
        %v2815 = vsel %vm1421, %v2791, %v2792
        %v2816 = vsel %vm1421, %v2790, %v2791
        %v2817 = vsel %vm1421, %v2789, %v2790
        %v2818 = vsel %vm1421, %v2788, %v2789
        %v2819 = vsel %vm1421, %v2787, %v2788
        %v2820 = vsel %vm1421, %v2786, %v2787
        %v2821 = vsel %vm1421, %v2785, %v2786
        %v2822 = vsel %vm1421, %v2784, %v2785
        %v2823 = vsel %vm1421, %v2783, %v2784
        %v2824 = vsel %vm1421, %v2782, %v2783
        %v2825 = vsel %vm1421, %v2781, %v2782
        %v2826 = vsel %vm1421, %v2780, %v2781
        %v2827 = vsel %vm1421, %v2779, %v2780
        %v2828 = vsel %vm1421, %v2778, %v2779
        %v2829 = vsel %vm1421, %v2777, %v2778
        %v2830 = vsel %vm1421, %v2776, %v2777
        %v2831 = vsel %vm1421, %v2775, %v2776
        %v2832 = vsel %vm1421, %v2774, %v2775
        %v2833 = vsel %vm1421, %v2773, %v2774
        %v2834 = vsel %vm1421, %v2772, %v2773
        %v2835 = vsel %vm1421, %v2771, %v2772
        %v2836 = vsel %vm1421, %v2770, %v2771
        %v2837 = vsel %vm1421, %v2769, %v2770
        %v2838 = vsel %vm1421, %v2768, %v2769
        %v2839 = vsel %vm1421, %v2767, %v2768
        %v2840 = vsel %vm1421, %v2766, %v2767
        %v2841 = vsel %vm1421, %v2765, %v2766
        %v2842 = vsel %vm1421, %v2764, %v2765
        %v2843 = vsel %vm1421, %v2763, %v2764
        %v2844 = vsel %vm1421, %v2762, %v2763
        %v2845 = vsel %vm1421, %v2761, %v2762
        %v2846 = vsel %vm1421, %v2760, %v2761
        %v2847 = vsel %vm1421, %v2759, %v2760
        %v2848 = vsel %vm1421, %v2758, %v2759
        %v2849 = vsel %vm1421, %v2757, %v2758
        %v2850 = vsel %vm1421, %v2756, %v2757
        %v2851 = vsel %vm1421, %v2755, %v2756
        %v2852 = vsel %vm1421, %v2754, %v2755
        %v2853 = vsel %vm1421, %v2753, %v2754
        %v2854 = vsel %vm1421, %v2752, %v2753
        %v2855 = vsel %vm1421, %v2751, %v2752
        %v2856 = vsel %vm1421, %v2750, %v2751
        %v2857 = vsel %vm1421, %v2749, %v2750
        %v2858 = vsel %vm1421, %v2748, %v2749
        %v2859 = vsel %vm1421, %v2747, %v2748
        %v2860 = vsel %vm1421, %v2746, %v2747
        %v2861 = vsel %vm1421, %v2745, %v2746
        %v2862 = vsel %vm1421, %v2744, %v2745
        %v2863 = vsel %vm1421, %v2743, %v2744
        %v2864 = vsel %vm1421, %v2742, %v2743
        %v2865 = vsel %vm1421, %v2741, %v2742
        %v2866 = vsel %vm1421, %v2740, %v2741
        %v2867 = vsel %vm1421, %v2803, %v2740
        %v2868 = vld [vmem:[#allocation4] sm:$0xf]
        %v2869 = vld [vmem:[#allocation4 + $0x4] sm:$0xf]
        %v2870 = vld [vmem:[#allocation4 + $0x8] sm:$0xf]
        %v2871 = vld [vmem:[#allocation4 + $0xc] sm:$0xf]
        %v2872 = vld [vmem:[#allocation4 + $0x10] sm:$0xf]
        %v2873 = vld [vmem:[#allocation4 + $0x14] sm:$0xf]
        %v2874 = vld [vmem:[#allocation4 + $0x18] sm:$0xf]
        %v2875 = vld [vmem:[#allocation4 + $0x1c] sm:$0xf]
        %v2876 = vld [vmem:[#allocation4 + $0x20] sm:$0xf]
        %v2877 = vld [vmem:[#allocation4 + $0x24] sm:$0xf]
        %v2878 = vld [vmem:[#allocation4 + $0x28] sm:$0xf]
        %v2879 = vld [vmem:[#allocation4 + $0x2c] sm:$0xf]
        %v2880 = vld [vmem:[#allocation4 + $0x30] sm:$0xf]
        %v2881 = vld [vmem:[#allocation4 + $0x34] sm:$0xf]
        %v2882 = vld [vmem:[#allocation4 + $0x38] sm:$0xf]
        %v2883 = vld [vmem:[#allocation4 + $0x3c] sm:$0xf]
        %v2900 = vunpack.c.l.b16 %v2868
        %v2901 = vunpack.c.l.b16 %v2869
        %v2902 = vunpack.c.l.b16 %v2870
        %v2903 = vunpack.c.l.b16 %v2871
        %v2904 = vunpack.c.l.b16 %v2872
        %v2905 = vunpack.c.l.b16 %v2873
        %v2906 = vunpack.c.l.b16 %v2874
        %v2907 = vunpack.c.l.b16 %v2875
        %v2908 = vunpack.c.l.b16 %v2876
        %v2909 = vunpack.c.l.b16 %v2877
        %v2910 = vunpack.c.l.b16 %v2878
        %v2911 = vunpack.c.l.b16 %v2879
        %v2912 = vunpack.c.l.b16 %v2880
        %v2913 = vunpack.c.l.b16 %v2881
        %v2914 = vunpack.c.l.b16 %v2882
        %v2915 = vunpack.c.l.b16 %v2883
        %v2916 = vpack.c.b16 %v2901, %v2900
        %v2917 = vpack.c.b16 %v2903, %v2902
        %v2918 = vpack.c.b16 %v2905, %v2904
        %v2919 = vpack.c.b16 %v2907, %v2906
        %v2920 = vpack.c.b16 %v2909, %v2908
        %v2921 = vpack.c.b16 %v2911, %v2910
        %v2922 = vpack.c.b16 %v2913, %v2912
        %v2923 = vpack.c.b16 %v2915, %v2914
        %2932 = vmatprep.subr.bf16.mxu0 0
        %2933 = vmatpush1.bf16.msra.mxu0 %v2916
        %2934 = vmatprep.subr.bf16.mxu0 0
        %2935 = vmatpush1.bf16.msra.mxu0 %v2917
        %2936 = vmatprep.subr.bf16.mxu0 0
        %2937 = vmatpush1.bf16.msra.mxu0 %v2918
        %2938 = vmatprep.subr.bf16.mxu0 0
        %2939 = vmatpush1.bf16.msra.mxu0 %v2919
        %2940 = vmatprep.subr.bf16.mxu0 0
        %2941 = vmatpush1.bf16.msra.mxu0 %v2920
        %2942 = vmatprep.subr.bf16.mxu0 0
        %2943 = vmatpush1.bf16.msra.mxu0 %v2921
        %2944 = vmatprep.subr.bf16.mxu0 0
        %2945 = vmatpush1.bf16.msra.mxu0 %v2922
        %2946 = vmatprep.subr.bf16.mxu0 0
        %2947 = vmatpush1.bf16.msra.mxu0 %v2923
        %2948 = vmatprep.subr.bf16.mxu0 0
        %2949 = vmatpush1.bf16.msra.mxu0 0
        %2950 = vmatprep.subr.bf16.mxu0 0
        %2951 = vmatpush1.bf16.msra.mxu0 0
        %2952 = vmatprep.subr.bf16.mxu0 0
        %2953 = vmatpush1.bf16.msra.mxu0 0
        %2954 = vmatprep.subr.bf16.mxu0 0
        %2955 = vmatpush1.bf16.msra.mxu0 0
        %2956 = vmatprep.subr.bf16.mxu0 0
        %2957 = vmatpush1.bf16.msra.mxu0 0
        %2958 = vmatprep.subr.bf16.mxu0 0
        %2959 = vmatpush1.bf16.msra.mxu0 0
        %2960 = vmatprep.subr.bf16.mxu0 0
        %2961 = vmatpush1.bf16.msra.mxu0 0
        %2962 = vmatprep.subr.bf16.mxu0 0
        %2963 = vmatpush1.bf16.msra.mxu0 0
        %2964 = vmatprep.mubr.bf16.mxu0 0
        %2965 = vmatmul.mubr.bf16.gmra.mrb[0].mxu0 %v193
        %v2966 = vpop.f32.mrb[0].mxu0
        %v2967 = vadd.f32 0.0, %v2966
        %v2968 = vpop.f32.mrb[0].mxu0
        %v2969 = vpop.f32.mrb[0].mxu0
        %v2970 = vadd.f32 0.0, %v2969
        %v2971 = vpop.f32.mrb[0].mxu0
        %2972 = vmatprep.mubr.bf16.mxu0 0
        %2973 = vmatmul.mubr.bf16.gmra.mrb[0].mxu0 %v194
        %v2974 = vpop.f32.mrb[0].mxu0
        %v2975 = vadd.f32 0.0, %v2974
        %v2976 = vpop.f32.mrb[0].mxu0
        %v2977 = vpop.f32.mrb[0].mxu0
        %v2978 = vadd.f32 0.0, %v2977
        %v2979 = vpop.f32.mrb[0].mxu0
        %2980 = vmatprep.mubr.bf16.mxu0 0
        %2981 = vmatmul.mubr.bf16.gmra.mrb[0].mxu0 %v195
        %v2982 = vpop.f32.mrb[0].mxu0
        %v2983 = vadd.f32 0.0, %v2982
        %v2984 = vpop.f32.mrb[0].mxu0
        %v2985 = vpop.f32.mrb[0].mxu0
        %v2986 = vadd.f32 0.0, %v2985
        %v2987 = vpop.f32.mrb[0].mxu0
        %2988 = vmatprep.mubr.bf16.mxu0 0
        %2989 = vmatmul.mubr.bf16.gmra.mrb[0].mxu0 %v196
        %v2990 = vpop.f32.mrb[0].mxu0
        %v2991 = vadd.f32 0.0, %v2990
        %v2992 = vpop.f32.mrb[0].mxu0
        %v2993 = vpop.f32.mrb[0].mxu0
        %v2994 = vadd.f32 0.0, %v2993
        %v2995 = vpop.f32.mrb[0].mxu0
        %2996 = vmatprep.mubr.bf16.mxu0 0
        %2997 = vmatmul.mubr.bf16.gmra.mrb[0].mxu0 %v197
        %v2998 = vpop.f32.mrb[0].mxu0
        %v2999 = vadd.f32 0.0, %v2998
        %v3000 = vpop.f32.mrb[0].mxu0
        %v3001 = vpop.f32.mrb[0].mxu0
        %v3002 = vadd.f32 0.0, %v3001
        %v3003 = vpop.f32.mrb[0].mxu0
        %3004 = vmatprep.mubr.bf16.mxu0 0
        %3005 = vmatmul.mubr.bf16.gmra.mrb[0].mxu0 %v198
        %v3006 = vpop.f32.mrb[0].mxu0
        %v3007 = vadd.f32 0.0, %v3006
        %v3008 = vpop.f32.mrb[0].mxu0
        %v3009 = vpop.f32.mrb[0].mxu0
        %v3010 = vadd.f32 0.0, %v3009
        %v3011 = vpop.f32.mrb[0].mxu0
        %3012 = vmatprep.mubr.bf16.mxu0 0
        %3013 = vmatmul.mubr.bf16.gmra.mrb[0].mxu0 %v199
        %v3014 = vpop.f32.mrb[0].mxu0
        %v3015 = vadd.f32 0.0, %v3014
        %v3016 = vpop.f32.mrb[0].mxu0
        %v3017 = vpop.f32.mrb[0].mxu0
        %v3018 = vadd.f32 0.0, %v3017
        %v3019 = vpop.f32.mrb[0].mxu0
        %3020 = vmatprep.mubr.bf16.mxu0 0
        %3021 = vmatmul.mubr.bf16.gmra.mrb[0].mxu0 %v200
        %v3022 = vpop.f32.mrb[0].mxu0
        %v3023 = vadd.f32 0.0, %v3022
        %v3024 = vpop.f32.mrb[0].mxu0
        %v3025 = vpop.f32.mrb[0].mxu0
        %v3026 = vadd.f32 0.0, %v3025
        %v3027 = vpop.f32.mrb[0].mxu0
        %3028 = vmatprep.mubr.bf16.mxu0 0
        %3029 = vmatmul.mubr.bf16.gmra.mrb[0].mxu0 %v201
        %v3030 = vpop.f32.mrb[0].mxu0
        %v3031 = vadd.f32 0.0, %v3030
        %v3032 = vpop.f32.mrb[0].mxu0
        %v3033 = vpop.f32.mrb[0].mxu0
        %v3034 = vadd.f32 0.0, %v3033
        %v3035 = vpop.f32.mrb[0].mxu0
        %3036 = vmatprep.mubr.bf16.mxu0 0
        %3037 = vmatmul.mubr.bf16.gmra.mrb[0].mxu0 %v202
        %v3038 = vpop.f32.mrb[0].mxu0
        %v3039 = vadd.f32 0.0, %v3038
        %v3040 = vpop.f32.mrb[0].mxu0
        %v3041 = vpop.f32.mrb[0].mxu0
        %v3042 = vadd.f32 0.0, %v3041
        %v3043 = vpop.f32.mrb[0].mxu0
        %3044 = vmatprep.mubr.bf16.mxu0 0
        %3045 = vmatmul.mubr.bf16.gmra.mrb[0].mxu0 %v203
        %v3046 = vpop.f32.mrb[0].mxu0
        %v3047 = vadd.f32 0.0, %v3046
        %v3048 = vpop.f32.mrb[0].mxu0
        %v3049 = vpop.f32.mrb[0].mxu0
        %v3050 = vadd.f32 0.0, %v3049
        %v3051 = vpop.f32.mrb[0].mxu0
        %3052 = vmatprep.mubr.bf16.mxu0 0
        %3053 = vmatmul.mubr.bf16.gmra.mrb[0].mxu0 %v204
        %v3054 = vpop.f32.mrb[0].mxu0
        %v3055 = vadd.f32 0.0, %v3054
        %v3056 = vpop.f32.mrb[0].mxu0
        %v3057 = vpop.f32.mrb[0].mxu0
        %v3058 = vadd.f32 0.0, %v3057
        %v3059 = vpop.f32.mrb[0].mxu0
        %3060 = vmatprep.mubr.bf16.mxu0 0
        %3061 = vmatmul.mubr.bf16.gmra.mrb[0].mxu0 %v205
        %v3062 = vpop.f32.mrb[0].mxu0
        %v3063 = vadd.f32 0.0, %v3062
        %v3064 = vpop.f32.mrb[0].mxu0
        %v3065 = vpop.f32.mrb[0].mxu0
        %v3066 = vadd.f32 0.0, %v3065
        %v3067 = vpop.f32.mrb[0].mxu0
        %3068 = vmatprep.mubr.bf16.mxu0 0
        %3069 = vmatmul.mubr.bf16.gmra.mrb[0].mxu0 %v206
        %v3070 = vpop.f32.mrb[0].mxu0
        %v3071 = vadd.f32 0.0, %v3070
        %v3072 = vpop.f32.mrb[0].mxu0
        %v3073 = vpop.f32.mrb[0].mxu0
        %v3074 = vadd.f32 0.0, %v3073
        %v3075 = vpop.f32.mrb[0].mxu0
        %3076 = vmatprep.mubr.bf16.mxu0 0
        %3077 = vmatmul.mubr.bf16.gmra.mrb[0].mxu0 %v207
        %v3078 = vpop.f32.mrb[0].mxu0
        %v3079 = vadd.f32 0.0, %v3078
        %v3080 = vpop.f32.mrb[0].mxu0
        %v3081 = vpop.f32.mrb[0].mxu0
        %v3082 = vadd.f32 0.0, %v3081
        %v3083 = vpop.f32.mrb[0].mxu0
        %3084 = vmatprep.mubr.bf16.mxu0 0
        %3085 = vmatmul.mubr.bf16.gmra.mrb[0].mxu0 %v208
        %v3086 = vpop.f32.mrb[0].mxu0
        %v3087 = vadd.f32 0.0, %v3086
        %v3088 = vpop.f32.mrb[0].mxu0
        %v3089 = vpop.f32.mrb[0].mxu0
        %v3090 = vadd.f32 0.0, %v3089
        %v3091 = vpop.f32.mrb[0].mxu0
        %3092 = vmatprep.mubr.bf16.mxu0 0
        %3093 = vmatmul.mubr.bf16.gmra.mrb[0].mxu0 %v209
        %v3094 = vpop.f32.mrb[0].mxu0
        %v3095 = vadd.f32 0.0, %v3094
        %v3096 = vpop.f32.mrb[0].mxu0
        %v3097 = vpop.f32.mrb[0].mxu0
        %v3098 = vadd.f32 0.0, %v3097
        %v3099 = vpop.f32.mrb[0].mxu0
        %3100 = vmatprep.mubr.bf16.mxu0 0
        %3101 = vmatmul.mubr.bf16.gmra.mrb[0].mxu0 %v210
        %v3102 = vpop.f32.mrb[0].mxu0
        %v3103 = vadd.f32 0.0, %v3102
        %v3104 = vpop.f32.mrb[0].mxu0
        %v3105 = vpop.f32.mrb[0].mxu0
        %v3106 = vadd.f32 0.0, %v3105
        %v3107 = vpop.f32.mrb[0].mxu0
        %3108 = vmatprep.mubr.bf16.mxu0 0
        %3109 = vmatmul.mubr.bf16.gmra.mrb[0].mxu0 %v211
        %v3110 = vpop.f32.mrb[0].mxu0
        %v3111 = vadd.f32 0.0, %v3110
        %v3112 = vpop.f32.mrb[0].mxu0
        %v3113 = vpop.f32.mrb[0].mxu0
        %v3114 = vadd.f32 0.0, %v3113
        %v3115 = vpop.f32.mrb[0].mxu0
        %3116 = vmatprep.mubr.bf16.mxu0 0
        %3117 = vmatmul.mubr.bf16.gmra.mrb[0].mxu0 %v212
        %v3118 = vpop.f32.mrb[0].mxu0
        %v3119 = vadd.f32 0.0, %v3118
        %v3120 = vpop.f32.mrb[0].mxu0
        %v3121 = vpop.f32.mrb[0].mxu0
        %v3122 = vadd.f32 0.0, %v3121
        %v3123 = vpop.f32.mrb[0].mxu0
        %3124 = vmatprep.mubr.bf16.mxu0 0
        %3125 = vmatmul.mubr.bf16.gmra.mrb[0].mxu0 %v213
        %v3126 = vpop.f32.mrb[0].mxu0
        %v3127 = vadd.f32 0.0, %v3126
        %v3128 = vpop.f32.mrb[0].mxu0
        %v3129 = vpop.f32.mrb[0].mxu0
        %v3130 = vadd.f32 0.0, %v3129
        %v3131 = vpop.f32.mrb[0].mxu0
        %3132 = vmatprep.mubr.bf16.mxu0 0
        %3133 = vmatmul.mubr.bf16.gmra.mrb[0].mxu0 %v214
        %v3134 = vpop.f32.mrb[0].mxu0
        %v3135 = vadd.f32 0.0, %v3134
        %v3136 = vpop.f32.mrb[0].mxu0
        %v3137 = vpop.f32.mrb[0].mxu0
        %v3138 = vadd.f32 0.0, %v3137
        %v3139 = vpop.f32.mrb[0].mxu0
        %3140 = vmatprep.mubr.bf16.mxu0 0
        %3141 = vmatmul.mubr.bf16.gmra.mrb[0].mxu0 %v215
        %v3142 = vpop.f32.mrb[0].mxu0
        %v3143 = vadd.f32 0.0, %v3142
        %v3144 = vpop.f32.mrb[0].mxu0
        %v3145 = vpop.f32.mrb[0].mxu0
        %v3146 = vadd.f32 0.0, %v3145
        %v3147 = vpop.f32.mrb[0].mxu0
        %3148 = vmatprep.mubr.bf16.mxu0 0
        %3149 = vmatmul.mubr.bf16.gmra.mrb[0].mxu0 %v216
        %v3150 = vpop.f32.mrb[0].mxu0
        %v3151 = vadd.f32 0.0, %v3150
        %v3152 = vpop.f32.mrb[0].mxu0
        %v3153 = vpop.f32.mrb[0].mxu0
        %v3154 = vadd.f32 0.0, %v3153
        %v3155 = vpop.f32.mrb[0].mxu0
        %3156 = vmatprep.mubr.bf16.mxu0 0
        %3157 = vmatmul.mubr.bf16.gmra.mrb[0].mxu0 %v217
        %v3158 = vpop.f32.mrb[0].mxu0
        %v3159 = vadd.f32 0.0, %v3158
        %v3160 = vpop.f32.mrb[0].mxu0
        %v3161 = vpop.f32.mrb[0].mxu0
        %v3162 = vadd.f32 0.0, %v3161
        %v3163 = vpop.f32.mrb[0].mxu0
        %3164 = vmatprep.mubr.bf16.mxu0 0
        %3165 = vmatmul.mubr.bf16.gmra.mrb[0].mxu0 %v218
        %v3166 = vpop.f32.mrb[0].mxu0
        %v3167 = vadd.f32 0.0, %v3166
        %v3168 = vpop.f32.mrb[0].mxu0
        %v3169 = vpop.f32.mrb[0].mxu0
        %v3170 = vadd.f32 0.0, %v3169
        %v3171 = vpop.f32.mrb[0].mxu0
        %3172 = vmatprep.mubr.bf16.mxu0 0
        %3173 = vmatmul.mubr.bf16.gmra.mrb[0].mxu0 %v219
        %v3174 = vpop.f32.mrb[0].mxu0
        %v3175 = vadd.f32 0.0, %v3174
        %v3176 = vpop.f32.mrb[0].mxu0
        %v3177 = vpop.f32.mrb[0].mxu0
        %v3178 = vadd.f32 0.0, %v3177
        %v3179 = vpop.f32.mrb[0].mxu0
        %3180 = vmatprep.mubr.bf16.mxu0 0
        %3181 = vmatmul.mubr.bf16.gmra.mrb[0].mxu0 %v220
        %v3182 = vpop.f32.mrb[0].mxu0
        %v3183 = vadd.f32 0.0, %v3182
        %v3184 = vpop.f32.mrb[0].mxu0
        %v3185 = vpop.f32.mrb[0].mxu0
        %v3186 = vadd.f32 0.0, %v3185
        %v3187 = vpop.f32.mrb[0].mxu0
        %3188 = vmatprep.mubr.bf16.mxu0 0
        %3189 = vmatmul.mubr.bf16.gmra.mrb[0].mxu0 %v221
        %v3190 = vpop.f32.mrb[0].mxu0
        %v3191 = vadd.f32 0.0, %v3190
        %v3192 = vpop.f32.mrb[0].mxu0
        %v3193 = vpop.f32.mrb[0].mxu0
        %v3194 = vadd.f32 0.0, %v3193
        %v3195 = vpop.f32.mrb[0].mxu0
        %3196 = vmatprep.mubr.bf16.mxu0 0
        %3197 = vmatmul.mubr.bf16.gmra.mrb[0].mxu0 %v222
        %v3198 = vpop.f32.mrb[0].mxu0
        %v3199 = vadd.f32 0.0, %v3198
        %v3200 = vpop.f32.mrb[0].mxu0
        %v3201 = vpop.f32.mrb[0].mxu0
        %v3202 = vadd.f32 0.0, %v3201
        %v3203 = vpop.f32.mrb[0].mxu0
        %3204 = vmatprep.mubr.bf16.mxu0 0
        %3205 = vmatmul.mubr.bf16.gmra.mrb[0].mxu0 %v223
        %v3206 = vpop.f32.mrb[0].mxu0
        %v3207 = vadd.f32 0.0, %v3206
        %v3208 = vpop.f32.mrb[0].mxu0
        %v3209 = vpop.f32.mrb[0].mxu0
        %v3210 = vadd.f32 0.0, %v3209
        %v3211 = vpop.f32.mrb[0].mxu0
        %3212 = vmatprep.mubr.bf16.mxu0 0
        %3213 = vmatmul.mubr.bf16.gmra.mrb[0].mxu0 %v224
        %v3214 = vpop.f32.mrb[0].mxu0
        %v3215 = vadd.f32 0.0, %v3214
        %v3216 = vpop.f32.mrb[0].mxu0
        %v3217 = vpop.f32.mrb[0].mxu0
        %v3218 = vadd.f32 0.0, %v3217
        %v3219 = vpop.f32.mrb[0].mxu0
        %3220 = vdwg.mxu0
        %v3221 = vadd.f32 %v2866, %v2967
        %v3222 = vadd.f32 %v2865, %v2970
        %v3223 = vadd.f32 %v2864, %v2975
        %v3224 = vadd.f32 %v2863, %v2978
        %v3225 = vadd.f32 %v2862, %v2983
        %v3226 = vadd.f32 %v2861, %v2986
        %v3227 = vadd.f32 %v2860, %v2991
        %v3228 = vadd.f32 %v2859, %v2994
        %v3229 = vadd.f32 %v2858, %v2999
        %v3230 = vadd.f32 %v2857, %v3002
        %v3231 = vadd.f32 %v2856, %v3007
        %v3232 = vadd.f32 %v2855, %v3010
        %v3233 = vadd.f32 %v2854, %v3015
        %v3234 = vadd.f32 %v2853, %v3018
        %v3235 = vadd.f32 %v2852, %v3023
        %v3236 = vadd.f32 %v2851, %v3026
        %v3237 = vadd.f32 %v2850, %v3031
        %v3238 = vadd.f32 %v2849, %v3034
        %v3239 = vadd.f32 %v2848, %v3039
        %v3240 = vadd.f32 %v2847, %v3042
        %v3241 = vadd.f32 %v2846, %v3047
        %v3242 = vadd.f32 %v2845, %v3050
        %v3243 = vadd.f32 %v2844, %v3055
        %v3244 = vadd.f32 %v2843, %v3058
        %v3245 = vadd.f32 %v2842, %v3063
        %v3246 = vadd.f32 %v2841, %v3066
        %v3247 = vadd.f32 %v2840, %v3071
        %v3248 = vadd.f32 %v2839, %v3074
        %v3249 = vadd.f32 %v2838, %v3079
        %v3250 = vadd.f32 %v2837, %v3082
        %v3251 = vadd.f32 %v2836, %v3087
        %v3252 = vadd.f32 %v2835, %v3090
        %v3253 = vadd.f32 %v2834, %v3095
        %v3254 = vadd.f32 %v2833, %v3098
        %v3255 = vadd.f32 %v2832, %v3103
        %v3256 = vadd.f32 %v2831, %v3106
        %v3257 = vadd.f32 %v2830, %v3111
        %v3258 = vadd.f32 %v2829, %v3114
        %v3259 = vadd.f32 %v2828, %v3119
        %v3260 = vadd.f32 %v2827, %v3122
        %v3261 = vadd.f32 %v2826, %v3127
        %v3262 = vadd.f32 %v2825, %v3130
        %v3263 = vadd.f32 %v2824, %v3135
        %v3264 = vadd.f32 %v2823, %v3138
        %v3265 = vadd.f32 %v2822, %v3143
        %v3266 = vadd.f32 %v2821, %v3146
        %v3267 = vadd.f32 %v2820, %v3151
        %v3268 = vadd.f32 %v2819, %v3154
        %v3269 = vadd.f32 %v2818, %v3159
        %v3270 = vadd.f32 %v2817, %v3162
        %v3271 = vadd.f32 %v2816, %v3167
        %v3272 = vadd.f32 %v2815, %v3170
        %v3273 = vadd.f32 %v2814, %v3175
        %v3274 = vadd.f32 %v2813, %v3178
        %v3275 = vadd.f32 %v2812, %v3183
        %v3276 = vadd.f32 %v2811, %v3186
        %v3277 = vadd.f32 %v2810, %v3191
        %v3278 = vadd.f32 %v2809, %v3194
        %v3279 = vadd.f32 %v2808, %v3199
        %v3280 = vadd.f32 %v2807, %v3202
        %v3281 = vadd.f32 %v2806, %v3207
        %v3282 = vadd.f32 %v2805, %v3210
        %v3283 = vadd.f32 %v2804, %v3215
        %v3284 = vadd.f32 %v2867, %v3218
        %s3285 = scalar_lea.vmem [#allocation4], 192
        %v3286 = vld [vmem:[%s3285] sm:$0xf]
        %v3287 = vld [vmem:[%s3285 + $0x4] sm:$0xf]
        %v3288 = vld [vmem:[%s3285 + $0x8] sm:$0xf]
        %v3289 = vld [vmem:[%s3285 + $0xc] sm:$0xf]
        %v3290 = vld [vmem:[%s3285 + $0x10] sm:$0xf]
        %v3291 = vld [vmem:[%s3285 + $0x14] sm:$0xf]
        %v3292 = vld [vmem:[%s3285 + $0x18] sm:$0xf]
        %v3293 = vld [vmem:[%s3285 + $0x1c] sm:$0xf]
        %v3294 = vld [vmem:[%s3285 + $0x20] sm:$0xf]
        %v3295 = vld [vmem:[%s3285 + $0x24] sm:$0xf]
        %v3296 = vld [vmem:[%s3285 + $0x28] sm:$0xf]
        %v3297 = vld [vmem:[%s3285 + $0x2c] sm:$0xf]
        %v3298 = vld [vmem:[%s3285 + $0x30] sm:$0xf]
        %v3299 = vld [vmem:[%s3285 + $0x34] sm:$0xf]
        %v3300 = vld [vmem:[%s3285 + $0x38] sm:$0xf]
        %v3301 = vld [vmem:[%s3285 + $0x3c] sm:$0xf]
        %v3318 = vunpack.c.l.b16 %v3286
        %v3319 = vunpack.c.l.b16 %v3287
        %v3320 = vunpack.c.l.b16 %v3288
        %v3321 = vunpack.c.l.b16 %v3289
        %v3322 = vunpack.c.l.b16 %v3290
        %v3323 = vunpack.c.l.b16 %v3291
        %v3324 = vunpack.c.l.b16 %v3292
        %v3325 = vunpack.c.l.b16 %v3293
        %v3326 = vunpack.c.l.b16 %v3294
        %v3327 = vunpack.c.l.b16 %v3295
        %v3328 = vunpack.c.l.b16 %v3296
        %v3329 = vunpack.c.l.b16 %v3297
        %v3330 = vunpack.c.l.b16 %v3298
        %v3331 = vunpack.c.l.b16 %v3299
        %v3332 = vunpack.c.l.b16 %v3300
        %v3333 = vunpack.c.l.b16 %v3301
        %v3334 = vpack.c.b16 %v3319, %v3318
        %v3335 = vpack.c.b16 %v3321, %v3320
        %v3336 = vpack.c.b16 %v3323, %v3322
        %v3337 = vpack.c.b16 %v3325, %v3324
        %v3338 = vpack.c.b16 %v3327, %v3326
        %v3339 = vpack.c.b16 %v3329, %v3328
        %v3340 = vpack.c.b16 %v3331, %v3330
        %v3341 = vpack.c.b16 %v3333, %v3332
        %3350 = vmatprep.subr.bf16.mxu0 0
        %3351 = vmatpush1.bf16.msra.mxu0 %v3334
        %3352 = vmatprep.subr.bf16.mxu0 0
        %3353 = vmatpush1.bf16.msra.mxu0 %v3335
        %3354 = vmatprep.subr.bf16.mxu0 0
        %3355 = vmatpush1.bf16.msra.mxu0 %v3336
        %3356 = vmatprep.subr.bf16.mxu0 0
        %3357 = vmatpush1.bf16.msra.mxu0 %v3337
        %3358 = vmatprep.subr.bf16.mxu0 0
        %3359 = vmatpush1.bf16.msra.mxu0 %v3338
        %3360 = vmatprep.subr.bf16.mxu0 0
        %3361 = vmatpush1.bf16.msra.mxu0 %v3339
        %3362 = vmatprep.subr.bf16.mxu0 0
        %3363 = vmatpush1.bf16.msra.mxu0 %v3340
        %3364 = vmatprep.subr.bf16.mxu0 0
        %3365 = vmatpush1.bf16.msra.mxu0 %v3341
        %3366 = vmatprep.subr.bf16.mxu0 0
        %3367 = vmatpush1.bf16.msra.mxu0 0
        %3368 = vmatprep.subr.bf16.mxu0 0
        %3369 = vmatpush1.bf16.msra.mxu0 0
        %3370 = vmatprep.subr.bf16.mxu0 0
        %3371 = vmatpush1.bf16.msra.mxu0 0
        %3372 = vmatprep.subr.bf16.mxu0 0
        %3373 = vmatpush1.bf16.msra.mxu0 0
        %3374 = vmatprep.subr.bf16.mxu0 0
        %3375 = vmatpush1.bf16.msra.mxu0 0
        %3376 = vmatprep.subr.bf16.mxu0 0
        %3377 = vmatpush1.bf16.msra.mxu0 0
        %3378 = vmatprep.subr.bf16.mxu0 0
        %3379 = vmatpush1.bf16.msra.mxu0 0
        %3380 = vmatprep.subr.bf16.mxu0 0
        %3381 = vmatpush1.bf16.msra.mxu0 0
        %3382 = vmatprep.mubr.bf16.mxu0 0
        %3383 = vmatmul.mubr.bf16.gmra.mrb[0].mxu0 %v195
        %v3384 = vpop.f32.mrb[0].mxu0
        %v3385 = vadd.f32 0.0, %v3384
        %v3386 = vpop.f32.mrb[0].mxu0
        %v3387 = vpop.f32.mrb[0].mxu0
        %v3388 = vadd.f32 0.0, %v3387
        %v3389 = vpop.f32.mrb[0].mxu0
        %3390 = vmatprep.mubr.bf16.mxu0 0
        %3391 = vmatmul.mubr.bf16.gmra.mrb[0].mxu0 %v196
        %v3392 = vpop.f32.mrb[0].mxu0
        %v3393 = vadd.f32 0.0, %v3392
        %v3394 = vpop.f32.mrb[0].mxu0
        %v3395 = vpop.f32.mrb[0].mxu0
        %v3396 = vadd.f32 0.0, %v3395
        %v3397 = vpop.f32.mrb[0].mxu0
        %3398 = vmatprep.mubr.bf16.mxu0 0
        %3399 = vmatmul.mubr.bf16.gmra.mrb[0].mxu0 %v197
        %v3400 = vpop.f32.mrb[0].mxu0
        %v3401 = vadd.f32 0.0, %v3400
        %v3402 = vpop.f32.mrb[0].mxu0
        %v3403 = vpop.f32.mrb[0].mxu0
        %v3404 = vadd.f32 0.0, %v3403
        %v3405 = vpop.f32.mrb[0].mxu0
        %3406 = vmatprep.mubr.bf16.mxu0 0
        %3407 = vmatmul.mubr.bf16.gmra.mrb[0].mxu0 %v198
        %v3408 = vpop.f32.mrb[0].mxu0
        %v3409 = vadd.f32 0.0, %v3408
        %v3410 = vpop.f32.mrb[0].mxu0
        %v3411 = vpop.f32.mrb[0].mxu0
        %v3412 = vadd.f32 0.0, %v3411
        %v3413 = vpop.f32.mrb[0].mxu0
        %3414 = vmatprep.mubr.bf16.mxu0 0
        %3415 = vmatmul.mubr.bf16.gmra.mrb[0].mxu0 %v199
        %v3416 = vpop.f32.mrb[0].mxu0
        %v3417 = vadd.f32 0.0, %v3416
        %v3418 = vpop.f32.mrb[0].mxu0
        %v3419 = vpop.f32.mrb[0].mxu0
        %v3420 = vadd.f32 0.0, %v3419
        %v3421 = vpop.f32.mrb[0].mxu0
        %3422 = vmatprep.mubr.bf16.mxu0 0
        %3423 = vmatmul.mubr.bf16.gmra.mrb[0].mxu0 %v200
        %v3424 = vpop.f32.mrb[0].mxu0
        %v3425 = vadd.f32 0.0, %v3424
        %v3426 = vpop.f32.mrb[0].mxu0
        %v3427 = vpop.f32.mrb[0].mxu0
        %v3428 = vadd.f32 0.0, %v3427
        %v3429 = vpop.f32.mrb[0].mxu0
        %3430 = vmatprep.mubr.bf16.mxu0 0
        %3431 = vmatmul.mubr.bf16.gmra.mrb[0].mxu0 %v201
        %v3432 = vpop.f32.mrb[0].mxu0
        %v3433 = vadd.f32 0.0, %v3432
        %v3434 = vpop.f32.mrb[0].mxu0
        %v3435 = vpop.f32.mrb[0].mxu0
        %v3436 = vadd.f32 0.0, %v3435
        %v3437 = vpop.f32.mrb[0].mxu0
        %3438 = vmatprep.mubr.bf16.mxu0 0
        %3439 = vmatmul.mubr.bf16.gmra.mrb[0].mxu0 %v202
        %v3440 = vpop.f32.mrb[0].mxu0
        %v3441 = vadd.f32 0.0, %v3440
        %v3442 = vpop.f32.mrb[0].mxu0
        %v3443 = vpop.f32.mrb[0].mxu0
        %v3444 = vadd.f32 0.0, %v3443
        %v3445 = vpop.f32.mrb[0].mxu0
        %3446 = vmatprep.mubr.bf16.mxu0 0
        %3447 = vmatmul.mubr.bf16.gmra.mrb[0].mxu0 %v203
        %v3448 = vpop.f32.mrb[0].mxu0
        %v3449 = vadd.f32 0.0, %v3448
        %v3450 = vpop.f32.mrb[0].mxu0
        %v3451 = vpop.f32.mrb[0].mxu0
        %v3452 = vadd.f32 0.0, %v3451
        %v3453 = vpop.f32.mrb[0].mxu0
        %3454 = vmatprep.mubr.bf16.mxu0 0
        %3455 = vmatmul.mubr.bf16.gmra.mrb[0].mxu0 %v204
        %v3456 = vpop.f32.mrb[0].mxu0
        %v3457 = vadd.f32 0.0, %v3456
        %v3458 = vpop.f32.mrb[0].mxu0
        %v3459 = vpop.f32.mrb[0].mxu0
        %v3460 = vadd.f32 0.0, %v3459
        %v3461 = vpop.f32.mrb[0].mxu0
        %3462 = vmatprep.mubr.bf16.mxu0 0
        %3463 = vmatmul.mubr.bf16.gmra.mrb[0].mxu0 %v205
        %v3464 = vpop.f32.mrb[0].mxu0
        %v3465 = vadd.f32 0.0, %v3464
        %v3466 = vpop.f32.mrb[0].mxu0
        %v3467 = vpop.f32.mrb[0].mxu0
        %v3468 = vadd.f32 0.0, %v3467
        %v3469 = vpop.f32.mrb[0].mxu0
        %3470 = vmatprep.mubr.bf16.mxu0 0
        %3471 = vmatmul.mubr.bf16.gmra.mrb[0].mxu0 %v206
        %v3472 = vpop.f32.mrb[0].mxu0
        %v3473 = vadd.f32 0.0, %v3472
        %v3474 = vpop.f32.mrb[0].mxu0
        %v3475 = vpop.f32.mrb[0].mxu0
        %v3476 = vadd.f32 0.0, %v3475
        %v3477 = vpop.f32.mrb[0].mxu0
        %3478 = vmatprep.mubr.bf16.mxu0 0
        %3479 = vmatmul.mubr.bf16.gmra.mrb[0].mxu0 %v207
        %v3480 = vpop.f32.mrb[0].mxu0
        %v3481 = vadd.f32 0.0, %v3480
        %v3482 = vpop.f32.mrb[0].mxu0
        %v3483 = vpop.f32.mrb[0].mxu0
        %v3484 = vadd.f32 0.0, %v3483
        %v3485 = vpop.f32.mrb[0].mxu0
        %3486 = vmatprep.mubr.bf16.mxu0 0
        %3487 = vmatmul.mubr.bf16.gmra.mrb[0].mxu0 %v208
        %v3488 = vpop.f32.mrb[0].mxu0
        %v3489 = vadd.f32 0.0, %v3488
        %v3490 = vpop.f32.mrb[0].mxu0
        %v3491 = vpop.f32.mrb[0].mxu0
        %v3492 = vadd.f32 0.0, %v3491
        %v3493 = vpop.f32.mrb[0].mxu0
        %3494 = vmatprep.mubr.bf16.mxu0 0
        %3495 = vmatmul.mubr.bf16.gmra.mrb[0].mxu0 %v209
        %v3496 = vpop.f32.mrb[0].mxu0
        %v3497 = vadd.f32 0.0, %v3496
        %v3498 = vpop.f32.mrb[0].mxu0
        %v3499 = vpop.f32.mrb[0].mxu0
        %v3500 = vadd.f32 0.0, %v3499
        %v3501 = vpop.f32.mrb[0].mxu0
        %3502 = vmatprep.mubr.bf16.mxu0 0
        %3503 = vmatmul.mubr.bf16.gmra.mrb[0].mxu0 %v210
        %v3504 = vpop.f32.mrb[0].mxu0
        %v3505 = vadd.f32 0.0, %v3504
        %v3506 = vpop.f32.mrb[0].mxu0
        %v3507 = vpop.f32.mrb[0].mxu0
        %v3508 = vadd.f32 0.0, %v3507
        %v3509 = vpop.f32.mrb[0].mxu0
        %3510 = vmatprep.mubr.bf16.mxu0 0
        %3511 = vmatmul.mubr.bf16.gmra.mrb[0].mxu0 %v211
        %v3512 = vpop.f32.mrb[0].mxu0
        %v3513 = vadd.f32 0.0, %v3512
        %v3514 = vpop.f32.mrb[0].mxu0
        %v3515 = vpop.f32.mrb[0].mxu0
        %v3516 = vadd.f32 0.0, %v3515
        %v3517 = vpop.f32.mrb[0].mxu0
        %3518 = vmatprep.mubr.bf16.mxu0 0
        %3519 = vmatmul.mubr.bf16.gmra.mrb[0].mxu0 %v212
        %v3520 = vpop.f32.mrb[0].mxu0
        %v3521 = vadd.f32 0.0, %v3520
        %v3522 = vpop.f32.mrb[0].mxu0
        %v3523 = vpop.f32.mrb[0].mxu0
        %v3524 = vadd.f32 0.0, %v3523
        %v3525 = vpop.f32.mrb[0].mxu0
        %3526 = vmatprep.mubr.bf16.mxu0 0
        %3527 = vmatmul.mubr.bf16.gmra.mrb[0].mxu0 %v213
        %v3528 = vpop.f32.mrb[0].mxu0
        %v3529 = vadd.f32 0.0, %v3528
        %v3530 = vpop.f32.mrb[0].mxu0
        %v3531 = vpop.f32.mrb[0].mxu0
        %v3532 = vadd.f32 0.0, %v3531
        %v3533 = vpop.f32.mrb[0].mxu0
        %3534 = vmatprep.mubr.bf16.mxu0 0
        %3535 = vmatmul.mubr.bf16.gmra.mrb[0].mxu0 %v214
        %v3536 = vpop.f32.mrb[0].mxu0
        %v3537 = vadd.f32 0.0, %v3536
        %v3538 = vpop.f32.mrb[0].mxu0
        %v3539 = vpop.f32.mrb[0].mxu0
        %v3540 = vadd.f32 0.0, %v3539
        %v3541 = vpop.f32.mrb[0].mxu0
        %3542 = vmatprep.mubr.bf16.mxu0 0
        %3543 = vmatmul.mubr.bf16.gmra.mrb[0].mxu0 %v215
        %v3544 = vpop.f32.mrb[0].mxu0
        %v3545 = vadd.f32 0.0, %v3544
        %v3546 = vpop.f32.mrb[0].mxu0
        %v3547 = vpop.f32.mrb[0].mxu0
        %v3548 = vadd.f32 0.0, %v3547
        %v3549 = vpop.f32.mrb[0].mxu0
        %3550 = vmatprep.mubr.bf16.mxu0 0
        %3551 = vmatmul.mubr.bf16.gmra.mrb[0].mxu0 %v216
        %v3552 = vpop.f32.mrb[0].mxu0
        %v3553 = vadd.f32 0.0, %v3552
        %v3554 = vpop.f32.mrb[0].mxu0
        %v3555 = vpop.f32.mrb[0].mxu0
        %v3556 = vadd.f32 0.0, %v3555
        %v3557 = vpop.f32.mrb[0].mxu0
        %3558 = vmatprep.mubr.bf16.mxu0 0
        %3559 = vmatmul.mubr.bf16.gmra.mrb[0].mxu0 %v217
        %v3560 = vpop.f32.mrb[0].mxu0
        %v3561 = vadd.f32 0.0, %v3560
        %v3562 = vpop.f32.mrb[0].mxu0
        %v3563 = vpop.f32.mrb[0].mxu0
        %v3564 = vadd.f32 0.0, %v3563
        %v3565 = vpop.f32.mrb[0].mxu0
        %3566 = vmatprep.mubr.bf16.mxu0 0
        %3567 = vmatmul.mubr.bf16.gmra.mrb[0].mxu0 %v218
        %v3568 = vpop.f32.mrb[0].mxu0
        %v3569 = vadd.f32 0.0, %v3568
        %v3570 = vpop.f32.mrb[0].mxu0
        %v3571 = vpop.f32.mrb[0].mxu0
        %v3572 = vadd.f32 0.0, %v3571
        %v3573 = vpop.f32.mrb[0].mxu0
        %3574 = vmatprep.mubr.bf16.mxu0 0
        %3575 = vmatmul.mubr.bf16.gmra.mrb[0].mxu0 %v219
        %v3576 = vpop.f32.mrb[0].mxu0
        %v3577 = vadd.f32 0.0, %v3576
        %v3578 = vpop.f32.mrb[0].mxu0
        %v3579 = vpop.f32.mrb[0].mxu0
        %v3580 = vadd.f32 0.0, %v3579
        %v3581 = vpop.f32.mrb[0].mxu0
        %3582 = vmatprep.mubr.bf16.mxu0 0
        %3583 = vmatmul.mubr.bf16.gmra.mrb[0].mxu0 %v220
        %v3584 = vpop.f32.mrb[0].mxu0
        %v3585 = vadd.f32 0.0, %v3584
        %v3586 = vpop.f32.mrb[0].mxu0
        %v3587 = vpop.f32.mrb[0].mxu0
        %v3588 = vadd.f32 0.0, %v3587
        %v3589 = vpop.f32.mrb[0].mxu0
        %3590 = vmatprep.mubr.bf16.mxu0 0
        %3591 = vmatmul.mubr.bf16.gmra.mrb[0].mxu0 %v221
        %v3592 = vpop.f32.mrb[0].mxu0
        %v3593 = vadd.f32 0.0, %v3592
        %v3594 = vpop.f32.mrb[0].mxu0
        %v3595 = vpop.f32.mrb[0].mxu0
        %v3596 = vadd.f32 0.0, %v3595
        %v3597 = vpop.f32.mrb[0].mxu0
        %3598 = vmatprep.mubr.bf16.mxu0 0
        %3599 = vmatmul.mubr.bf16.gmra.mrb[0].mxu0 %v222
        %v3600 = vpop.f32.mrb[0].mxu0
        %v3601 = vadd.f32 0.0, %v3600
        %v3602 = vpop.f32.mrb[0].mxu0
        %v3603 = vpop.f32.mrb[0].mxu0
        %v3604 = vadd.f32 0.0, %v3603
        %v3605 = vpop.f32.mrb[0].mxu0
        %3606 = vmatprep.mubr.bf16.mxu0 0
        %3607 = vmatmul.mubr.bf16.gmra.mrb[0].mxu0 %v223
        %v3608 = vpop.f32.mrb[0].mxu0
        %v3609 = vadd.f32 0.0, %v3608
        %v3610 = vpop.f32.mrb[0].mxu0
        %v3611 = vpop.f32.mrb[0].mxu0
        %v3612 = vadd.f32 0.0, %v3611
        %v3613 = vpop.f32.mrb[0].mxu0
        %3614 = vmatprep.mubr.bf16.mxu0 0
        %3615 = vmatmul.mubr.bf16.gmra.mrb[0].mxu0 %v224
        %v3616 = vpop.f32.mrb[0].mxu0
        %v3617 = vadd.f32 0.0, %v3616
        %v3618 = vpop.f32.mrb[0].mxu0
        %v3619 = vpop.f32.mrb[0].mxu0
        %v3620 = vadd.f32 0.0, %v3619
        %v3621 = vpop.f32.mrb[0].mxu0
        %3622 = vmatprep.mubr.bf16.mxu0 0
        %3623 = vmatmul.mubr.bf16.gmra.mrb[0].mxu0 %v225
        %v3624 = vpop.f32.mrb[0].mxu0
        %v3625 = vadd.f32 0.0, %v3624
        %v3626 = vpop.f32.mrb[0].mxu0
        %v3627 = vpop.f32.mrb[0].mxu0
        %v3628 = vadd.f32 0.0, %v3627
        %v3629 = vpop.f32.mrb[0].mxu0
        %3630 = vmatprep.mubr.bf16.mxu0 0
        %3631 = vmatmul.mubr.bf16.gmra.mrb[0].mxu0 %v226
        %v3632 = vpop.f32.mrb[0].mxu0
        %v3633 = vadd.f32 0.0, %v3632
        %v3634 = vpop.f32.mrb[0].mxu0
        %v3635 = vpop.f32.mrb[0].mxu0
        %v3636 = vadd.f32 0.0, %v3635
        %v3637 = vpop.f32.mrb[0].mxu0
        %3638 = vdwg.mxu0
        %v3639 = vadd.f32 %v3221, %v3385
        %v3640 = vadd.f32 %v3222, %v3388
        %v3641 = vadd.f32 %v3223, %v3393
        %v3642 = vadd.f32 %v3224, %v3396
        %v3643 = vadd.f32 %v3225, %v3401
        %v3644 = vadd.f32 %v3226, %v3404
        %v3645 = vadd.f32 %v3227, %v3409
        %v3646 = vadd.f32 %v3228, %v3412
        %v3647 = vadd.f32 %v3229, %v3417
        %v3648 = vadd.f32 %v3230, %v3420
        %v3649 = vadd.f32 %v3231, %v3425
        %v3650 = vadd.f32 %v3232, %v3428
        %v3651 = vadd.f32 %v3233, %v3433
        %v3652 = vadd.f32 %v3234, %v3436
        %v3653 = vadd.f32 %v3235, %v3441
        %v3654 = vadd.f32 %v3236, %v3444
        %v3655 = vadd.f32 %v3237, %v3449
        %v3656 = vadd.f32 %v3238, %v3452
        %v3657 = vadd.f32 %v3239, %v3457
        %v3658 = vadd.f32 %v3240, %v3460
        %v3659 = vadd.f32 %v3241, %v3465
        %v3660 = vadd.f32 %v3242, %v3468
        %v3661 = vadd.f32 %v3243, %v3473
        %v3662 = vadd.f32 %v3244, %v3476
        %v3663 = vadd.f32 %v3245, %v3481
        %v3664 = vadd.f32 %v3246, %v3484
        %v3665 = vadd.f32 %v3247, %v3489
        %v3666 = vadd.f32 %v3248, %v3492
        %v3667 = vadd.f32 %v3249, %v3497
        %v3668 = vadd.f32 %v3250, %v3500
        %v3669 = vadd.f32 %v3251, %v3505
        %v3670 = vadd.f32 %v3252, %v3508
        %v3671 = vadd.f32 %v3253, %v3513
        %v3672 = vadd.f32 %v3254, %v3516
        %v3673 = vadd.f32 %v3255, %v3521
        %v3674 = vadd.f32 %v3256, %v3524
        %v3675 = vadd.f32 %v3257, %v3529
        %v3676 = vadd.f32 %v3258, %v3532
        %v3677 = vadd.f32 %v3259, %v3537
        %v3678 = vadd.f32 %v3260, %v3540
        %v3679 = vadd.f32 %v3261, %v3545
        %v3680 = vadd.f32 %v3262, %v3548
        %v3681 = vadd.f32 %v3263, %v3553
        %v3682 = vadd.f32 %v3264, %v3556
        %v3683 = vadd.f32 %v3265, %v3561
        %v3684 = vadd.f32 %v3266, %v3564
        %v3685 = vadd.f32 %v3267, %v3569
        %v3686 = vadd.f32 %v3268, %v3572
        %v3687 = vadd.f32 %v3269, %v3577
        %v3688 = vadd.f32 %v3270, %v3580
        %v3689 = vadd.f32 %v3271, %v3585
        %v3690 = vadd.f32 %v3272, %v3588
        %v3691 = vadd.f32 %v3273, %v3593
        %v3692 = vadd.f32 %v3274, %v3596
        %v3693 = vadd.f32 %v3275, %v3601
        %v3694 = vadd.f32 %v3276, %v3604
        %v3695 = vadd.f32 %v3277, %v3609
        %v3696 = vadd.f32 %v3278, %v3612
        %v3697 = vadd.f32 %v3279, %v3617
        %v3698 = vadd.f32 %v3280, %v3620
        %v3699 = vadd.f32 %v3281, %v3625
        %v3700 = vadd.f32 %v3282, %v3628
        %v3701 = vadd.f32 %v3283, %v3633
        %v3702 = vadd.f32 %v3284, %v3636
        %s3703 = scalar_lea.vmem [#allocation4], 384
        %v3704 = vld [vmem:[%s3703] sm:$0xf]
        %v3705 = vld [vmem:[%s3703 + $0x4] sm:$0xf]
        %v3706 = vld [vmem:[%s3703 + $0x8] sm:$0xf]
        %v3707 = vld [vmem:[%s3703 + $0xc] sm:$0xf]
        %v3708 = vld [vmem:[%s3703 + $0x10] sm:$0xf]
        %v3709 = vld [vmem:[%s3703 + $0x14] sm:$0xf]
        %v3710 = vld [vmem:[%s3703 + $0x18] sm:$0xf]
        %v3711 = vld [vmem:[%s3703 + $0x1c] sm:$0xf]
        %v3712 = vld [vmem:[%s3703 + $0x20] sm:$0xf]
        %v3713 = vld [vmem:[%s3703 + $0x24] sm:$0xf]
        %v3714 = vld [vmem:[%s3703 + $0x28] sm:$0xf]
        %v3715 = vld [vmem:[%s3703 + $0x2c] sm:$0xf]
        %v3716 = vld [vmem:[%s3703 + $0x30] sm:$0xf]
        %v3717 = vld [vmem:[%s3703 + $0x34] sm:$0xf]
        %v3718 = vld [vmem:[%s3703 + $0x38] sm:$0xf]
        %v3719 = vld [vmem:[%s3703 + $0x3c] sm:$0xf]
        %v3736 = vunpack.c.l.b16 %v3704
        %v3737 = vunpack.c.l.b16 %v3705
        %v3738 = vunpack.c.l.b16 %v3706
        %v3739 = vunpack.c.l.b16 %v3707
        %v3740 = vunpack.c.l.b16 %v3708
        %v3741 = vunpack.c.l.b16 %v3709
        %v3742 = vunpack.c.l.b16 %v3710
        %v3743 = vunpack.c.l.b16 %v3711
        %v3744 = vunpack.c.l.b16 %v3712
        %v3745 = vunpack.c.l.b16 %v3713
        %v3746 = vunpack.c.l.b16 %v3714
        %v3747 = vunpack.c.l.b16 %v3715
        %v3748 = vunpack.c.l.b16 %v3716
        %v3749 = vunpack.c.l.b16 %v3717
        %v3750 = vunpack.c.l.b16 %v3718
        %v3751 = vunpack.c.l.b16 %v3719
        %v3752 = vpack.c.b16 %v3737, %v3736
        %v3753 = vpack.c.b16 %v3739, %v3738
        %v3754 = vpack.c.b16 %v3741, %v3740
        %v3755 = vpack.c.b16 %v3743, %v3742
        %v3756 = vpack.c.b16 %v3745, %v3744
        %v3757 = vpack.c.b16 %v3747, %v3746
        %v3758 = vpack.c.b16 %v3749, %v3748
        %v3759 = vpack.c.b16 %v3751, %v3750
        %3768 = vmatprep.subr.bf16.mxu0 0
        %3769 = vmatpush1.bf16.msra.mxu0 %v3752
        %3770 = vmatprep.subr.bf16.mxu0 0
        %3771 = vmatpush1.bf16.msra.mxu0 %v3753
        %3772 = vmatprep.subr.bf16.mxu0 0
        %3773 = vmatpush1.bf16.msra.mxu0 %v3754
        %3774 = vmatprep.subr.bf16.mxu0 0
        %3775 = vmatpush1.bf16.msra.mxu0 %v3755
        %3776 = vmatprep.subr.bf16.mxu0 0
        %3777 = vmatpush1.bf16.msra.mxu0 %v3756
        %3778 = vmatprep.subr.bf16.mxu0 0
        %3779 = vmatpush1.bf16.msra.mxu0 %v3757
        %3780 = vmatprep.subr.bf16.mxu0 0
        %3781 = vmatpush1.bf16.msra.mxu0 %v3758
        %3782 = vmatprep.subr.bf16.mxu0 0
        %3783 = vmatpush1.bf16.msra.mxu0 %v3759
        %3784 = vmatprep.subr.bf16.mxu0 0
        %3785 = vmatpush1.bf16.msra.mxu0 0
        %3786 = vmatprep.subr.bf16.mxu0 0
        %3787 = vmatpush1.bf16.msra.mxu0 0
        %3788 = vmatprep.subr.bf16.mxu0 0
        %3789 = vmatpush1.bf16.msra.mxu0 0
        %3790 = vmatprep.subr.bf16.mxu0 0
        %3791 = vmatpush1.bf16.msra.mxu0 0
        %3792 = vmatprep.subr.bf16.mxu0 0
        %3793 = vmatpush1.bf16.msra.mxu0 0
        %3794 = vmatprep.subr.bf16.mxu0 0
        %3795 = vmatpush1.bf16.msra.mxu0 0
        %3796 = vmatprep.subr.bf16.mxu0 0
        %3797 = vmatpush1.bf16.msra.mxu0 0
        %3798 = vmatprep.subr.bf16.mxu0 0
        %3799 = vmatpush1.bf16.msra.mxu0 0
        %3800 = vmatprep.mubr.bf16.mxu0 0
        %3801 = vmatmul.mubr.bf16.gmra.mrb[0].mxu0 %v197
        %v3802 = vpop.f32.mrb[0].mxu0
        %v3803 = vadd.f32 0.0, %v3802
        %v3804 = vpop.f32.mrb[0].mxu0
        %v3805 = vpop.f32.mrb[0].mxu0
        %v3806 = vadd.f32 0.0, %v3805
        %v3807 = vpop.f32.mrb[0].mxu0
        %3808 = vmatprep.mubr.bf16.mxu0 0
        %3809 = vmatmul.mubr.bf16.gmra.mrb[0].mxu0 %v198
        %v3810 = vpop.f32.mrb[0].mxu0
        %v3811 = vadd.f32 0.0, %v3810
        %v3812 = vpop.f32.mrb[0].mxu0
        %v3813 = vpop.f32.mrb[0].mxu0
        %v3814 = vadd.f32 0.0, %v3813
        %v3815 = vpop.f32.mrb[0].mxu0
        %3816 = vmatprep.mubr.bf16.mxu0 0
        %3817 = vmatmul.mubr.bf16.gmra.mrb[0].mxu0 %v199
        %v3818 = vpop.f32.mrb[0].mxu0
        %v3819 = vadd.f32 0.0, %v3818
        %v3820 = vpop.f32.mrb[0].mxu0
        %v3821 = vpop.f32.mrb[0].mxu0
        %v3822 = vadd.f32 0.0, %v3821
        %v3823 = vpop.f32.mrb[0].mxu0
        %3824 = vmatprep.mubr.bf16.mxu0 0
        %3825 = vmatmul.mubr.bf16.gmra.mrb[0].mxu0 %v200
        %v3826 = vpop.f32.mrb[0].mxu0
        %v3827 = vadd.f32 0.0, %v3826
        %v3828 = vpop.f32.mrb[0].mxu0
        %v3829 = vpop.f32.mrb[0].mxu0
        %v3830 = vadd.f32 0.0, %v3829
        %v3831 = vpop.f32.mrb[0].mxu0
        %3832 = vmatprep.mubr.bf16.mxu0 0
        %3833 = vmatmul.mubr.bf16.gmra.mrb[0].mxu0 %v201
        %v3834 = vpop.f32.mrb[0].mxu0
        %v3835 = vadd.f32 0.0, %v3834
        %v3836 = vpop.f32.mrb[0].mxu0
        %v3837 = vpop.f32.mrb[0].mxu0
        %v3838 = vadd.f32 0.0, %v3837
        %v3839 = vpop.f32.mrb[0].mxu0
        %3840 = vmatprep.mubr.bf16.mxu0 0
        %3841 = vmatmul.mubr.bf16.gmra.mrb[0].mxu0 %v202
        %v3842 = vpop.f32.mrb[0].mxu0
        %v3843 = vadd.f32 0.0, %v3842
        %v3844 = vpop.f32.mrb[0].mxu0
        %v3845 = vpop.f32.mrb[0].mxu0
        %v3846 = vadd.f32 0.0, %v3845
        %v3847 = vpop.f32.mrb[0].mxu0
        %3848 = vmatprep.mubr.bf16.mxu0 0
        %3849 = vmatmul.mubr.bf16.gmra.mrb[0].mxu0 %v203
        %v3850 = vpop.f32.mrb[0].mxu0
        %v3851 = vadd.f32 0.0, %v3850
        %v3852 = vpop.f32.mrb[0].mxu0
        %v3853 = vpop.f32.mrb[0].mxu0
        %v3854 = vadd.f32 0.0, %v3853
        %v3855 = vpop.f32.mrb[0].mxu0
        %3856 = vmatprep.mubr.bf16.mxu0 0
        %3857 = vmatmul.mubr.bf16.gmra.mrb[0].mxu0 %v204
        %v3858 = vpop.f32.mrb[0].mxu0
        %v3859 = vadd.f32 0.0, %v3858
        %v3860 = vpop.f32.mrb[0].mxu0
        %v3861 = vpop.f32.mrb[0].mxu0
        %v3862 = vadd.f32 0.0, %v3861
        %v3863 = vpop.f32.mrb[0].mxu0
        %3864 = vmatprep.mubr.bf16.mxu0 0
        %3865 = vmatmul.mubr.bf16.gmra.mrb[0].mxu0 %v205
        %v3866 = vpop.f32.mrb[0].mxu0
        %v3867 = vadd.f32 0.0, %v3866
        %v3868 = vpop.f32.mrb[0].mxu0
        %v3869 = vpop.f32.mrb[0].mxu0
        %v3870 = vadd.f32 0.0, %v3869
        %v3871 = vpop.f32.mrb[0].mxu0
        %3872 = vmatprep.mubr.bf16.mxu0 0
        %3873 = vmatmul.mubr.bf16.gmra.mrb[0].mxu0 %v206
        %v3874 = vpop.f32.mrb[0].mxu0
        %v3875 = vadd.f32 0.0, %v3874
        %v3876 = vpop.f32.mrb[0].mxu0
        %v3877 = vpop.f32.mrb[0].mxu0
        %v3878 = vadd.f32 0.0, %v3877
        %v3879 = vpop.f32.mrb[0].mxu0
        %3880 = vmatprep.mubr.bf16.mxu0 0
        %3881 = vmatmul.mubr.bf16.gmra.mrb[0].mxu0 %v207
        %v3882 = vpop.f32.mrb[0].mxu0
        %v3883 = vadd.f32 0.0, %v3882
        %v3884 = vpop.f32.mrb[0].mxu0
        %v3885 = vpop.f32.mrb[0].mxu0
        %v3886 = vadd.f32 0.0, %v3885
        %v3887 = vpop.f32.mrb[0].mxu0
        %3888 = vmatprep.mubr.bf16.mxu0 0
        %3889 = vmatmul.mubr.bf16.gmra.mrb[0].mxu0 %v208
        %v3890 = vpop.f32.mrb[0].mxu0
        %v3891 = vadd.f32 0.0, %v3890
        %v3892 = vpop.f32.mrb[0].mxu0
        %v3893 = vpop.f32.mrb[0].mxu0
        %v3894 = vadd.f32 0.0, %v3893
        %v3895 = vpop.f32.mrb[0].mxu0
        %3896 = vmatprep.mubr.bf16.mxu0 0
        %3897 = vmatmul.mubr.bf16.gmra.mrb[0].mxu0 %v209
        %v3898 = vpop.f32.mrb[0].mxu0
        %v3899 = vadd.f32 0.0, %v3898
        %v3900 = vpop.f32.mrb[0].mxu0
        %v3901 = vpop.f32.mrb[0].mxu0
        %v3902 = vadd.f32 0.0, %v3901
        %v3903 = vpop.f32.mrb[0].mxu0
        %3904 = vmatprep.mubr.bf16.mxu0 0
        %3905 = vmatmul.mubr.bf16.gmra.mrb[0].mxu0 %v210
        %v3906 = vpop.f32.mrb[0].mxu0
        %v3907 = vadd.f32 0.0, %v3906
        %v3908 = vpop.f32.mrb[0].mxu0
        %v3909 = vpop.f32.mrb[0].mxu0
        %v3910 = vadd.f32 0.0, %v3909
        %v3911 = vpop.f32.mrb[0].mxu0
        %3912 = vmatprep.mubr.bf16.mxu0 0
        %3913 = vmatmul.mubr.bf16.gmra.mrb[0].mxu0 %v211
        %v3914 = vpop.f32.mrb[0].mxu0
        %v3915 = vadd.f32 0.0, %v3914
        %v3916 = vpop.f32.mrb[0].mxu0
        %v3917 = vpop.f32.mrb[0].mxu0
        %v3918 = vadd.f32 0.0, %v3917
        %v3919 = vpop.f32.mrb[0].mxu0
        %3920 = vmatprep.mubr.bf16.mxu0 0
        %3921 = vmatmul.mubr.bf16.gmra.mrb[0].mxu0 %v212
        %v3922 = vpop.f32.mrb[0].mxu0
        %v3923 = vadd.f32 0.0, %v3922
        %v3924 = vpop.f32.mrb[0].mxu0
        %v3925 = vpop.f32.mrb[0].mxu0
        %v3926 = vadd.f32 0.0, %v3925
        %v3927 = vpop.f32.mrb[0].mxu0
        %3928 = vmatprep.mubr.bf16.mxu0 0
        %3929 = vmatmul.mubr.bf16.gmra.mrb[0].mxu0 %v213
        %v3930 = vpop.f32.mrb[0].mxu0
        %v3931 = vadd.f32 0.0, %v3930
        %v3932 = vpop.f32.mrb[0].mxu0
        %v3933 = vpop.f32.mrb[0].mxu0
        %v3934 = vadd.f32 0.0, %v3933
        %v3935 = vpop.f32.mrb[0].mxu0
        %3936 = vmatprep.mubr.bf16.mxu0 0
        %3937 = vmatmul.mubr.bf16.gmra.mrb[0].mxu0 %v214
        %v3938 = vpop.f32.mrb[0].mxu0
        %v3939 = vadd.f32 0.0, %v3938
        %v3940 = vpop.f32.mrb[0].mxu0
        %v3941 = vpop.f32.mrb[0].mxu0
        %v3942 = vadd.f32 0.0, %v3941
        %v3943 = vpop.f32.mrb[0].mxu0
        %3944 = vmatprep.mubr.bf16.mxu0 0
        %3945 = vmatmul.mubr.bf16.gmra.mrb[0].mxu0 %v215
        %v3946 = vpop.f32.mrb[0].mxu0
        %v3947 = vadd.f32 0.0, %v3946
        %v3948 = vpop.f32.mrb[0].mxu0
        %v3949 = vpop.f32.mrb[0].mxu0
        %v3950 = vadd.f32 0.0, %v3949
        %v3951 = vpop.f32.mrb[0].mxu0
        %3952 = vmatprep.mubr.bf16.mxu0 0
        %3953 = vmatmul.mubr.bf16.gmra.mrb[0].mxu0 %v216
        %v3954 = vpop.f32.mrb[0].mxu0
        %v3955 = vadd.f32 0.0, %v3954
        %v3956 = vpop.f32.mrb[0].mxu0
        %v3957 = vpop.f32.mrb[0].mxu0
        %v3958 = vadd.f32 0.0, %v3957
        %v3959 = vpop.f32.mrb[0].mxu0
        %3960 = vmatprep.mubr.bf16.mxu0 0
        %3961 = vmatmul.mubr.bf16.gmra.mrb[0].mxu0 %v217
        %v3962 = vpop.f32.mrb[0].mxu0
        %v3963 = vadd.f32 0.0, %v3962
        %v3964 = vpop.f32.mrb[0].mxu0
        %v3965 = vpop.f32.mrb[0].mxu0
        %v3966 = vadd.f32 0.0, %v3965
        %v3967 = vpop.f32.mrb[0].mxu0
        %3968 = vmatprep.mubr.bf16.mxu0 0
        %3969 = vmatmul.mubr.bf16.gmra.mrb[0].mxu0 %v218
        %v3970 = vpop.f32.mrb[0].mxu0
        %v3971 = vadd.f32 0.0, %v3970
        %v3972 = vpop.f32.mrb[0].mxu0
        %v3973 = vpop.f32.mrb[0].mxu0
        %v3974 = vadd.f32 0.0, %v3973
        %v3975 = vpop.f32.mrb[0].mxu0
        %3976 = vmatprep.mubr.bf16.mxu0 0
        %3977 = vmatmul.mubr.bf16.gmra.mrb[0].mxu0 %v219
        %v3978 = vpop.f32.mrb[0].mxu0
        %v3979 = vadd.f32 0.0, %v3978
        %v3980 = vpop.f32.mrb[0].mxu0
        %v3981 = vpop.f32.mrb[0].mxu0
        %v3982 = vadd.f32 0.0, %v3981
        %v3983 = vpop.f32.mrb[0].mxu0
        %3984 = vmatprep.mubr.bf16.mxu0 0
        %3985 = vmatmul.mubr.bf16.gmra.mrb[0].mxu0 %v220
        %v3986 = vpop.f32.mrb[0].mxu0
        %v3987 = vadd.f32 0.0, %v3986
        %v3988 = vpop.f32.mrb[0].mxu0
        %v3989 = vpop.f32.mrb[0].mxu0
        %v3990 = vadd.f32 0.0, %v3989
        %v3991 = vpop.f32.mrb[0].mxu0
        %3992 = vmatprep.mubr.bf16.mxu0 0
        %3993 = vmatmul.mubr.bf16.gmra.mrb[0].mxu0 %v221
        %v3994 = vpop.f32.mrb[0].mxu0
        %v3995 = vadd.f32 0.0, %v3994
        %v3996 = vpop.f32.mrb[0].mxu0
        %v3997 = vpop.f32.mrb[0].mxu0
        %v3998 = vadd.f32 0.0, %v3997
        %v3999 = vpop.f32.mrb[0].mxu0
        %4000 = vmatprep.mubr.bf16.mxu0 0
        %4001 = vmatmul.mubr.bf16.gmra.mrb[0].mxu0 %v222
        %v4002 = vpop.f32.mrb[0].mxu0
        %v4003 = vadd.f32 0.0, %v4002
        %v4004 = vpop.f32.mrb[0].mxu0
        %v4005 = vpop.f32.mrb[0].mxu0
        %v4006 = vadd.f32 0.0, %v4005
        %v4007 = vpop.f32.mrb[0].mxu0
        %4008 = vmatprep.mubr.bf16.mxu0 0
        %4009 = vmatmul.mubr.bf16.gmra.mrb[0].mxu0 %v223
        %v4010 = vpop.f32.mrb[0].mxu0
        %v4011 = vadd.f32 0.0, %v4010
        %v4012 = vpop.f32.mrb[0].mxu0
        %v4013 = vpop.f32.mrb[0].mxu0
        %v4014 = vadd.f32 0.0, %v4013
        %v4015 = vpop.f32.mrb[0].mxu0
        %4016 = vmatprep.mubr.bf16.mxu0 0
        %4017 = vmatmul.mubr.bf16.gmra.mrb[0].mxu0 %v224
        %v4018 = vpop.f32.mrb[0].mxu0
        %v4019 = vadd.f32 0.0, %v4018
        %v4020 = vpop.f32.mrb[0].mxu0
        %v4021 = vpop.f32.mrb[0].mxu0
        %v4022 = vadd.f32 0.0, %v4021
        %v4023 = vpop.f32.mrb[0].mxu0
        %4024 = vmatprep.mubr.bf16.mxu0 0
        %4025 = vmatmul.mubr.bf16.gmra.mrb[0].mxu0 %v225
        %v4026 = vpop.f32.mrb[0].mxu0
        %v4027 = vadd.f32 0.0, %v4026
        %v4028 = vpop.f32.mrb[0].mxu0
        %v4029 = vpop.f32.mrb[0].mxu0
        %v4030 = vadd.f32 0.0, %v4029
        %v4031 = vpop.f32.mrb[0].mxu0
        %4032 = vmatprep.mubr.bf16.mxu0 0
        %4033 = vmatmul.mubr.bf16.gmra.mrb[0].mxu0 %v226
        %v4034 = vpop.f32.mrb[0].mxu0
        %v4035 = vadd.f32 0.0, %v4034
        %v4036 = vpop.f32.mrb[0].mxu0
        %v4037 = vpop.f32.mrb[0].mxu0
        %v4038 = vadd.f32 0.0, %v4037
        %v4039 = vpop.f32.mrb[0].mxu0
        %4040 = vmatprep.mubr.bf16.mxu0 0
        %4041 = vmatmul.mubr.bf16.gmra.mrb[0].mxu0 %v227
        %v4042 = vpop.f32.mrb[0].mxu0
        %v4043 = vadd.f32 0.0, %v4042
        %v4044 = vpop.f32.mrb[0].mxu0
        %v4045 = vpop.f32.mrb[0].mxu0
        %v4046 = vadd.f32 0.0, %v4045
        %v4047 = vpop.f32.mrb[0].mxu0
        %4048 = vmatprep.mubr.bf16.mxu0 0
        %4049 = vmatmul.mubr.bf16.gmra.mrb[0].mxu0 %v228
        %v4050 = vpop.f32.mrb[0].mxu0
        %v4051 = vadd.f32 0.0, %v4050
        %v4052 = vpop.f32.mrb[0].mxu0
        %v4053 = vpop.f32.mrb[0].mxu0
        %v4054 = vadd.f32 0.0, %v4053
        %v4055 = vpop.f32.mrb[0].mxu0
        %4056 = vdwg.mxu0
        %v4057 = vadd.f32 %v3639, %v3803
        %v4058 = vadd.f32 %v3640, %v3806
        %v4059 = vadd.f32 %v3641, %v3811
        %v4060 = vadd.f32 %v3642, %v3814
        %v4061 = vadd.f32 %v3643, %v3819
        %v4062 = vadd.f32 %v3644, %v3822
        %v4063 = vadd.f32 %v3645, %v3827
        %v4064 = vadd.f32 %v3646, %v3830
        %v4065 = vadd.f32 %v3647, %v3835
        %v4066 = vadd.f32 %v3648, %v3838
        %v4067 = vadd.f32 %v3649, %v3843
        %v4068 = vadd.f32 %v3650, %v3846
        %v4069 = vadd.f32 %v3651, %v3851
        %v4070 = vadd.f32 %v3652, %v3854
        %v4071 = vadd.f32 %v3653, %v3859
        %v4072 = vadd.f32 %v3654, %v3862
        %v4073 = vadd.f32 %v3655, %v3867
        %v4074 = vadd.f32 %v3656, %v3870
        %v4075 = vadd.f32 %v3657, %v3875
        %v4076 = vadd.f32 %v3658, %v3878
        %v4077 = vadd.f32 %v3659, %v3883
        %v4078 = vadd.f32 %v3660, %v3886
        %v4079 = vadd.f32 %v3661, %v3891
        %v4080 = vadd.f32 %v3662, %v3894
        %v4081 = vadd.f32 %v3663, %v3899
        %v4082 = vadd.f32 %v3664, %v3902
        %v4083 = vadd.f32 %v3665, %v3907
        %v4084 = vadd.f32 %v3666, %v3910
        %v4085 = vadd.f32 %v3667, %v3915
        %v4086 = vadd.f32 %v3668, %v3918
        %v4087 = vadd.f32 %v3669, %v3923
        %v4088 = vadd.f32 %v3670, %v3926
        %v4089 = vadd.f32 %v3671, %v3931
        %v4090 = vadd.f32 %v3672, %v3934
        %v4091 = vadd.f32 %v3673, %v3939
        %v4092 = vadd.f32 %v3674, %v3942
        %v4093 = vadd.f32 %v3675, %v3947
        %v4094 = vadd.f32 %v3676, %v3950
        %v4095 = vadd.f32 %v3677, %v3955
        %v4096 = vadd.f32 %v3678, %v3958
        %v4097 = vadd.f32 %v3679, %v3963
        %v4098 = vadd.f32 %v3680, %v3966
        %v4099 = vadd.f32 %v3681, %v3971
        %v4100 = vadd.f32 %v3682, %v3974
        %v4101 = vadd.f32 %v3683, %v3979
        %v4102 = vadd.f32 %v3684, %v3982
        %v4103 = vadd.f32 %v3685, %v3987
        %v4104 = vadd.f32 %v3686, %v3990
        %v4105 = vadd.f32 %v3687, %v3995
        %v4106 = vadd.f32 %v3688, %v3998
        %v4107 = vadd.f32 %v3689, %v4003
        %v4108 = vadd.f32 %v3690, %v4006
        %v4109 = vadd.f32 %v3691, %v4011
        %v4110 = vadd.f32 %v3692, %v4014
        %v4111 = vadd.f32 %v3693, %v4019
        %v4112 = vadd.f32 %v3694, %v4022
        %v4113 = vadd.f32 %v3695, %v4027
        %v4114 = vadd.f32 %v3696, %v4030
        %v4115 = vadd.f32 %v3697, %v4035
        %v4116 = vadd.f32 %v3698, %v4038
        %v4117 = vadd.f32 %v3699, %v4043
        %v4118 = vadd.f32 %v3700, %v4046
        %v4119 = vadd.f32 %v3701, %v4051
        %v4120 = vadd.f32 %v3702, %v4054
        %v4121 = vld [vmem:[%s2] sm:$0x1]
        %v4123 = vlaneseq
        %v4124 = vshrl.u32 %v4123, 7
        %v4125 = vsub.s32 0, %v4124
        %v4126 = vrot.slane %v4121, %v4125
        %v4128 = vadd.f32 %v4057, %v4126
        %v4129 = vadd.f32 %v4058, %v4126
        %v4130 = vadd.f32 %v4059, %v4126
        %v4131 = vadd.f32 %v4060, %v4126
        %v4132 = vadd.f32 %v4061, %v4126
        %v4133 = vadd.f32 %v4062, %v4126
        %v4134 = vadd.f32 %v4063, %v4126
        %v4135 = vadd.f32 %v4064, %v4126
        %v4136 = vadd.f32 %v4065, %v4126
        %v4137 = vadd.f32 %v4066, %v4126
        %v4138 = vadd.f32 %v4067, %v4126
        %v4139 = vadd.f32 %v4068, %v4126
        %v4140 = vadd.f32 %v4069, %v4126
        %v4141 = vadd.f32 %v4070, %v4126
        %v4142 = vadd.f32 %v4071, %v4126
        %v4143 = vadd.f32 %v4072, %v4126
        %v4144 = vadd.f32 %v4073, %v4126
        %v4145 = vadd.f32 %v4074, %v4126
        %v4146 = vadd.f32 %v4075, %v4126
        %v4147 = vadd.f32 %v4076, %v4126
        %v4148 = vadd.f32 %v4077, %v4126
        %v4149 = vadd.f32 %v4078, %v4126
        %v4150 = vadd.f32 %v4079, %v4126
        %v4151 = vadd.f32 %v4080, %v4126
        %v4152 = vadd.f32 %v4081, %v4126
        %v4153 = vadd.f32 %v4082, %v4126
        %v4154 = vadd.f32 %v4083, %v4126
        %v4155 = vadd.f32 %v4084, %v4126
        %v4156 = vadd.f32 %v4085, %v4126
        %v4157 = vadd.f32 %v4086, %v4126
        %v4158 = vadd.f32 %v4087, %v4126
        %v4159 = vadd.f32 %v4088, %v4126
        %v4160 = vadd.f32 %v4089, %v4126
        %v4161 = vadd.f32 %v4090, %v4126
        %v4162 = vadd.f32 %v4091, %v4126
        %v4163 = vadd.f32 %v4092, %v4126
        %v4164 = vadd.f32 %v4093, %v4126
        %v4165 = vadd.f32 %v4094, %v4126
        %v4166 = vadd.f32 %v4095, %v4126
        %v4167 = vadd.f32 %v4096, %v4126
        %v4168 = vadd.f32 %v4097, %v4126
        %v4169 = vadd.f32 %v4098, %v4126
        %v4170 = vadd.f32 %v4099, %v4126
        %v4171 = vadd.f32 %v4100, %v4126
        %v4172 = vadd.f32 %v4101, %v4126
        %v4173 = vadd.f32 %v4102, %v4126
        %v4174 = vadd.f32 %v4103, %v4126
        %v4175 = vadd.f32 %v4104, %v4126
        %v4176 = vadd.f32 %v4105, %v4126
        %v4177 = vadd.f32 %v4106, %v4126
        %v4178 = vadd.f32 %v4107, %v4126
        %v4179 = vadd.f32 %v4108, %v4126
        %v4180 = vadd.f32 %v4109, %v4126
        %v4181 = vadd.f32 %v4110, %v4126
        %v4182 = vadd.f32 %v4111, %v4126
        %v4183 = vadd.f32 %v4112, %v4126
        %v4184 = vadd.f32 %v4113, %v4126
        %v4185 = vadd.f32 %v4114, %v4126
        %v4186 = vadd.f32 %v4115, %v4126
        %v4187 = vadd.f32 %v4116, %v4126
        %v4188 = vadd.f32 %v4117, %v4126
        %v4189 = vadd.f32 %v4118, %v4126
        %v4190 = vadd.f32 %v4119, %v4126
        %v4191 = vadd.f32 %v4120, %v4126
        %4192 = vst [vmem:[%s151] sm:$0xff] %v4128
        %4193 = vst [vmem:[%s151 + $0x8] sm:$0xff] %v4129
        %4194 = vst [vmem:[%s151 + $0x10] sm:$0xff] %v4130
        %4195 = vst [vmem:[%s151 + $0x18] sm:$0xff] %v4131
        %4196 = vst [vmem:[%s151 + $0x20] sm:$0xff] %v4132
        %4197 = vst [vmem:[%s151 + $0x28] sm:$0xff] %v4133
        %4198 = vst [vmem:[%s151 + $0x30] sm:$0xff] %v4134
        %4199 = vst [vmem:[%s151 + $0x38] sm:$0xff] %v4135
        %4200 = vst [vmem:[%s151 + $0x40] sm:$0xff] %v4136
        %4201 = vst [vmem:[%s151 + $0x48] sm:$0xff] %v4137
        %4202 = vst [vmem:[%s151 + $0x50] sm:$0xff] %v4138
        %4203 = vst [vmem:[%s151 + $0x58] sm:$0xff] %v4139
        %4204 = vst [vmem:[%s151 + $0x60] sm:$0xff] %v4140
        %4205 = vst [vmem:[%s151 + $0x68] sm:$0xff] %v4141
        %4206 = vst [vmem:[%s151 + $0x70] sm:$0xff] %v4142
        %4207 = vst [vmem:[%s151 + $0x78] sm:$0xff] %v4143
        %4208 = vst [vmem:[%s151 + $0x80] sm:$0xff] %v4144
        %4209 = vst [vmem:[%s151 + $0x88] sm:$0xff] %v4145
        %4210 = vst [vmem:[%s151 + $0x90] sm:$0xff] %v4146
        %4211 = vst [vmem:[%s151 + $0x98] sm:$0xff] %v4147
        %4212 = vst [vmem:[%s151 + $0xa0] sm:$0xff] %v4148
        %4213 = vst [vmem:[%s151 + $0xa8] sm:$0xff] %v4149
        %4214 = vst [vmem:[%s151 + $0xb0] sm:$0xff] %v4150
        %4215 = vst [vmem:[%s151 + $0xb8] sm:$0xff] %v4151
        %4216 = vst [vmem:[%s151 + $0xc0] sm:$0xff] %v4152
        %4217 = vst [vmem:[%s151 + $0xc8] sm:$0xff] %v4153
        %4218 = vst [vmem:[%s151 + $0xd0] sm:$0xff] %v4154
        %4219 = vst [vmem:[%s151 + $0xd8] sm:$0xff] %v4155
        %4220 = vst [vmem:[%s151 + $0xe0] sm:$0xff] %v4156
        %4221 = vst [vmem:[%s151 + $0xe8] sm:$0xff] %v4157
        %4222 = vst [vmem:[%s151 + $0xf0] sm:$0xff] %v4158
        %4223 = vst [vmem:[%s151 + $0xf8] sm:$0xff] %v4159
        %4224 = vst [vmem:[%s151 + $0x100] sm:$0xff] %v4160
        %4225 = vst [vmem:[%s151 + $0x108] sm:$0xff] %v4161
        %4226 = vst [vmem:[%s151 + $0x110] sm:$0xff] %v4162
        %4227 = vst [vmem:[%s151 + $0x118] sm:$0xff] %v4163
        %4228 = vst [vmem:[%s151 + $0x120] sm:$0xff] %v4164
        %4229 = vst [vmem:[%s151 + $0x128] sm:$0xff] %v4165
        %4230 = vst [vmem:[%s151 + $0x130] sm:$0xff] %v4166
        %4231 = vst [vmem:[%s151 + $0x138] sm:$0xff] %v4167
        %4232 = vst [vmem:[%s151 + $0x140] sm:$0xff] %v4168
        %4233 = vst [vmem:[%s151 + $0x148] sm:$0xff] %v4169
        %4234 = vst [vmem:[%s151 + $0x150] sm:$0xff] %v4170
        %4235 = vst [vmem:[%s151 + $0x158] sm:$0xff] %v4171
        %4236 = vst [vmem:[%s151 + $0x160] sm:$0xff] %v4172
        %4237 = vst [vmem:[%s151 + $0x168] sm:$0xff] %v4173
        %4238 = vst [vmem:[%s151 + $0x170] sm:$0xff] %v4174
        %4239 = vst [vmem:[%s151 + $0x178] sm:$0xff] %v4175
        %4240 = vst [vmem:[%s151 + $0x180] sm:$0xff] %v4176
        %4241 = vst [vmem:[%s151 + $0x188] sm:$0xff] %v4177
        %4242 = vst [vmem:[%s151 + $0x190] sm:$0xff] %v4178
        %4243 = vst [vmem:[%s151 + $0x198] sm:$0xff] %v4179
        %4244 = vst [vmem:[%s151 + $0x1a0] sm:$0xff] %v4180
        %4245 = vst [vmem:[%s151 + $0x1a8] sm:$0xff] %v4181
        %4246 = vst [vmem:[%s151 + $0x1b0] sm:$0xff] %v4182
        %4247 = vst [vmem:[%s151 + $0x1b8] sm:$0xff] %v4183
        %4248 = vst [vmem:[%s151 + $0x1c0] sm:$0xff] %v4184
        %4249 = vst [vmem:[%s151 + $0x1c8] sm:$0xff] %v4185
        %4250 = vst [vmem:[%s151 + $0x1d0] sm:$0xff] %v4186
        %4251 = vst [vmem:[%s151 + $0x1d8] sm:$0xff] %v4187
        %4252 = vst [vmem:[%s151 + $0x1e0] sm:$0xff] %v4188
        %4253 = vst [vmem:[%s151 + $0x1e8] sm:$0xff] %v4189
        %4254 = vst [vmem:[%s151 + $0x1f0] sm:$0xff] %v4190
        %4255 = vst [vmem:[%s151 + $0x1f8] sm:$0xff] %v4191
        %s4256 = sand.u32 %s82, 1
        %s4257 = scalar_lea.sflag [#allocation6], %s4256
        %s4258 = sand.u32 %s82, 1
        %s4259 = smul.addr %s4258, 512
        %s4260 = scalar_lea.vmem [#allocation7], %s4259
        // Predicated region
        $region41: #{tpu_custom_call.1} parent=27 // pred_check
          %p4261 = pneg %p92
        $region42: #{tpu_custom_call.1} parent=27 // pred_check_branch
          %4263 = sbr.rel (%p4261) target = $region44
        $region43: #{tpu_custom_call.1} parent=27 // pred_region
          %s4264 = smul.u32 16, %s23
          %s4266 = ssub.s32 8192, 8192
          %4267 = vsyncadd %s4257, %s4266
          %s4268 = smul.addr %s4264, 4
          %s4269 = smul.addr %s22, 64
          %s4270 = sadd.s32 %s4268, %s4269
          %s4271 = smul.addr %s4270, 128
          %s4272 = scalar_lea.hbm %s3, %s4271
          %s4273 = sshll.u32 %s4260, 4
          %s4274 = int_to_ptr.vmem [resolvable:$true] %s4273
          %4279 = dma.vmem_to_hbm [thread:$0]  %s4274, 8192, %s4272, %s4257, 128, 128, 8
        $region44: #{tpu_custom_call.1} parent=27 // pred_fallthru
          _
      $region28: #{tpu_custom_call.1} parent=5 // pred_fallthru
        _
      %p4280 = scmp.le.s32.totalorder 2, %s13
      // Predicated region
      $region45: #{tpu_custom_call.1} parent=5 // pred_check
        %p4281 = pneg %p4280
      $region46: #{tpu_custom_call.1} parent=5 // pred_check_branch
        %4283 = sbr.rel (%p4281) target = $region48
      $region47: #{tpu_custom_call.1} parent=5 // pred_region
        %s4284 = ssub.s32 %s13, 2
        // Predicated region
        $region49: #{tpu_custom_call.1} parent=47 // pred_check
          %p4285 = pneg %p98
        $region50: #{tpu_custom_call.1} parent=47 // pred_check_branch
          %4287 = sbr.rel (%p4285) target = $region52
        $region51: #{tpu_custom_call.1} parent=47 // pred_region
          %s4288 = sand.u32 %s83, 1
          %s4289 = scalar_lea.sflag [#allocation6], %s4288
          %s4290 = sand.u32 %s83, 1
          %s4291 = smul.addr %s4290, 512
          %s4292 = scalar_lea.vmem [#allocation7], %s4291
          %4293 = dma.done %s4289, 8192
        $region52: #{tpu_custom_call.1} parent=47 // pred_fallthru
          _
      $region48: #{tpu_custom_call.1} parent=5 // pred_fallthru
        _
    $region6: #{tpu_custom_call.1} parent=1 // loop_footer
      %s17 = sadd.s32 1, %s13
    $region7: #{tpu_custom_call.1} parent=1 // loop_footer_branch
      %12 = sbr.rel target = $region3
    $region8: #{tpu_custom_call.1} parent=1 // loop_exit
      _
    %4294 = vsyncpa [#allocation5], 1
    %s4295 = scalar_lea.sflag [#allocation5], 1
    %4296 = vsyncpa %s4295, 1
    %4297 = vsyncpa [#allocation6], 1
    %s4298 = scalar_lea.sflag [#allocation6], 1
    %4299 = vsyncpa %s4298, 1
  %4300 = vsyncmov [#allocation3]
  %s4301 = vpop.sfrf %4300
  %p4302 = scmp.eq.s32.totalorder %s4301, 0
  %p4303 = pneg %p4302
  %4305 = shalt.err (%p4303)
  %s4306 = scalar_lea.sflag [#allocation3], 1
  %4307 = vsyncmov %s4306
  %s4308 = vpop.sfrf %4307
  %p4309 = scmp.eq.s32.totalorder %s4308, 0
  %p4310 = pneg %p4309
  %4312 = shalt.err (%p4310)

</llo_original>
